<compile_context>
chip_gen: v7x
topology: tpu7x:2x2x1
jax: 0.10.0
libtpu: 0.0.40
codegen_flags: <defaults>
</compile_context>

<pallas_src>
import functools

import jax
import jax.numpy as jnp
from jax.experimental import pallas as pl
from jax.experimental.pallas import tpu as pltpu

# Fixed by the module (fc1 expects 32*8*8 features -> 3x32x32 input).
H1, W1, C1, O1 = 32, 32, 3, 16        # conv1 stage
H2, W2, C2, O2 = 16, 16, 16, 32       # conv2 stage (after first pool)
FC1, FC2 = 128, 10

K1 = 128                              # (W1 + 2) * C1 = 102, zero-padded to 128
K2 = (W2 + 2) * C2                    # 288  (conv2 padded-row width)
N1 = W1 * O1                          # 512  conv1 output cols (w*16 + o)
N2 = W2 * O2                          # 512  conv2 output cols (w*32 + o)
P1 = K2                               # 288  pool1 output cols (halo-ed conv2 layout)
P2 = (W2 // 2) * O2                   # 256  pool2 output cols (w'*32 + o)
FLAT = (H2 // 2) * P2                 # 2048 flattened fc1 input
FC2_PAD = 128                         # fc2 output lanes (padded from 10)


# ----------------------------------------------------------------------------
# Fused kernel: B images per grid step, everything stays in VMEM / vregs.
# Activation row layout everywhere: row index = h * B + b  (batch-inner).
# ----------------------------------------------------------------------------
def _cifar10_fused_kernel(xp_ref, w1_ref, b1_ref, ce1_ref, co1_ref,
                          w2_ref, b2_ref, ce2_ref, co2_ref,
                          wfc1_ref, bfc1_ref, wfc2_ref, bfc2_ref, out_ref):
    f32 = jnp.float32
    B = xp_ref.shape[1]                         # (rows, B, cols) batch-inner
    cdt = w1_ref.dtype                          # compute dtype (f32 or bf16)

    def mm(x, w):
        return jnp.dot(x.astype(cdt), w, preferred_element_type=f32)

    def pool_vertical(x, rows, cols):
        # rows ordered h*B+b: pair rows (2h', 2h'+1) -> pure VPU max, no matmul.
        r = x.reshape(rows // 2, 2, B, cols)
        return jnp.maximum(r[:, 0], r[:, 1]).reshape((rows // 2) * B, cols)

    # ---- conv1 (3x3, pad=1) + bias + ReLU: 3 banded matmuls, M = B*32 -------
    acc1 = mm(xp_ref[0:H1].reshape(H1 * B, K1), w1_ref[0])
    acc1 = acc1 + mm(xp_ref[1:H1 + 1].reshape(H1 * B, K1), w1_ref[1])
    acc1 = acc1 + mm(xp_ref[2:H1 + 2].reshape(H1 * B, K1), w1_ref[2])
    acc1 = jnp.maximum(acc1 + b1_ref[...], 0.0)                 # (B*32, 512)

    # ---- maxpool #1: VPU vertical max + hoisted 0/1 selection matmuls ------
    vert1 = pool_vertical(acc1, H1, N1)                         # (B*16, 512)
    pool1 = jnp.maximum(mm(vert1, ce1_ref[...]),
                        mm(vert1, co1_ref[...]))                # (B*16, 288) col-halo'd

    # zero row-halo for conv2, kept as an SSA value (never leaves VMEM)
    zrow = jnp.zeros((1, B, K2), pool1.dtype)
    p2 = jnp.concatenate([zrow, pool1.reshape(H2, B, K2), zrow], axis=0)  # (18,B,288)

    # ---- conv2 (3x3, pad=1) + bias + ReLU: 3 banded matmuls, M = B*16 -------
    acc2 = mm(p2[0:H2].reshape(H2 * B, K2), w2_ref[0])
    acc2 = acc2 + mm(p2[1:H2 + 1].reshape(H2 * B, K2), w2_ref[1])
    acc2 = acc2 + mm(p2[2:H2 + 2].reshape(H2 * B, K2), w2_ref[2])
    acc2 = jnp.maximum(acc2 + b2_ref[...], 0.0)                 # (B*16, 512)

    # ---- maxpool #2 --------------------------------------------------------
    vert2 = pool_vertical(acc2, H2, N2)                         # (B*8, 512)
    pool2 = jnp.maximum(mm(vert2, ce2_ref[...]),
                        mm(vert2, co2_ref[...]))                # (B*8, 256)

    # ---- flatten (lane concat of 8 tile-aligned row groups) + fc1 + fc2 ----
    flat = jnp.concatenate(
        [pool2[h * B:(h + 1) * B] for h in range(H2 // 2)], axis=-1)  # (B, 2048)
    fc1 = jnp.maximum(mm(flat, wfc1_ref[...]) + bfc1_ref[...], 0.0)    # (B, 128)
    out_ref[...] = (mm(fc1, wfc2_ref[...]) + bfc2_ref[...]).astype(out_ref.dtype)


# ----------------------------------------------------------------------------
# One-time weight / selection-matrix repacking (outside the per-step forward).
# ----------------------------------------------------------------------------
def _banded_conv_weight(conv_w, width):
    """(O, C, 3, 3) OIHW -> (3, (width+2)*C, width*O) banded matrices so that
    out[h, w*O+o] = sum_kh x_padded_row[h+kh] @ banded[kh]."""
    O, C, KH, KW = conv_w.shape
    mats = []
    for kh in range(KH):
        m = jnp.zeros(((width + 2) * C, width * O), jnp.float32)
        for kw in range(KW):
            eye = jnp.eye(width + 2, width, k=-kw, dtype=jnp.float32)
            tap = conv_w[:, :, kh, kw].T.astype(jnp.float32)      # (C, O)
            m = m + jnp.kron(eye, tap)
        mats.append(m)
    return jnp.stack(mats, axis=0)


def _halfpool_cols(width_in, chans, parity):
    """0/1 matrix selecting column w = 2*w' + parity (same channel) for the
    horizontal half of a 2x2 max-pool on a (rows, width_in*chans) tile."""
    cols_in = width_in * chans
    cols_out = (width_in // 2) * chans
    i = jax.lax.broadcasted_iota(jnp.int32, (cols_in, cols_out), 0)
    j = jax.lax.broadcasted_iota(jnp.int32, (cols_in, cols_out), 1)
    sel = i == (2 * (j // chans) + parity) * chans + (j % chans)
    return sel.astype(jnp.float32)


def prepare_params(p, compute_dtype=jnp.float32):
    """Repack PyTorch-layout weights once.  Use compute_dtype=jnp.bfloat16 on
    v5e (MXU-bound after batching); biases / accumulation stay f32."""
    cdt = compute_dtype
    w1 = _banded_conv_weight(p["conv1_w"], W1)                    # (3, 102, 512)
    w1 = jnp.pad(w1, ((0, 0), (0, K1 - (W1 + 2) * C1), (0, 0)))   # K pad -> 128
    w2 = _banded_conv_weight(p["conv2_w"], W2)                    # (3, 288, 512)
    ce1 = jnp.pad(_halfpool_cols(W1, O1, 0), ((0, 0), (O1, O1)))  # (512, 288) + halo
    co1 = jnp.pad(_halfpool_cols(W1, O1, 1), ((0, 0), (O1, O1)))
    ce2 = _halfpool_cols(W2, O2, 0)                               # (512, 256)
    co2 = _halfpool_cols(W2, O2, 1)
    # fc1 weight permuted to our (h, w, c) flatten order (replaces the
    # per-forward NHWC->NCHW activation transpose) and flattened to (2048,128).
    wfc1 = p["fc1_w"].reshape(FC1, O2, H2 // 2, W2 // 2)          # (j, c, h, w)
    wfc1 = jnp.transpose(wfc1, (2, 3, 1, 0)).reshape(FLAT, FC1)   # (2048, 128)
    wfc2 = jnp.zeros((FC1, FC2_PAD), jnp.float32).at[:, :FC2].set(p["fc2_w"].T)
    bfc2 = jnp.zeros((1, FC2_PAD), jnp.float32).at[:, :FC2].set(p["fc2_b"])
    return {
        "w1": w1.astype(cdt),
        "b1": jnp.tile(p["conv1_b"], W1).reshape(1, N1),
        "ce1": ce1.astype(cdt), "co1": co1.astype(cdt),
        "w2": w2.astype(cdt),
        "b2": jnp.tile(p["conv2_b"], W2).reshape(1, N2),
        "ce2": ce2.astype(cdt), "co2": co2.astype(cdt),
        "wfc1": wfc1.astype(cdt), "bfc1": p["fc1_b"].reshape(1, FC1),
        "wfc2": wfc2.astype(cdt), "bfc2": bfc2,
    }


# ----------------------------------------------------------------------------
# Forward pass: one pallas_call for the whole network.
# ----------------------------------------------------------------------------
def _pack_input(x_nchw, n_pad, dtype):
    # Batch-inner padded layout (H1+2, n_pad, K1); tiny one-time XLA prep op.
    n = x_nchw.shape[0]
    x = jnp.pad(x_nchw, ((0, n_pad - n), (0, 0), (0, 0), (0, 0)))
    x = jnp.transpose(x, (0, 2, 3, 1))                       # NHWC
    x = jnp.pad(x, ((0, 0), (1, 1), (1, 1), (0, 0)))         # spatial halo
    x = jnp.transpose(x, (1, 0, 2, 3))                       # (34, n_pad, 34, 3)
    x = x.reshape(H1 + 2, n_pad, (W1 + 2) * C1)              # (34, n_pad, 102)
    x = jnp.pad(x, ((0, 0), (0, 0), (0, K1 - (W1 + 2) * C1)))  # lane pad -> 128
    return x.astype(dtype)


@functools.partial(jax.jit, static_argnames=("batch_block",))
def cifar10nn_forward(x_nchw, pp, batch_block=8):
    assert batch_block % 8 == 0 and batch_block > 0
    n = x_nchw.shape[0]
    B = batch_block
    n_pad = -(-n // B) * B
    cdt = pp["w1"].dtype
    xp = _pack_input(x_nchw, n_pad, cdt)

    def cspec(shape):                                # resident, constant block
        zero = (0,) * len(shape)
        return pl.BlockSpec(shape, lambda i, _z=zero: _z)

    out = pl.pallas_call(
        _cifar10_fused_kernel,
        out_shape=jax.ShapeDtypeStruct((n_pad, FC2_PAD), jnp.float32),
        grid=(n_pad // B,),
        in_specs=[
            pl.BlockSpec((H1 + 2, B, K1), lambda i: (0, i, 0)),   # input slab
            cspec((3, K1, N1)), cspec((1, N1)),                   # conv1
            cspec((N1, P1)), cspec((N1, P1)),                     # pool1 select
            cspec((3, K2, N2)), cspec((1, N2)),                   # conv2
            cspec((N2, P2)), cspec((N2, P2)),                     # pool2 select
            cspec((FLAT, FC1)), cspec((1, FC1)),                  # fc1
            cspec((FC1, FC2_PAD)), cspec((1, FC2_PAD)),           # fc2 (padded)
        ],
        out_specs=pl.BlockSpec((B, FC2_PAD), lambda i: (i, 0)),
        compiler_params=pltpu.CompilerParams(
            dimension_semantics=("parallel",)),
    )(xp, pp["w1"], pp["b1"], pp["ce1"], pp["co1"],
      pp["w2"], pp["b2"], pp["ce2"], pp["co2"],
      pp["wfc1"], pp["bfc1"], pp["wfc2"], pp["bfc2"])
    return out[:n, :FC2]


# ----------------------------------------------------------------------------
# Params / reference / main
# ----------------------------------------------------------------------------
def init_params(key):
    ks = jax.random.split(key, 8)
    return {
        "conv1_w": 0.05 * jax.random.normal(ks[0], (16, 3, 3, 3), jnp.float32),
        "conv1_b": 0.05 * jax.random.normal(ks[1], (16,), jnp.float32),
        "conv2_w": 0.05 * jax.random.normal(ks[2], (32, 16, 3, 3), jnp.float32),
        "conv2_b": 0.05 * jax.random.normal(ks[3], (32,), jnp.float32),
        "fc1_w": 0.02 * jax.random.normal(ks[4], (128, 32 * 8 * 8), jnp.float32),
        "fc1_b": 0.02 * jax.random.normal(ks[5], (128,), jnp.float32),
        "fc2_w": 0.02 * jax.random.normal(ks[6], (10, 128), jnp.float32),
        "fc2_b": 0.02 * jax.random.normal(ks[7], (10,), jnp.float32),
    }


def _reference_forward(x_nchw, p):
    """Pure-XLA reference mirroring the PyTorch module (for validation)."""
    hp = jax.lax.Precision.HIGHEST
    dn = ("NCHW", "OIHW", "NCHW")
    y = jax.lax.conv_general_dilated(x_nchw, p["conv1_w"], (1, 1),
                                     ((1, 1), (1, 1)), dimension_numbers=dn,
                                     precision=hp)
    y = jax.nn.relu(y + p["conv1_b"][None, :, None, None])
    y = jax.lax.reduce_window(y, -jnp.inf, jax.lax.max,
                              (1, 1, 2, 2), (1, 1, 2, 2), "VALID")
    y = jax.lax.conv_general_dilated(y, p["conv2_w"], (1, 1),
                                     ((1, 1), (1, 1)), dimension_numbers=dn,
                                     precision=hp)
    y = jax.nn.relu(y + p["conv2_b"][None, :, None, None])
    y = jax.lax.reduce_window(y, -jnp.inf, jax.lax.max,
                              (1, 1, 2, 2), (1, 1, 2, 2), "VALID")
    y = y.reshape(y.shape[0], -1)
    y = jax.nn.relu(jnp.dot(y, p["fc1_w"].T, precision=hp) + p["fc1_b"])
    return jnp.dot(y, p["fc2_w"].T, precision=hp) + p["fc2_b"]


if __name__ == "__main__":
    key = jax.random.PRNGKey(0)
    kx, kp = jax.random.split(key)
    # fc1 expects 32*8*8 features -> spatial size pinned to 3x32x32.
    # 16 images / batch_block=8 -> grid of 2 steps (keeps both v7x TCs busy).
    x = jax.random.normal(kx, (16, 3, 32, 32), jnp.float32)
    params = init_params(kp)
    packed = prepare_params(params)     # one-time repack (f32; bf16 for v5e)

    logits = cifar10nn_forward(x, packed)
    jax.block_until_ready(logits)
    assert logits.shape == (16, 10), logits.shape
    assert logits.dtype == jnp.float32

    ref = _reference_forward(x, params)
    err = float(jnp.max(jnp.abs(logits - ref)))
    assert jnp.allclose(logits, ref, atol=2e-3, rtol=2e-3), err
    print("KERNEL_OK")
</pallas_src>

<mosaic_0001>
module attributes {stable_mosaic.version = 11 : i64} {
  func.func @_cifar10_fused_kernel(%arg0: i32, %arg1: memref<34x8x128xf32, #tpu.memory_space<vmem>>, %arg2: memref<3x128x512xf32, #tpu.memory_space<vmem>>, %arg3: memref<1x512xf32, #tpu.memory_space<vmem>>, %arg4: memref<512x288xf32, #tpu.memory_space<vmem>>, %arg5: memref<512x288xf32, #tpu.memory_space<vmem>>, %arg6: memref<3x288x512xf32, #tpu.memory_space<vmem>>, %arg7: memref<1x512xf32, #tpu.memory_space<vmem>>, %arg8: memref<512x256xf32, #tpu.memory_space<vmem>>, %arg9: memref<512x256xf32, #tpu.memory_space<vmem>>, %arg10: memref<2048x128xf32, #tpu.memory_space<vmem>>, %arg11: memref<1x128xf32, #tpu.memory_space<vmem>>, %arg12: memref<128x128xf32, #tpu.memory_space<vmem>>, %arg13: memref<1x128xf32, #tpu.memory_space<vmem>>, %arg14: memref<8x128xf32, #tpu.memory_space<vmem>>) attributes {dimension_semantics = [#tpu.dimension_semantics<parallel>], iteration_bounds = array<i64: 2>, scalar_prefetch = 0 : i64, scratch_operands = 0 : i64, tpu.core_type = #tpu.core_type<tc>, window_params = [{transform_indices = @transform_0, window_bounds = array<i64: 34, 8, 128>}, {pipeline_mode = #tpu.pipeline_mode<synchronous>, transform_indices = @transform_1, window_bounds = array<i64: 3, 128, 512>}, {pipeline_mode = #tpu.pipeline_mode<synchronous>, transform_indices = @transform_2, window_bounds = array<i64: 1, 512>}, {pipeline_mode = #tpu.pipeline_mode<synchronous>, transform_indices = @transform_3, window_bounds = array<i64: 512, 288>}, {pipeline_mode = #tpu.pipeline_mode<synchronous>, transform_indices = @transform_4, window_bounds = array<i64: 512, 288>}, {pipeline_mode = #tpu.pipeline_mode<synchronous>, transform_indices = @transform_5, window_bounds = array<i64: 3, 288, 512>}, {pipeline_mode = #tpu.pipeline_mode<synchronous>, transform_indices = @transform_6, window_bounds = array<i64: 1, 512>}, {pipeline_mode = #tpu.pipeline_mode<synchronous>, transform_indices = @transform_7, window_bounds = array<i64: 512, 256>}, {pipeline_mode = #tpu.pipeline_mode<synchronous>, transform_indices = @transform_8, window_bounds = array<i64: 512, 256>}, {pipeline_mode = #tpu.pipeline_mode<synchronous>, transform_indices = @transform_9, window_bounds = array<i64: 2048, 128>}, {pipeline_mode = #tpu.pipeline_mode<synchronous>, transform_indices = @transform_10, window_bounds = array<i64: 1, 128>}, {pipeline_mode = #tpu.pipeline_mode<synchronous>, transform_indices = @transform_11, window_bounds = array<i64: 128, 128>}, {pipeline_mode = #tpu.pipeline_mode<synchronous>, transform_indices = @transform_12, window_bounds = array<i64: 1, 128>}, {transform_indices = @transform_13, window_bounds = array<i64: 8, 128>}]} {
    %c0 = arith.constant 0 : index
    %c0_0 = arith.constant 0 : index
    %c0_1 = arith.constant 0 : index
    %0 = vector.load %arg1[%c0, %c0_0, %c0_1] : memref<34x8x128xf32, #tpu.memory_space<vmem>>, vector<32x8x128xf32>
    %1 = vector.shape_cast %0 : vector<32x8x128xf32> to vector<256x128xf32>
    %c0_2 = arith.constant 0 : index
    %c0_3 = arith.constant 0 : index
    %c0_4 = arith.constant 0 : index
    %2 = vector.load %arg2[%c0_2, %c0_3, %c0_4] : memref<3x128x512xf32, #tpu.memory_space<vmem>>, vector<1x128x512xf32>
    %3 = vector.shape_cast %2 : vector<1x128x512xf32> to vector<128x512xf32>
    %cst = arith.constant dense<0.000000e+00> : vector<256x512xf32>
    %4 = tpu.matmul %1, %3, %cst {dimension_numbers = #tpu.dot_dimension_numbers<[1], [0], [0], [1], [0, 0, 1, 1], [], []>} : vector<256x128xf32>, vector<128x512xf32>, vector<256x512xf32> -> vector<256x512xf32>
    %c1 = arith.constant 1 : index
    %c0_5 = arith.constant 0 : index
    %c0_6 = arith.constant 0 : index
    %5 = vector.load %arg1[%c1, %c0_5, %c0_6] : memref<34x8x128xf32, #tpu.memory_space<vmem>>, vector<32x8x128xf32>
    %6 = vector.shape_cast %5 : vector<32x8x128xf32> to vector<256x128xf32>
    %c1_7 = arith.constant 1 : index
    %c0_8 = arith.constant 0 : index
    %c0_9 = arith.constant 0 : index
    %7 = vector.load %arg2[%c1_7, %c0_8, %c0_9] : memref<3x128x512xf32, #tpu.memory_space<vmem>>, vector<1x128x512xf32>
    %8 = vector.shape_cast %7 : vector<1x128x512xf32> to vector<128x512xf32>
    %cst_10 = arith.constant dense<0.000000e+00> : vector<256x512xf32>
    %9 = tpu.matmul %6, %8, %cst_10 {dimension_numbers = #tpu.dot_dimension_numbers<[1], [0], [0], [1], [0, 0, 1, 1], [], []>} : vector<256x128xf32>, vector<128x512xf32>, vector<256x512xf32> -> vector<256x512xf32>
    %10 = arith.addf %4, %9 : vector<256x512xf32>
    %c2 = arith.constant 2 : index
    %c0_11 = arith.constant 0 : index
    %c0_12 = arith.constant 0 : index
    %11 = vector.load %arg1[%c2, %c0_11, %c0_12] : memref<34x8x128xf32, #tpu.memory_space<vmem>>, vector<32x8x128xf32>
    %12 = vector.shape_cast %11 : vector<32x8x128xf32> to vector<256x128xf32>
    %c2_13 = arith.constant 2 : index
    %c0_14 = arith.constant 0 : index
    %c0_15 = arith.constant 0 : index
    %13 = vector.load %arg2[%c2_13, %c0_14, %c0_15] : memref<3x128x512xf32, #tpu.memory_space<vmem>>, vector<1x128x512xf32>
    %14 = vector.shape_cast %13 : vector<1x128x512xf32> to vector<128x512xf32>
    %cst_16 = arith.constant dense<0.000000e+00> : vector<256x512xf32>
    %15 = tpu.matmul %12, %14, %cst_16 {dimension_numbers = #tpu.dot_dimension_numbers<[1], [0], [0], [1], [0, 0, 1, 1], [], []>} : vector<256x128xf32>, vector<128x512xf32>, vector<256x512xf32> -> vector<256x512xf32>
    %16 = arith.addf %10, %15 : vector<256x512xf32>
    %c0_17 = arith.constant 0 : index
    %c0_18 = arith.constant 0 : index
    %17 = vector.load %arg3[%c0_17, %c0_18] : memref<1x512xf32, #tpu.memory_space<vmem>>, vector<1x512xf32>
    %18 = vector.broadcast %17 : vector<1x512xf32> to vector<256x512xf32>
    %19 = arith.addf %16, %18 : vector<256x512xf32>
    %cst_19 = arith.constant 0.000000e+00 : f32
    %20 = vector.broadcast %cst_19 : f32 to vector<256x512xf32>
    %21 = arith.maximumf %19, %20 : vector<256x512xf32>
    %22 = vector.shape_cast %21 : vector<256x512xf32> to vector<16x2x8x512xf32>
    %23 = vector.extract_strided_slice %22 {offsets = [0, 0, 0, 0], sizes = [16, 1, 8, 512], strides = [1, 1, 1, 1]} : vector<16x2x8x512xf32> to vector<16x1x8x512xf32>
    %24 = vector.shape_cast %23 : vector<16x1x8x512xf32> to vector<16x8x512xf32>
    %25 = vector.extract_strided_slice %22 {offsets = [0, 1, 0, 0], sizes = [16, 1, 8, 512], strides = [1, 1, 1, 1]} : vector<16x2x8x512xf32> to vector<16x1x8x512xf32>
    %26 = vector.shape_cast %25 : vector<16x1x8x512xf32> to vector<16x8x512xf32>
    %27 = arith.maximumf %24, %26 : vector<16x8x512xf32>
    %28 = vector.shape_cast %27 : vector<16x8x512xf32> to vector<128x512xf32>
    %c0_20 = arith.constant 0 : index
    %c0_21 = arith.constant 0 : index
    %29 = vector.load %arg4[%c0_20, %c0_21] : memref<512x288xf32, #tpu.memory_space<vmem>>, vector<512x288xf32>
    %cst_22 = arith.constant dense<0.000000e+00> : vector<128x288xf32>
    %30 = tpu.matmul %28, %29, %cst_22 {dimension_numbers = #tpu.dot_dimension_numbers<[1], [0], [0], [1], [0, 0, 1, 1], [], []>} : vector<128x512xf32>, vector<512x288xf32>, vector<128x288xf32> -> vector<128x288xf32>
    %c0_23 = arith.constant 0 : index
    %c0_24 = arith.constant 0 : index
    %31 = vector.load %arg5[%c0_23, %c0_24] : memref<512x288xf32, #tpu.memory_space<vmem>>, vector<512x288xf32>
    %cst_25 = arith.constant dense<0.000000e+00> : vector<128x288xf32>
    %32 = tpu.matmul %28, %31, %cst_25 {dimension_numbers = #tpu.dot_dimension_numbers<[1], [0], [0], [1], [0, 0, 1, 1], [], []>} : vector<128x512xf32>, vector<512x288xf32>, vector<128x288xf32> -> vector<128x288xf32>
    %33 = arith.maximumf %30, %32 : vector<128x288xf32>
    %cst_26 = arith.constant 0.000000e+00 : f32
    %34 = vector.broadcast %cst_26 : f32 to vector<1x8x288xf32>
    %35 = vector.shape_cast %33 : vector<128x288xf32> to vector<16x8x288xf32>
    %36 = tpu.concatenate %34, %35, %34 in 0 : vector<1x8x288xf32>, vector<16x8x288xf32>, vector<1x8x288xf32> -> vector<18x8x288xf32>
    %37 = vector.extract_strided_slice %36 {offsets = [0, 0, 0], sizes = [16, 8, 288], strides = [1, 1, 1]} : vector<18x8x288xf32> to vector<16x8x288xf32>
    %38 = vector.shape_cast %37 : vector<16x8x288xf32> to vector<128x288xf32>
    %c0_27 = arith.constant 0 : index
    %c0_28 = arith.constant 0 : index
    %c0_29 = arith.constant 0 : index
    %39 = vector.load %arg6[%c0_27, %c0_28, %c0_29] : memref<3x288x512xf32, #tpu.memory_space<vmem>>, vector<1x288x512xf32>
    %40 = vector.shape_cast %39 : vector<1x288x512xf32> to vector<288x512xf32>
    %cst_30 = arith.constant dense<0.000000e+00> : vector<128x512xf32>
    %41 = tpu.matmul %38, %40, %cst_30 {dimension_numbers = #tpu.dot_dimension_numbers<[1], [0], [0], [1], [0, 0, 1, 1], [], []>} : vector<128x288xf32>, vector<288x512xf32>, vector<128x512xf32> -> vector<128x512xf32>
    %42 = vector.extract_strided_slice %36 {offsets = [1, 0, 0], sizes = [16, 8, 288], strides = [1, 1, 1]} : vector<18x8x288xf32> to vector<16x8x288xf32>
    %43 = vector.shape_cast %42 : vector<16x8x288xf32> to vector<128x288xf32>
    %c1_31 = arith.constant 1 : index
    %c0_32 = arith.constant 0 : index
    %c0_33 = arith.constant 0 : index
    %44 = vector.load %arg6[%c1_31, %c0_32, %c0_33] : memref<3x288x512xf32, #tpu.memory_space<vmem>>, vector<1x288x512xf32>
    %45 = vector.shape_cast %44 : vector<1x288x512xf32> to vector<288x512xf32>
    %cst_34 = arith.constant dense<0.000000e+00> : vector<128x512xf32>
    %46 = tpu.matmul %43, %45, %cst_34 {dimension_numbers = #tpu.dot_dimension_numbers<[1], [0], [0], [1], [0, 0, 1, 1], [], []>} : vector<128x288xf32>, vector<288x512xf32>, vector<128x512xf32> -> vector<128x512xf32>
    %47 = arith.addf %41, %46 : vector<128x512xf32>
    %48 = vector.extract_strided_slice %36 {offsets = [2, 0, 0], sizes = [16, 8, 288], strides = [1, 1, 1]} : vector<18x8x288xf32> to vector<16x8x288xf32>
    %49 = vector.shape_cast %48 : vector<16x8x288xf32> to vector<128x288xf32>
    %c2_35 = arith.constant 2 : index
    %c0_36 = arith.constant 0 : index
    %c0_37 = arith.constant 0 : index
    %50 = vector.load %arg6[%c2_35, %c0_36, %c0_37] : memref<3x288x512xf32, #tpu.memory_space<vmem>>, vector<1x288x512xf32>
    %51 = vector.shape_cast %50 : vector<1x288x512xf32> to vector<288x512xf32>
    %cst_38 = arith.constant dense<0.000000e+00> : vector<128x512xf32>
    %52 = tpu.matmul %49, %51, %cst_38 {dimension_numbers = #tpu.dot_dimension_numbers<[1], [0], [0], [1], [0, 0, 1, 1], [], []>} : vector<128x288xf32>, vector<288x512xf32>, vector<128x512xf32> -> vector<128x512xf32>
    %53 = arith.addf %47, %52 : vector<128x512xf32>
    %c0_39 = arith.constant 0 : index
    %c0_40 = arith.constant 0 : index
    %54 = vector.load %arg7[%c0_39, %c0_40] : memref<1x512xf32, #tpu.memory_space<vmem>>, vector<1x512xf32>
    %55 = vector.broadcast %54 : vector<1x512xf32> to vector<128x512xf32>
    %56 = arith.addf %53, %55 : vector<128x512xf32>
    %cst_41 = arith.constant 0.000000e+00 : f32
    %57 = vector.broadcast %cst_41 : f32 to vector<128x512xf32>
    %58 = arith.maximumf %56, %57 : vector<128x512xf32>
    %59 = vector.shape_cast %58 : vector<128x512xf32> to vector<8x2x8x512xf32>
    %60 = vector.extract_strided_slice %59 {offsets = [0, 0, 0, 0], sizes = [8, 1, 8, 512], strides = [1, 1, 1, 1]} : vector<8x2x8x512xf32> to vector<8x1x8x512xf32>
    %61 = vector.shape_cast %60 : vector<8x1x8x512xf32> to vector<8x8x512xf32>
    %62 = vector.extract_strided_slice %59 {offsets = [0, 1, 0, 0], sizes = [8, 1, 8, 512], strides = [1, 1, 1, 1]} : vector<8x2x8x512xf32> to vector<8x1x8x512xf32>
    %63 = vector.shape_cast %62 : vector<8x1x8x512xf32> to vector<8x8x512xf32>
    %64 = arith.maximumf %61, %63 : vector<8x8x512xf32>
    %65 = vector.shape_cast %64 : vector<8x8x512xf32> to vector<64x512xf32>
    %c0_42 = arith.constant 0 : index
    %c0_43 = arith.constant 0 : index
    %66 = vector.load %arg8[%c0_42, %c0_43] : memref<512x256xf32, #tpu.memory_space<vmem>>, vector<512x256xf32>
    %cst_44 = arith.constant dense<0.000000e+00> : vector<64x256xf32>
    %67 = tpu.matmul %65, %66, %cst_44 {dimension_numbers = #tpu.dot_dimension_numbers<[1], [0], [0], [1], [0, 0, 1, 1], [], []>} : vector<64x512xf32>, vector<512x256xf32>, vector<64x256xf32> -> vector<64x256xf32>
    %c0_45 = arith.constant 0 : index
    %c0_46 = arith.constant 0 : index
    %68 = vector.load %arg9[%c0_45, %c0_46] : memref<512x256xf32, #tpu.memory_space<vmem>>, vector<512x256xf32>
    %cst_47 = arith.constant dense<0.000000e+00> : vector<64x256xf32>
    %69 = tpu.matmul %65, %68, %cst_47 {dimension_numbers = #tpu.dot_dimension_numbers<[1], [0], [0], [1], [0, 0, 1, 1], [], []>} : vector<64x512xf32>, vector<512x256xf32>, vector<64x256xf32> -> vector<64x256xf32>
    %70 = arith.maximumf %67, %69 : vector<64x256xf32>
    %71 = vector.extract_strided_slice %70 {offsets = [0, 0], sizes = [8, 256], strides = [1, 1]} : vector<64x256xf32> to vector<8x256xf32>
    %72 = vector.extract_strided_slice %70 {offsets = [8, 0], sizes = [8, 256], strides = [1, 1]} : vector<64x256xf32> to vector<8x256xf32>
    %73 = vector.extract_strided_slice %70 {offsets = [16, 0], sizes = [8, 256], strides = [1, 1]} : vector<64x256xf32> to vector<8x256xf32>
    %74 = vector.extract_strided_slice %70 {offsets = [24, 0], sizes = [8, 256], strides = [1, 1]} : vector<64x256xf32> to vector<8x256xf32>
    %75 = vector.extract_strided_slice %70 {offsets = [32, 0], sizes = [8, 256], strides = [1, 1]} : vector<64x256xf32> to vector<8x256xf32>
    %76 = vector.extract_strided_slice %70 {offsets = [40, 0], sizes = [8, 256], strides = [1, 1]} : vector<64x256xf32> to vector<8x256xf32>
    %77 = vector.extract_strided_slice %70 {offsets = [48, 0], sizes = [8, 256], strides = [1, 1]} : vector<64x256xf32> to vector<8x256xf32>
    %78 = vector.extract_strided_slice %70 {offsets = [56, 0], sizes = [8, 256], strides = [1, 1]} : vector<64x256xf32> to vector<8x256xf32>
    %79 = tpu.concatenate %71, %72, %73, %74, %75, %76, %77, %78 in 1 : vector<8x256xf32>, vector<8x256xf32>, vector<8x256xf32>, vector<8x256xf32>, vector<8x256xf32>, vector<8x256xf32>, vector<8x256xf32>, vector<8x256xf32> -> vector<8x2048xf32>
    %c0_48 = arith.constant 0 : index
    %c0_49 = arith.constant 0 : index
    %80 = vector.load %arg10[%c0_48, %c0_49] : memref<2048x128xf32, #tpu.memory_space<vmem>>, vector<2048x128xf32>
    %cst_50 = arith.constant dense<0.000000e+00> : vector<8x128xf32>
    %81 = tpu.matmul %79, %80, %cst_50 {dimension_numbers = #tpu.dot_dimension_numbers<[1], [0], [0], [1], [0, 0, 1, 1], [], []>} : vector<8x2048xf32>, vector<2048x128xf32>, vector<8x128xf32> -> vector<8x128xf32>
    %c0_51 = arith.constant 0 : index
    %c0_52 = arith.constant 0 : index
    %82 = vector.load %arg11[%c0_51, %c0_52] : memref<1x128xf32, #tpu.memory_space<vmem>>, vector<1x128xf32>
    %83 = vector.broadcast %82 : vector<1x128xf32> to vector<8x128xf32>
    %84 = arith.addf %81, %83 : vector<8x128xf32>
    %cst_53 = arith.constant 0.000000e+00 : f32
    %85 = vector.broadcast %cst_53 : f32 to vector<8x128xf32>
    %86 = arith.maximumf %84, %85 : vector<8x128xf32>
    %c0_54 = arith.constant 0 : index
    %c0_55 = arith.constant 0 : index
    %87 = vector.load %arg12[%c0_54, %c0_55] : memref<128x128xf32, #tpu.memory_space<vmem>>, vector<128x128xf32>
    %cst_56 = arith.constant dense<0.000000e+00> : vector<8x128xf32>
    %88 = tpu.matmul %86, %87, %cst_56 {dimension_numbers = #tpu.dot_dimension_numbers<[1], [0], [0], [1], [0, 0, 1, 1], [], []>} : vector<8x128xf32>, vector<128x128xf32>, vector<8x128xf32> -> vector<8x128xf32>
    %c0_57 = arith.constant 0 : index
    %c0_58 = arith.constant 0 : index
    %89 = vector.load %arg13[%c0_57, %c0_58] : memref<1x128xf32, #tpu.memory_space<vmem>>, vector<1x128xf32>
    %90 = vector.broadcast %89 : vector<1x128xf32> to vector<8x128xf32>
    %91 = arith.addf %88, %90 : vector<8x128xf32>
    %c0_59 = arith.constant 0 : index
    %c0_60 = arith.constant 0 : index
    %92 = vector.load %arg14[%c0_59, %c0_60] : memref<8x128xf32, #tpu.memory_space<vmem>>, vector<8x128xf32>
    tpu.vector_store %arg14[%c0_59, %c0_60], %91 {strides = array<i32>} : memref<8x128xf32, #tpu.memory_space<vmem>>, vector<8x128xf32>,
    return
  }
  func.func @transform_0(%arg0: i32) -> (i32, i32, i32) {
    %c0_i32 = arith.constant 0 : i32
    %c0_i32_0 = arith.constant 0 : i32
    %c0_i32_1 = arith.constant 0 : i32
    return %c0_i32, %arg0, %c0_i32_0 : i32, i32, i32
  }
  func.func @transform_1(%arg0: i32) -> (i32, i32, i32) {
    %c0_i32 = arith.constant 0 : i32
    %c0_i32_0 = arith.constant 0 : i32
    %c0_i32_1 = arith.constant 0 : i32
    %c0_i32_2 = arith.constant 0 : i32
    return %c0_i32, %c0_i32_0, %c0_i32_1 : i32, i32, i32
  }
  func.func @transform_2(%arg0: i32) -> (i32, i32) {
    %c0_i32 = arith.constant 0 : i32
    %c0_i32_0 = arith.constant 0 : i32
    %c0_i32_1 = arith.constant 0 : i32
    return %c0_i32, %c0_i32_0 : i32, i32
  }
  func.func @transform_3(%arg0: i32) -> (i32, i32) {
    %c0_i32 = arith.constant 0 : i32
    %c0_i32_0 = arith.constant 0 : i32
    %c0_i32_1 = arith.constant 0 : i32
    return %c0_i32, %c0_i32_0 : i32, i32
  }
  func.func @transform_4(%arg0: i32) -> (i32, i32) {
    %c0_i32 = arith.constant 0 : i32
    %c0_i32_0 = arith.constant 0 : i32
    %c0_i32_1 = arith.constant 0 : i32
    return %c0_i32, %c0_i32_0 : i32, i32
  }
  func.func @transform_5(%arg0: i32) -> (i32, i32, i32) {
    %c0_i32 = arith.constant 0 : i32
    %c0_i32_0 = arith.constant 0 : i32
    %c0_i32_1 = arith.constant 0 : i32
    %c0_i32_2 = arith.constant 0 : i32
    return %c0_i32, %c0_i32_0, %c0_i32_1 : i32, i32, i32
  }
  func.func @transform_6(%arg0: i32) -> (i32, i32) {
    %c0_i32 = arith.constant 0 : i32
    %c0_i32_0 = arith.constant 0 : i32
    %c0_i32_1 = arith.constant 0 : i32
    return %c0_i32, %c0_i32_0 : i32, i32
  }
  func.func @transform_7(%arg0: i32) -> (i32, i32) {
    %c0_i32 = arith.constant 0 : i32
    %c0_i32_0 = arith.constant 0 : i32
    %c0_i32_1 = arith.constant 0 : i32
    return %c0_i32, %c0_i32_0 : i32, i32
  }
  func.func @transform_8(%arg0: i32) -> (i32, i32) {
    %c0_i32 = arith.constant 0 : i32
    %c0_i32_0 = arith.constant 0 : i32
    %c0_i32_1 = arith.constant 0 : i32
    return %c0_i32, %c0_i32_0 : i32, i32
  }
  func.func @transform_9(%arg0: i32) -> (i32, i32) {
    %c0_i32 = arith.constant 0 : i32
    %c0_i32_0 = arith.constant 0 : i32
    %c0_i32_1 = arith.constant 0 : i32
    return %c0_i32, %c0_i32_0 : i32, i32
  }
  func.func @transform_10(%arg0: i32) -> (i32, i32) {
    %c0_i32 = arith.constant 0 : i32
    %c0_i32_0 = arith.constant 0 : i32
    %c0_i32_1 = arith.constant 0 : i32
    return %c0_i32, %c0_i32_0 : i32, i32
  }
  func.func @transform_11(%arg0: i32) -> (i32, i32) {
    %c0_i32 = arith.constant 0 : i32
    %c0_i32_0 = arith.constant 0 : i32
    %c0_i32_1 = arith.constant 0 : i32
    return %c0_i32, %c0_i32_0 : i32, i32
  }
  func.func @transform_12(%arg0: i32) -> (i32, i32) {
    %c0_i32 = arith.constant 0 : i32
    %c0_i32_0 = arith.constant 0 : i32
    %c0_i32_1 = arith.constant 0 : i32
    return %c0_i32, %c0_i32_0 : i32, i32
  }
  func.func @transform_13(%arg0: i32) -> (i32, i32) {
    %c0_i32 = arith.constant 0 : i32
    %c0_i32_0 = arith.constant 0 : i32
    return %arg0, %c0_i32 : i32, i32
  }
}

</mosaic_0001>

<llo_original>
// kernel: cifar10nn_forward.1
$region0: #{cifar10nn_forward.1}
  #allocation0 [shape = 'u32[]', space=smem, size = 0x4, offset = 0x4, fixed_abs, tag = 'smem constant byte address 0x4 - core index']
  #allocation1 [shape = 'u32[144,128]{1,0:T(1,128)}', space=vmem, size = 0x12000, scoped, tag = 'internal scratch']
  %s0 = inlined_call_operand.vmem [shape: f32[34,16,128], index: 0, kind: input, shape index: {}]
  %s1 = inlined_call_operand.vmem [shape: f32[3,128,512], index: 1, kind: input, shape index: {}]
  %s2 = inlined_call_operand.vmem [shape: f32[1,512], index: 2, kind: input, shape index: {}]
  %s3 = inlined_call_operand.vmem [shape: f32[512,288], index: 3, kind: input, shape index: {}]
  %s4 = inlined_call_operand.vmem [shape: f32[512,288], index: 4, kind: input, shape index: {}]
  %s5 = inlined_call_operand.vmem [shape: f32[3,288,512], index: 5, kind: input, shape index: {}]
  %s6 = inlined_call_operand.vmem [shape: f32[1,512], index: 6, kind: input, shape index: {}]
  %s7 = inlined_call_operand.vmem [shape: f32[512,256], index: 7, kind: input, shape index: {}]
  %s8 = inlined_call_operand.vmem [shape: f32[512,256], index: 8, kind: input, shape index: {}]
  %s9 = inlined_call_operand.vmem [shape: f32[2048,128], index: 9, kind: input, shape index: {}]
  %s10 = inlined_call_operand.vmem [shape: f32[1,128], index: 10, kind: input, shape index: {}]
  %s11 = inlined_call_operand.vmem [shape: f32[128,128], index: 11, kind: input, shape index: {}]
  %s12 = inlined_call_operand.vmem [shape: f32[1,128], index: 12, kind: input, shape index: {}]
  %s13 = inlined_call_operand.hbm [shape: f32[16,128], index: 13, kind: output, shape index: {}]
  %s14 = sld [smem:[#allocation0]]
  $region123: #{cifar10nn_forward.1} parent=0
    _
  %s16 = ssub.s32 1, %s14
  %s17 = scalar_select 0, %s16, %s14
  $region1: #{cifar10nn_forward.1} parent=0
    #allocation2 [shape = 'u8[278528]{0}', space=vmem, size = 0x44000, scoped, tag = 'input window, operand 0']
    #allocation3 [shape = 'u8[8192]{0}', space=vmem, size = 0x2000, scoped, tag = 'output window, operand 0']
    #allocation4 [shape = 's32[2]{0}', space=sflag, size = 0x8, scoped, tag = 'scoped memory for cifar10nn_forward.1']
    %18 = vsyncpa [#allocation4], 0
    %s19 = scalar_lea.sflag [#allocation4], 1
    %20 = vsyncpa %s19, 0
    loop: start=0, step=1, limit=4
    $region2: #{cifar10nn_forward.1} parent=1 // loop_pre_header
      _
    $region3: #{cifar10nn_forward.1} parent=1 // loop_header
      %s22 = sphi 0, %s26
      %p23 = scmp.ge.s32.totalorder %s22, 4
      %s32 = sphi 0, %s34
      %s35 = sphi 0, %s32
      %s36 = sphi 0, %s35
      %s52 = sphi 0, %s36
      %s56 = sphi 0, %s56
      %s58 = sphi 0, %s56
      %s59 = sphi 0, %s58
      %s73 = sphi 0, %s59
      %s77 = sphi 0, %s77
      %s79 = sphi 0, %s77
      %s80 = sphi 0, %s79
      %s94 = sphi 0, %s80
      %s98 = sphi 0, %s98
      %s100 = sphi 0, %s98
      %s101 = sphi 0, %s100
      %s115 = sphi 0, %s101
      %s119 = sphi 0, %s119
      %s121 = sphi 0, %s119
      %s122 = sphi 0, %s121
      %s136 = sphi 0, %s122
      %s140 = sphi 0, %s140
      %s142 = sphi 0, %s140
      %s143 = sphi 0, %s142
      %s157 = sphi 0, %s143
      %s161 = sphi 0, %s161
      %s163 = sphi 0, %s161
      %s164 = sphi 0, %s163
      %s178 = sphi 0, %s164
      %s182 = sphi 0, %s182
      %s184 = sphi 0, %s182
      %s185 = sphi 0, %s184
      %s199 = sphi 0, %s185
      %s203 = sphi 0, %s203
      %s205 = sphi 0, %s203
      %s206 = sphi 0, %s205
      %s220 = sphi 0, %s206
      %s224 = sphi 0, %s224
      %s226 = sphi 0, %s224
      %s227 = sphi 0, %s226
      %s241 = sphi 0, %s227
      %s245 = sphi 0, %s245
      %s247 = sphi 0, %s245
      %s248 = sphi 0, %s247
      %s262 = sphi 0, %s248
      %s266 = sphi 0, %s266
      %s268 = sphi 0, %s266
      %s269 = sphi 0, %s268
      %s283 = sphi 0, %s269
      %s287 = sphi 0, %s287
      %s289 = sphi 0, %s287
      %s290 = sphi 0, %s289
      %s304 = sphi 0, %s290
      %s310 = sphi 0, %s312
      %s313 = sphi 0, %s310
      %s314 = sphi 0, %s313
      %s330 = sphi 0, %s314
    $region4: #{cifar10nn_forward.1} parent=1 // loop_header_branch
      %25 = sbr.rel (%p23) target = $region8
    $region5: #{cifar10nn_forward.1} parent=1 // loop_body
      %s27 = ssub.s32 %s22, 1
      %s28 = ssub.s32 %s22, 2
      %s29 = sadd.s32 %s22, 1
      %s30 = ssub.s32 %s22, %s29
      %p31 = scmp.eq.s32.totalorder %s30, 0
      %s33 = sadd.s32 %s32, 1
      %s34 = scalar_select %p31, %s32, %s33
      %p37 = pneg %p31
      %p38 = scmp.eq.s32.totalorder %s22, 1
      %p39 = por %p37, %p38
      %p40 = scmp.ne.s32.totalorder %s32, %s35
      %p41 = scmp.eq.s32.totalorder %s22, 0
      %p42 = por %p40, %p41
      %p43 = scmp.ne.s32.totalorder %s32, %s35
      %p44 = scmp.eq.s32.totalorder %s27, 1
      %p45 = por %p43, %p44
      %p46 = scmp.ne.s32.totalorder %s35, %s36
      %p47 = scmp.eq.s32.totalorder %s27, 0
      %p48 = por %p46, %p47
      %p49 = scmp.ne.s32.totalorder %s35, %s36
      %p50 = scmp.eq.s32.totalorder %s28, 1
      %p51 = por %p49, %p50
      %p53 = scmp.ne.s32.totalorder %s36, %s52
      %p54 = scmp.eq.s32.totalorder %s28, 0
      %p55 = por %p53, %p54
      %s57 = sadd.s32 %s56, 1
      %p60 = scmp.eq.s32.totalorder %s22, 1
      %p61 = scmp.ne.s32.totalorder %s56, %s58
      %p62 = scmp.eq.s32.totalorder %s22, 0
      %p63 = por %p61, %p62
      %p64 = scmp.ne.s32.totalorder %s56, %s58
      %p65 = scmp.eq.s32.totalorder %s27, 1
      %p66 = por %p64, %p65
      %p67 = scmp.ne.s32.totalorder %s58, %s59
      %p68 = scmp.eq.s32.totalorder %s27, 0
      %p69 = por %p67, %p68
      %p70 = scmp.ne.s32.totalorder %s58, %s59
      %p71 = scmp.eq.s32.totalorder %s28, 1
      %p72 = por %p70, %p71
      %p74 = scmp.ne.s32.totalorder %s59, %s73
      %p75 = scmp.eq.s32.totalorder %s28, 0
      %p76 = por %p74, %p75
      %s78 = sadd.s32 %s77, 1
      %p81 = scmp.eq.s32.totalorder %s22, 1
      %p82 = scmp.ne.s32.totalorder %s77, %s79
      %p83 = scmp.eq.s32.totalorder %s22, 0
      %p84 = por %p82, %p83
      %p85 = scmp.ne.s32.totalorder %s77, %s79
      %p86 = scmp.eq.s32.totalorder %s27, 1
      %p87 = por %p85, %p86
      %p88 = scmp.ne.s32.totalorder %s79, %s80
      %p89 = scmp.eq.s32.totalorder %s27, 0
      %p90 = por %p88, %p89
      %p91 = scmp.ne.s32.totalorder %s79, %s80
      %p92 = scmp.eq.s32.totalorder %s28, 1
      %p93 = por %p91, %p92
      %p95 = scmp.ne.s32.totalorder %s80, %s94
      %p96 = scmp.eq.s32.totalorder %s28, 0
      %p97 = por %p95, %p96
      %s99 = sadd.s32 %s98, 1
      %p102 = scmp.eq.s32.totalorder %s22, 1
      %p103 = scmp.ne.s32.totalorder %s98, %s100
      %p104 = scmp.eq.s32.totalorder %s22, 0
      %p105 = por %p103, %p104
      %p106 = scmp.ne.s32.totalorder %s98, %s100
      %p107 = scmp.eq.s32.totalorder %s27, 1
      %p108 = por %p106, %p107
      %p109 = scmp.ne.s32.totalorder %s100, %s101
      %p110 = scmp.eq.s32.totalorder %s27, 0
      %p111 = por %p109, %p110
      %p112 = scmp.ne.s32.totalorder %s100, %s101
      %p113 = scmp.eq.s32.totalorder %s28, 1
      %p114 = por %p112, %p113
      %p116 = scmp.ne.s32.totalorder %s101, %s115
      %p117 = scmp.eq.s32.totalorder %s28, 0
      %p118 = por %p116, %p117
      %s120 = sadd.s32 %s119, 1
      %p123 = scmp.eq.s32.totalorder %s22, 1
      %p124 = scmp.ne.s32.totalorder %s119, %s121
      %p125 = scmp.eq.s32.totalorder %s22, 0
      %p126 = por %p124, %p125
      %p127 = scmp.ne.s32.totalorder %s119, %s121
      %p128 = scmp.eq.s32.totalorder %s27, 1
      %p129 = por %p127, %p128
      %p130 = scmp.ne.s32.totalorder %s121, %s122
      %p131 = scmp.eq.s32.totalorder %s27, 0
      %p132 = por %p130, %p131
      %p133 = scmp.ne.s32.totalorder %s121, %s122
      %p134 = scmp.eq.s32.totalorder %s28, 1
      %p135 = por %p133, %p134
      %p137 = scmp.ne.s32.totalorder %s122, %s136
      %p138 = scmp.eq.s32.totalorder %s28, 0
      %p139 = por %p137, %p138
      %s141 = sadd.s32 %s140, 1
      %p144 = scmp.eq.s32.totalorder %s22, 1
      %p145 = scmp.ne.s32.totalorder %s140, %s142
      %p146 = scmp.eq.s32.totalorder %s22, 0
      %p147 = por %p145, %p146
      %p148 = scmp.ne.s32.totalorder %s140, %s142
      %p149 = scmp.eq.s32.totalorder %s27, 1
      %p150 = por %p148, %p149
      %p151 = scmp.ne.s32.totalorder %s142, %s143
      %p152 = scmp.eq.s32.totalorder %s27, 0
      %p153 = por %p151, %p152
      %p154 = scmp.ne.s32.totalorder %s142, %s143
      %p155 = scmp.eq.s32.totalorder %s28, 1
      %p156 = por %p154, %p155
      %p158 = scmp.ne.s32.totalorder %s143, %s157
      %p159 = scmp.eq.s32.totalorder %s28, 0
      %p160 = por %p158, %p159
      %s162 = sadd.s32 %s161, 1
      %p165 = scmp.eq.s32.totalorder %s22, 1
      %p166 = scmp.ne.s32.totalorder %s161, %s163
      %p167 = scmp.eq.s32.totalorder %s22, 0
      %p168 = por %p166, %p167
      %p169 = scmp.ne.s32.totalorder %s161, %s163
      %p170 = scmp.eq.s32.totalorder %s27, 1
      %p171 = por %p169, %p170
      %p172 = scmp.ne.s32.totalorder %s163, %s164
      %p173 = scmp.eq.s32.totalorder %s27, 0
      %p174 = por %p172, %p173
      %p175 = scmp.ne.s32.totalorder %s163, %s164
      %p176 = scmp.eq.s32.totalorder %s28, 1
      %p177 = por %p175, %p176
      %p179 = scmp.ne.s32.totalorder %s164, %s178
      %p180 = scmp.eq.s32.totalorder %s28, 0
      %p181 = por %p179, %p180
      %s183 = sadd.s32 %s182, 1
      %p186 = scmp.eq.s32.totalorder %s22, 1
      %p187 = scmp.ne.s32.totalorder %s182, %s184
      %p188 = scmp.eq.s32.totalorder %s22, 0
      %p189 = por %p187, %p188
      %p190 = scmp.ne.s32.totalorder %s182, %s184
      %p191 = scmp.eq.s32.totalorder %s27, 1
      %p192 = por %p190, %p191
      %p193 = scmp.ne.s32.totalorder %s184, %s185
      %p194 = scmp.eq.s32.totalorder %s27, 0
      %p195 = por %p193, %p194
      %p196 = scmp.ne.s32.totalorder %s184, %s185
      %p197 = scmp.eq.s32.totalorder %s28, 1
      %p198 = por %p196, %p197
      %p200 = scmp.ne.s32.totalorder %s185, %s199
      %p201 = scmp.eq.s32.totalorder %s28, 0
      %p202 = por %p200, %p201
      %s204 = sadd.s32 %s203, 1
      %p207 = scmp.eq.s32.totalorder %s22, 1
      %p208 = scmp.ne.s32.totalorder %s203, %s205
      %p209 = scmp.eq.s32.totalorder %s22, 0
      %p210 = por %p208, %p209
      %p211 = scmp.ne.s32.totalorder %s203, %s205
      %p212 = scmp.eq.s32.totalorder %s27, 1
      %p213 = por %p211, %p212
      %p214 = scmp.ne.s32.totalorder %s205, %s206
      %p215 = scmp.eq.s32.totalorder %s27, 0
      %p216 = por %p214, %p215
      %p217 = scmp.ne.s32.totalorder %s205, %s206
      %p218 = scmp.eq.s32.totalorder %s28, 1
      %p219 = por %p217, %p218
      %p221 = scmp.ne.s32.totalorder %s206, %s220
      %p222 = scmp.eq.s32.totalorder %s28, 0
      %p223 = por %p221, %p222
      %s225 = sadd.s32 %s224, 1
      %p228 = scmp.eq.s32.totalorder %s22, 1
      %p229 = scmp.ne.s32.totalorder %s224, %s226
      %p230 = scmp.eq.s32.totalorder %s22, 0
      %p231 = por %p229, %p230
      %p232 = scmp.ne.s32.totalorder %s224, %s226
      %p233 = scmp.eq.s32.totalorder %s27, 1
      %p234 = por %p232, %p233
      %p235 = scmp.ne.s32.totalorder %s226, %s227
      %p236 = scmp.eq.s32.totalorder %s27, 0
      %p237 = por %p235, %p236
      %p238 = scmp.ne.s32.totalorder %s226, %s227
      %p239 = scmp.eq.s32.totalorder %s28, 1
      %p240 = por %p238, %p239
      %p242 = scmp.ne.s32.totalorder %s227, %s241
      %p243 = scmp.eq.s32.totalorder %s28, 0
      %p244 = por %p242, %p243
      %s246 = sadd.s32 %s245, 1
      %p249 = scmp.eq.s32.totalorder %s22, 1
      %p250 = scmp.ne.s32.totalorder %s245, %s247
      %p251 = scmp.eq.s32.totalorder %s22, 0
      %p252 = por %p250, %p251
      %p253 = scmp.ne.s32.totalorder %s245, %s247
      %p254 = scmp.eq.s32.totalorder %s27, 1
      %p255 = por %p253, %p254
      %p256 = scmp.ne.s32.totalorder %s247, %s248
      %p257 = scmp.eq.s32.totalorder %s27, 0
      %p258 = por %p256, %p257
      %p259 = scmp.ne.s32.totalorder %s247, %s248
      %p260 = scmp.eq.s32.totalorder %s28, 1
      %p261 = por %p259, %p260
      %p263 = scmp.ne.s32.totalorder %s248, %s262
      %p264 = scmp.eq.s32.totalorder %s28, 0
      %p265 = por %p263, %p264
      %s267 = sadd.s32 %s266, 1
      %p270 = scmp.eq.s32.totalorder %s22, 1
      %p271 = scmp.ne.s32.totalorder %s266, %s268
      %p272 = scmp.eq.s32.totalorder %s22, 0
      %p273 = por %p271, %p272
      %p274 = scmp.ne.s32.totalorder %s266, %s268
      %p275 = scmp.eq.s32.totalorder %s27, 1
      %p276 = por %p274, %p275
      %p277 = scmp.ne.s32.totalorder %s268, %s269
      %p278 = scmp.eq.s32.totalorder %s27, 0
      %p279 = por %p277, %p278
      %p280 = scmp.ne.s32.totalorder %s268, %s269
      %p281 = scmp.eq.s32.totalorder %s28, 1
      %p282 = por %p280, %p281
      %p284 = scmp.ne.s32.totalorder %s269, %s283
      %p285 = scmp.eq.s32.totalorder %s28, 0
      %p286 = por %p284, %p285
      %s288 = sadd.s32 %s287, 1
      %p291 = scmp.eq.s32.totalorder %s22, 1
      %p292 = scmp.ne.s32.totalorder %s287, %s289
      %p293 = scmp.eq.s32.totalorder %s22, 0
      %p294 = por %p292, %p293
      %p295 = scmp.ne.s32.totalorder %s287, %s289
      %p296 = scmp.eq.s32.totalorder %s27, 1
      %p297 = por %p295, %p296
      %p298 = scmp.ne.s32.totalorder %s289, %s290
      %p299 = scmp.eq.s32.totalorder %s27, 0
      %p300 = por %p298, %p299
      %p301 = scmp.ne.s32.totalorder %s289, %s290
      %p302 = scmp.eq.s32.totalorder %s28, 1
      %p303 = por %p301, %p302
      %p305 = scmp.ne.s32.totalorder %s290, %s304
      %p306 = scmp.eq.s32.totalorder %s28, 0
      %p307 = por %p305, %p306
      %s308 = ssub.s32 %s22, %s29
      %p309 = scmp.eq.s32.totalorder %s308, 0
      %s311 = sadd.s32 %s310, 1
      %s312 = scalar_select %p309, %s310, %s311
      %p315 = pneg %p309
      %p316 = scmp.eq.s32.totalorder %s22, 1
      %p317 = por %p315, %p316
      %p318 = scmp.ne.s32.totalorder %s310, %s313
      %p319 = scmp.eq.s32.totalorder %s22, 0
      %p320 = por %p318, %p319
      %p321 = scmp.ne.s32.totalorder %s310, %s313
      %p322 = scmp.eq.s32.totalorder %s27, 1
      %p323 = por %p321, %p322
      %p324 = scmp.ne.s32.totalorder %s313, %s314
      %p325 = scmp.eq.s32.totalorder %s27, 0
      %p326 = por %p324, %p325
      %p327 = scmp.ne.s32.totalorder %s313, %s314
      %p328 = scmp.eq.s32.totalorder %s28, 1
      %p329 = por %p327, %p328
      %p331 = scmp.ne.s32.totalorder %s314, %s330
      %p332 = scmp.eq.s32.totalorder %s28, 0
      %p333 = por %p331, %p332
      %p334 = scmp.le.s32.totalorder 1, %s22
      %p335 = scmp.lt.s32.totalorder %s22, 3
      %p336 = pnand %p334, %p335
      %p337 = pneg %p336
      // Predicated region
      $region9: #{cifar10nn_forward.1} parent=5 // pred_check
        _
      $region10: #{cifar10nn_forward.1} parent=5 // pred_check_branch
        %339 = sbr.rel (%p336) target = $region12
      $region11: #{cifar10nn_forward.1} parent=5 // pred_region
        %s340 = ssub.s32 %s22, 1
        // Predicated region
        $region13: #{cifar10nn_forward.1} parent=11 // pred_check
          %p341 = pneg %p69
        $region14: #{cifar10nn_forward.1} parent=11 // pred_check_branch
          %343 = sbr.rel (%p341) target = $region16
        $region15: #{cifar10nn_forward.1} parent=11 // pred_region
          _
        $region16: #{cifar10nn_forward.1} parent=11 // pred_fallthru
          _
        // Predicated region
        $region17: #{cifar10nn_forward.1} parent=11 // pred_check
          %p344 = pneg %p90
        $region18: #{cifar10nn_forward.1} parent=11 // pred_check_branch
          %346 = sbr.rel (%p344) target = $region20
        $region19: #{cifar10nn_forward.1} parent=11 // pred_region
          _
        $region20: #{cifar10nn_forward.1} parent=11 // pred_fallthru
          _
        // Predicated region
        $region21: #{cifar10nn_forward.1} parent=11 // pred_check
          %p347 = pneg %p111
        $region22: #{cifar10nn_forward.1} parent=11 // pred_check_branch
          %349 = sbr.rel (%p347) target = $region24
        $region23: #{cifar10nn_forward.1} parent=11 // pred_region
          _
        $region24: #{cifar10nn_forward.1} parent=11 // pred_fallthru
          _
        // Predicated region
        $region25: #{cifar10nn_forward.1} parent=11 // pred_check
          %p350 = pneg %p132
        $region26: #{cifar10nn_forward.1} parent=11 // pred_check_branch
          %352 = sbr.rel (%p350) target = $region28
        $region27: #{cifar10nn_forward.1} parent=11 // pred_region
          _
        $region28: #{cifar10nn_forward.1} parent=11 // pred_fallthru
          _
        // Predicated region
        $region29: #{cifar10nn_forward.1} parent=11 // pred_check
          %p353 = pneg %p153
        $region30: #{cifar10nn_forward.1} parent=11 // pred_check_branch
          %355 = sbr.rel (%p353) target = $region32
        $region31: #{cifar10nn_forward.1} parent=11 // pred_region
          _
        $region32: #{cifar10nn_forward.1} parent=11 // pred_fallthru
          _
        // Predicated region
        $region33: #{cifar10nn_forward.1} parent=11 // pred_check
          %p356 = pneg %p174
        $region34: #{cifar10nn_forward.1} parent=11 // pred_check_branch
          %358 = sbr.rel (%p356) target = $region36
        $region35: #{cifar10nn_forward.1} parent=11 // pred_region
          _
        $region36: #{cifar10nn_forward.1} parent=11 // pred_fallthru
          _
        // Predicated region
        $region37: #{cifar10nn_forward.1} parent=11 // pred_check
          %p359 = pneg %p195
        $region38: #{cifar10nn_forward.1} parent=11 // pred_check_branch
          %361 = sbr.rel (%p359) target = $region40
        $region39: #{cifar10nn_forward.1} parent=11 // pred_region
          _
        $region40: #{cifar10nn_forward.1} parent=11 // pred_fallthru
          _
        // Predicated region
        $region41: #{cifar10nn_forward.1} parent=11 // pred_check
          %p362 = pneg %p216
        $region42: #{cifar10nn_forward.1} parent=11 // pred_check_branch
          %364 = sbr.rel (%p362) target = $region44
        $region43: #{cifar10nn_forward.1} parent=11 // pred_region
          _
        $region44: #{cifar10nn_forward.1} parent=11 // pred_fallthru
          _
        // Predicated region
        $region45: #{cifar10nn_forward.1} parent=11 // pred_check
          %p365 = pneg %p237
        $region46: #{cifar10nn_forward.1} parent=11 // pred_check_branch
          %367 = sbr.rel (%p365) target = $region48
        $region47: #{cifar10nn_forward.1} parent=11 // pred_region
          _
        $region48: #{cifar10nn_forward.1} parent=11 // pred_fallthru
          _
        // Predicated region
        $region49: #{cifar10nn_forward.1} parent=11 // pred_check
          %p368 = pneg %p258
        $region50: #{cifar10nn_forward.1} parent=11 // pred_check_branch
          %370 = sbr.rel (%p368) target = $region52
        $region51: #{cifar10nn_forward.1} parent=11 // pred_region
          _
        $region52: #{cifar10nn_forward.1} parent=11 // pred_fallthru
          _
        // Predicated region
        $region53: #{cifar10nn_forward.1} parent=11 // pred_check
          %p371 = pneg %p279
        $region54: #{cifar10nn_forward.1} parent=11 // pred_check_branch
          %373 = sbr.rel (%p371) target = $region56
        $region55: #{cifar10nn_forward.1} parent=11 // pred_region
          _
        $region56: #{cifar10nn_forward.1} parent=11 // pred_fallthru
          _
        // Predicated region
        $region57: #{cifar10nn_forward.1} parent=11 // pred_check
          %p374 = pneg %p300
        $region58: #{cifar10nn_forward.1} parent=11 // pred_check_branch
          %376 = sbr.rel (%p374) target = $region60
        $region59: #{cifar10nn_forward.1} parent=11 // pred_region
          _
        $region60: #{cifar10nn_forward.1} parent=11 // pred_fallthru
          _
      $region12: #{cifar10nn_forward.1} parent=5 // pred_fallthru
        _
      %p377 = scmp.lt.s32.totalorder %s22, 2
      // Predicated region
      $region61: #{cifar10nn_forward.1} parent=5 // pred_check
        %p378 = pneg %p377
      $region62: #{cifar10nn_forward.1} parent=5 // pred_check_branch
        %380 = sbr.rel (%p378) target = $region64
      $region63: #{cifar10nn_forward.1} parent=5 // pred_region
        // Predicated region
        $region65: #{cifar10nn_forward.1} parent=63 // pred_check
          %p381 = pneg %p42
        $region66: #{cifar10nn_forward.1} parent=63 // pred_check_branch
          %383 = sbr.rel (%p381) target = $region68
        $region67: #{cifar10nn_forward.1} parent=63 // pred_region
          %s384 = sand.u32 %s32, 1
          %s385 = sand.u32 %s32, 1
          %s386 = smul.addr %s385, 272
          %s387 = scalar_lea.vmem [#allocation2], %s386
          %s388 = smul.addr %s22, 8
          %s389 = scalar_lea.vmem %s0, %s388
          // Predicated region
          $region69: #{cifar10nn_forward.1} parent=67 // pred_check
            _
          $region70: #{cifar10nn_forward.1} parent=67 // pred_check_branch
            %391 = sbr.rel (0) target = $region72
          $region71: #{cifar10nn_forward.1} parent=67 // pred_region
            // Predicated region
            $region73: #{cifar10nn_forward.1} parent=71 // pred_check
              _
            $region74: #{cifar10nn_forward.1} parent=71 // pred_check_branch
              %393 = sbr.rel (0) target = $region76
            $region75: #{cifar10nn_forward.1} parent=71 // pred_region
              // Predicated region
              $region88: #{cifar10nn_forward.1} parent=75 // pred_check
                _
              $region89: #{cifar10nn_forward.1} parent=75 // pred_check_branch
                %474 = sbr.rel (0) target = $region91
              $region90: #{cifar10nn_forward.1} parent=75 // pred_region
                loop: start=0, step=1, limit=1
                $region92: #{cifar10nn_forward.1} parent=90 // loop_pre_header
                  _
                $region93: #{cifar10nn_forward.1} parent=90 // loop_header
                  %s476 = sphi 0, %s480
                  %p477 = scmp.ge.s32.totalorder %s476, 1
                  %s481 = sphi %s389, %s389
                  %s482 = sphi %s387, %s387
                $region94: #{cifar10nn_forward.1} parent=90 // loop_header_branch
                  %479 = sbr.rel (%p477) target = $region98
                $region95: #{cifar10nn_forward.1} parent=90 // loop_body
                  %v483 = vld [vmem:[%s481] sm:$0xff]
                  %484 = vst [vmem:[%s482] sm:$0xff] %v483
                  %v485 = vld [vmem:[%s481 + $0x10] sm:$0xff]
                  %486 = vst [vmem:[%s482 + $0x8] sm:$0xff] %v485
                  %v487 = vld [vmem:[%s481 + $0x20] sm:$0xff]
                  %488 = vst [vmem:[%s482 + $0x10] sm:$0xff] %v487
                  %v489 = vld [vmem:[%s481 + $0x30] sm:$0xff]
                  %490 = vst [vmem:[%s482 + $0x18] sm:$0xff] %v489
                  %v491 = vld [vmem:[%s481 + $0x40] sm:$0xff]
                  %492 = vst [vmem:[%s482 + $0x20] sm:$0xff] %v491
                  %v493 = vld [vmem:[%s481 + $0x50] sm:$0xff]
                  %494 = vst [vmem:[%s482 + $0x28] sm:$0xff] %v493
                  %v495 = vld [vmem:[%s481 + $0x60] sm:$0xff]
                  %496 = vst [vmem:[%s482 + $0x30] sm:$0xff] %v495
                  %v497 = vld [vmem:[%s481 + $0x70] sm:$0xff]
                  %498 = vst [vmem:[%s482 + $0x38] sm:$0xff] %v497
                  %v499 = vld [vmem:[%s481 + $0x80] sm:$0xff]
                  %500 = vst [vmem:[%s482 + $0x40] sm:$0xff] %v499
                  %v501 = vld [vmem:[%s481 + $0x90] sm:$0xff]
                  %502 = vst [vmem:[%s482 + $0x48] sm:$0xff] %v501
                  %v503 = vld [vmem:[%s481 + $0xa0] sm:$0xff]
                  %504 = vst [vmem:[%s482 + $0x50] sm:$0xff] %v503
                  %v505 = vld [vmem:[%s481 + $0xb0] sm:$0xff]
                  %506 = vst [vmem:[%s482 + $0x58] sm:$0xff] %v505
                  %v507 = vld [vmem:[%s481 + $0xc0] sm:$0xff]
                  %508 = vst [vmem:[%s482 + $0x60] sm:$0xff] %v507
                  %v509 = vld [vmem:[%s481 + $0xd0] sm:$0xff]
                  %510 = vst [vmem:[%s482 + $0x68] sm:$0xff] %v509
                  %v511 = vld [vmem:[%s481 + $0xe0] sm:$0xff]
                  %512 = vst [vmem:[%s482 + $0x70] sm:$0xff] %v511
                  %v513 = vld [vmem:[%s481 + $0xf0] sm:$0xff]
                  %514 = vst [vmem:[%s482 + $0x78] sm:$0xff] %v513
                  %v515 = vld [vmem:[%s481 + $0x100] sm:$0xff]
                  %516 = vst [vmem:[%s482 + $0x80] sm:$0xff] %v515
                  %v517 = vld [vmem:[%s481 + $0x110] sm:$0xff]
                  %518 = vst [vmem:[%s482 + $0x88] sm:$0xff] %v517
                  %v519 = vld [vmem:[%s481 + $0x120] sm:$0xff]
                  %520 = vst [vmem:[%s482 + $0x90] sm:$0xff] %v519
                  %v521 = vld [vmem:[%s481 + $0x130] sm:$0xff]
                  %522 = vst [vmem:[%s482 + $0x98] sm:$0xff] %v521
                  %v523 = vld [vmem:[%s481 + $0x140] sm:$0xff]
                  %524 = vst [vmem:[%s482 + $0xa0] sm:$0xff] %v523
                  %v525 = vld [vmem:[%s481 + $0x150] sm:$0xff]
                  %526 = vst [vmem:[%s482 + $0xa8] sm:$0xff] %v525
                  %v527 = vld [vmem:[%s481 + $0x160] sm:$0xff]
                  %528 = vst [vmem:[%s482 + $0xb0] sm:$0xff] %v527
                  %v529 = vld [vmem:[%s481 + $0x170] sm:$0xff]
                  %530 = vst [vmem:[%s482 + $0xb8] sm:$0xff] %v529
                  %v531 = vld [vmem:[%s481 + $0x180] sm:$0xff]
                  %532 = vst [vmem:[%s482 + $0xc0] sm:$0xff] %v531
                  %v533 = vld [vmem:[%s481 + $0x190] sm:$0xff]
                  %534 = vst [vmem:[%s482 + $0xc8] sm:$0xff] %v533
                  %v535 = vld [vmem:[%s481 + $0x1a0] sm:$0xff]
                  %536 = vst [vmem:[%s482 + $0xd0] sm:$0xff] %v535
                  %v537 = vld [vmem:[%s481 + $0x1b0] sm:$0xff]
                  %538 = vst [vmem:[%s482 + $0xd8] sm:$0xff] %v537
                  %v539 = vld [vmem:[%s481 + $0x1c0] sm:$0xff]
                  %540 = vst [vmem:[%s482 + $0xe0] sm:$0xff] %v539
                  %v541 = vld [vmem:[%s481 + $0x1d0] sm:$0xff]
                  %542 = vst [vmem:[%s482 + $0xe8] sm:$0xff] %v541
                  %v543 = vld [vmem:[%s481 + $0x1e0] sm:$0xff]
                  %544 = vst [vmem:[%s482 + $0xf0] sm:$0xff] %v543
                  %v545 = vld [vmem:[%s481 + $0x1f0] sm:$0xff]
                  %546 = vst [vmem:[%s482 + $0xf8] sm:$0xff] %v545
                  %v547 = vld [vmem:[%s481 + $0x200] sm:$0xff]
                  %548 = vst [vmem:[%s482 + $0x100] sm:$0xff] %v547
                  %v549 = vld [vmem:[%s481 + $0x210] sm:$0xff]
                  %550 = vst [vmem:[%s482 + $0x108] sm:$0xff] %v549
                $region96: #{cifar10nn_forward.1} parent=90 // loop_footer
                  %s480 = sadd.s32 1, %s476
                $region97: #{cifar10nn_forward.1} parent=90 // loop_footer_branch
                  %475 = sbr.rel target = $region93
                $region98: #{cifar10nn_forward.1} parent=90 // loop_exit
                  _
              $region91: #{cifar10nn_forward.1} parent=75 // pred_fallthru
                _
              // Predicated region
              $region99: #{cifar10nn_forward.1} parent=75 // pred_check
                _
              $region100: #{cifar10nn_forward.1} parent=75 // pred_check_branch
                %552 = sbr.rel target = $region102
              $region101: #{cifar10nn_forward.1} parent=75 // pred_region
                _
              $region102: #{cifar10nn_forward.1} parent=75 // pred_fallthru
                _
            $region76: #{cifar10nn_forward.1} parent=71 // pred_fallthru
              _
            // Predicated region
            $region77: #{cifar10nn_forward.1} parent=71 // pred_check
              _
            $region78: #{cifar10nn_forward.1} parent=71 // pred_check_branch
              %395 = sbr.rel target = $region80
            $region79: #{cifar10nn_forward.1} parent=71 // pred_region
              loop: start=0, step=1, limit=1
              $region81: #{cifar10nn_forward.1} parent=79 // loop_pre_header
                _
              $region82: #{cifar10nn_forward.1} parent=79 // loop_header
                %s398 = sphi 0, %s402
                %p399 = scmp.ge.s32.totalorder %s398, 1
                %s403 = sphi %s389, %s389
                %s404 = sphi %s387, %s387
              $region83: #{cifar10nn_forward.1} parent=79 // loop_header_branch
                %401 = sbr.rel (%p399) target = $region87
              $region84: #{cifar10nn_forward.1} parent=79 // loop_body
                %v405 = vld [vmem:[%s403] sm:$0xff]
                %406 = vst [vmem:[%s404] sm:$0xff] %v405
                %v407 = vld [vmem:[%s403 + $0x10] sm:$0xff]
                %408 = vst [vmem:[%s404 + $0x8] sm:$0xff] %v407
                %v409 = vld [vmem:[%s403 + $0x20] sm:$0xff]
                %410 = vst [vmem:[%s404 + $0x10] sm:$0xff] %v409
                %v411 = vld [vmem:[%s403 + $0x30] sm:$0xff]
                %412 = vst [vmem:[%s404 + $0x18] sm:$0xff] %v411
                %v413 = vld [vmem:[%s403 + $0x40] sm:$0xff]
                %414 = vst [vmem:[%s404 + $0x20] sm:$0xff] %v413
                %v415 = vld [vmem:[%s403 + $0x50] sm:$0xff]
                %416 = vst [vmem:[%s404 + $0x28] sm:$0xff] %v415
                %v417 = vld [vmem:[%s403 + $0x60] sm:$0xff]
                %418 = vst [vmem:[%s404 + $0x30] sm:$0xff] %v417
                %v419 = vld [vmem:[%s403 + $0x70] sm:$0xff]
                %420 = vst [vmem:[%s404 + $0x38] sm:$0xff] %v419
                %v421 = vld [vmem:[%s403 + $0x80] sm:$0xff]
                %422 = vst [vmem:[%s404 + $0x40] sm:$0xff] %v421
                %v423 = vld [vmem:[%s403 + $0x90] sm:$0xff]
                %424 = vst [vmem:[%s404 + $0x48] sm:$0xff] %v423
                %v425 = vld [vmem:[%s403 + $0xa0] sm:$0xff]
                %426 = vst [vmem:[%s404 + $0x50] sm:$0xff] %v425
                %v427 = vld [vmem:[%s403 + $0xb0] sm:$0xff]
                %428 = vst [vmem:[%s404 + $0x58] sm:$0xff] %v427
                %v429 = vld [vmem:[%s403 + $0xc0] sm:$0xff]
                %430 = vst [vmem:[%s404 + $0x60] sm:$0xff] %v429
                %v431 = vld [vmem:[%s403 + $0xd0] sm:$0xff]
                %432 = vst [vmem:[%s404 + $0x68] sm:$0xff] %v431
                %v433 = vld [vmem:[%s403 + $0xe0] sm:$0xff]
                %434 = vst [vmem:[%s404 + $0x70] sm:$0xff] %v433
                %v435 = vld [vmem:[%s403 + $0xf0] sm:$0xff]
                %436 = vst [vmem:[%s404 + $0x78] sm:$0xff] %v435
                %v437 = vld [vmem:[%s403 + $0x100] sm:$0xff]
                %438 = vst [vmem:[%s404 + $0x80] sm:$0xff] %v437
                %v439 = vld [vmem:[%s403 + $0x110] sm:$0xff]
                %440 = vst [vmem:[%s404 + $0x88] sm:$0xff] %v439
                %v441 = vld [vmem:[%s403 + $0x120] sm:$0xff]
                %442 = vst [vmem:[%s404 + $0x90] sm:$0xff] %v441
                %v443 = vld [vmem:[%s403 + $0x130] sm:$0xff]
                %444 = vst [vmem:[%s404 + $0x98] sm:$0xff] %v443
                %v445 = vld [vmem:[%s403 + $0x140] sm:$0xff]
                %446 = vst [vmem:[%s404 + $0xa0] sm:$0xff] %v445
                %v447 = vld [vmem:[%s403 + $0x150] sm:$0xff]
                %448 = vst [vmem:[%s404 + $0xa8] sm:$0xff] %v447
                %v449 = vld [vmem:[%s403 + $0x160] sm:$0xff]
                %450 = vst [vmem:[%s404 + $0xb0] sm:$0xff] %v449
                %v451 = vld [vmem:[%s403 + $0x170] sm:$0xff]
                %452 = vst [vmem:[%s404 + $0xb8] sm:$0xff] %v451
                %v453 = vld [vmem:[%s403 + $0x180] sm:$0xff]
                %454 = vst [vmem:[%s404 + $0xc0] sm:$0xff] %v453
                %v455 = vld [vmem:[%s403 + $0x190] sm:$0xff]
                %456 = vst [vmem:[%s404 + $0xc8] sm:$0xff] %v455
                %v457 = vld [vmem:[%s403 + $0x1a0] sm:$0xff]
                %458 = vst [vmem:[%s404 + $0xd0] sm:$0xff] %v457
                %v459 = vld [vmem:[%s403 + $0x1b0] sm:$0xff]
                %460 = vst [vmem:[%s404 + $0xd8] sm:$0xff] %v459
                %v461 = vld [vmem:[%s403 + $0x1c0] sm:$0xff]
                %462 = vst [vmem:[%s404 + $0xe0] sm:$0xff] %v461
                %v463 = vld [vmem:[%s403 + $0x1d0] sm:$0xff]
                %464 = vst [vmem:[%s404 + $0xe8] sm:$0xff] %v463
                %v465 = vld [vmem:[%s403 + $0x1e0] sm:$0xff]
                %466 = vst [vmem:[%s404 + $0xf0] sm:$0xff] %v465
                %v467 = vld [vmem:[%s403 + $0x1f0] sm:$0xff]
                %468 = vst [vmem:[%s404 + $0xf8] sm:$0xff] %v467
                %v469 = vld [vmem:[%s403 + $0x200] sm:$0xff]
                %470 = vst [vmem:[%s404 + $0x100] sm:$0xff] %v469
                %v471 = vld [vmem:[%s403 + $0x210] sm:$0xff]
                %472 = vst [vmem:[%s404 + $0x108] sm:$0xff] %v471
              $region85: #{cifar10nn_forward.1} parent=79 // loop_footer
                %s402 = sadd.s32 1, %s398
              $region86: #{cifar10nn_forward.1} parent=79 // loop_footer_branch
                %397 = sbr.rel target = $region82
              $region87: #{cifar10nn_forward.1} parent=79 // loop_exit
                _
            $region80: #{cifar10nn_forward.1} parent=71 // pred_fallthru
              _
          $region72: #{cifar10nn_forward.1} parent=67 // pred_fallthru
            _
          %553 = vnop
        $region68: #{cifar10nn_forward.1} parent=63 // pred_fallthru
          _
      $region64: #{cifar10nn_forward.1} parent=5 // pred_fallthru
        _
      %p554 = scmp.le.s32.totalorder 1, %s22
      %p555 = scmp.lt.s32.totalorder %s22, 3
      %p556 = pnand %p554, %p555
      %p557 = pneg %p556
      // Predicated region
      $region103: #{cifar10nn_forward.1} parent=5 // pred_check
        _
      $region104: #{cifar10nn_forward.1} parent=5 // pred_check_branch
        %559 = sbr.rel (%p556) target = $region106
      $region105: #{cifar10nn_forward.1} parent=5 // pred_region
        %s560 = ssub.s32 %s22, 1
        %s561 = sand.u32 %s35, 1
        %s562 = sand.u32 %s35, 1
        %s563 = smul.addr %s562, 272
        %s564 = scalar_lea.vmem [#allocation2], %s563
        // Predicated region
        $region107: #{cifar10nn_forward.1} parent=105 // pred_check
          %p565 = pneg %p48
        $region108: #{cifar10nn_forward.1} parent=105 // pred_check_branch
          %567 = sbr.rel (%p565) target = $region110
        $region109: #{cifar10nn_forward.1} parent=105 // pred_region
          _
        $region110: #{cifar10nn_forward.1} parent=105 // pred_fallthru
          _
        %s568 = sand.u32 %s35, 1
        %s569 = sand.u32 %s35, 1
        %s570 = smul.addr %s569, 272
        %s571 = scalar_lea.vmem [#allocation2], %s570
        %p572 = pneg %p48
        %p573 = pneg %p45
        %p574 = pneg %p69
        %p575 = pneg %p66
        %p576 = pneg %p90
        %p577 = pneg %p87
        %p578 = pneg %p111
        %p579 = pneg %p108
        %p580 = pneg %p132
        %p581 = pneg %p129
        %p582 = pneg %p153
        %p583 = pneg %p150
        %p584 = pneg %p174
        %p585 = pneg %p171
        %p586 = pneg %p195
        %p587 = pneg %p192
        %p588 = pneg %p216
        %p589 = pneg %p213
        %p590 = pneg %p237
        %p591 = pneg %p234
        %p592 = pneg %p258
        %p593 = pneg %p255
        %p594 = pneg %p279
        %p595 = pneg %p276
        %p596 = pneg %p300
        %p597 = pneg %p297
        %p598 = pneg %p326
        %p599 = pneg %p323
        %s600 = sand.u32 %s313, 1
        %s601 = scalar_lea.sflag [#allocation4], %s600
        %s602 = sand.u32 %s313, 1
        %s603 = smul.addr %s602, 8
        %s604 = scalar_lea.vmem [#allocation3], %s603
        %v605 = vld [vmem:[%s564] sm:$0xff]
        %v606 = vld [vmem:[%s564 + $0x8] sm:$0xff]
        %v607 = vld [vmem:[%s564 + $0x10] sm:$0xff]
        %v608 = vld [vmem:[%s564 + $0x18] sm:$0xff]
        %v609 = vld [vmem:[%s564 + $0x20] sm:$0xff]
        %v610 = vld [vmem:[%s564 + $0x28] sm:$0xff]
        %v611 = vld [vmem:[%s564 + $0x30] sm:$0xff]
        %v612 = vld [vmem:[%s564 + $0x38] sm:$0xff]
        %v613 = vld [vmem:[%s564 + $0x40] sm:$0xff]
        %v614 = vld [vmem:[%s564 + $0x48] sm:$0xff]
        %v615 = vld [vmem:[%s564 + $0x50] sm:$0xff]
        %v616 = vld [vmem:[%s564 + $0x58] sm:$0xff]
        %v617 = vld [vmem:[%s564 + $0x60] sm:$0xff]
        %v618 = vld [vmem:[%s564 + $0x68] sm:$0xff]
        %v619 = vld [vmem:[%s564 + $0x70] sm:$0xff]
        %v620 = vld [vmem:[%s564 + $0x78] sm:$0xff]
        %v621 = vld [vmem:[%s564 + $0x80] sm:$0xff]
        %v622 = vld [vmem:[%s564 + $0x88] sm:$0xff]
        %v623 = vld [vmem:[%s564 + $0x90] sm:$0xff]
        %v624 = vld [vmem:[%s564 + $0x98] sm:$0xff]
        %v625 = vld [vmem:[%s564 + $0xa0] sm:$0xff]
        %v626 = vld [vmem:[%s564 + $0xa8] sm:$0xff]
        %v627 = vld [vmem:[%s564 + $0xb0] sm:$0xff]
        %v628 = vld [vmem:[%s564 + $0xb8] sm:$0xff]
        %v629 = vld [vmem:[%s564 + $0xc0] sm:$0xff]
        %v630 = vld [vmem:[%s564 + $0xc8] sm:$0xff]
        %v631 = vld [vmem:[%s564 + $0xd0] sm:$0xff]
        %v632 = vld [vmem:[%s564 + $0xd8] sm:$0xff]
        %v633 = vld [vmem:[%s564 + $0xe0] sm:$0xff]
        %v634 = vld [vmem:[%s564 + $0xe8] sm:$0xff]
        %v635 = vld [vmem:[%s564 + $0xf0] sm:$0xff]
        %v636 = vld [vmem:[%s564 + $0xf8] sm:$0xff]
        %v637 = vld [vmem:[%s1] sm:$0xff]
        %v638 = vld [vmem:[%s1 + $0x8] sm:$0xff]
        %v639 = vld [vmem:[%s1 + $0x10] sm:$0xff]
        %v640 = vld [vmem:[%s1 + $0x18] sm:$0xff]
        %v641 = vld [vmem:[%s1 + $0x20] sm:$0xff]
        %v642 = vld [vmem:[%s1 + $0x28] sm:$0xff]
        %v643 = vld [vmem:[%s1 + $0x30] sm:$0xff]
        %v644 = vld [vmem:[%s1 + $0x38] sm:$0xff]
        %v645 = vld [vmem:[%s1 + $0x40] sm:$0xff]
        %v646 = vld [vmem:[%s1 + $0x48] sm:$0xff]
        %v647 = vld [vmem:[%s1 + $0x50] sm:$0xff]
        %v648 = vld [vmem:[%s1 + $0x58] sm:$0xff]
        %v649 = vld [vmem:[%s1 + $0x60] sm:$0xff]
        %v650 = vld [vmem:[%s1 + $0x68] sm:$0xff]
        %v651 = vld [vmem:[%s1 + $0x70] sm:$0xff]
        %v652 = vld [vmem:[%s1 + $0x78] sm:$0xff]
        %v653 = vld [vmem:[%s1 + $0x80] sm:$0xff]
        %v654 = vld [vmem:[%s1 + $0x88] sm:$0xff]
        %v655 = vld [vmem:[%s1 + $0x90] sm:$0xff]
        %v656 = vld [vmem:[%s1 + $0x98] sm:$0xff]
        %v657 = vld [vmem:[%s1 + $0xa0] sm:$0xff]
        %v658 = vld [vmem:[%s1 + $0xa8] sm:$0xff]
        %v659 = vld [vmem:[%s1 + $0xb0] sm:$0xff]
        %v660 = vld [vmem:[%s1 + $0xb8] sm:$0xff]
        %v661 = vld [vmem:[%s1 + $0xc0] sm:$0xff]
        %v662 = vld [vmem:[%s1 + $0xc8] sm:$0xff]
        %v663 = vld [vmem:[%s1 + $0xd0] sm:$0xff]
        %v664 = vld [vmem:[%s1 + $0xd8] sm:$0xff]
        %v665 = vld [vmem:[%s1 + $0xe0] sm:$0xff]
        %v666 = vld [vmem:[%s1 + $0xe8] sm:$0xff]
        %v667 = vld [vmem:[%s1 + $0xf0] sm:$0xff]
        %v668 = vld [vmem:[%s1 + $0xf8] sm:$0xff]
        %v669 = vld [vmem:[%s1 + $0x100] sm:$0xff]
        %v670 = vld [vmem:[%s1 + $0x108] sm:$0xff]
        %v671 = vld [vmem:[%s1 + $0x110] sm:$0xff]
        %v672 = vld [vmem:[%s1 + $0x118] sm:$0xff]
        %v673 = vld [vmem:[%s1 + $0x120] sm:$0xff]
        %v674 = vld [vmem:[%s1 + $0x128] sm:$0xff]
        %v675 = vld [vmem:[%s1 + $0x130] sm:$0xff]
        %v676 = vld [vmem:[%s1 + $0x138] sm:$0xff]
        %v677 = vld [vmem:[%s1 + $0x140] sm:$0xff]
        %v678 = vld [vmem:[%s1 + $0x148] sm:$0xff]
        %v679 = vld [vmem:[%s1 + $0x150] sm:$0xff]
        %v680 = vld [vmem:[%s1 + $0x158] sm:$0xff]
        %v681 = vld [vmem:[%s1 + $0x160] sm:$0xff]
        %v682 = vld [vmem:[%s1 + $0x168] sm:$0xff]
        %v683 = vld [vmem:[%s1 + $0x170] sm:$0xff]
        %v684 = vld [vmem:[%s1 + $0x178] sm:$0xff]
        %v685 = vld [vmem:[%s1 + $0x180] sm:$0xff]
        %v686 = vld [vmem:[%s1 + $0x188] sm:$0xff]
        %v687 = vld [vmem:[%s1 + $0x190] sm:$0xff]
        %v688 = vld [vmem:[%s1 + $0x198] sm:$0xff]
        %v689 = vld [vmem:[%s1 + $0x1a0] sm:$0xff]
        %v690 = vld [vmem:[%s1 + $0x1a8] sm:$0xff]
        %v691 = vld [vmem:[%s1 + $0x1b0] sm:$0xff]
        %v692 = vld [vmem:[%s1 + $0x1b8] sm:$0xff]
        %v693 = vld [vmem:[%s1 + $0x1c0] sm:$0xff]
        %v694 = vld [vmem:[%s1 + $0x1c8] sm:$0xff]
        %v695 = vld [vmem:[%s1 + $0x1d0] sm:$0xff]
        %v696 = vld [vmem:[%s1 + $0x1d8] sm:$0xff]
        %v697 = vld [vmem:[%s1 + $0x1e0] sm:$0xff]
        %v698 = vld [vmem:[%s1 + $0x1e8] sm:$0xff]
        %v699 = vld [vmem:[%s1 + $0x1f0] sm:$0xff]
        %v700 = vld [vmem:[%s1 + $0x1f8] sm:$0xff]
        %s701 = scalar_lea.vmem %s564, 8 [#allocation2]
        %v702 = vld [vmem:[%s701] sm:$0xff]
        %v703 = vld [vmem:[%s701 + $0x8] sm:$0xff]
        %v704 = vld [vmem:[%s701 + $0x10] sm:$0xff]
        %v705 = vld [vmem:[%s701 + $0x18] sm:$0xff]
        %v706 = vld [vmem:[%s701 + $0x20] sm:$0xff]
        %v707 = vld [vmem:[%s701 + $0x28] sm:$0xff]
        %v708 = vld [vmem:[%s701 + $0x30] sm:$0xff]
        %v709 = vld [vmem:[%s701 + $0x38] sm:$0xff]
        %v710 = vld [vmem:[%s701 + $0x40] sm:$0xff]
        %v711 = vld [vmem:[%s701 + $0x48] sm:$0xff]
        %v712 = vld [vmem:[%s701 + $0x50] sm:$0xff]
        %v713 = vld [vmem:[%s701 + $0x58] sm:$0xff]
        %v714 = vld [vmem:[%s701 + $0x60] sm:$0xff]
        %v715 = vld [vmem:[%s701 + $0x68] sm:$0xff]
        %v716 = vld [vmem:[%s701 + $0x70] sm:$0xff]
        %v717 = vld [vmem:[%s701 + $0x78] sm:$0xff]
        %v718 = vld [vmem:[%s701 + $0x80] sm:$0xff]
        %v719 = vld [vmem:[%s701 + $0x88] sm:$0xff]
        %v720 = vld [vmem:[%s701 + $0x90] sm:$0xff]
        %v721 = vld [vmem:[%s701 + $0x98] sm:$0xff]
        %v722 = vld [vmem:[%s701 + $0xa0] sm:$0xff]
        %v723 = vld [vmem:[%s701 + $0xa8] sm:$0xff]
        %v724 = vld [vmem:[%s701 + $0xb0] sm:$0xff]
        %v725 = vld [vmem:[%s701 + $0xb8] sm:$0xff]
        %v726 = vld [vmem:[%s701 + $0xc0] sm:$0xff]
        %v727 = vld [vmem:[%s701 + $0xc8] sm:$0xff]
        %v728 = vld [vmem:[%s701 + $0xd0] sm:$0xff]
        %v729 = vld [vmem:[%s701 + $0xd8] sm:$0xff]
        %v730 = vld [vmem:[%s701 + $0xe0] sm:$0xff]
        %v731 = vld [vmem:[%s701 + $0xe8] sm:$0xff]
        %v732 = vld [vmem:[%s701 + $0xf0] sm:$0xff]
        %v733 = vld [vmem:[%s701 + $0xf8] sm:$0xff]
        %s734 = scalar_lea.vmem %s1, 512
        %v735 = vld [vmem:[%s734] sm:$0xff]
        %v736 = vld [vmem:[%s734 + $0x8] sm:$0xff]
        %v737 = vld [vmem:[%s734 + $0x10] sm:$0xff]
        %v738 = vld [vmem:[%s734 + $0x18] sm:$0xff]
        %v739 = vld [vmem:[%s734 + $0x20] sm:$0xff]
        %v740 = vld [vmem:[%s734 + $0x28] sm:$0xff]
        %v741 = vld [vmem:[%s734 + $0x30] sm:$0xff]
        %v742 = vld [vmem:[%s734 + $0x38] sm:$0xff]
        %v743 = vld [vmem:[%s734 + $0x40] sm:$0xff]
        %v744 = vld [vmem:[%s734 + $0x48] sm:$0xff]
        %v745 = vld [vmem:[%s734 + $0x50] sm:$0xff]
        %v746 = vld [vmem:[%s734 + $0x58] sm:$0xff]
        %v747 = vld [vmem:[%s734 + $0x60] sm:$0xff]
        %v748 = vld [vmem:[%s734 + $0x68] sm:$0xff]
        %v749 = vld [vmem:[%s734 + $0x70] sm:$0xff]
        %v750 = vld [vmem:[%s734 + $0x78] sm:$0xff]
        %v751 = vld [vmem:[%s734 + $0x80] sm:$0xff]
        %v752 = vld [vmem:[%s734 + $0x88] sm:$0xff]
        %v753 = vld [vmem:[%s734 + $0x90] sm:$0xff]
        %v754 = vld [vmem:[%s734 + $0x98] sm:$0xff]
        %v755 = vld [vmem:[%s734 + $0xa0] sm:$0xff]
        %v756 = vld [vmem:[%s734 + $0xa8] sm:$0xff]
        %v757 = vld [vmem:[%s734 + $0xb0] sm:$0xff]
        %v758 = vld [vmem:[%s734 + $0xb8] sm:$0xff]
        %v759 = vld [vmem:[%s734 + $0xc0] sm:$0xff]
        %v760 = vld [vmem:[%s734 + $0xc8] sm:$0xff]
        %v761 = vld [vmem:[%s734 + $0xd0] sm:$0xff]
        %v762 = vld [vmem:[%s734 + $0xd8] sm:$0xff]
        %v763 = vld [vmem:[%s734 + $0xe0] sm:$0xff]
        %v764 = vld [vmem:[%s734 + $0xe8] sm:$0xff]
        %v765 = vld [vmem:[%s734 + $0xf0] sm:$0xff]
        %v766 = vld [vmem:[%s734 + $0xf8] sm:$0xff]
        %v767 = vld [vmem:[%s734 + $0x100] sm:$0xff]
        %v768 = vld [vmem:[%s734 + $0x108] sm:$0xff]
        %v769 = vld [vmem:[%s734 + $0x110] sm:$0xff]
        %v770 = vld [vmem:[%s734 + $0x118] sm:$0xff]
        %v771 = vld [vmem:[%s734 + $0x120] sm:$0xff]
        %v772 = vld [vmem:[%s734 + $0x128] sm:$0xff]
        %v773 = vld [vmem:[%s734 + $0x130] sm:$0xff]
        %v774 = vld [vmem:[%s734 + $0x138] sm:$0xff]
        %v775 = vld [vmem:[%s734 + $0x140] sm:$0xff]
        %v776 = vld [vmem:[%s734 + $0x148] sm:$0xff]
        %v777 = vld [vmem:[%s734 + $0x150] sm:$0xff]
        %v778 = vld [vmem:[%s734 + $0x158] sm:$0xff]
        %v779 = vld [vmem:[%s734 + $0x160] sm:$0xff]
        %v780 = vld [vmem:[%s734 + $0x168] sm:$0xff]
        %v781 = vld [vmem:[%s734 + $0x170] sm:$0xff]
        %v782 = vld [vmem:[%s734 + $0x178] sm:$0xff]
        %v783 = vld [vmem:[%s734 + $0x180] sm:$0xff]
        %v784 = vld [vmem:[%s734 + $0x188] sm:$0xff]
        %v785 = vld [vmem:[%s734 + $0x190] sm:$0xff]
        %v786 = vld [vmem:[%s734 + $0x198] sm:$0xff]
        %v787 = vld [vmem:[%s734 + $0x1a0] sm:$0xff]
        %v788 = vld [vmem:[%s734 + $0x1a8] sm:$0xff]
        %v789 = vld [vmem:[%s734 + $0x1b0] sm:$0xff]
        %v790 = vld [vmem:[%s734 + $0x1b8] sm:$0xff]
        %v791 = vld [vmem:[%s734 + $0x1c0] sm:$0xff]
        %v792 = vld [vmem:[%s734 + $0x1c8] sm:$0xff]
        %v793 = vld [vmem:[%s734 + $0x1d0] sm:$0xff]
        %v794 = vld [vmem:[%s734 + $0x1d8] sm:$0xff]
        %v795 = vld [vmem:[%s734 + $0x1e0] sm:$0xff]
        %v796 = vld [vmem:[%s734 + $0x1e8] sm:$0xff]
        %v797 = vld [vmem:[%s734 + $0x1f0] sm:$0xff]
        %v798 = vld [vmem:[%s734 + $0x1f8] sm:$0xff]
        %799 = vmatprep.subr.mxu0 %v736
        %800 = vmatpush1.msra.mxu0 %v735
        %801 = vmatprep.subr.mxu0 %v740
        %802 = vmatpush1.msra.mxu0 %v739
        %803 = vmatprep.subr.mxu0 %v744
        %804 = vmatpush1.msra.mxu0 %v743
        %805 = vmatprep.subr.mxu0 %v748
        %806 = vmatpush1.msra.mxu0 %v747
        %807 = vmatprep.subr.mxu0 %v752
        %808 = vmatpush1.msra.mxu0 %v751
        %809 = vmatprep.subr.mxu0 %v756
        %810 = vmatpush1.msra.mxu0 %v755
        %811 = vmatprep.subr.mxu0 %v760
        %812 = vmatpush1.msra.mxu0 %v759
        %813 = vmatprep.subr.mxu0 %v764
        %814 = vmatpush1.msra.mxu0 %v763
        %815 = vmatprep.subr.mxu0 %v768
        %816 = vmatpush1.msra.mxu0 %v767
        %817 = vmatprep.subr.mxu0 %v772
        %818 = vmatpush1.msra.mxu0 %v771
        %819 = vmatprep.subr.mxu0 %v776
        %820 = vmatpush1.msra.mxu0 %v775
        %821 = vmatprep.subr.mxu0 %v780
        %822 = vmatpush1.msra.mxu0 %v779
        %823 = vmatprep.subr.mxu0 %v784
        %824 = vmatpush1.msra.mxu0 %v783
        %825 = vmatprep.subr.mxu0 %v788
        %826 = vmatpush1.msra.mxu0 %v787
        %827 = vmatprep.subr.mxu0 %v792
        %828 = vmatpush1.msra.mxu0 %v791
        %829 = vmatprep.subr.mxu0 %v796
        %830 = vmatpush1.msra.mxu0 %v795
        %831 = vmatprep.subr.mxu0 0.0
        %832 = vmatpush1.msra.mxu0 0.0
        %833 = vmatprep.subr.mxu0 0.0
        %834 = vmatpush1.msra.mxu0 0.0
        %835 = vmatprep.subr.mxu0 0.0
        %836 = vmatpush1.msra.mxu0 0.0
        %837 = vmatprep.subr.mxu0 0.0
        %838 = vmatpush1.msra.mxu0 0.0
        %839 = vmatprep.subr.mxu0 0.0
        %840 = vmatpush1.msra.mxu0 0.0
        %841 = vmatprep.subr.mxu0 0.0
        %842 = vmatpush1.msra.mxu0 0.0
        %843 = vmatprep.subr.mxu0 0.0
        %844 = vmatpush1.msra.mxu0 0.0
        %845 = vmatprep.subr.mxu0 0.0
        %846 = vmatpush1.msra.mxu0 0.0
        %847 = vmatprep.subr.mxu0 0.0
        %848 = vmatpush1.msra.mxu0 0.0
        %849 = vmatprep.subr.mxu0 0.0
        %850 = vmatpush1.msra.mxu0 0.0
        %851 = vmatprep.subr.mxu0 0.0
        %852 = vmatpush1.msra.mxu0 0.0
        %853 = vmatprep.subr.mxu0 0.0
        %854 = vmatpush1.msra.mxu0 0.0
        %855 = vmatprep.subr.mxu0 0.0
        %856 = vmatpush1.msra.mxu0 0.0
        %857 = vmatprep.subr.mxu0 0.0
        %858 = vmatpush1.msra.mxu0 0.0
        %859 = vmatprep.subr.mxu0 0.0
        %860 = vmatpush1.msra.mxu0 0.0
        %861 = vmatprep.subr.mxu0 0.0
        %862 = vmatpush1.msra.mxu0 0.0
        %863 = vmatprep.mubr.f32.mxu0 0.0
        %864 = vmatmul.mubr.f32.gmra.mrb[0].mxu0 %v702
        %v865 = vpop.f32.mrb[0].mxu0
        %v866 = vadd.f32 0.0, %v865
        %v867 = vpop.f32.mrb[0].mxu0
        %v868 = vadd.f32 0.0, %v867
        %869 = vmatprep.mubr.f32.mxu0 0.0
        %870 = vmatmul.mubr.f32.gmra.mrb[0].mxu0 %v703
        %v871 = vpop.f32.mrb[0].mxu0
        %v872 = vadd.f32 0.0, %v871
        %v873 = vpop.f32.mrb[0].mxu0
        %v874 = vadd.f32 0.0, %v873
        %875 = vmatprep.mubr.f32.mxu0 0.0
        %876 = vmatmul.mubr.f32.gmra.mrb[0].mxu0 %v704
        %v877 = vpop.f32.mrb[0].mxu0
        %v878 = vadd.f32 0.0, %v877
        %v879 = vpop.f32.mrb[0].mxu0
        %v880 = vadd.f32 0.0, %v879
        %881 = vmatprep.mubr.f32.mxu0 0.0
        %882 = vmatmul.mubr.f32.gmra.mrb[0].mxu0 %v705
        %v883 = vpop.f32.mrb[0].mxu0
        %v884 = vadd.f32 0.0, %v883
        %v885 = vpop.f32.mrb[0].mxu0
        %v886 = vadd.f32 0.0, %v885
        %887 = vmatprep.mubr.f32.mxu0 0.0
        %888 = vmatmul.mubr.f32.gmra.mrb[0].mxu0 %v706
        %v889 = vpop.f32.mrb[0].mxu0
        %v890 = vadd.f32 0.0, %v889
        %v891 = vpop.f32.mrb[0].mxu0
        %v892 = vadd.f32 0.0, %v891
        %893 = vmatprep.mubr.f32.mxu0 0.0
        %894 = vmatmul.mubr.f32.gmra.mrb[0].mxu0 %v707
        %v895 = vpop.f32.mrb[0].mxu0
        %v896 = vadd.f32 0.0, %v895
        %v897 = vpop.f32.mrb[0].mxu0
        %v898 = vadd.f32 0.0, %v897
        %899 = vmatprep.mubr.f32.mxu0 0.0
        %900 = vmatmul.mubr.f32.gmra.mrb[0].mxu0 %v708
        %v901 = vpop.f32.mrb[0].mxu0
        %v902 = vadd.f32 0.0, %v901
        %v903 = vpop.f32.mrb[0].mxu0
        %v904 = vadd.f32 0.0, %v903
        %905 = vmatprep.mubr.f32.mxu0 0.0
        %906 = vmatmul.mubr.f32.gmra.mrb[0].mxu0 %v709
        %v907 = vpop.f32.mrb[0].mxu0
        %v908 = vadd.f32 0.0, %v907
        %v909 = vpop.f32.mrb[0].mxu0
        %v910 = vadd.f32 0.0, %v909
        %911 = vmatprep.mubr.f32.mxu0 0.0
        %912 = vmatmul.mubr.f32.gmra.mrb[0].mxu0 %v710
        %v913 = vpop.f32.mrb[0].mxu0
        %v914 = vadd.f32 0.0, %v913
        %v915 = vpop.f32.mrb[0].mxu0
        %v916 = vadd.f32 0.0, %v915
        %917 = vmatprep.mubr.f32.mxu0 0.0
        %918 = vmatmul.mubr.f32.gmra.mrb[0].mxu0 %v711
        %v919 = vpop.f32.mrb[0].mxu0
        %v920 = vadd.f32 0.0, %v919
        %v921 = vpop.f32.mrb[0].mxu0
        %v922 = vadd.f32 0.0, %v921
        %923 = vmatprep.mubr.f32.mxu0 0.0
        %924 = vmatmul.mubr.f32.gmra.mrb[0].mxu0 %v712
        %v925 = vpop.f32.mrb[0].mxu0
        %v926 = vadd.f32 0.0, %v925
        %v927 = vpop.f32.mrb[0].mxu0
        %v928 = vadd.f32 0.0, %v927
        %929 = vmatprep.mubr.f32.mxu0 0.0
        %930 = vmatmul.mubr.f32.gmra.mrb[0].mxu0 %v713
        %v931 = vpop.f32.mrb[0].mxu0
        %v932 = vadd.f32 0.0, %v931
        %v933 = vpop.f32.mrb[0].mxu0
        %v934 = vadd.f32 0.0, %v933
        %935 = vmatprep.mubr.f32.mxu0 0.0
        %936 = vmatmul.mubr.f32.gmra.mrb[0].mxu0 %v714
        %v937 = vpop.f32.mrb[0].mxu0
        %v938 = vadd.f32 0.0, %v937
        %v939 = vpop.f32.mrb[0].mxu0
        %v940 = vadd.f32 0.0, %v939
        %941 = vmatprep.mubr.f32.mxu0 0.0
        %942 = vmatmul.mubr.f32.gmra.mrb[0].mxu0 %v715
        %v943 = vpop.f32.mrb[0].mxu0
        %v944 = vadd.f32 0.0, %v943
        %v945 = vpop.f32.mrb[0].mxu0
        %v946 = vadd.f32 0.0, %v945
        %947 = vmatprep.mubr.f32.mxu0 0.0
        %948 = vmatmul.mubr.f32.gmra.mrb[0].mxu0 %v716
        %v949 = vpop.f32.mrb[0].mxu0
        %v950 = vadd.f32 0.0, %v949
        %v951 = vpop.f32.mrb[0].mxu0
        %v952 = vadd.f32 0.0, %v951
        %953 = vmatprep.mubr.f32.mxu0 0.0
        %954 = vmatmul.mubr.f32.gmra.mrb[0].mxu0 %v717
        %v955 = vpop.f32.mrb[0].mxu0
        %v956 = vadd.f32 0.0, %v955
        %v957 = vpop.f32.mrb[0].mxu0
        %v958 = vadd.f32 0.0, %v957
        %959 = vmatprep.mubr.f32.mxu0 0.0
        %960 = vmatmul.mubr.f32.gmra.mrb[0].mxu0 %v718
        %v961 = vpop.f32.mrb[0].mxu0
        %v962 = vadd.f32 0.0, %v961
        %v963 = vpop.f32.mrb[0].mxu0
        %v964 = vadd.f32 0.0, %v963
        %965 = vmatprep.mubr.f32.mxu0 0.0
        %966 = vmatmul.mubr.f32.gmra.mrb[0].mxu0 %v719
        %v967 = vpop.f32.mrb[0].mxu0
        %v968 = vadd.f32 0.0, %v967
        %v969 = vpop.f32.mrb[0].mxu0
        %v970 = vadd.f32 0.0, %v969
        %971 = vmatprep.mubr.f32.mxu0 0.0
        %972 = vmatmul.mubr.f32.gmra.mrb[0].mxu0 %v720
        %v973 = vpop.f32.mrb[0].mxu0
        %v974 = vadd.f32 0.0, %v973
        %v975 = vpop.f32.mrb[0].mxu0
        %v976 = vadd.f32 0.0, %v975
        %977 = vmatprep.mubr.f32.mxu0 0.0
        %978 = vmatmul.mubr.f32.gmra.mrb[0].mxu0 %v721
        %v979 = vpop.f32.mrb[0].mxu0
        %v980 = vadd.f32 0.0, %v979
        %v981 = vpop.f32.mrb[0].mxu0
        %v982 = vadd.f32 0.0, %v981
        %983 = vmatprep.mubr.f32.mxu0 0.0
        %984 = vmatmul.mubr.f32.gmra.mrb[0].mxu0 %v722
        %v985 = vpop.f32.mrb[0].mxu0
        %v986 = vadd.f32 0.0, %v985
        %v987 = vpop.f32.mrb[0].mxu0
        %v988 = vadd.f32 0.0, %v987
        %989 = vmatprep.mubr.f32.mxu0 0.0
        %990 = vmatmul.mubr.f32.gmra.mrb[0].mxu0 %v723
        %v991 = vpop.f32.mrb[0].mxu0
        %v992 = vadd.f32 0.0, %v991
        %v993 = vpop.f32.mrb[0].mxu0
        %v994 = vadd.f32 0.0, %v993
        %995 = vmatprep.mubr.f32.mxu0 0.0
        %996 = vmatmul.mubr.f32.gmra.mrb[0].mxu0 %v724
        %v997 = vpop.f32.mrb[0].mxu0
        %v998 = vadd.f32 0.0, %v997
        %v999 = vpop.f32.mrb[0].mxu0
        %v1000 = vadd.f32 0.0, %v999
        %1001 = vmatprep.mubr.f32.mxu0 0.0
        %1002 = vmatmul.mubr.f32.gmra.mrb[0].mxu0 %v725
        %v1003 = vpop.f32.mrb[0].mxu0
        %v1004 = vadd.f32 0.0, %v1003
        %v1005 = vpop.f32.mrb[0].mxu0
        %v1006 = vadd.f32 0.0, %v1005
        %1007 = vmatprep.mubr.f32.mxu0 0.0
        %1008 = vmatmul.mubr.f32.gmra.mrb[0].mxu0 %v726
        %v1009 = vpop.f32.mrb[0].mxu0
        %v1010 = vadd.f32 0.0, %v1009
        %v1011 = vpop.f32.mrb[0].mxu0
        %v1012 = vadd.f32 0.0, %v1011
        %1013 = vmatprep.mubr.f32.mxu0 0.0
        %1014 = vmatmul.mubr.f32.gmra.mrb[0].mxu0 %v727
        %v1015 = vpop.f32.mrb[0].mxu0
        %v1016 = vadd.f32 0.0, %v1015
        %v1017 = vpop.f32.mrb[0].mxu0
        %v1018 = vadd.f32 0.0, %v1017
        %1019 = vmatprep.mubr.f32.mxu0 0.0
        %1020 = vmatmul.mubr.f32.gmra.mrb[0].mxu0 %v728
        %v1021 = vpop.f32.mrb[0].mxu0
        %v1022 = vadd.f32 0.0, %v1021
        %v1023 = vpop.f32.mrb[0].mxu0
        %v1024 = vadd.f32 0.0, %v1023
        %1025 = vmatprep.mubr.f32.mxu0 0.0
        %1026 = vmatmul.mubr.f32.gmra.mrb[0].mxu0 %v729
        %v1027 = vpop.f32.mrb[0].mxu0
        %v1028 = vadd.f32 0.0, %v1027
        %v1029 = vpop.f32.mrb[0].mxu0
        %v1030 = vadd.f32 0.0, %v1029
        %1031 = vmatprep.mubr.f32.mxu0 0.0
        %1032 = vmatmul.mubr.f32.gmra.mrb[0].mxu0 %v730
        %v1033 = vpop.f32.mrb[0].mxu0
        %v1034 = vadd.f32 0.0, %v1033
        %v1035 = vpop.f32.mrb[0].mxu0
        %v1036 = vadd.f32 0.0, %v1035
        %1037 = vmatprep.mubr.f32.mxu0 0.0
        %1038 = vmatmul.mubr.f32.gmra.mrb[0].mxu0 %v731
        %v1039 = vpop.f32.mrb[0].mxu0
        %v1040 = vadd.f32 0.0, %v1039
        %v1041 = vpop.f32.mrb[0].mxu0
        %v1042 = vadd.f32 0.0, %v1041
        %1043 = vmatprep.mubr.f32.mxu0 0.0
        %1044 = vmatmul.mubr.f32.gmra.mrb[0].mxu0 %v732
        %v1045 = vpop.f32.mrb[0].mxu0
        %v1046 = vadd.f32 0.0, %v1045
        %v1047 = vpop.f32.mrb[0].mxu0
        %v1048 = vadd.f32 0.0, %v1047
        %1049 = vmatprep.mubr.f32.mxu0 0.0
        %1050 = vmatmul.mubr.f32.gmra.mrb[0].mxu0 %v733
        %v1051 = vpop.f32.mrb[0].mxu0
        %v1052 = vadd.f32 0.0, %v1051
        %v1053 = vpop.f32.mrb[0].mxu0
        %v1054 = vadd.f32 0.0, %v1053
        %1055 = vdwg.mxu0
        %1056 = vmatprep.subr.mxu0 %v738
        %1057 = vmatpush1.msra.mxu0 %v737
        %1058 = vmatprep.subr.mxu0 %v742
        %1059 = vmatpush1.msra.mxu0 %v741
        %1060 = vmatprep.subr.mxu0 %v746
        %1061 = vmatpush1.msra.mxu0 %v745
        %1062 = vmatprep.subr.mxu0 %v750
        %1063 = vmatpush1.msra.mxu0 %v749
        %1064 = vmatprep.subr.mxu0 %v754
        %1065 = vmatpush1.msra.mxu0 %v753
        %1066 = vmatprep.subr.mxu0 %v758
        %1067 = vmatpush1.msra.mxu0 %v757
        %1068 = vmatprep.subr.mxu0 %v762
        %1069 = vmatpush1.msra.mxu0 %v761
        %1070 = vmatprep.subr.mxu0 %v766
        %1071 = vmatpush1.msra.mxu0 %v765
        %1072 = vmatprep.subr.mxu0 %v770
        %1073 = vmatpush1.msra.mxu0 %v769
        %1074 = vmatprep.subr.mxu0 %v774
        %1075 = vmatpush1.msra.mxu0 %v773
        %1076 = vmatprep.subr.mxu0 %v778
        %1077 = vmatpush1.msra.mxu0 %v777
        %1078 = vmatprep.subr.mxu0 %v782
        %1079 = vmatpush1.msra.mxu0 %v781
        %1080 = vmatprep.subr.mxu0 %v786
        %1081 = vmatpush1.msra.mxu0 %v785
        %1082 = vmatprep.subr.mxu0 %v790
        %1083 = vmatpush1.msra.mxu0 %v789
        %1084 = vmatprep.subr.mxu0 %v794
        %1085 = vmatpush1.msra.mxu0 %v793
        %1086 = vmatprep.subr.mxu0 %v798
        %1087 = vmatpush1.msra.mxu0 %v797
        %1088 = vmatprep.subr.mxu0 0.0
        %1089 = vmatpush1.msra.mxu0 0.0
        %1090 = vmatprep.subr.mxu0 0.0
        %1091 = vmatpush1.msra.mxu0 0.0
        %1092 = vmatprep.subr.mxu0 0.0
        %1093 = vmatpush1.msra.mxu0 0.0
        %1094 = vmatprep.subr.mxu0 0.0
        %1095 = vmatpush1.msra.mxu0 0.0
        %1096 = vmatprep.subr.mxu0 0.0
        %1097 = vmatpush1.msra.mxu0 0.0
        %1098 = vmatprep.subr.mxu0 0.0
        %1099 = vmatpush1.msra.mxu0 0.0
        %1100 = vmatprep.subr.mxu0 0.0
        %1101 = vmatpush1.msra.mxu0 0.0
        %1102 = vmatprep.subr.mxu0 0.0
        %1103 = vmatpush1.msra.mxu0 0.0
        %1104 = vmatprep.subr.mxu0 0.0
        %1105 = vmatpush1.msra.mxu0 0.0
        %1106 = vmatprep.subr.mxu0 0.0
        %1107 = vmatpush1.msra.mxu0 0.0
        %1108 = vmatprep.subr.mxu0 0.0
        %1109 = vmatpush1.msra.mxu0 0.0
        %1110 = vmatprep.subr.mxu0 0.0
        %1111 = vmatpush1.msra.mxu0 0.0
        %1112 = vmatprep.subr.mxu0 0.0
        %1113 = vmatpush1.msra.mxu0 0.0
        %1114 = vmatprep.subr.mxu0 0.0
        %1115 = vmatpush1.msra.mxu0 0.0
        %1116 = vmatprep.subr.mxu0 0.0
        %1117 = vmatpush1.msra.mxu0 0.0
        %1118 = vmatprep.subr.mxu0 0.0
        %1119 = vmatpush1.msra.mxu0 0.0
        %1120 = vmatprep.mubr.f32.mxu0 0.0
        %1121 = vmatmul.mubr.f32.gmra.mrb[0].mxu0 %v702
        %v1122 = vpop.f32.mrb[0].mxu0
        %v1123 = vadd.f32 0.0, %v1122
        %v1124 = vpop.f32.mrb[0].mxu0
        %v1125 = vadd.f32 0.0, %v1124
        %1126 = vmatprep.mubr.f32.mxu0 0.0
        %1127 = vmatmul.mubr.f32.gmra.mrb[0].mxu0 %v703
        %v1128 = vpop.f32.mrb[0].mxu0
        %v1129 = vadd.f32 0.0, %v1128
        %v1130 = vpop.f32.mrb[0].mxu0
        %v1131 = vadd.f32 0.0, %v1130
        %1132 = vmatprep.mubr.f32.mxu0 0.0
        %1133 = vmatmul.mubr.f32.gmra.mrb[0].mxu0 %v704
        %v1134 = vpop.f32.mrb[0].mxu0
        %v1135 = vadd.f32 0.0, %v1134
        %v1136 = vpop.f32.mrb[0].mxu0
        %v1137 = vadd.f32 0.0, %v1136
        %1138 = vmatprep.mubr.f32.mxu0 0.0
        %1139 = vmatmul.mubr.f32.gmra.mrb[0].mxu0 %v705
        %v1140 = vpop.f32.mrb[0].mxu0
        %v1141 = vadd.f32 0.0, %v1140
        %v1142 = vpop.f32.mrb[0].mxu0
        %v1143 = vadd.f32 0.0, %v1142
        %1144 = vmatprep.mubr.f32.mxu0 0.0
        %1145 = vmatmul.mubr.f32.gmra.mrb[0].mxu0 %v706
        %v1146 = vpop.f32.mrb[0].mxu0
        %v1147 = vadd.f32 0.0, %v1146
        %v1148 = vpop.f32.mrb[0].mxu0
        %v1149 = vadd.f32 0.0, %v1148
        %1150 = vmatprep.mubr.f32.mxu0 0.0
        %1151 = vmatmul.mubr.f32.gmra.mrb[0].mxu0 %v707
        %v1152 = vpop.f32.mrb[0].mxu0
        %v1153 = vadd.f32 0.0, %v1152
        %v1154 = vpop.f32.mrb[0].mxu0
        %v1155 = vadd.f32 0.0, %v1154
        %1156 = vmatprep.mubr.f32.mxu0 0.0
        %1157 = vmatmul.mubr.f32.gmra.mrb[0].mxu0 %v708
        %v1158 = vpop.f32.mrb[0].mxu0
        %v1159 = vadd.f32 0.0, %v1158
        %v1160 = vpop.f32.mrb[0].mxu0
        %v1161 = vadd.f32 0.0, %v1160
        %1162 = vmatprep.mubr.f32.mxu0 0.0
        %1163 = vmatmul.mubr.f32.gmra.mrb[0].mxu0 %v709
        %v1164 = vpop.f32.mrb[0].mxu0
        %v1165 = vadd.f32 0.0, %v1164
        %v1166 = vpop.f32.mrb[0].mxu0
        %v1167 = vadd.f32 0.0, %v1166
        %1168 = vmatprep.mubr.f32.mxu0 0.0
        %1169 = vmatmul.mubr.f32.gmra.mrb[0].mxu0 %v710
        %v1170 = vpop.f32.mrb[0].mxu0
        %v1171 = vadd.f32 0.0, %v1170
        %v1172 = vpop.f32.mrb[0].mxu0
        %v1173 = vadd.f32 0.0, %v1172
        %1174 = vmatprep.mubr.f32.mxu0 0.0
        %1175 = vmatmul.mubr.f32.gmra.mrb[0].mxu0 %v711
        %v1176 = vpop.f32.mrb[0].mxu0
        %v1177 = vadd.f32 0.0, %v1176
        %v1178 = vpop.f32.mrb[0].mxu0
        %v1179 = vadd.f32 0.0, %v1178
        %1180 = vmatprep.mubr.f32.mxu0 0.0
        %1181 = vmatmul.mubr.f32.gmra.mrb[0].mxu0 %v712
        %v1182 = vpop.f32.mrb[0].mxu0
        %v1183 = vadd.f32 0.0, %v1182
        %v1184 = vpop.f32.mrb[0].mxu0
        %v1185 = vadd.f32 0.0, %v1184
        %1186 = vmatprep.mubr.f32.mxu0 0.0
        %1187 = vmatmul.mubr.f32.gmra.mrb[0].mxu0 %v713
        %v1188 = vpop.f32.mrb[0].mxu0
        %v1189 = vadd.f32 0.0, %v1188
        %v1190 = vpop.f32.mrb[0].mxu0
        %v1191 = vadd.f32 0.0, %v1190
        %1192 = vmatprep.mubr.f32.mxu0 0.0
        %1193 = vmatmul.mubr.f32.gmra.mrb[0].mxu0 %v714
        %v1194 = vpop.f32.mrb[0].mxu0
        %v1195 = vadd.f32 0.0, %v1194
        %v1196 = vpop.f32.mrb[0].mxu0
        %v1197 = vadd.f32 0.0, %v1196
        %1198 = vmatprep.mubr.f32.mxu0 0.0
        %1199 = vmatmul.mubr.f32.gmra.mrb[0].mxu0 %v715
        %v1200 = vpop.f32.mrb[0].mxu0
        %v1201 = vadd.f32 0.0, %v1200
        %v1202 = vpop.f32.mrb[0].mxu0
        %v1203 = vadd.f32 0.0, %v1202
        %1204 = vmatprep.mubr.f32.mxu0 0.0
        %1205 = vmatmul.mubr.f32.gmra.mrb[0].mxu0 %v716
        %v1206 = vpop.f32.mrb[0].mxu0
        %v1207 = vadd.f32 0.0, %v1206
        %v1208 = vpop.f32.mrb[0].mxu0
        %v1209 = vadd.f32 0.0, %v1208
        %1210 = vmatprep.mubr.f32.mxu0 0.0
        %1211 = vmatmul.mubr.f32.gmra.mrb[0].mxu0 %v717
        %v1212 = vpop.f32.mrb[0].mxu0
        %v1213 = vadd.f32 0.0, %v1212
        %v1214 = vpop.f32.mrb[0].mxu0
        %v1215 = vadd.f32 0.0, %v1214
        %1216 = vmatprep.mubr.f32.mxu0 0.0
        %1217 = vmatmul.mubr.f32.gmra.mrb[0].mxu0 %v718
        %v1218 = vpop.f32.mrb[0].mxu0
        %v1219 = vadd.f32 0.0, %v1218
        %v1220 = vpop.f32.mrb[0].mxu0
        %v1221 = vadd.f32 0.0, %v1220
        %1222 = vmatprep.mubr.f32.mxu0 0.0
        %1223 = vmatmul.mubr.f32.gmra.mrb[0].mxu0 %v719
        %v1224 = vpop.f32.mrb[0].mxu0
        %v1225 = vadd.f32 0.0, %v1224
        %v1226 = vpop.f32.mrb[0].mxu0
        %v1227 = vadd.f32 0.0, %v1226
        %1228 = vmatprep.mubr.f32.mxu0 0.0
        %1229 = vmatmul.mubr.f32.gmra.mrb[0].mxu0 %v720
        %v1230 = vpop.f32.mrb[0].mxu0
        %v1231 = vadd.f32 0.0, %v1230
        %v1232 = vpop.f32.mrb[0].mxu0
        %v1233 = vadd.f32 0.0, %v1232
        %1234 = vmatprep.mubr.f32.mxu0 0.0
        %1235 = vmatmul.mubr.f32.gmra.mrb[0].mxu0 %v721
        %v1236 = vpop.f32.mrb[0].mxu0
        %v1237 = vadd.f32 0.0, %v1236
        %v1238 = vpop.f32.mrb[0].mxu0
        %v1239 = vadd.f32 0.0, %v1238
        %1240 = vmatprep.mubr.f32.mxu0 0.0
        %1241 = vmatmul.mubr.f32.gmra.mrb[0].mxu0 %v722
        %v1242 = vpop.f32.mrb[0].mxu0
        %v1243 = vadd.f32 0.0, %v1242
        %v1244 = vpop.f32.mrb[0].mxu0
        %v1245 = vadd.f32 0.0, %v1244
        %1246 = vmatprep.mubr.f32.mxu0 0.0
        %1247 = vmatmul.mubr.f32.gmra.mrb[0].mxu0 %v723
        %v1248 = vpop.f32.mrb[0].mxu0
        %v1249 = vadd.f32 0.0, %v1248
        %v1250 = vpop.f32.mrb[0].mxu0
        %v1251 = vadd.f32 0.0, %v1250
        %1252 = vmatprep.mubr.f32.mxu0 0.0
        %1253 = vmatmul.mubr.f32.gmra.mrb[0].mxu0 %v724
        %v1254 = vpop.f32.mrb[0].mxu0
        %v1255 = vadd.f32 0.0, %v1254
        %v1256 = vpop.f32.mrb[0].mxu0
        %v1257 = vadd.f32 0.0, %v1256
        %1258 = vmatprep.mubr.f32.mxu0 0.0
        %1259 = vmatmul.mubr.f32.gmra.mrb[0].mxu0 %v725
        %v1260 = vpop.f32.mrb[0].mxu0
        %v1261 = vadd.f32 0.0, %v1260
        %v1262 = vpop.f32.mrb[0].mxu0
        %v1263 = vadd.f32 0.0, %v1262
        %1264 = vmatprep.mubr.f32.mxu0 0.0
        %1265 = vmatmul.mubr.f32.gmra.mrb[0].mxu0 %v726
        %v1266 = vpop.f32.mrb[0].mxu0
        %v1267 = vadd.f32 0.0, %v1266
        %v1268 = vpop.f32.mrb[0].mxu0
        %v1269 = vadd.f32 0.0, %v1268
        %1270 = vmatprep.mubr.f32.mxu0 0.0
        %1271 = vmatmul.mubr.f32.gmra.mrb[0].mxu0 %v727
        %v1272 = vpop.f32.mrb[0].mxu0
        %v1273 = vadd.f32 0.0, %v1272
        %v1274 = vpop.f32.mrb[0].mxu0
        %v1275 = vadd.f32 0.0, %v1274
        %1276 = vmatprep.mubr.f32.mxu0 0.0
        %1277 = vmatmul.mubr.f32.gmra.mrb[0].mxu0 %v728
        %v1278 = vpop.f32.mrb[0].mxu0
        %v1279 = vadd.f32 0.0, %v1278
        %v1280 = vpop.f32.mrb[0].mxu0
        %v1281 = vadd.f32 0.0, %v1280
        %1282 = vmatprep.mubr.f32.mxu0 0.0
        %1283 = vmatmul.mubr.f32.gmra.mrb[0].mxu0 %v729
        %v1284 = vpop.f32.mrb[0].mxu0
        %v1285 = vadd.f32 0.0, %v1284
        %v1286 = vpop.f32.mrb[0].mxu0
        %v1287 = vadd.f32 0.0, %v1286
        %1288 = vmatprep.mubr.f32.mxu0 0.0
        %1289 = vmatmul.mubr.f32.gmra.mrb[0].mxu0 %v730
        %v1290 = vpop.f32.mrb[0].mxu0
        %v1291 = vadd.f32 0.0, %v1290
        %v1292 = vpop.f32.mrb[0].mxu0
        %v1293 = vadd.f32 0.0, %v1292
        %1294 = vmatprep.mubr.f32.mxu0 0.0
        %1295 = vmatmul.mubr.f32.gmra.mrb[0].mxu0 %v731
        %v1296 = vpop.f32.mrb[0].mxu0
        %v1297 = vadd.f32 0.0, %v1296
        %v1298 = vpop.f32.mrb[0].mxu0
        %v1299 = vadd.f32 0.0, %v1298
        %1300 = vmatprep.mubr.f32.mxu0 0.0
        %1301 = vmatmul.mubr.f32.gmra.mrb[0].mxu0 %v732
        %v1302 = vpop.f32.mrb[0].mxu0
        %v1303 = vadd.f32 0.0, %v1302
        %v1304 = vpop.f32.mrb[0].mxu0
        %v1305 = vadd.f32 0.0, %v1304
        %1306 = vmatprep.mubr.f32.mxu0 0.0
        %1307 = vmatmul.mubr.f32.gmra.mrb[0].mxu0 %v733
        %v1308 = vpop.f32.mrb[0].mxu0
        %v1309 = vadd.f32 0.0, %v1308
        %v1310 = vpop.f32.mrb[0].mxu0
        %v1311 = vadd.f32 0.0, %v1310
        %1312 = vdwg.mxu0
        %1313 = vmatprep.subr.mxu0 %v638
        %1314 = vmatpush1.msra.mxu0 %v637
        %1315 = vmatprep.subr.mxu0 %v642
        %1316 = vmatpush1.msra.mxu0 %v641
        %1317 = vmatprep.subr.mxu0 %v646
        %1318 = vmatpush1.msra.mxu0 %v645
        %1319 = vmatprep.subr.mxu0 %v650
        %1320 = vmatpush1.msra.mxu0 %v649
        %1321 = vmatprep.subr.mxu0 %v654
        %1322 = vmatpush1.msra.mxu0 %v653
        %1323 = vmatprep.subr.mxu0 %v658
        %1324 = vmatpush1.msra.mxu0 %v657
        %1325 = vmatprep.subr.mxu0 %v662
        %1326 = vmatpush1.msra.mxu0 %v661
        %1327 = vmatprep.subr.mxu0 %v666
        %1328 = vmatpush1.msra.mxu0 %v665
        %1329 = vmatprep.subr.mxu0 %v670
        %1330 = vmatpush1.msra.mxu0 %v669
        %1331 = vmatprep.subr.mxu0 %v674
        %1332 = vmatpush1.msra.mxu0 %v673
        %1333 = vmatprep.subr.mxu0 %v678
        %1334 = vmatpush1.msra.mxu0 %v677
        %1335 = vmatprep.subr.mxu0 %v682
        %1336 = vmatpush1.msra.mxu0 %v681
        %1337 = vmatprep.subr.mxu0 %v686
        %1338 = vmatpush1.msra.mxu0 %v685
        %1339 = vmatprep.subr.mxu0 %v690
        %1340 = vmatpush1.msra.mxu0 %v689
        %1341 = vmatprep.subr.mxu0 %v694
        %1342 = vmatpush1.msra.mxu0 %v693
        %1343 = vmatprep.subr.mxu0 %v698
        %1344 = vmatpush1.msra.mxu0 %v697
        %1345 = vmatprep.subr.mxu0 0.0
        %1346 = vmatpush1.msra.mxu0 0.0
        %1347 = vmatprep.subr.mxu0 0.0
        %1348 = vmatpush1.msra.mxu0 0.0
        %1349 = vmatprep.subr.mxu0 0.0
        %1350 = vmatpush1.msra.mxu0 0.0
        %1351 = vmatprep.subr.mxu0 0.0
        %1352 = vmatpush1.msra.mxu0 0.0
        %1353 = vmatprep.subr.mxu0 0.0
        %1354 = vmatpush1.msra.mxu0 0.0
        %1355 = vmatprep.subr.mxu0 0.0
        %1356 = vmatpush1.msra.mxu0 0.0
        %1357 = vmatprep.subr.mxu0 0.0
        %1358 = vmatpush1.msra.mxu0 0.0
        %1359 = vmatprep.subr.mxu0 0.0
        %1360 = vmatpush1.msra.mxu0 0.0
        %1361 = vmatprep.subr.mxu0 0.0
        %1362 = vmatpush1.msra.mxu0 0.0
        %1363 = vmatprep.subr.mxu0 0.0
        %1364 = vmatpush1.msra.mxu0 0.0
        %1365 = vmatprep.subr.mxu0 0.0
        %1366 = vmatpush1.msra.mxu0 0.0
        %1367 = vmatprep.subr.mxu0 0.0
        %1368 = vmatpush1.msra.mxu0 0.0
        %1369 = vmatprep.subr.mxu0 0.0
        %1370 = vmatpush1.msra.mxu0 0.0
        %1371 = vmatprep.subr.mxu0 0.0
        %1372 = vmatpush1.msra.mxu0 0.0
        %1373 = vmatprep.subr.mxu0 0.0
        %1374 = vmatpush1.msra.mxu0 0.0
        %1375 = vmatprep.subr.mxu0 0.0
        %1376 = vmatpush1.msra.mxu0 0.0
        %1377 = vmatprep.mubr.f32.mxu0 0.0
        %1378 = vmatmul.mubr.f32.gmra.mrb[0].mxu0 %v605
        %v1379 = vpop.f32.mrb[0].mxu0
        %v1380 = vadd.f32 %v866, %v1379
        %v1381 = vpop.f32.mrb[0].mxu0
        %v1382 = vadd.f32 %v868, %v1381
        %1383 = vmatprep.mubr.f32.mxu0 0.0
        %1384 = vmatmul.mubr.f32.gmra.mrb[0].mxu0 %v606
        %v1385 = vpop.f32.mrb[0].mxu0
        %v1386 = vadd.f32 %v872, %v1385
        %v1387 = vpop.f32.mrb[0].mxu0
        %v1388 = vadd.f32 %v874, %v1387
        %1389 = vmatprep.mubr.f32.mxu0 0.0
        %1390 = vmatmul.mubr.f32.gmra.mrb[0].mxu0 %v607
        %v1391 = vpop.f32.mrb[0].mxu0
        %v1392 = vadd.f32 %v878, %v1391
        %v1393 = vpop.f32.mrb[0].mxu0
        %v1394 = vadd.f32 %v880, %v1393
        %1395 = vmatprep.mubr.f32.mxu0 0.0
        %1396 = vmatmul.mubr.f32.gmra.mrb[0].mxu0 %v608
        %v1397 = vpop.f32.mrb[0].mxu0
        %v1398 = vadd.f32 %v884, %v1397
        %v1399 = vpop.f32.mrb[0].mxu0
        %v1400 = vadd.f32 %v886, %v1399
        %1401 = vmatprep.mubr.f32.mxu0 0.0
        %1402 = vmatmul.mubr.f32.gmra.mrb[0].mxu0 %v609
        %v1403 = vpop.f32.mrb[0].mxu0
        %v1404 = vadd.f32 %v890, %v1403
        %v1405 = vpop.f32.mrb[0].mxu0
        %v1406 = vadd.f32 %v892, %v1405
        %1407 = vmatprep.mubr.f32.mxu0 0.0
        %1408 = vmatmul.mubr.f32.gmra.mrb[0].mxu0 %v610
        %v1409 = vpop.f32.mrb[0].mxu0
        %v1410 = vadd.f32 %v896, %v1409
        %v1411 = vpop.f32.mrb[0].mxu0
        %v1412 = vadd.f32 %v898, %v1411
        %1413 = vmatprep.mubr.f32.mxu0 0.0
        %1414 = vmatmul.mubr.f32.gmra.mrb[0].mxu0 %v611
        %v1415 = vpop.f32.mrb[0].mxu0
        %v1416 = vadd.f32 %v902, %v1415
        %v1417 = vpop.f32.mrb[0].mxu0
        %v1418 = vadd.f32 %v904, %v1417
        %1419 = vmatprep.mubr.f32.mxu0 0.0
        %1420 = vmatmul.mubr.f32.gmra.mrb[0].mxu0 %v612
        %v1421 = vpop.f32.mrb[0].mxu0
        %v1422 = vadd.f32 %v908, %v1421
        %v1423 = vpop.f32.mrb[0].mxu0
        %v1424 = vadd.f32 %v910, %v1423
        %1425 = vmatprep.mubr.f32.mxu0 0.0
        %1426 = vmatmul.mubr.f32.gmra.mrb[0].mxu0 %v613
        %v1427 = vpop.f32.mrb[0].mxu0
        %v1428 = vadd.f32 %v914, %v1427
        %v1429 = vpop.f32.mrb[0].mxu0
        %v1430 = vadd.f32 %v916, %v1429
        %1431 = vmatprep.mubr.f32.mxu0 0.0
        %1432 = vmatmul.mubr.f32.gmra.mrb[0].mxu0 %v614
        %v1433 = vpop.f32.mrb[0].mxu0
        %v1434 = vadd.f32 %v920, %v1433
        %v1435 = vpop.f32.mrb[0].mxu0
        %v1436 = vadd.f32 %v922, %v1435
        %1437 = vmatprep.mubr.f32.mxu0 0.0
        %1438 = vmatmul.mubr.f32.gmra.mrb[0].mxu0 %v615
        %v1439 = vpop.f32.mrb[0].mxu0
        %v1440 = vadd.f32 %v926, %v1439
        %v1441 = vpop.f32.mrb[0].mxu0
        %v1442 = vadd.f32 %v928, %v1441
        %1443 = vmatprep.mubr.f32.mxu0 0.0
        %1444 = vmatmul.mubr.f32.gmra.mrb[0].mxu0 %v616
        %v1445 = vpop.f32.mrb[0].mxu0
        %v1446 = vadd.f32 %v932, %v1445
        %v1447 = vpop.f32.mrb[0].mxu0
        %v1448 = vadd.f32 %v934, %v1447
        %1449 = vmatprep.mubr.f32.mxu0 0.0
        %1450 = vmatmul.mubr.f32.gmra.mrb[0].mxu0 %v617
        %v1451 = vpop.f32.mrb[0].mxu0
        %v1452 = vadd.f32 %v938, %v1451
        %v1453 = vpop.f32.mrb[0].mxu0
        %v1454 = vadd.f32 %v940, %v1453
        %1455 = vmatprep.mubr.f32.mxu0 0.0
        %1456 = vmatmul.mubr.f32.gmra.mrb[0].mxu0 %v618
        %v1457 = vpop.f32.mrb[0].mxu0
        %v1458 = vadd.f32 %v944, %v1457
        %v1459 = vpop.f32.mrb[0].mxu0
        %v1460 = vadd.f32 %v946, %v1459
        %1461 = vmatprep.mubr.f32.mxu0 0.0
        %1462 = vmatmul.mubr.f32.gmra.mrb[0].mxu0 %v619
        %v1463 = vpop.f32.mrb[0].mxu0
        %v1464 = vadd.f32 %v950, %v1463
        %v1465 = vpop.f32.mrb[0].mxu0
        %v1466 = vadd.f32 %v952, %v1465
        %1467 = vmatprep.mubr.f32.mxu0 0.0
        %1468 = vmatmul.mubr.f32.gmra.mrb[0].mxu0 %v620
        %v1469 = vpop.f32.mrb[0].mxu0
        %v1470 = vadd.f32 %v956, %v1469
        %v1471 = vpop.f32.mrb[0].mxu0
        %v1472 = vadd.f32 %v958, %v1471
        %1473 = vmatprep.mubr.f32.mxu0 0.0
        %1474 = vmatmul.mubr.f32.gmra.mrb[0].mxu0 %v621
        %v1475 = vpop.f32.mrb[0].mxu0
        %v1476 = vadd.f32 %v962, %v1475
        %v1477 = vpop.f32.mrb[0].mxu0
        %v1478 = vadd.f32 %v964, %v1477
        %1479 = vmatprep.mubr.f32.mxu0 0.0
        %1480 = vmatmul.mubr.f32.gmra.mrb[0].mxu0 %v622
        %v1481 = vpop.f32.mrb[0].mxu0
        %v1482 = vadd.f32 %v968, %v1481
        %v1483 = vpop.f32.mrb[0].mxu0
        %v1484 = vadd.f32 %v970, %v1483
        %1485 = vmatprep.mubr.f32.mxu0 0.0
        %1486 = vmatmul.mubr.f32.gmra.mrb[0].mxu0 %v623
        %v1487 = vpop.f32.mrb[0].mxu0
        %v1488 = vadd.f32 %v974, %v1487
        %v1489 = vpop.f32.mrb[0].mxu0
        %v1490 = vadd.f32 %v976, %v1489
        %1491 = vmatprep.mubr.f32.mxu0 0.0
        %1492 = vmatmul.mubr.f32.gmra.mrb[0].mxu0 %v624
        %v1493 = vpop.f32.mrb[0].mxu0
        %v1494 = vadd.f32 %v980, %v1493
        %v1495 = vpop.f32.mrb[0].mxu0
        %v1496 = vadd.f32 %v982, %v1495
        %1497 = vmatprep.mubr.f32.mxu0 0.0
        %1498 = vmatmul.mubr.f32.gmra.mrb[0].mxu0 %v625
        %v1499 = vpop.f32.mrb[0].mxu0
        %v1500 = vadd.f32 %v986, %v1499
        %v1501 = vpop.f32.mrb[0].mxu0
        %v1502 = vadd.f32 %v988, %v1501
        %1503 = vmatprep.mubr.f32.mxu0 0.0
        %1504 = vmatmul.mubr.f32.gmra.mrb[0].mxu0 %v626
        %v1505 = vpop.f32.mrb[0].mxu0
        %v1506 = vadd.f32 %v992, %v1505
        %v1507 = vpop.f32.mrb[0].mxu0
        %v1508 = vadd.f32 %v994, %v1507
        %1509 = vmatprep.mubr.f32.mxu0 0.0
        %1510 = vmatmul.mubr.f32.gmra.mrb[0].mxu0 %v627
        %v1511 = vpop.f32.mrb[0].mxu0
        %v1512 = vadd.f32 %v998, %v1511
        %v1513 = vpop.f32.mrb[0].mxu0
        %v1514 = vadd.f32 %v1000, %v1513
        %1515 = vmatprep.mubr.f32.mxu0 0.0
        %1516 = vmatmul.mubr.f32.gmra.mrb[0].mxu0 %v628
        %v1517 = vpop.f32.mrb[0].mxu0
        %v1518 = vadd.f32 %v1004, %v1517
        %v1519 = vpop.f32.mrb[0].mxu0
        %v1520 = vadd.f32 %v1006, %v1519
        %1521 = vmatprep.mubr.f32.mxu0 0.0
        %1522 = vmatmul.mubr.f32.gmra.mrb[0].mxu0 %v629
        %v1523 = vpop.f32.mrb[0].mxu0
        %v1524 = vadd.f32 %v1010, %v1523
        %v1525 = vpop.f32.mrb[0].mxu0
        %v1526 = vadd.f32 %v1012, %v1525
        %1527 = vmatprep.mubr.f32.mxu0 0.0
        %1528 = vmatmul.mubr.f32.gmra.mrb[0].mxu0 %v630
        %v1529 = vpop.f32.mrb[0].mxu0
        %v1530 = vadd.f32 %v1016, %v1529
        %v1531 = vpop.f32.mrb[0].mxu0
        %v1532 = vadd.f32 %v1018, %v1531
        %1533 = vmatprep.mubr.f32.mxu0 0.0
        %1534 = vmatmul.mubr.f32.gmra.mrb[0].mxu0 %v631
        %v1535 = vpop.f32.mrb[0].mxu0
        %v1536 = vadd.f32 %v1022, %v1535
        %v1537 = vpop.f32.mrb[0].mxu0
        %v1538 = vadd.f32 %v1024, %v1537
        %1539 = vmatprep.mubr.f32.mxu0 0.0
        %1540 = vmatmul.mubr.f32.gmra.mrb[0].mxu0 %v632
        %v1541 = vpop.f32.mrb[0].mxu0
        %v1542 = vadd.f32 %v1028, %v1541
        %v1543 = vpop.f32.mrb[0].mxu0
        %v1544 = vadd.f32 %v1030, %v1543
        %1545 = vmatprep.mubr.f32.mxu0 0.0
        %1546 = vmatmul.mubr.f32.gmra.mrb[0].mxu0 %v633
        %v1547 = vpop.f32.mrb[0].mxu0
        %v1548 = vadd.f32 %v1034, %v1547
        %v1549 = vpop.f32.mrb[0].mxu0
        %v1550 = vadd.f32 %v1036, %v1549
        %1551 = vmatprep.mubr.f32.mxu0 0.0
        %1552 = vmatmul.mubr.f32.gmra.mrb[0].mxu0 %v634
        %v1553 = vpop.f32.mrb[0].mxu0
        %v1554 = vadd.f32 %v1040, %v1553
        %v1555 = vpop.f32.mrb[0].mxu0
        %v1556 = vadd.f32 %v1042, %v1555
        %1557 = vmatprep.mubr.f32.mxu0 0.0
        %1558 = vmatmul.mubr.f32.gmra.mrb[0].mxu0 %v635
        %v1559 = vpop.f32.mrb[0].mxu0
        %v1560 = vadd.f32 %v1046, %v1559
        %v1561 = vpop.f32.mrb[0].mxu0
        %v1562 = vadd.f32 %v1048, %v1561
        %1563 = vmatprep.mubr.f32.mxu0 0.0
        %1564 = vmatmul.mubr.f32.gmra.mrb[0].mxu0 %v636
        %v1565 = vpop.f32.mrb[0].mxu0
        %v1566 = vadd.f32 %v1052, %v1565
        %v1567 = vpop.f32.mrb[0].mxu0
        %v1568 = vadd.f32 %v1054, %v1567
        %1569 = vdwg.mxu0
        %1570 = vmatprep.subr.mxu0 %v640
        %1571 = vmatpush1.msra.mxu0 %v639
        %1572 = vmatprep.subr.mxu0 %v644
        %1573 = vmatpush1.msra.mxu0 %v643
        %1574 = vmatprep.subr.mxu0 %v648
        %1575 = vmatpush1.msra.mxu0 %v647
        %1576 = vmatprep.subr.mxu0 %v652
        %1577 = vmatpush1.msra.mxu0 %v651
        %1578 = vmatprep.subr.mxu0 %v656
        %1579 = vmatpush1.msra.mxu0 %v655
        %1580 = vmatprep.subr.mxu0 %v660
        %1581 = vmatpush1.msra.mxu0 %v659
        %1582 = vmatprep.subr.mxu0 %v664
        %1583 = vmatpush1.msra.mxu0 %v663
        %1584 = vmatprep.subr.mxu0 %v668
        %1585 = vmatpush1.msra.mxu0 %v667
        %1586 = vmatprep.subr.mxu0 %v672
        %1587 = vmatpush1.msra.mxu0 %v671
        %1588 = vmatprep.subr.mxu0 %v676
        %1589 = vmatpush1.msra.mxu0 %v675
        %1590 = vmatprep.subr.mxu0 %v680
        %1591 = vmatpush1.msra.mxu0 %v679
        %1592 = vmatprep.subr.mxu0 %v684
        %1593 = vmatpush1.msra.mxu0 %v683
        %1594 = vmatprep.subr.mxu0 %v688
        %1595 = vmatpush1.msra.mxu0 %v687
        %1596 = vmatprep.subr.mxu0 %v692
        %1597 = vmatpush1.msra.mxu0 %v691
        %1598 = vmatprep.subr.mxu0 %v696
        %1599 = vmatpush1.msra.mxu0 %v695
        %1600 = vmatprep.subr.mxu0 %v700
        %1601 = vmatpush1.msra.mxu0 %v699
        %1602 = vmatprep.subr.mxu0 0.0
        %1603 = vmatpush1.msra.mxu0 0.0
        %1604 = vmatprep.subr.mxu0 0.0
        %1605 = vmatpush1.msra.mxu0 0.0
        %1606 = vmatprep.subr.mxu0 0.0
        %1607 = vmatpush1.msra.mxu0 0.0
        %1608 = vmatprep.subr.mxu0 0.0
        %1609 = vmatpush1.msra.mxu0 0.0
        %1610 = vmatprep.subr.mxu0 0.0
        %1611 = vmatpush1.msra.mxu0 0.0
        %1612 = vmatprep.subr.mxu0 0.0
        %1613 = vmatpush1.msra.mxu0 0.0
        %1614 = vmatprep.subr.mxu0 0.0
        %1615 = vmatpush1.msra.mxu0 0.0
        %1616 = vmatprep.subr.mxu0 0.0
        %1617 = vmatpush1.msra.mxu0 0.0
        %1618 = vmatprep.subr.mxu0 0.0
        %1619 = vmatpush1.msra.mxu0 0.0
        %1620 = vmatprep.subr.mxu0 0.0
        %1621 = vmatpush1.msra.mxu0 0.0
        %1622 = vmatprep.subr.mxu0 0.0
        %1623 = vmatpush1.msra.mxu0 0.0
        %1624 = vmatprep.subr.mxu0 0.0
        %1625 = vmatpush1.msra.mxu0 0.0
        %1626 = vmatprep.subr.mxu0 0.0
        %1627 = vmatpush1.msra.mxu0 0.0
        %1628 = vmatprep.subr.mxu0 0.0
        %1629 = vmatpush1.msra.mxu0 0.0
        %1630 = vmatprep.subr.mxu0 0.0
        %1631 = vmatpush1.msra.mxu0 0.0
        %1632 = vmatprep.subr.mxu0 0.0
        %1633 = vmatpush1.msra.mxu0 0.0
        %1634 = vmatprep.mubr.f32.mxu0 0.0
        %1635 = vmatmul.mubr.f32.gmra.mrb[0].mxu0 %v605
        %v1636 = vpop.f32.mrb[0].mxu0
        %v1637 = vadd.f32 %v1123, %v1636
        %v1638 = vpop.f32.mrb[0].mxu0
        %v1639 = vadd.f32 %v1125, %v1638
        %1640 = vmatprep.mubr.f32.mxu0 0.0
        %1641 = vmatmul.mubr.f32.gmra.mrb[0].mxu0 %v606
        %v1642 = vpop.f32.mrb[0].mxu0
        %v1643 = vadd.f32 %v1129, %v1642
        %v1644 = vpop.f32.mrb[0].mxu0
        %v1645 = vadd.f32 %v1131, %v1644
        %1646 = vmatprep.mubr.f32.mxu0 0.0
        %1647 = vmatmul.mubr.f32.gmra.mrb[0].mxu0 %v607
        %v1648 = vpop.f32.mrb[0].mxu0
        %v1649 = vadd.f32 %v1135, %v1648
        %v1650 = vpop.f32.mrb[0].mxu0
        %v1651 = vadd.f32 %v1137, %v1650
        %1652 = vmatprep.mubr.f32.mxu0 0.0
        %1653 = vmatmul.mubr.f32.gmra.mrb[0].mxu0 %v608
        %v1654 = vpop.f32.mrb[0].mxu0
        %v1655 = vadd.f32 %v1141, %v1654
        %v1656 = vpop.f32.mrb[0].mxu0
        %v1657 = vadd.f32 %v1143, %v1656
        %1658 = vmatprep.mubr.f32.mxu0 0.0
        %1659 = vmatmul.mubr.f32.gmra.mrb[0].mxu0 %v609
        %v1660 = vpop.f32.mrb[0].mxu0
        %v1661 = vadd.f32 %v1147, %v1660
        %v1662 = vpop.f32.mrb[0].mxu0
        %v1663 = vadd.f32 %v1149, %v1662
        %1664 = vmatprep.mubr.f32.mxu0 0.0
        %1665 = vmatmul.mubr.f32.gmra.mrb[0].mxu0 %v610
        %v1666 = vpop.f32.mrb[0].mxu0
        %v1667 = vadd.f32 %v1153, %v1666
        %v1668 = vpop.f32.mrb[0].mxu0
        %v1669 = vadd.f32 %v1155, %v1668
        %1670 = vmatprep.mubr.f32.mxu0 0.0
        %1671 = vmatmul.mubr.f32.gmra.mrb[0].mxu0 %v611
        %v1672 = vpop.f32.mrb[0].mxu0
        %v1673 = vadd.f32 %v1159, %v1672
        %v1674 = vpop.f32.mrb[0].mxu0
        %v1675 = vadd.f32 %v1161, %v1674
        %1676 = vmatprep.mubr.f32.mxu0 0.0
        %1677 = vmatmul.mubr.f32.gmra.mrb[0].mxu0 %v612
        %v1678 = vpop.f32.mrb[0].mxu0
        %v1679 = vadd.f32 %v1165, %v1678
        %v1680 = vpop.f32.mrb[0].mxu0
        %v1681 = vadd.f32 %v1167, %v1680
        %1682 = vmatprep.mubr.f32.mxu0 0.0
        %1683 = vmatmul.mubr.f32.gmra.mrb[0].mxu0 %v613
        %v1684 = vpop.f32.mrb[0].mxu0
        %v1685 = vadd.f32 %v1171, %v1684
        %v1686 = vpop.f32.mrb[0].mxu0
        %v1687 = vadd.f32 %v1173, %v1686
        %1688 = vmatprep.mubr.f32.mxu0 0.0
        %1689 = vmatmul.mubr.f32.gmra.mrb[0].mxu0 %v614
        %v1690 = vpop.f32.mrb[0].mxu0
        %v1691 = vadd.f32 %v1177, %v1690
        %v1692 = vpop.f32.mrb[0].mxu0
        %v1693 = vadd.f32 %v1179, %v1692
        %1694 = vmatprep.mubr.f32.mxu0 0.0
        %1695 = vmatmul.mubr.f32.gmra.mrb[0].mxu0 %v615
        %v1696 = vpop.f32.mrb[0].mxu0
        %v1697 = vadd.f32 %v1183, %v1696
        %v1698 = vpop.f32.mrb[0].mxu0
        %v1699 = vadd.f32 %v1185, %v1698
        %1700 = vmatprep.mubr.f32.mxu0 0.0
        %1701 = vmatmul.mubr.f32.gmra.mrb[0].mxu0 %v616
        %v1702 = vpop.f32.mrb[0].mxu0
        %v1703 = vadd.f32 %v1189, %v1702
        %v1704 = vpop.f32.mrb[0].mxu0
        %v1705 = vadd.f32 %v1191, %v1704
        %1706 = vmatprep.mubr.f32.mxu0 0.0
        %1707 = vmatmul.mubr.f32.gmra.mrb[0].mxu0 %v617
        %v1708 = vpop.f32.mrb[0].mxu0
        %v1709 = vadd.f32 %v1195, %v1708
        %v1710 = vpop.f32.mrb[0].mxu0
        %v1711 = vadd.f32 %v1197, %v1710
        %1712 = vmatprep.mubr.f32.mxu0 0.0
        %1713 = vmatmul.mubr.f32.gmra.mrb[0].mxu0 %v618
        %v1714 = vpop.f32.mrb[0].mxu0
        %v1715 = vadd.f32 %v1201, %v1714
        %v1716 = vpop.f32.mrb[0].mxu0
        %v1717 = vadd.f32 %v1203, %v1716
        %1718 = vmatprep.mubr.f32.mxu0 0.0
        %1719 = vmatmul.mubr.f32.gmra.mrb[0].mxu0 %v619
        %v1720 = vpop.f32.mrb[0].mxu0
        %v1721 = vadd.f32 %v1207, %v1720
        %v1722 = vpop.f32.mrb[0].mxu0
        %v1723 = vadd.f32 %v1209, %v1722
        %1724 = vmatprep.mubr.f32.mxu0 0.0
        %1725 = vmatmul.mubr.f32.gmra.mrb[0].mxu0 %v620
        %v1726 = vpop.f32.mrb[0].mxu0
        %v1727 = vadd.f32 %v1213, %v1726
        %v1728 = vpop.f32.mrb[0].mxu0
        %v1729 = vadd.f32 %v1215, %v1728
        %1730 = vmatprep.mubr.f32.mxu0 0.0
        %1731 = vmatmul.mubr.f32.gmra.mrb[0].mxu0 %v621
        %v1732 = vpop.f32.mrb[0].mxu0
        %v1733 = vadd.f32 %v1219, %v1732
        %v1734 = vpop.f32.mrb[0].mxu0
        %v1735 = vadd.f32 %v1221, %v1734
        %1736 = vmatprep.mubr.f32.mxu0 0.0
        %1737 = vmatmul.mubr.f32.gmra.mrb[0].mxu0 %v622
        %v1738 = vpop.f32.mrb[0].mxu0
        %v1739 = vadd.f32 %v1225, %v1738
        %v1740 = vpop.f32.mrb[0].mxu0
        %v1741 = vadd.f32 %v1227, %v1740
        %1742 = vmatprep.mubr.f32.mxu0 0.0
        %1743 = vmatmul.mubr.f32.gmra.mrb[0].mxu0 %v623
        %v1744 = vpop.f32.mrb[0].mxu0
        %v1745 = vadd.f32 %v1231, %v1744
        %v1746 = vpop.f32.mrb[0].mxu0
        %v1747 = vadd.f32 %v1233, %v1746
        %1748 = vmatprep.mubr.f32.mxu0 0.0
        %1749 = vmatmul.mubr.f32.gmra.mrb[0].mxu0 %v624
        %v1750 = vpop.f32.mrb[0].mxu0
        %v1751 = vadd.f32 %v1237, %v1750
        %v1752 = vpop.f32.mrb[0].mxu0
        %v1753 = vadd.f32 %v1239, %v1752
        %1754 = vmatprep.mubr.f32.mxu0 0.0
        %1755 = vmatmul.mubr.f32.gmra.mrb[0].mxu0 %v625
        %v1756 = vpop.f32.mrb[0].mxu0
        %v1757 = vadd.f32 %v1243, %v1756
        %v1758 = vpop.f32.mrb[0].mxu0
        %v1759 = vadd.f32 %v1245, %v1758
        %1760 = vmatprep.mubr.f32.mxu0 0.0
        %1761 = vmatmul.mubr.f32.gmra.mrb[0].mxu0 %v626
        %v1762 = vpop.f32.mrb[0].mxu0
        %v1763 = vadd.f32 %v1249, %v1762
        %v1764 = vpop.f32.mrb[0].mxu0
        %v1765 = vadd.f32 %v1251, %v1764
        %1766 = vmatprep.mubr.f32.mxu0 0.0
        %1767 = vmatmul.mubr.f32.gmra.mrb[0].mxu0 %v627
        %v1768 = vpop.f32.mrb[0].mxu0
        %v1769 = vadd.f32 %v1255, %v1768
        %v1770 = vpop.f32.mrb[0].mxu0
        %v1771 = vadd.f32 %v1257, %v1770
        %1772 = vmatprep.mubr.f32.mxu0 0.0
        %1773 = vmatmul.mubr.f32.gmra.mrb[0].mxu0 %v628
        %v1774 = vpop.f32.mrb[0].mxu0
        %v1775 = vadd.f32 %v1261, %v1774
        %v1776 = vpop.f32.mrb[0].mxu0
        %v1777 = vadd.f32 %v1263, %v1776
        %1778 = vmatprep.mubr.f32.mxu0 0.0
        %1779 = vmatmul.mubr.f32.gmra.mrb[0].mxu0 %v629
        %v1780 = vpop.f32.mrb[0].mxu0
        %v1781 = vadd.f32 %v1267, %v1780
        %v1782 = vpop.f32.mrb[0].mxu0
        %v1783 = vadd.f32 %v1269, %v1782
        %1784 = vmatprep.mubr.f32.mxu0 0.0
        %1785 = vmatmul.mubr.f32.gmra.mrb[0].mxu0 %v630
        %v1786 = vpop.f32.mrb[0].mxu0
        %v1787 = vadd.f32 %v1273, %v1786
        %v1788 = vpop.f32.mrb[0].mxu0
        %v1789 = vadd.f32 %v1275, %v1788
        %1790 = vmatprep.mubr.f32.mxu0 0.0
        %1791 = vmatmul.mubr.f32.gmra.mrb[0].mxu0 %v631
        %v1792 = vpop.f32.mrb[0].mxu0
        %v1793 = vadd.f32 %v1279, %v1792
        %v1794 = vpop.f32.mrb[0].mxu0
        %v1795 = vadd.f32 %v1281, %v1794
        %1796 = vmatprep.mubr.f32.mxu0 0.0
        %1797 = vmatmul.mubr.f32.gmra.mrb[0].mxu0 %v632
        %v1798 = vpop.f32.mrb[0].mxu0
        %v1799 = vadd.f32 %v1285, %v1798
        %v1800 = vpop.f32.mrb[0].mxu0
        %v1801 = vadd.f32 %v1287, %v1800
        %1802 = vmatprep.mubr.f32.mxu0 0.0
        %1803 = vmatmul.mubr.f32.gmra.mrb[0].mxu0 %v633
        %v1804 = vpop.f32.mrb[0].mxu0
        %v1805 = vadd.f32 %v1291, %v1804
        %v1806 = vpop.f32.mrb[0].mxu0
        %v1807 = vadd.f32 %v1293, %v1806
        %1808 = vmatprep.mubr.f32.mxu0 0.0
        %1809 = vmatmul.mubr.f32.gmra.mrb[0].mxu0 %v634
        %v1810 = vpop.f32.mrb[0].mxu0
        %v1811 = vadd.f32 %v1297, %v1810
        %v1812 = vpop.f32.mrb[0].mxu0
        %v1813 = vadd.f32 %v1299, %v1812
        %1814 = vmatprep.mubr.f32.mxu0 0.0
        %1815 = vmatmul.mubr.f32.gmra.mrb[0].mxu0 %v635
        %v1816 = vpop.f32.mrb[0].mxu0
        %v1817 = vadd.f32 %v1303, %v1816
        %v1818 = vpop.f32.mrb[0].mxu0
        %v1819 = vadd.f32 %v1305, %v1818
        %1820 = vmatprep.mubr.f32.mxu0 0.0
        %1821 = vmatmul.mubr.f32.gmra.mrb[0].mxu0 %v636
        %v1822 = vpop.f32.mrb[0].mxu0
        %v1823 = vadd.f32 %v1309, %v1822
        %v1824 = vpop.f32.mrb[0].mxu0
        %v1825 = vadd.f32 %v1311, %v1824
        %1826 = vdwg.mxu0
        %s1827 = scalar_lea.vmem %s564, 16 [#allocation2]
        %v1828 = vld [vmem:[%s1827] sm:$0xff]
        %v1829 = vld [vmem:[%s1827 + $0x8] sm:$0xff]
        %v1830 = vld [vmem:[%s1827 + $0x10] sm:$0xff]
        %v1831 = vld [vmem:[%s1827 + $0x18] sm:$0xff]
        %v1832 = vld [vmem:[%s1827 + $0x20] sm:$0xff]
        %v1833 = vld [vmem:[%s1827 + $0x28] sm:$0xff]
        %v1834 = vld [vmem:[%s1827 + $0x30] sm:$0xff]
        %v1835 = vld [vmem:[%s1827 + $0x38] sm:$0xff]
        %v1836 = vld [vmem:[%s1827 + $0x40] sm:$0xff]
        %v1837 = vld [vmem:[%s1827 + $0x48] sm:$0xff]
        %v1838 = vld [vmem:[%s1827 + $0x50] sm:$0xff]
        %v1839 = vld [vmem:[%s1827 + $0x58] sm:$0xff]
        %v1840 = vld [vmem:[%s1827 + $0x60] sm:$0xff]
        %v1841 = vld [vmem:[%s1827 + $0x68] sm:$0xff]
        %v1842 = vld [vmem:[%s1827 + $0x70] sm:$0xff]
        %v1843 = vld [vmem:[%s1827 + $0x78] sm:$0xff]
        %v1844 = vld [vmem:[%s1827 + $0x80] sm:$0xff]
        %v1845 = vld [vmem:[%s1827 + $0x88] sm:$0xff]
        %v1846 = vld [vmem:[%s1827 + $0x90] sm:$0xff]
        %v1847 = vld [vmem:[%s1827 + $0x98] sm:$0xff]
        %v1848 = vld [vmem:[%s1827 + $0xa0] sm:$0xff]
        %v1849 = vld [vmem:[%s1827 + $0xa8] sm:$0xff]
        %v1850 = vld [vmem:[%s1827 + $0xb0] sm:$0xff]
        %v1851 = vld [vmem:[%s1827 + $0xb8] sm:$0xff]
        %v1852 = vld [vmem:[%s1827 + $0xc0] sm:$0xff]
        %v1853 = vld [vmem:[%s1827 + $0xc8] sm:$0xff]
        %v1854 = vld [vmem:[%s1827 + $0xd0] sm:$0xff]
        %v1855 = vld [vmem:[%s1827 + $0xd8] sm:$0xff]
        %v1856 = vld [vmem:[%s1827 + $0xe0] sm:$0xff]
        %v1857 = vld [vmem:[%s1827 + $0xe8] sm:$0xff]
        %v1858 = vld [vmem:[%s1827 + $0xf0] sm:$0xff]
        %v1859 = vld [vmem:[%s1827 + $0xf8] sm:$0xff]
        %s1860 = scalar_lea.vmem %s1, 1024
        %v1861 = vld [vmem:[%s1860] sm:$0xff]
        %v1862 = vld [vmem:[%s1860 + $0x8] sm:$0xff]
        %v1863 = vld [vmem:[%s1860 + $0x10] sm:$0xff]
        %v1864 = vld [vmem:[%s1860 + $0x18] sm:$0xff]
        %v1865 = vld [vmem:[%s1860 + $0x20] sm:$0xff]
        %v1866 = vld [vmem:[%s1860 + $0x28] sm:$0xff]
        %v1867 = vld [vmem:[%s1860 + $0x30] sm:$0xff]
        %v1868 = vld [vmem:[%s1860 + $0x38] sm:$0xff]
        %v1869 = vld [vmem:[%s1860 + $0x40] sm:$0xff]
        %v1870 = vld [vmem:[%s1860 + $0x48] sm:$0xff]
        %v1871 = vld [vmem:[%s1860 + $0x50] sm:$0xff]
        %v1872 = vld [vmem:[%s1860 + $0x58] sm:$0xff]
        %v1873 = vld [vmem:[%s1860 + $0x60] sm:$0xff]
        %v1874 = vld [vmem:[%s1860 + $0x68] sm:$0xff]
        %v1875 = vld [vmem:[%s1860 + $0x70] sm:$0xff]
        %v1876 = vld [vmem:[%s1860 + $0x78] sm:$0xff]
        %v1877 = vld [vmem:[%s1860 + $0x80] sm:$0xff]
        %v1878 = vld [vmem:[%s1860 + $0x88] sm:$0xff]
        %v1879 = vld [vmem:[%s1860 + $0x90] sm:$0xff]
        %v1880 = vld [vmem:[%s1860 + $0x98] sm:$0xff]
        %v1881 = vld [vmem:[%s1860 + $0xa0] sm:$0xff]
        %v1882 = vld [vmem:[%s1860 + $0xa8] sm:$0xff]
        %v1883 = vld [vmem:[%s1860 + $0xb0] sm:$0xff]
        %v1884 = vld [vmem:[%s1860 + $0xb8] sm:$0xff]
        %v1885 = vld [vmem:[%s1860 + $0xc0] sm:$0xff]
        %v1886 = vld [vmem:[%s1860 + $0xc8] sm:$0xff]
        %v1887 = vld [vmem:[%s1860 + $0xd0] sm:$0xff]
        %v1888 = vld [vmem:[%s1860 + $0xd8] sm:$0xff]
        %v1889 = vld [vmem:[%s1860 + $0xe0] sm:$0xff]
        %v1890 = vld [vmem:[%s1860 + $0xe8] sm:$0xff]
        %v1891 = vld [vmem:[%s1860 + $0xf0] sm:$0xff]
        %v1892 = vld [vmem:[%s1860 + $0xf8] sm:$0xff]
        %v1893 = vld [vmem:[%s1860 + $0x100] sm:$0xff]
        %v1894 = vld [vmem:[%s1860 + $0x108] sm:$0xff]
        %v1895 = vld [vmem:[%s1860 + $0x110] sm:$0xff]
        %v1896 = vld [vmem:[%s1860 + $0x118] sm:$0xff]
        %v1897 = vld [vmem:[%s1860 + $0x120] sm:$0xff]
        %v1898 = vld [vmem:[%s1860 + $0x128] sm:$0xff]
        %v1899 = vld [vmem:[%s1860 + $0x130] sm:$0xff]
        %v1900 = vld [vmem:[%s1860 + $0x138] sm:$0xff]
        %v1901 = vld [vmem:[%s1860 + $0x140] sm:$0xff]
        %v1902 = vld [vmem:[%s1860 + $0x148] sm:$0xff]
        %v1903 = vld [vmem:[%s1860 + $0x150] sm:$0xff]
        %v1904 = vld [vmem:[%s1860 + $0x158] sm:$0xff]
        %v1905 = vld [vmem:[%s1860 + $0x160] sm:$0xff]
        %v1906 = vld [vmem:[%s1860 + $0x168] sm:$0xff]
        %v1907 = vld [vmem:[%s1860 + $0x170] sm:$0xff]
        %v1908 = vld [vmem:[%s1860 + $0x178] sm:$0xff]
        %v1909 = vld [vmem:[%s1860 + $0x180] sm:$0xff]
        %v1910 = vld [vmem:[%s1860 + $0x188] sm:$0xff]
        %v1911 = vld [vmem:[%s1860 + $0x190] sm:$0xff]
        %v1912 = vld [vmem:[%s1860 + $0x198] sm:$0xff]
        %v1913 = vld [vmem:[%s1860 + $0x1a0] sm:$0xff]
        %v1914 = vld [vmem:[%s1860 + $0x1a8] sm:$0xff]
        %v1915 = vld [vmem:[%s1860 + $0x1b0] sm:$0xff]
        %v1916 = vld [vmem:[%s1860 + $0x1b8] sm:$0xff]
        %v1917 = vld [vmem:[%s1860 + $0x1c0] sm:$0xff]
        %v1918 = vld [vmem:[%s1860 + $0x1c8] sm:$0xff]
        %v1919 = vld [vmem:[%s1860 + $0x1d0] sm:$0xff]
        %v1920 = vld [vmem:[%s1860 + $0x1d8] sm:$0xff]
        %v1921 = vld [vmem:[%s1860 + $0x1e0] sm:$0xff]
        %v1922 = vld [vmem:[%s1860 + $0x1e8] sm:$0xff]
        %v1923 = vld [vmem:[%s1860 + $0x1f0] sm:$0xff]
        %v1924 = vld [vmem:[%s1860 + $0x1f8] sm:$0xff]
        %1925 = vmatprep.subr.mxu0 %v1862
        %1926 = vmatpush1.msra.mxu0 %v1861
        %1927 = vmatprep.subr.mxu0 %v1866
        %1928 = vmatpush1.msra.mxu0 %v1865
        %1929 = vmatprep.subr.mxu0 %v1870
        %1930 = vmatpush1.msra.mxu0 %v1869
        %1931 = vmatprep.subr.mxu0 %v1874
        %1932 = vmatpush1.msra.mxu0 %v1873
        %1933 = vmatprep.subr.mxu0 %v1878
        %1934 = vmatpush1.msra.mxu0 %v1877
        %1935 = vmatprep.subr.mxu0 %v1882
        %1936 = vmatpush1.msra.mxu0 %v1881
        %1937 = vmatprep.subr.mxu0 %v1886
        %1938 = vmatpush1.msra.mxu0 %v1885
        %1939 = vmatprep.subr.mxu0 %v1890
        %1940 = vmatpush1.msra.mxu0 %v1889
        %1941 = vmatprep.subr.mxu0 %v1894
        %1942 = vmatpush1.msra.mxu0 %v1893
        %1943 = vmatprep.subr.mxu0 %v1898
        %1944 = vmatpush1.msra.mxu0 %v1897
        %1945 = vmatprep.subr.mxu0 %v1902
        %1946 = vmatpush1.msra.mxu0 %v1901
        %1947 = vmatprep.subr.mxu0 %v1906
        %1948 = vmatpush1.msra.mxu0 %v1905
        %1949 = vmatprep.subr.mxu0 %v1910
        %1950 = vmatpush1.msra.mxu0 %v1909
        %1951 = vmatprep.subr.mxu0 %v1914
        %1952 = vmatpush1.msra.mxu0 %v1913
        %1953 = vmatprep.subr.mxu0 %v1918
        %1954 = vmatpush1.msra.mxu0 %v1917
        %1955 = vmatprep.subr.mxu0 %v1922
        %1956 = vmatpush1.msra.mxu0 %v1921
        %1957 = vmatprep.subr.mxu0 0.0
        %1958 = vmatpush1.msra.mxu0 0.0
        %1959 = vmatprep.subr.mxu0 0.0
        %1960 = vmatpush1.msra.mxu0 0.0
        %1961 = vmatprep.subr.mxu0 0.0
        %1962 = vmatpush1.msra.mxu0 0.0
        %1963 = vmatprep.subr.mxu0 0.0
        %1964 = vmatpush1.msra.mxu0 0.0
        %1965 = vmatprep.subr.mxu0 0.0
        %1966 = vmatpush1.msra.mxu0 0.0
        %1967 = vmatprep.subr.mxu0 0.0
        %1968 = vmatpush1.msra.mxu0 0.0
        %1969 = vmatprep.subr.mxu0 0.0
        %1970 = vmatpush1.msra.mxu0 0.0
        %1971 = vmatprep.subr.mxu0 0.0
        %1972 = vmatpush1.msra.mxu0 0.0
        %1973 = vmatprep.subr.mxu0 0.0
        %1974 = vmatpush1.msra.mxu0 0.0
        %1975 = vmatprep.subr.mxu0 0.0
        %1976 = vmatpush1.msra.mxu0 0.0
        %1977 = vmatprep.subr.mxu0 0.0
        %1978 = vmatpush1.msra.mxu0 0.0
        %1979 = vmatprep.subr.mxu0 0.0
        %1980 = vmatpush1.msra.mxu0 0.0
        %1981 = vmatprep.subr.mxu0 0.0
        %1982 = vmatpush1.msra.mxu0 0.0
        %1983 = vmatprep.subr.mxu0 0.0
        %1984 = vmatpush1.msra.mxu0 0.0
        %1985 = vmatprep.subr.mxu0 0.0
        %1986 = vmatpush1.msra.mxu0 0.0
        %1987 = vmatprep.subr.mxu0 0.0
        %1988 = vmatpush1.msra.mxu0 0.0
        %1989 = vmatprep.mubr.f32.mxu0 0.0
        %1990 = vmatmul.mubr.f32.gmra.mrb[0].mxu0 %v1828
        %v1991 = vpop.f32.mrb[0].mxu0
        %v1992 = vadd.f32 0.0, %v1991
        %v1993 = vpop.f32.mrb[0].mxu0
        %v1994 = vadd.f32 0.0, %v1993
        %1995 = vmatprep.mubr.f32.mxu0 0.0
        %1996 = vmatmul.mubr.f32.gmra.mrb[0].mxu0 %v1829
        %v1997 = vpop.f32.mrb[0].mxu0
        %v1998 = vadd.f32 0.0, %v1997
        %v1999 = vpop.f32.mrb[0].mxu0
        %v2000 = vadd.f32 0.0, %v1999
        %2001 = vmatprep.mubr.f32.mxu0 0.0
        %2002 = vmatmul.mubr.f32.gmra.mrb[0].mxu0 %v1830
        %v2003 = vpop.f32.mrb[0].mxu0
        %v2004 = vadd.f32 0.0, %v2003
        %v2005 = vpop.f32.mrb[0].mxu0
        %v2006 = vadd.f32 0.0, %v2005
        %2007 = vmatprep.mubr.f32.mxu0 0.0
        %2008 = vmatmul.mubr.f32.gmra.mrb[0].mxu0 %v1831
        %v2009 = vpop.f32.mrb[0].mxu0
        %v2010 = vadd.f32 0.0, %v2009
        %v2011 = vpop.f32.mrb[0].mxu0
        %v2012 = vadd.f32 0.0, %v2011
        %2013 = vmatprep.mubr.f32.mxu0 0.0
        %2014 = vmatmul.mubr.f32.gmra.mrb[0].mxu0 %v1832
        %v2015 = vpop.f32.mrb[0].mxu0
        %v2016 = vadd.f32 0.0, %v2015
        %v2017 = vpop.f32.mrb[0].mxu0
        %v2018 = vadd.f32 0.0, %v2017
        %2019 = vmatprep.mubr.f32.mxu0 0.0
        %2020 = vmatmul.mubr.f32.gmra.mrb[0].mxu0 %v1833
        %v2021 = vpop.f32.mrb[0].mxu0
        %v2022 = vadd.f32 0.0, %v2021
        %v2023 = vpop.f32.mrb[0].mxu0
        %v2024 = vadd.f32 0.0, %v2023
        %2025 = vmatprep.mubr.f32.mxu0 0.0
        %2026 = vmatmul.mubr.f32.gmra.mrb[0].mxu0 %v1834
        %v2027 = vpop.f32.mrb[0].mxu0
        %v2028 = vadd.f32 0.0, %v2027
        %v2029 = vpop.f32.mrb[0].mxu0
        %v2030 = vadd.f32 0.0, %v2029
        %2031 = vmatprep.mubr.f32.mxu0 0.0
        %2032 = vmatmul.mubr.f32.gmra.mrb[0].mxu0 %v1835
        %v2033 = vpop.f32.mrb[0].mxu0
        %v2034 = vadd.f32 0.0, %v2033
        %v2035 = vpop.f32.mrb[0].mxu0
        %v2036 = vadd.f32 0.0, %v2035
        %2037 = vmatprep.mubr.f32.mxu0 0.0
        %2038 = vmatmul.mubr.f32.gmra.mrb[0].mxu0 %v1836
        %v2039 = vpop.f32.mrb[0].mxu0
        %v2040 = vadd.f32 0.0, %v2039
        %v2041 = vpop.f32.mrb[0].mxu0
        %v2042 = vadd.f32 0.0, %v2041
        %2043 = vmatprep.mubr.f32.mxu0 0.0
        %2044 = vmatmul.mubr.f32.gmra.mrb[0].mxu0 %v1837
        %v2045 = vpop.f32.mrb[0].mxu0
        %v2046 = vadd.f32 0.0, %v2045
        %v2047 = vpop.f32.mrb[0].mxu0
        %v2048 = vadd.f32 0.0, %v2047
        %2049 = vmatprep.mubr.f32.mxu0 0.0
        %2050 = vmatmul.mubr.f32.gmra.mrb[0].mxu0 %v1838
        %v2051 = vpop.f32.mrb[0].mxu0
        %v2052 = vadd.f32 0.0, %v2051
        %v2053 = vpop.f32.mrb[0].mxu0
        %v2054 = vadd.f32 0.0, %v2053
        %2055 = vmatprep.mubr.f32.mxu0 0.0
        %2056 = vmatmul.mubr.f32.gmra.mrb[0].mxu0 %v1839
        %v2057 = vpop.f32.mrb[0].mxu0
        %v2058 = vadd.f32 0.0, %v2057
        %v2059 = vpop.f32.mrb[0].mxu0
        %v2060 = vadd.f32 0.0, %v2059
        %2061 = vmatprep.mubr.f32.mxu0 0.0
        %2062 = vmatmul.mubr.f32.gmra.mrb[0].mxu0 %v1840
        %v2063 = vpop.f32.mrb[0].mxu0
        %v2064 = vadd.f32 0.0, %v2063
        %v2065 = vpop.f32.mrb[0].mxu0
        %v2066 = vadd.f32 0.0, %v2065
        %2067 = vmatprep.mubr.f32.mxu0 0.0
        %2068 = vmatmul.mubr.f32.gmra.mrb[0].mxu0 %v1841
        %v2069 = vpop.f32.mrb[0].mxu0
        %v2070 = vadd.f32 0.0, %v2069
        %v2071 = vpop.f32.mrb[0].mxu0
        %v2072 = vadd.f32 0.0, %v2071
        %2073 = vmatprep.mubr.f32.mxu0 0.0
        %2074 = vmatmul.mubr.f32.gmra.mrb[0].mxu0 %v1842
        %v2075 = vpop.f32.mrb[0].mxu0
        %v2076 = vadd.f32 0.0, %v2075
        %v2077 = vpop.f32.mrb[0].mxu0
        %v2078 = vadd.f32 0.0, %v2077
        %2079 = vmatprep.mubr.f32.mxu0 0.0
        %2080 = vmatmul.mubr.f32.gmra.mrb[0].mxu0 %v1843
        %v2081 = vpop.f32.mrb[0].mxu0
        %v2082 = vadd.f32 0.0, %v2081
        %v2083 = vpop.f32.mrb[0].mxu0
        %v2084 = vadd.f32 0.0, %v2083
        %2085 = vmatprep.mubr.f32.mxu0 0.0
        %2086 = vmatmul.mubr.f32.gmra.mrb[0].mxu0 %v1844
        %v2087 = vpop.f32.mrb[0].mxu0
        %v2088 = vadd.f32 0.0, %v2087
        %v2089 = vpop.f32.mrb[0].mxu0
        %v2090 = vadd.f32 0.0, %v2089
        %2091 = vmatprep.mubr.f32.mxu0 0.0
        %2092 = vmatmul.mubr.f32.gmra.mrb[0].mxu0 %v1845
        %v2093 = vpop.f32.mrb[0].mxu0
        %v2094 = vadd.f32 0.0, %v2093
        %v2095 = vpop.f32.mrb[0].mxu0
        %v2096 = vadd.f32 0.0, %v2095
        %2097 = vmatprep.mubr.f32.mxu0 0.0
        %2098 = vmatmul.mubr.f32.gmra.mrb[0].mxu0 %v1846
        %v2099 = vpop.f32.mrb[0].mxu0
        %v2100 = vadd.f32 0.0, %v2099
        %v2101 = vpop.f32.mrb[0].mxu0
        %v2102 = vadd.f32 0.0, %v2101
        %2103 = vmatprep.mubr.f32.mxu0 0.0
        %2104 = vmatmul.mubr.f32.gmra.mrb[0].mxu0 %v1847
        %v2105 = vpop.f32.mrb[0].mxu0
        %v2106 = vadd.f32 0.0, %v2105
        %v2107 = vpop.f32.mrb[0].mxu0
        %v2108 = vadd.f32 0.0, %v2107
        %2109 = vmatprep.mubr.f32.mxu0 0.0
        %2110 = vmatmul.mubr.f32.gmra.mrb[0].mxu0 %v1848
        %v2111 = vpop.f32.mrb[0].mxu0
        %v2112 = vadd.f32 0.0, %v2111
        %v2113 = vpop.f32.mrb[0].mxu0
        %v2114 = vadd.f32 0.0, %v2113
        %2115 = vmatprep.mubr.f32.mxu0 0.0
        %2116 = vmatmul.mubr.f32.gmra.mrb[0].mxu0 %v1849
        %v2117 = vpop.f32.mrb[0].mxu0
        %v2118 = vadd.f32 0.0, %v2117
        %v2119 = vpop.f32.mrb[0].mxu0
        %v2120 = vadd.f32 0.0, %v2119
        %2121 = vmatprep.mubr.f32.mxu0 0.0
        %2122 = vmatmul.mubr.f32.gmra.mrb[0].mxu0 %v1850
        %v2123 = vpop.f32.mrb[0].mxu0
        %v2124 = vadd.f32 0.0, %v2123
        %v2125 = vpop.f32.mrb[0].mxu0
        %v2126 = vadd.f32 0.0, %v2125
        %2127 = vmatprep.mubr.f32.mxu0 0.0
        %2128 = vmatmul.mubr.f32.gmra.mrb[0].mxu0 %v1851
        %v2129 = vpop.f32.mrb[0].mxu0
        %v2130 = vadd.f32 0.0, %v2129
        %v2131 = vpop.f32.mrb[0].mxu0
        %v2132 = vadd.f32 0.0, %v2131
        %2133 = vmatprep.mubr.f32.mxu0 0.0
        %2134 = vmatmul.mubr.f32.gmra.mrb[0].mxu0 %v1852
        %v2135 = vpop.f32.mrb[0].mxu0
        %v2136 = vadd.f32 0.0, %v2135
        %v2137 = vpop.f32.mrb[0].mxu0
        %v2138 = vadd.f32 0.0, %v2137
        %2139 = vmatprep.mubr.f32.mxu0 0.0
        %2140 = vmatmul.mubr.f32.gmra.mrb[0].mxu0 %v1853
        %v2141 = vpop.f32.mrb[0].mxu0
        %v2142 = vadd.f32 0.0, %v2141
        %v2143 = vpop.f32.mrb[0].mxu0
        %v2144 = vadd.f32 0.0, %v2143
        %2145 = vmatprep.mubr.f32.mxu0 0.0
        %2146 = vmatmul.mubr.f32.gmra.mrb[0].mxu0 %v1854
        %v2147 = vpop.f32.mrb[0].mxu0
        %v2148 = vadd.f32 0.0, %v2147
        %v2149 = vpop.f32.mrb[0].mxu0
        %v2150 = vadd.f32 0.0, %v2149
        %2151 = vmatprep.mubr.f32.mxu0 0.0
        %2152 = vmatmul.mubr.f32.gmra.mrb[0].mxu0 %v1855
        %v2153 = vpop.f32.mrb[0].mxu0
        %v2154 = vadd.f32 0.0, %v2153
        %v2155 = vpop.f32.mrb[0].mxu0
        %v2156 = vadd.f32 0.0, %v2155
        %2157 = vmatprep.mubr.f32.mxu0 0.0
        %2158 = vmatmul.mubr.f32.gmra.mrb[0].mxu0 %v1856
        %v2159 = vpop.f32.mrb[0].mxu0
        %v2160 = vadd.f32 0.0, %v2159
        %v2161 = vpop.f32.mrb[0].mxu0
        %v2162 = vadd.f32 0.0, %v2161
        %2163 = vmatprep.mubr.f32.mxu0 0.0
        %2164 = vmatmul.mubr.f32.gmra.mrb[0].mxu0 %v1857
        %v2165 = vpop.f32.mrb[0].mxu0
        %v2166 = vadd.f32 0.0, %v2165
        %v2167 = vpop.f32.mrb[0].mxu0
        %v2168 = vadd.f32 0.0, %v2167
        %2169 = vmatprep.mubr.f32.mxu0 0.0
        %2170 = vmatmul.mubr.f32.gmra.mrb[0].mxu0 %v1858
        %v2171 = vpop.f32.mrb[0].mxu0
        %v2172 = vadd.f32 0.0, %v2171
        %v2173 = vpop.f32.mrb[0].mxu0
        %v2174 = vadd.f32 0.0, %v2173
        %2175 = vmatprep.mubr.f32.mxu0 0.0
        %2176 = vmatmul.mubr.f32.gmra.mrb[0].mxu0 %v1859
        %v2177 = vpop.f32.mrb[0].mxu0
        %v2178 = vadd.f32 0.0, %v2177
        %v2179 = vpop.f32.mrb[0].mxu0
        %v2180 = vadd.f32 0.0, %v2179
        %2181 = vdwg.mxu0
        %2182 = vmatprep.subr.mxu0 %v1864
        %2183 = vmatpush1.msra.mxu0 %v1863
        %2184 = vmatprep.subr.mxu0 %v1868
        %2185 = vmatpush1.msra.mxu0 %v1867
        %2186 = vmatprep.subr.mxu0 %v1872
        %2187 = vmatpush1.msra.mxu0 %v1871
        %2188 = vmatprep.subr.mxu0 %v1876
        %2189 = vmatpush1.msra.mxu0 %v1875
        %2190 = vmatprep.subr.mxu0 %v1880
        %2191 = vmatpush1.msra.mxu0 %v1879
        %2192 = vmatprep.subr.mxu0 %v1884
        %2193 = vmatpush1.msra.mxu0 %v1883
        %2194 = vmatprep.subr.mxu0 %v1888
        %2195 = vmatpush1.msra.mxu0 %v1887
        %2196 = vmatprep.subr.mxu0 %v1892
        %2197 = vmatpush1.msra.mxu0 %v1891
        %2198 = vmatprep.subr.mxu0 %v1896
        %2199 = vmatpush1.msra.mxu0 %v1895
        %2200 = vmatprep.subr.mxu0 %v1900
        %2201 = vmatpush1.msra.mxu0 %v1899
        %2202 = vmatprep.subr.mxu0 %v1904
        %2203 = vmatpush1.msra.mxu0 %v1903
        %2204 = vmatprep.subr.mxu0 %v1908
        %2205 = vmatpush1.msra.mxu0 %v1907
        %2206 = vmatprep.subr.mxu0 %v1912
        %2207 = vmatpush1.msra.mxu0 %v1911
        %2208 = vmatprep.subr.mxu0 %v1916
        %2209 = vmatpush1.msra.mxu0 %v1915
        %2210 = vmatprep.subr.mxu0 %v1920
        %2211 = vmatpush1.msra.mxu0 %v1919
        %2212 = vmatprep.subr.mxu0 %v1924
        %2213 = vmatpush1.msra.mxu0 %v1923
        %2214 = vmatprep.subr.mxu0 0.0
        %2215 = vmatpush1.msra.mxu0 0.0
        %2216 = vmatprep.subr.mxu0 0.0
        %2217 = vmatpush1.msra.mxu0 0.0
        %2218 = vmatprep.subr.mxu0 0.0
        %2219 = vmatpush1.msra.mxu0 0.0
        %2220 = vmatprep.subr.mxu0 0.0
        %2221 = vmatpush1.msra.mxu0 0.0
        %2222 = vmatprep.subr.mxu0 0.0
        %2223 = vmatpush1.msra.mxu0 0.0
        %2224 = vmatprep.subr.mxu0 0.0
        %2225 = vmatpush1.msra.mxu0 0.0
        %2226 = vmatprep.subr.mxu0 0.0
        %2227 = vmatpush1.msra.mxu0 0.0
        %2228 = vmatprep.subr.mxu0 0.0
        %2229 = vmatpush1.msra.mxu0 0.0
        %2230 = vmatprep.subr.mxu0 0.0
        %2231 = vmatpush1.msra.mxu0 0.0
        %2232 = vmatprep.subr.mxu0 0.0
        %2233 = vmatpush1.msra.mxu0 0.0
        %2234 = vmatprep.subr.mxu0 0.0
        %2235 = vmatpush1.msra.mxu0 0.0
        %2236 = vmatprep.subr.mxu0 0.0
        %2237 = vmatpush1.msra.mxu0 0.0
        %2238 = vmatprep.subr.mxu0 0.0
        %2239 = vmatpush1.msra.mxu0 0.0
        %2240 = vmatprep.subr.mxu0 0.0
        %2241 = vmatpush1.msra.mxu0 0.0
        %2242 = vmatprep.subr.mxu0 0.0
        %2243 = vmatpush1.msra.mxu0 0.0
        %2244 = vmatprep.subr.mxu0 0.0
        %2245 = vmatpush1.msra.mxu0 0.0
        %2246 = vmatprep.mubr.f32.mxu0 0.0
        %2247 = vmatmul.mubr.f32.gmra.mrb[0].mxu0 %v1828
        %v2248 = vpop.f32.mrb[0].mxu0
        %v2249 = vadd.f32 0.0, %v2248
        %v2250 = vpop.f32.mrb[0].mxu0
        %v2251 = vadd.f32 0.0, %v2250
        %2252 = vmatprep.mubr.f32.mxu0 0.0
        %2253 = vmatmul.mubr.f32.gmra.mrb[0].mxu0 %v1829
        %v2254 = vpop.f32.mrb[0].mxu0
        %v2255 = vadd.f32 0.0, %v2254
        %v2256 = vpop.f32.mrb[0].mxu0
        %v2257 = vadd.f32 0.0, %v2256
        %2258 = vmatprep.mubr.f32.mxu0 0.0
        %2259 = vmatmul.mubr.f32.gmra.mrb[0].mxu0 %v1830
        %v2260 = vpop.f32.mrb[0].mxu0
        %v2261 = vadd.f32 0.0, %v2260
        %v2262 = vpop.f32.mrb[0].mxu0
        %v2263 = vadd.f32 0.0, %v2262
        %2264 = vmatprep.mubr.f32.mxu0 0.0
        %2265 = vmatmul.mubr.f32.gmra.mrb[0].mxu0 %v1831
        %v2266 = vpop.f32.mrb[0].mxu0
        %v2267 = vadd.f32 0.0, %v2266
        %v2268 = vpop.f32.mrb[0].mxu0
        %v2269 = vadd.f32 0.0, %v2268
        %2270 = vmatprep.mubr.f32.mxu0 0.0
        %2271 = vmatmul.mubr.f32.gmra.mrb[0].mxu0 %v1832
        %v2272 = vpop.f32.mrb[0].mxu0
        %v2273 = vadd.f32 0.0, %v2272
        %v2274 = vpop.f32.mrb[0].mxu0
        %v2275 = vadd.f32 0.0, %v2274
        %2276 = vmatprep.mubr.f32.mxu0 0.0
        %2277 = vmatmul.mubr.f32.gmra.mrb[0].mxu0 %v1833
        %v2278 = vpop.f32.mrb[0].mxu0
        %v2279 = vadd.f32 0.0, %v2278
        %v2280 = vpop.f32.mrb[0].mxu0
        %v2281 = vadd.f32 0.0, %v2280
        %2282 = vmatprep.mubr.f32.mxu0 0.0
        %2283 = vmatmul.mubr.f32.gmra.mrb[0].mxu0 %v1834
        %v2284 = vpop.f32.mrb[0].mxu0
        %v2285 = vadd.f32 0.0, %v2284
        %v2286 = vpop.f32.mrb[0].mxu0
        %v2287 = vadd.f32 0.0, %v2286
        %2288 = vmatprep.mubr.f32.mxu0 0.0
        %2289 = vmatmul.mubr.f32.gmra.mrb[0].mxu0 %v1835
        %v2290 = vpop.f32.mrb[0].mxu0
        %v2291 = vadd.f32 0.0, %v2290
        %v2292 = vpop.f32.mrb[0].mxu0
        %v2293 = vadd.f32 0.0, %v2292
        %2294 = vmatprep.mubr.f32.mxu0 0.0
        %2295 = vmatmul.mubr.f32.gmra.mrb[0].mxu0 %v1836
        %v2296 = vpop.f32.mrb[0].mxu0
        %v2297 = vadd.f32 0.0, %v2296
        %v2298 = vpop.f32.mrb[0].mxu0
        %v2299 = vadd.f32 0.0, %v2298
        %2300 = vmatprep.mubr.f32.mxu0 0.0
        %2301 = vmatmul.mubr.f32.gmra.mrb[0].mxu0 %v1837
        %v2302 = vpop.f32.mrb[0].mxu0
        %v2303 = vadd.f32 0.0, %v2302
        %v2304 = vpop.f32.mrb[0].mxu0
        %v2305 = vadd.f32 0.0, %v2304
        %2306 = vmatprep.mubr.f32.mxu0 0.0
        %2307 = vmatmul.mubr.f32.gmra.mrb[0].mxu0 %v1838
        %v2308 = vpop.f32.mrb[0].mxu0
        %v2309 = vadd.f32 0.0, %v2308
        %v2310 = vpop.f32.mrb[0].mxu0
        %v2311 = vadd.f32 0.0, %v2310
        %2312 = vmatprep.mubr.f32.mxu0 0.0
        %2313 = vmatmul.mubr.f32.gmra.mrb[0].mxu0 %v1839
        %v2314 = vpop.f32.mrb[0].mxu0
        %v2315 = vadd.f32 0.0, %v2314
        %v2316 = vpop.f32.mrb[0].mxu0
        %v2317 = vadd.f32 0.0, %v2316
        %2318 = vmatprep.mubr.f32.mxu0 0.0
        %2319 = vmatmul.mubr.f32.gmra.mrb[0].mxu0 %v1840
        %v2320 = vpop.f32.mrb[0].mxu0
        %v2321 = vadd.f32 0.0, %v2320
        %v2322 = vpop.f32.mrb[0].mxu0
        %v2323 = vadd.f32 0.0, %v2322
        %2324 = vmatprep.mubr.f32.mxu0 0.0
        %2325 = vmatmul.mubr.f32.gmra.mrb[0].mxu0 %v1841
        %v2326 = vpop.f32.mrb[0].mxu0
        %v2327 = vadd.f32 0.0, %v2326
        %v2328 = vpop.f32.mrb[0].mxu0
        %v2329 = vadd.f32 0.0, %v2328
        %2330 = vmatprep.mubr.f32.mxu0 0.0
        %2331 = vmatmul.mubr.f32.gmra.mrb[0].mxu0 %v1842
        %v2332 = vpop.f32.mrb[0].mxu0
        %v2333 = vadd.f32 0.0, %v2332
        %v2334 = vpop.f32.mrb[0].mxu0
        %v2335 = vadd.f32 0.0, %v2334
        %2336 = vmatprep.mubr.f32.mxu0 0.0
        %2337 = vmatmul.mubr.f32.gmra.mrb[0].mxu0 %v1843
        %v2338 = vpop.f32.mrb[0].mxu0
        %v2339 = vadd.f32 0.0, %v2338
        %v2340 = vpop.f32.mrb[0].mxu0
        %v2341 = vadd.f32 0.0, %v2340
        %2342 = vmatprep.mubr.f32.mxu0 0.0
        %2343 = vmatmul.mubr.f32.gmra.mrb[0].mxu0 %v1844
        %v2344 = vpop.f32.mrb[0].mxu0
        %v2345 = vadd.f32 0.0, %v2344
        %v2346 = vpop.f32.mrb[0].mxu0
        %v2347 = vadd.f32 0.0, %v2346
        %2348 = vmatprep.mubr.f32.mxu0 0.0
        %2349 = vmatmul.mubr.f32.gmra.mrb[0].mxu0 %v1845
        %v2350 = vpop.f32.mrb[0].mxu0
        %v2351 = vadd.f32 0.0, %v2350
        %v2352 = vpop.f32.mrb[0].mxu0
        %v2353 = vadd.f32 0.0, %v2352
        %2354 = vmatprep.mubr.f32.mxu0 0.0
        %2355 = vmatmul.mubr.f32.gmra.mrb[0].mxu0 %v1846
        %v2356 = vpop.f32.mrb[0].mxu0
        %v2357 = vadd.f32 0.0, %v2356
        %v2358 = vpop.f32.mrb[0].mxu0
        %v2359 = vadd.f32 0.0, %v2358
        %2360 = vmatprep.mubr.f32.mxu0 0.0
        %2361 = vmatmul.mubr.f32.gmra.mrb[0].mxu0 %v1847
        %v2362 = vpop.f32.mrb[0].mxu0
        %v2363 = vadd.f32 0.0, %v2362
        %v2364 = vpop.f32.mrb[0].mxu0
        %v2365 = vadd.f32 0.0, %v2364
        %2366 = vmatprep.mubr.f32.mxu0 0.0
        %2367 = vmatmul.mubr.f32.gmra.mrb[0].mxu0 %v1848
        %v2368 = vpop.f32.mrb[0].mxu0
        %v2369 = vadd.f32 0.0, %v2368
        %v2370 = vpop.f32.mrb[0].mxu0
        %v2371 = vadd.f32 0.0, %v2370
        %2372 = vmatprep.mubr.f32.mxu0 0.0
        %2373 = vmatmul.mubr.f32.gmra.mrb[0].mxu0 %v1849
        %v2374 = vpop.f32.mrb[0].mxu0
        %v2375 = vadd.f32 0.0, %v2374
        %v2376 = vpop.f32.mrb[0].mxu0
        %v2377 = vadd.f32 0.0, %v2376
        %2378 = vmatprep.mubr.f32.mxu0 0.0
        %2379 = vmatmul.mubr.f32.gmra.mrb[0].mxu0 %v1850
        %v2380 = vpop.f32.mrb[0].mxu0
        %v2381 = vadd.f32 0.0, %v2380
        %v2382 = vpop.f32.mrb[0].mxu0
        %v2383 = vadd.f32 0.0, %v2382
        %2384 = vmatprep.mubr.f32.mxu0 0.0
        %2385 = vmatmul.mubr.f32.gmra.mrb[0].mxu0 %v1851
        %v2386 = vpop.f32.mrb[0].mxu0
        %v2387 = vadd.f32 0.0, %v2386
        %v2388 = vpop.f32.mrb[0].mxu0
        %v2389 = vadd.f32 0.0, %v2388
        %2390 = vmatprep.mubr.f32.mxu0 0.0
        %2391 = vmatmul.mubr.f32.gmra.mrb[0].mxu0 %v1852
        %v2392 = vpop.f32.mrb[0].mxu0
        %v2393 = vadd.f32 0.0, %v2392
        %v2394 = vpop.f32.mrb[0].mxu0
        %v2395 = vadd.f32 0.0, %v2394
        %2396 = vmatprep.mubr.f32.mxu0 0.0
        %2397 = vmatmul.mubr.f32.gmra.mrb[0].mxu0 %v1853
        %v2398 = vpop.f32.mrb[0].mxu0
        %v2399 = vadd.f32 0.0, %v2398
        %v2400 = vpop.f32.mrb[0].mxu0
        %v2401 = vadd.f32 0.0, %v2400
        %2402 = vmatprep.mubr.f32.mxu0 0.0
        %2403 = vmatmul.mubr.f32.gmra.mrb[0].mxu0 %v1854
        %v2404 = vpop.f32.mrb[0].mxu0
        %v2405 = vadd.f32 0.0, %v2404
        %v2406 = vpop.f32.mrb[0].mxu0
        %v2407 = vadd.f32 0.0, %v2406
        %2408 = vmatprep.mubr.f32.mxu0 0.0
        %2409 = vmatmul.mubr.f32.gmra.mrb[0].mxu0 %v1855
        %v2410 = vpop.f32.mrb[0].mxu0
        %v2411 = vadd.f32 0.0, %v2410
        %v2412 = vpop.f32.mrb[0].mxu0
        %v2413 = vadd.f32 0.0, %v2412
        %2414 = vmatprep.mubr.f32.mxu0 0.0
        %2415 = vmatmul.mubr.f32.gmra.mrb[0].mxu0 %v1856
        %v2416 = vpop.f32.mrb[0].mxu0
        %v2417 = vadd.f32 0.0, %v2416
        %v2418 = vpop.f32.mrb[0].mxu0
        %v2419 = vadd.f32 0.0, %v2418
        %2420 = vmatprep.mubr.f32.mxu0 0.0
        %2421 = vmatmul.mubr.f32.gmra.mrb[0].mxu0 %v1857
        %v2422 = vpop.f32.mrb[0].mxu0
        %v2423 = vadd.f32 0.0, %v2422
        %v2424 = vpop.f32.mrb[0].mxu0
        %v2425 = vadd.f32 0.0, %v2424
        %2426 = vmatprep.mubr.f32.mxu0 0.0
        %2427 = vmatmul.mubr.f32.gmra.mrb[0].mxu0 %v1858
        %v2428 = vpop.f32.mrb[0].mxu0
        %v2429 = vadd.f32 0.0, %v2428
        %v2430 = vpop.f32.mrb[0].mxu0
        %v2431 = vadd.f32 0.0, %v2430
        %2432 = vmatprep.mubr.f32.mxu0 0.0
        %2433 = vmatmul.mubr.f32.gmra.mrb[0].mxu0 %v1859
        %v2434 = vpop.f32.mrb[0].mxu0
        %v2435 = vadd.f32 0.0, %v2434
        %v2436 = vpop.f32.mrb[0].mxu0
        %v2437 = vadd.f32 0.0, %v2436
        %2438 = vdwg.mxu0
        %v2439 = vadd.f32 %v1380, %v1992
        %v2440 = vadd.f32 %v1382, %v1994
        %v2441 = vadd.f32 %v1637, %v2249
        %v2442 = vadd.f32 %v1639, %v2251
        %v2443 = vadd.f32 %v1386, %v1998
        %v2444 = vadd.f32 %v1388, %v2000
        %v2445 = vadd.f32 %v1643, %v2255
        %v2446 = vadd.f32 %v1645, %v2257
        %v2447 = vadd.f32 %v1392, %v2004
        %v2448 = vadd.f32 %v1394, %v2006
        %v2449 = vadd.f32 %v1649, %v2261
        %v2450 = vadd.f32 %v1651, %v2263
        %v2451 = vadd.f32 %v1398, %v2010
        %v2452 = vadd.f32 %v1400, %v2012
        %v2453 = vadd.f32 %v1655, %v2267
        %v2454 = vadd.f32 %v1657, %v2269
        %v2455 = vadd.f32 %v1404, %v2016
        %v2456 = vadd.f32 %v1406, %v2018
        %v2457 = vadd.f32 %v1661, %v2273
        %v2458 = vadd.f32 %v1663, %v2275
        %v2459 = vadd.f32 %v1410, %v2022
        %v2460 = vadd.f32 %v1412, %v2024
        %v2461 = vadd.f32 %v1667, %v2279
        %v2462 = vadd.f32 %v1669, %v2281
        %v2463 = vadd.f32 %v1416, %v2028
        %v2464 = vadd.f32 %v1418, %v2030
        %v2465 = vadd.f32 %v1673, %v2285
        %v2466 = vadd.f32 %v1675, %v2287
        %v2467 = vadd.f32 %v1422, %v2034
        %v2468 = vadd.f32 %v1424, %v2036
        %v2469 = vadd.f32 %v1679, %v2291
        %v2470 = vadd.f32 %v1681, %v2293
        %v2471 = vadd.f32 %v1428, %v2040
        %v2472 = vadd.f32 %v1430, %v2042
        %v2473 = vadd.f32 %v1685, %v2297
        %v2474 = vadd.f32 %v1687, %v2299
        %v2475 = vadd.f32 %v1434, %v2046
        %v2476 = vadd.f32 %v1436, %v2048
        %v2477 = vadd.f32 %v1691, %v2303
        %v2478 = vadd.f32 %v1693, %v2305
        %v2479 = vadd.f32 %v1440, %v2052
        %v2480 = vadd.f32 %v1442, %v2054
        %v2481 = vadd.f32 %v1697, %v2309
        %v2482 = vadd.f32 %v1699, %v2311
        %v2483 = vadd.f32 %v1446, %v2058
        %v2484 = vadd.f32 %v1448, %v2060
        %v2485 = vadd.f32 %v1703, %v2315
        %v2486 = vadd.f32 %v1705, %v2317
        %v2487 = vadd.f32 %v1452, %v2064
        %v2488 = vadd.f32 %v1454, %v2066
        %v2489 = vadd.f32 %v1709, %v2321
        %v2490 = vadd.f32 %v1711, %v2323
        %v2491 = vadd.f32 %v1458, %v2070
        %v2492 = vadd.f32 %v1460, %v2072
        %v2493 = vadd.f32 %v1715, %v2327
        %v2494 = vadd.f32 %v1717, %v2329
        %v2495 = vadd.f32 %v1464, %v2076
        %v2496 = vadd.f32 %v1466, %v2078
        %v2497 = vadd.f32 %v1721, %v2333
        %v2498 = vadd.f32 %v1723, %v2335
        %v2499 = vadd.f32 %v1470, %v2082
        %v2500 = vadd.f32 %v1472, %v2084
        %v2501 = vadd.f32 %v1727, %v2339
        %v2502 = vadd.f32 %v1729, %v2341
        %v2503 = vadd.f32 %v1476, %v2088
        %v2504 = vadd.f32 %v1478, %v2090
        %v2505 = vadd.f32 %v1733, %v2345
        %v2506 = vadd.f32 %v1735, %v2347
        %v2507 = vadd.f32 %v1482, %v2094
        %v2508 = vadd.f32 %v1484, %v2096
        %v2509 = vadd.f32 %v1739, %v2351
        %v2510 = vadd.f32 %v1741, %v2353
        %v2511 = vadd.f32 %v1488, %v2100
        %v2512 = vadd.f32 %v1490, %v2102
        %v2513 = vadd.f32 %v1745, %v2357
        %v2514 = vadd.f32 %v1747, %v2359
        %v2515 = vadd.f32 %v1494, %v2106
        %v2516 = vadd.f32 %v1496, %v2108
        %v2517 = vadd.f32 %v1751, %v2363
        %v2518 = vadd.f32 %v1753, %v2365
        %v2519 = vadd.f32 %v1500, %v2112
        %v2520 = vadd.f32 %v1502, %v2114
        %v2521 = vadd.f32 %v1757, %v2369
        %v2522 = vadd.f32 %v1759, %v2371
        %v2523 = vadd.f32 %v1506, %v2118
        %v2524 = vadd.f32 %v1508, %v2120
        %v2525 = vadd.f32 %v1763, %v2375
        %v2526 = vadd.f32 %v1765, %v2377
        %v2527 = vadd.f32 %v1512, %v2124
        %v2528 = vadd.f32 %v1514, %v2126
        %v2529 = vadd.f32 %v1769, %v2381
        %v2530 = vadd.f32 %v1771, %v2383
        %v2531 = vadd.f32 %v1518, %v2130
        %v2532 = vadd.f32 %v1520, %v2132
        %v2533 = vadd.f32 %v1775, %v2387
        %v2534 = vadd.f32 %v1777, %v2389
        %v2535 = vadd.f32 %v1524, %v2136
        %v2536 = vadd.f32 %v1526, %v2138
        %v2537 = vadd.f32 %v1781, %v2393
        %v2538 = vadd.f32 %v1783, %v2395
        %v2539 = vadd.f32 %v1530, %v2142
        %v2540 = vadd.f32 %v1532, %v2144
        %v2541 = vadd.f32 %v1787, %v2399
        %v2542 = vadd.f32 %v1789, %v2401
        %v2543 = vadd.f32 %v1536, %v2148
        %v2544 = vadd.f32 %v1538, %v2150
        %v2545 = vadd.f32 %v1793, %v2405
        %v2546 = vadd.f32 %v1795, %v2407
        %v2547 = vadd.f32 %v1542, %v2154
        %v2548 = vadd.f32 %v1544, %v2156
        %v2549 = vadd.f32 %v1799, %v2411
        %v2550 = vadd.f32 %v1801, %v2413
        %v2551 = vadd.f32 %v1548, %v2160
        %v2552 = vadd.f32 %v1550, %v2162
        %v2553 = vadd.f32 %v1805, %v2417
        %v2554 = vadd.f32 %v1807, %v2419
        %v2555 = vadd.f32 %v1554, %v2166
        %v2556 = vadd.f32 %v1556, %v2168
        %v2557 = vadd.f32 %v1811, %v2423
        %v2558 = vadd.f32 %v1813, %v2425
        %v2559 = vadd.f32 %v1560, %v2172
        %v2560 = vadd.f32 %v1562, %v2174
        %v2561 = vadd.f32 %v1817, %v2429
        %v2562 = vadd.f32 %v1819, %v2431
        %v2563 = vadd.f32 %v1566, %v2178
        %v2564 = vadd.f32 %v1568, %v2180
        %v2565 = vadd.f32 %v1823, %v2435
        %v2566 = vadd.f32 %v1825, %v2437
        %v2567 = vld [vmem:[%s2] sm:$0xf]
        %v2569 = vlaneseq
        %v2570 = vshrl.u32 %v2569, 7
        %v2571 = vsub.s32 0, %v2570
        %v2572 = vrot.slane %v2567, %v2571
        %v2573 = vlaneseq
        %v2574 = vshrl.u32 %v2573, 7
        %v2575 = vsub.s32 1, %v2574
        %v2576 = vrot.slane %v2567, %v2575
        %v2577 = vlaneseq
        %v2578 = vshrl.u32 %v2577, 7
        %v2579 = vsub.s32 2, %v2578
        %v2580 = vrot.slane %v2567, %v2579
        %v2581 = vlaneseq
        %v2582 = vshrl.u32 %v2581, 7
        %v2583 = vsub.s32 3, %v2582
        %v2584 = vrot.slane %v2567, %v2583
        %v2589 = vadd.f32 %v2439, %v2572
        %v2590 = vadd.f32 %v2440, %v2576
        %v2591 = vadd.f32 %v2441, %v2580
        %v2592 = vadd.f32 %v2442, %v2584
        %v2593 = vadd.f32 %v2443, %v2572
        %v2594 = vadd.f32 %v2444, %v2576
        %v2595 = vadd.f32 %v2445, %v2580
        %v2596 = vadd.f32 %v2446, %v2584
        %v2597 = vadd.f32 %v2447, %v2572
        %v2598 = vadd.f32 %v2448, %v2576
        %v2599 = vadd.f32 %v2449, %v2580
        %v2600 = vadd.f32 %v2450, %v2584
        %v2601 = vadd.f32 %v2451, %v2572
        %v2602 = vadd.f32 %v2452, %v2576
        %v2603 = vadd.f32 %v2453, %v2580
        %v2604 = vadd.f32 %v2454, %v2584
        %v2605 = vadd.f32 %v2455, %v2572
        %v2606 = vadd.f32 %v2456, %v2576
        %v2607 = vadd.f32 %v2457, %v2580
        %v2608 = vadd.f32 %v2458, %v2584
        %v2609 = vadd.f32 %v2459, %v2572
        %v2610 = vadd.f32 %v2460, %v2576
        %v2611 = vadd.f32 %v2461, %v2580
        %v2612 = vadd.f32 %v2462, %v2584
        %v2613 = vadd.f32 %v2463, %v2572
        %v2614 = vadd.f32 %v2464, %v2576
        %v2615 = vadd.f32 %v2465, %v2580
        %v2616 = vadd.f32 %v2466, %v2584
        %v2617 = vadd.f32 %v2467, %v2572
        %v2618 = vadd.f32 %v2468, %v2576
        %v2619 = vadd.f32 %v2469, %v2580
        %v2620 = vadd.f32 %v2470, %v2584
        %v2621 = vadd.f32 %v2471, %v2572
        %v2622 = vadd.f32 %v2472, %v2576
        %v2623 = vadd.f32 %v2473, %v2580
        %v2624 = vadd.f32 %v2474, %v2584
        %v2625 = vadd.f32 %v2475, %v2572
        %v2626 = vadd.f32 %v2476, %v2576
        %v2627 = vadd.f32 %v2477, %v2580
        %v2628 = vadd.f32 %v2478, %v2584
        %v2629 = vadd.f32 %v2479, %v2572
        %v2630 = vadd.f32 %v2480, %v2576
        %v2631 = vadd.f32 %v2481, %v2580
        %v2632 = vadd.f32 %v2482, %v2584
        %v2633 = vadd.f32 %v2483, %v2572
        %v2634 = vadd.f32 %v2484, %v2576
        %v2635 = vadd.f32 %v2485, %v2580
        %v2636 = vadd.f32 %v2486, %v2584
        %v2637 = vadd.f32 %v2487, %v2572
        %v2638 = vadd.f32 %v2488, %v2576
        %v2639 = vadd.f32 %v2489, %v2580
        %v2640 = vadd.f32 %v2490, %v2584
        %v2641 = vadd.f32 %v2491, %v2572
        %v2642 = vadd.f32 %v2492, %v2576
        %v2643 = vadd.f32 %v2493, %v2580
        %v2644 = vadd.f32 %v2494, %v2584
        %v2645 = vadd.f32 %v2495, %v2572
        %v2646 = vadd.f32 %v2496, %v2576
        %v2647 = vadd.f32 %v2497, %v2580
        %v2648 = vadd.f32 %v2498, %v2584
        %v2649 = vadd.f32 %v2499, %v2572
        %v2650 = vadd.f32 %v2500, %v2576
        %v2651 = vadd.f32 %v2501, %v2580
        %v2652 = vadd.f32 %v2502, %v2584
        %v2653 = vadd.f32 %v2503, %v2572
        %v2654 = vadd.f32 %v2504, %v2576
        %v2655 = vadd.f32 %v2505, %v2580
        %v2656 = vadd.f32 %v2506, %v2584
        %v2657 = vadd.f32 %v2507, %v2572
        %v2658 = vadd.f32 %v2508, %v2576
        %v2659 = vadd.f32 %v2509, %v2580
        %v2660 = vadd.f32 %v2510, %v2584
        %v2661 = vadd.f32 %v2511, %v2572
        %v2662 = vadd.f32 %v2512, %v2576
        %v2663 = vadd.f32 %v2513, %v2580
        %v2664 = vadd.f32 %v2514, %v2584
        %v2665 = vadd.f32 %v2515, %v2572
        %v2666 = vadd.f32 %v2516, %v2576
        %v2667 = vadd.f32 %v2517, %v2580
        %v2668 = vadd.f32 %v2518, %v2584
        %v2669 = vadd.f32 %v2519, %v2572
        %v2670 = vadd.f32 %v2520, %v2576
        %v2671 = vadd.f32 %v2521, %v2580
        %v2672 = vadd.f32 %v2522, %v2584
        %v2673 = vadd.f32 %v2523, %v2572
        %v2674 = vadd.f32 %v2524, %v2576
        %v2675 = vadd.f32 %v2525, %v2580
        %v2676 = vadd.f32 %v2526, %v2584
        %v2677 = vadd.f32 %v2527, %v2572
        %v2678 = vadd.f32 %v2528, %v2576
        %v2679 = vadd.f32 %v2529, %v2580
        %v2680 = vadd.f32 %v2530, %v2584
        %v2681 = vadd.f32 %v2531, %v2572
        %v2682 = vadd.f32 %v2532, %v2576
        %v2683 = vadd.f32 %v2533, %v2580
        %v2684 = vadd.f32 %v2534, %v2584
        %v2685 = vadd.f32 %v2535, %v2572
        %v2686 = vadd.f32 %v2536, %v2576
        %v2687 = vadd.f32 %v2537, %v2580
        %v2688 = vadd.f32 %v2538, %v2584
        %v2689 = vadd.f32 %v2539, %v2572
        %v2690 = vadd.f32 %v2540, %v2576
        %v2691 = vadd.f32 %v2541, %v2580
        %v2692 = vadd.f32 %v2542, %v2584
        %v2693 = vadd.f32 %v2543, %v2572
        %v2694 = vadd.f32 %v2544, %v2576
        %v2695 = vadd.f32 %v2545, %v2580
        %v2696 = vadd.f32 %v2546, %v2584
        %v2697 = vadd.f32 %v2547, %v2572
        %v2698 = vadd.f32 %v2548, %v2576
        %v2699 = vadd.f32 %v2549, %v2580
        %v2700 = vadd.f32 %v2550, %v2584
        %v2701 = vadd.f32 %v2551, %v2572
        %v2702 = vadd.f32 %v2552, %v2576
        %v2703 = vadd.f32 %v2553, %v2580
        %v2704 = vadd.f32 %v2554, %v2584
        %v2705 = vadd.f32 %v2555, %v2572
        %v2706 = vadd.f32 %v2556, %v2576
        %v2707 = vadd.f32 %v2557, %v2580
        %v2708 = vadd.f32 %v2558, %v2584
        %v2709 = vadd.f32 %v2559, %v2572
        %v2710 = vadd.f32 %v2560, %v2576
        %v2711 = vadd.f32 %v2561, %v2580
        %v2712 = vadd.f32 %v2562, %v2584
        %v2713 = vadd.f32 %v2563, %v2572
        %v2714 = vadd.f32 %v2564, %v2576
        %v2715 = vadd.f32 %v2565, %v2580
        %v2716 = vadd.f32 %v2566, %v2584
        %v2717 = vmax.f32 %v2589, 0.0
        %v2718 = vmax.f32 %v2590, 0.0
        %v2719 = vmax.f32 %v2591, 0.0
        %v2720 = vmax.f32 %v2592, 0.0
        %v2721 = vmax.f32 %v2593, 0.0
        %v2722 = vmax.f32 %v2594, 0.0
        %v2723 = vmax.f32 %v2595, 0.0
        %v2724 = vmax.f32 %v2596, 0.0
        %v2725 = vmax.f32 %v2597, 0.0
        %v2726 = vmax.f32 %v2598, 0.0
        %v2727 = vmax.f32 %v2599, 0.0
        %v2728 = vmax.f32 %v2600, 0.0
        %v2729 = vmax.f32 %v2601, 0.0
        %v2730 = vmax.f32 %v2602, 0.0
        %v2731 = vmax.f32 %v2603, 0.0
        %v2732 = vmax.f32 %v2604, 0.0
        %v2733 = vmax.f32 %v2605, 0.0
        %v2734 = vmax.f32 %v2606, 0.0
        %v2735 = vmax.f32 %v2607, 0.0
        %v2736 = vmax.f32 %v2608, 0.0
        %v2737 = vmax.f32 %v2609, 0.0
        %v2738 = vmax.f32 %v2610, 0.0
        %v2739 = vmax.f32 %v2611, 0.0
        %v2740 = vmax.f32 %v2612, 0.0
        %v2741 = vmax.f32 %v2613, 0.0
        %v2742 = vmax.f32 %v2614, 0.0
        %v2743 = vmax.f32 %v2615, 0.0
        %v2744 = vmax.f32 %v2616, 0.0
        %v2745 = vmax.f32 %v2617, 0.0
        %v2746 = vmax.f32 %v2618, 0.0
        %v2747 = vmax.f32 %v2619, 0.0
        %v2748 = vmax.f32 %v2620, 0.0
        %v2749 = vmax.f32 %v2621, 0.0
        %v2750 = vmax.f32 %v2622, 0.0
        %v2751 = vmax.f32 %v2623, 0.0
        %v2752 = vmax.f32 %v2624, 0.0
        %v2753 = vmax.f32 %v2625, 0.0
        %v2754 = vmax.f32 %v2626, 0.0
        %v2755 = vmax.f32 %v2627, 0.0
        %v2756 = vmax.f32 %v2628, 0.0
        %v2757 = vmax.f32 %v2629, 0.0
        %v2758 = vmax.f32 %v2630, 0.0
        %v2759 = vmax.f32 %v2631, 0.0
        %v2760 = vmax.f32 %v2632, 0.0
        %v2761 = vmax.f32 %v2633, 0.0
        %v2762 = vmax.f32 %v2634, 0.0
        %v2763 = vmax.f32 %v2635, 0.0
        %v2764 = vmax.f32 %v2636, 0.0
        %v2765 = vmax.f32 %v2637, 0.0
        %v2766 = vmax.f32 %v2638, 0.0
        %v2767 = vmax.f32 %v2639, 0.0
        %v2768 = vmax.f32 %v2640, 0.0
        %v2769 = vmax.f32 %v2641, 0.0
        %v2770 = vmax.f32 %v2642, 0.0
        %v2771 = vmax.f32 %v2643, 0.0
        %v2772 = vmax.f32 %v2644, 0.0
        %v2773 = vmax.f32 %v2645, 0.0
        %v2774 = vmax.f32 %v2646, 0.0
        %v2775 = vmax.f32 %v2647, 0.0
        %v2776 = vmax.f32 %v2648, 0.0
        %v2777 = vmax.f32 %v2649, 0.0
        %v2778 = vmax.f32 %v2650, 0.0
        %v2779 = vmax.f32 %v2651, 0.0
        %v2780 = vmax.f32 %v2652, 0.0
        %v2781 = vmax.f32 %v2653, 0.0
        %v2782 = vmax.f32 %v2654, 0.0
        %v2783 = vmax.f32 %v2655, 0.0
        %v2784 = vmax.f32 %v2656, 0.0
        %v2785 = vmax.f32 %v2657, 0.0
        %v2786 = vmax.f32 %v2658, 0.0
        %v2787 = vmax.f32 %v2659, 0.0
        %v2788 = vmax.f32 %v2660, 0.0
        %v2789 = vmax.f32 %v2661, 0.0
        %v2790 = vmax.f32 %v2662, 0.0
        %v2791 = vmax.f32 %v2663, 0.0
        %v2792 = vmax.f32 %v2664, 0.0
        %v2793 = vmax.f32 %v2665, 0.0
        %v2794 = vmax.f32 %v2666, 0.0
        %v2795 = vmax.f32 %v2667, 0.0
        %v2796 = vmax.f32 %v2668, 0.0
        %v2797 = vmax.f32 %v2669, 0.0
        %v2798 = vmax.f32 %v2670, 0.0
        %v2799 = vmax.f32 %v2671, 0.0
        %v2800 = vmax.f32 %v2672, 0.0
        %v2801 = vmax.f32 %v2673, 0.0
        %v2802 = vmax.f32 %v2674, 0.0
        %v2803 = vmax.f32 %v2675, 0.0
        %v2804 = vmax.f32 %v2676, 0.0
        %v2805 = vmax.f32 %v2677, 0.0
        %v2806 = vmax.f32 %v2678, 0.0
        %v2807 = vmax.f32 %v2679, 0.0
        %v2808 = vmax.f32 %v2680, 0.0
        %v2809 = vmax.f32 %v2681, 0.0
        %v2810 = vmax.f32 %v2682, 0.0
        %v2811 = vmax.f32 %v2683, 0.0
        %v2812 = vmax.f32 %v2684, 0.0
        %v2813 = vmax.f32 %v2685, 0.0
        %v2814 = vmax.f32 %v2686, 0.0
        %v2815 = vmax.f32 %v2687, 0.0
        %v2816 = vmax.f32 %v2688, 0.0
        %v2817 = vmax.f32 %v2689, 0.0
        %v2818 = vmax.f32 %v2690, 0.0
        %v2819 = vmax.f32 %v2691, 0.0
        %v2820 = vmax.f32 %v2692, 0.0
        %v2821 = vmax.f32 %v2693, 0.0
        %v2822 = vmax.f32 %v2694, 0.0
        %v2823 = vmax.f32 %v2695, 0.0
        %v2824 = vmax.f32 %v2696, 0.0
        %v2825 = vmax.f32 %v2697, 0.0
        %v2826 = vmax.f32 %v2698, 0.0
        %v2827 = vmax.f32 %v2699, 0.0
        %v2828 = vmax.f32 %v2700, 0.0
        %v2829 = vmax.f32 %v2701, 0.0
        %v2830 = vmax.f32 %v2702, 0.0
        %v2831 = vmax.f32 %v2703, 0.0
        %v2832 = vmax.f32 %v2704, 0.0
        %v2833 = vmax.f32 %v2705, 0.0
        %v2834 = vmax.f32 %v2706, 0.0
        %v2835 = vmax.f32 %v2707, 0.0
        %v2836 = vmax.f32 %v2708, 0.0
        %v2837 = vmax.f32 %v2709, 0.0
        %v2838 = vmax.f32 %v2710, 0.0
        %v2839 = vmax.f32 %v2711, 0.0
        %v2840 = vmax.f32 %v2712, 0.0
        %v2841 = vmax.f32 %v2713, 0.0
        %v2842 = vmax.f32 %v2714, 0.0
        %v2843 = vmax.f32 %v2715, 0.0
        %v2844 = vmax.f32 %v2716, 0.0
        %v2845 = vmax.f32 %v2717, %v2721
        %v2846 = vmax.f32 %v2718, %v2722
        %v2847 = vmax.f32 %v2719, %v2723
        %v2848 = vmax.f32 %v2720, %v2724
        %v2849 = vmax.f32 %v2725, %v2729
        %v2850 = vmax.f32 %v2726, %v2730
        %v2851 = vmax.f32 %v2727, %v2731
        %v2852 = vmax.f32 %v2728, %v2732
        %v2853 = vmax.f32 %v2733, %v2737
        %v2854 = vmax.f32 %v2734, %v2738
        %v2855 = vmax.f32 %v2735, %v2739
        %v2856 = vmax.f32 %v2736, %v2740
        %v2857 = vmax.f32 %v2741, %v2745
        %v2858 = vmax.f32 %v2742, %v2746
        %v2859 = vmax.f32 %v2743, %v2747
        %v2860 = vmax.f32 %v2744, %v2748
        %v2861 = vmax.f32 %v2749, %v2753
        %v2862 = vmax.f32 %v2750, %v2754
        %v2863 = vmax.f32 %v2751, %v2755
        %v2864 = vmax.f32 %v2752, %v2756
        %v2865 = vmax.f32 %v2757, %v2761
        %v2866 = vmax.f32 %v2758, %v2762
        %v2867 = vmax.f32 %v2759, %v2763
        %v2868 = vmax.f32 %v2760, %v2764
        %v2869 = vmax.f32 %v2765, %v2769
        %v2870 = vmax.f32 %v2766, %v2770
        %v2871 = vmax.f32 %v2767, %v2771
        %v2872 = vmax.f32 %v2768, %v2772
        %v2873 = vmax.f32 %v2773, %v2777
        %v2874 = vmax.f32 %v2774, %v2778
        %v2875 = vmax.f32 %v2775, %v2779
        %v2876 = vmax.f32 %v2776, %v2780
        %v2877 = vmax.f32 %v2781, %v2785
        %v2878 = vmax.f32 %v2782, %v2786
        %v2879 = vmax.f32 %v2783, %v2787
        %v2880 = vmax.f32 %v2784, %v2788
        %v2881 = vmax.f32 %v2789, %v2793
        %v2882 = vmax.f32 %v2790, %v2794
        %v2883 = vmax.f32 %v2791, %v2795
        %v2884 = vmax.f32 %v2792, %v2796
        %v2885 = vmax.f32 %v2797, %v2801
        %v2886 = vmax.f32 %v2798, %v2802
        %v2887 = vmax.f32 %v2799, %v2803
        %v2888 = vmax.f32 %v2800, %v2804
        %v2889 = vmax.f32 %v2805, %v2809
        %v2890 = vmax.f32 %v2806, %v2810
        %v2891 = vmax.f32 %v2807, %v2811
        %v2892 = vmax.f32 %v2808, %v2812
        %v2893 = vmax.f32 %v2813, %v2817
        %v2894 = vmax.f32 %v2814, %v2818
        %v2895 = vmax.f32 %v2815, %v2819
        %v2896 = vmax.f32 %v2816, %v2820
        %v2897 = vmax.f32 %v2821, %v2825
        %v2898 = vmax.f32 %v2822, %v2826
        %v2899 = vmax.f32 %v2823, %v2827
        %v2900 = vmax.f32 %v2824, %v2828
        %v2901 = vmax.f32 %v2829, %v2833
        %v2902 = vmax.f32 %v2830, %v2834
        %v2903 = vmax.f32 %v2831, %v2835
        %v2904 = vmax.f32 %v2832, %v2836
        %v2905 = vmax.f32 %v2837, %v2841
        %v2906 = vmax.f32 %v2838, %v2842
        %v2907 = vmax.f32 %v2839, %v2843
        %v2908 = vmax.f32 %v2840, %v2844
        %v2909 = vld [vmem:[%s3] sm:$0xff]
        %v2910 = vld [vmem:[%s3 + $0x8] sm:$0xff]
        %v2911 = vld [vmem:[%s3 + $0x10] sm:$0xff]
        %v2912 = vld [vmem:[%s3 + $0x18] sm:$0xff]
        %v2913 = vld [vmem:[%s3 + $0x20] sm:$0xff]
        %v2914 = vld [vmem:[%s3 + $0x28] sm:$0xff]
        %v2915 = vld [vmem:[%s3 + $0x30] sm:$0xff]
        %v2916 = vld [vmem:[%s3 + $0x38] sm:$0xff]
        %v2917 = vld [vmem:[%s3 + $0x40] sm:$0xff]
        %v2918 = vld [vmem:[%s3 + $0x48] sm:$0xff]
        %v2919 = vld [vmem:[%s3 + $0x50] sm:$0xff]
        %v2920 = vld [vmem:[%s3 + $0x58] sm:$0xff]
        %v2921 = vld [vmem:[%s3 + $0x60] sm:$0xff]
        %v2922 = vld [vmem:[%s3 + $0x68] sm:$0xff]
        %v2923 = vld [vmem:[%s3 + $0x70] sm:$0xff]
        %v2924 = vld [vmem:[%s3 + $0x78] sm:$0xff]
        %v2925 = vld [vmem:[%s3 + $0x80] sm:$0xff]
        %v2926 = vld [vmem:[%s3 + $0x88] sm:$0xff]
        %v2927 = vld [vmem:[%s3 + $0x90] sm:$0xff]
        %v2928 = vld [vmem:[%s3 + $0x98] sm:$0xff]
        %v2929 = vld [vmem:[%s3 + $0xa0] sm:$0xff]
        %v2930 = vld [vmem:[%s3 + $0xa8] sm:$0xff]
        %v2931 = vld [vmem:[%s3 + $0xb0] sm:$0xff]
        %v2932 = vld [vmem:[%s3 + $0xb8] sm:$0xff]
        %v2933 = vld [vmem:[%s3 + $0xc0] sm:$0xff]
        %v2934 = vld [vmem:[%s3 + $0xc8] sm:$0xff]
        %v2935 = vld [vmem:[%s3 + $0xd0] sm:$0xff]
        %v2936 = vld [vmem:[%s3 + $0xd8] sm:$0xff]
        %v2937 = vld [vmem:[%s3 + $0xe0] sm:$0xff]
        %v2938 = vld [vmem:[%s3 + $0xe8] sm:$0xff]
        %v2939 = vld [vmem:[%s3 + $0xf0] sm:$0xff]
        %v2940 = vld [vmem:[%s3 + $0xf8] sm:$0xff]
        %v2941 = vld [vmem:[%s3 + $0x100] sm:$0xff]
        %v2942 = vld [vmem:[%s3 + $0x108] sm:$0xff]
        %v2943 = vld [vmem:[%s3 + $0x110] sm:$0xff]
        %v2944 = vld [vmem:[%s3 + $0x118] sm:$0xff]
        %v2945 = vld [vmem:[%s3 + $0x120] sm:$0xff]
        %v2946 = vld [vmem:[%s3 + $0x128] sm:$0xff]
        %v2947 = vld [vmem:[%s3 + $0x130] sm:$0xff]
        %v2948 = vld [vmem:[%s3 + $0x138] sm:$0xff]
        %v2949 = vld [vmem:[%s3 + $0x140] sm:$0xff]
        %v2950 = vld [vmem:[%s3 + $0x148] sm:$0xff]
        %v2951 = vld [vmem:[%s3 + $0x150] sm:$0xff]
        %v2952 = vld [vmem:[%s3 + $0x158] sm:$0xff]
        %v2953 = vld [vmem:[%s3 + $0x160] sm:$0xff]
        %v2954 = vld [vmem:[%s3 + $0x168] sm:$0xff]
        %v2955 = vld [vmem:[%s3 + $0x170] sm:$0xff]
        %v2956 = vld [vmem:[%s3 + $0x178] sm:$0xff]
        %v2957 = vld [vmem:[%s3 + $0x180] sm:$0xff]
        %v2958 = vld [vmem:[%s3 + $0x188] sm:$0xff]
        %v2959 = vld [vmem:[%s3 + $0x190] sm:$0xff]
        %v2960 = vld [vmem:[%s3 + $0x198] sm:$0xff]
        %v2961 = vld [vmem:[%s3 + $0x1a0] sm:$0xff]
        %v2962 = vld [vmem:[%s3 + $0x1a8] sm:$0xff]
        %v2963 = vld [vmem:[%s3 + $0x1b0] sm:$0xff]
        %v2964 = vld [vmem:[%s3 + $0x1b8] sm:$0xff]
        %v2965 = vld [vmem:[%s3 + $0x1c0] sm:$0xff]
        %v2966 = vld [vmem:[%s3 + $0x1c8] sm:$0xff]
        %v2967 = vld [vmem:[%s3 + $0x1d0] sm:$0xff]
        %v2968 = vld [vmem:[%s3 + $0x1d8] sm:$0xff]
        %v2969 = vld [vmem:[%s3 + $0x1e0] sm:$0xff]
        %v2970 = vld [vmem:[%s3 + $0x1e8] sm:$0xff]
        %v2971 = vld [vmem:[%s3 + $0x1f0] sm:$0xff]
        %v2972 = vld [vmem:[%s3 + $0x1f8] sm:$0xff]
        %v2973 = vld [vmem:[%s3 + $0x200] sm:$0xff]
        %v2974 = vld [vmem:[%s3 + $0x208] sm:$0xff]
        %v2975 = vld [vmem:[%s3 + $0x210] sm:$0xff]
        %v2976 = vld [vmem:[%s3 + $0x218] sm:$0xff]
        %v2977 = vld [vmem:[%s3 + $0x220] sm:$0xff]
        %v2978 = vld [vmem:[%s3 + $0x228] sm:$0xff]
        %v2979 = vld [vmem:[%s3 + $0x230] sm:$0xff]
        %v2980 = vld [vmem:[%s3 + $0x238] sm:$0xff]
        %v2981 = vld [vmem:[%s3 + $0x240] sm:$0xff]
        %v2982 = vld [vmem:[%s3 + $0x248] sm:$0xff]
        %v2983 = vld [vmem:[%s3 + $0x250] sm:$0xff]
        %v2984 = vld [vmem:[%s3 + $0x258] sm:$0xff]
        %v2985 = vld [vmem:[%s3 + $0x260] sm:$0xff]
        %v2986 = vld [vmem:[%s3 + $0x268] sm:$0xff]
        %v2987 = vld [vmem:[%s3 + $0x270] sm:$0xff]
        %v2988 = vld [vmem:[%s3 + $0x278] sm:$0xff]
        %v2989 = vld [vmem:[%s3 + $0x280] sm:$0xff]
        %v2990 = vld [vmem:[%s3 + $0x288] sm:$0xff]
        %v2991 = vld [vmem:[%s3 + $0x290] sm:$0xff]
        %v2992 = vld [vmem:[%s3 + $0x298] sm:$0xff]
        %v2993 = vld [vmem:[%s3 + $0x2a0] sm:$0xff]
        %v2994 = vld [vmem:[%s3 + $0x2a8] sm:$0xff]
        %v2995 = vld [vmem:[%s3 + $0x2b0] sm:$0xff]
        %v2996 = vld [vmem:[%s3 + $0x2b8] sm:$0xff]
        %v2997 = vld [vmem:[%s3 + $0x2c0] sm:$0xff]
        %v2998 = vld [vmem:[%s3 + $0x2c8] sm:$0xff]
        %v2999 = vld [vmem:[%s3 + $0x2d0] sm:$0xff]
        %v3000 = vld [vmem:[%s3 + $0x2d8] sm:$0xff]
        %v3001 = vld [vmem:[%s3 + $0x2e0] sm:$0xff]
        %v3002 = vld [vmem:[%s3 + $0x2e8] sm:$0xff]
        %v3003 = vld [vmem:[%s3 + $0x2f0] sm:$0xff]
        %v3004 = vld [vmem:[%s3 + $0x2f8] sm:$0xff]
        %v3005 = vld [vmem:[%s3 + $0x300] sm:$0xff]
        %v3006 = vld [vmem:[%s3 + $0x308] sm:$0xff]
        %v3007 = vld [vmem:[%s3 + $0x310] sm:$0xff]
        %v3008 = vld [vmem:[%s3 + $0x318] sm:$0xff]
        %v3009 = vld [vmem:[%s3 + $0x320] sm:$0xff]
        %v3010 = vld [vmem:[%s3 + $0x328] sm:$0xff]
        %v3011 = vld [vmem:[%s3 + $0x330] sm:$0xff]
        %v3012 = vld [vmem:[%s3 + $0x338] sm:$0xff]
        %v3013 = vld [vmem:[%s3 + $0x340] sm:$0xff]
        %v3014 = vld [vmem:[%s3 + $0x348] sm:$0xff]
        %v3015 = vld [vmem:[%s3 + $0x350] sm:$0xff]
        %v3016 = vld [vmem:[%s3 + $0x358] sm:$0xff]
        %v3017 = vld [vmem:[%s3 + $0x360] sm:$0xff]
        %v3018 = vld [vmem:[%s3 + $0x368] sm:$0xff]
        %v3019 = vld [vmem:[%s3 + $0x370] sm:$0xff]
        %v3020 = vld [vmem:[%s3 + $0x378] sm:$0xff]
        %v3021 = vld [vmem:[%s3 + $0x380] sm:$0xff]
        %v3022 = vld [vmem:[%s3 + $0x388] sm:$0xff]
        %v3023 = vld [vmem:[%s3 + $0x390] sm:$0xff]
        %v3024 = vld [vmem:[%s3 + $0x398] sm:$0xff]
        %v3025 = vld [vmem:[%s3 + $0x3a0] sm:$0xff]
        %v3026 = vld [vmem:[%s3 + $0x3a8] sm:$0xff]
        %v3027 = vld [vmem:[%s3 + $0x3b0] sm:$0xff]
        %v3028 = vld [vmem:[%s3 + $0x3b8] sm:$0xff]
        %v3029 = vld [vmem:[%s3 + $0x3c0] sm:$0xff]
        %v3030 = vld [vmem:[%s3 + $0x3c8] sm:$0xff]
        %v3031 = vld [vmem:[%s3 + $0x3d0] sm:$0xff]
        %v3032 = vld [vmem:[%s3 + $0x3d8] sm:$0xff]
        %v3033 = vld [vmem:[%s3 + $0x3e0] sm:$0xff]
        %v3034 = vld [vmem:[%s3 + $0x3e8] sm:$0xff]
        %v3035 = vld [vmem:[%s3 + $0x3f0] sm:$0xff]
        %v3036 = vld [vmem:[%s3 + $0x3f8] sm:$0xff]
        %v3037 = vld [vmem:[%s3 + $0x400] sm:$0xff]
        %v3038 = vld [vmem:[%s3 + $0x408] sm:$0xff]
        %v3039 = vld [vmem:[%s3 + $0x410] sm:$0xff]
        %v3040 = vld [vmem:[%s3 + $0x418] sm:$0xff]
        %v3041 = vld [vmem:[%s3 + $0x420] sm:$0xff]
        %v3042 = vld [vmem:[%s3 + $0x428] sm:$0xff]
        %v3043 = vld [vmem:[%s3 + $0x430] sm:$0xff]
        %v3044 = vld [vmem:[%s3 + $0x438] sm:$0xff]
        %v3045 = vld [vmem:[%s3 + $0x440] sm:$0xff]
        %v3046 = vld [vmem:[%s3 + $0x448] sm:$0xff]
        %v3047 = vld [vmem:[%s3 + $0x450] sm:$0xff]
        %v3048 = vld [vmem:[%s3 + $0x458] sm:$0xff]
        %v3049 = vld [vmem:[%s3 + $0x460] sm:$0xff]
        %v3050 = vld [vmem:[%s3 + $0x468] sm:$0xff]
        %v3051 = vld [vmem:[%s3 + $0x470] sm:$0xff]
        %v3052 = vld [vmem:[%s3 + $0x478] sm:$0xff]
        %v3053 = vld [vmem:[%s3 + $0x480] sm:$0xff]
        %v3054 = vld [vmem:[%s3 + $0x488] sm:$0xff]
        %v3055 = vld [vmem:[%s3 + $0x490] sm:$0xff]
        %v3056 = vld [vmem:[%s3 + $0x498] sm:$0xff]
        %v3057 = vld [vmem:[%s3 + $0x4a0] sm:$0xff]
        %v3058 = vld [vmem:[%s3 + $0x4a8] sm:$0xff]
        %v3059 = vld [vmem:[%s3 + $0x4b0] sm:$0xff]
        %v3060 = vld [vmem:[%s3 + $0x4b8] sm:$0xff]
        %v3061 = vld [vmem:[%s3 + $0x4c0] sm:$0xff]
        %v3062 = vld [vmem:[%s3 + $0x4c8] sm:$0xff]
        %v3063 = vld [vmem:[%s3 + $0x4d0] sm:$0xff]
        %v3064 = vld [vmem:[%s3 + $0x4d8] sm:$0xff]
        %v3065 = vld [vmem:[%s3 + $0x4e0] sm:$0xff]
        %v3066 = vld [vmem:[%s3 + $0x4e8] sm:$0xff]
        %v3067 = vld [vmem:[%s3 + $0x4f0] sm:$0xff]
        %v3068 = vld [vmem:[%s3 + $0x4f8] sm:$0xff]
        %v3069 = vld [vmem:[%s3 + $0x500] sm:$0xff]
        %v3070 = vld [vmem:[%s3 + $0x508] sm:$0xff]
        %v3071 = vld [vmem:[%s3 + $0x510] sm:$0xff]
        %v3072 = vld [vmem:[%s3 + $0x518] sm:$0xff]
        %v3073 = vld [vmem:[%s3 + $0x520] sm:$0xff]
        %v3074 = vld [vmem:[%s3 + $0x528] sm:$0xff]
        %v3075 = vld [vmem:[%s3 + $0x530] sm:$0xff]
        %v3076 = vld [vmem:[%s3 + $0x538] sm:$0xff]
        %v3077 = vld [vmem:[%s3 + $0x540] sm:$0xff]
        %v3078 = vld [vmem:[%s3 + $0x548] sm:$0xff]
        %v3079 = vld [vmem:[%s3 + $0x550] sm:$0xff]
        %v3080 = vld [vmem:[%s3 + $0x558] sm:$0xff]
        %v3081 = vld [vmem:[%s3 + $0x560] sm:$0xff]
        %v3082 = vld [vmem:[%s3 + $0x568] sm:$0xff]
        %v3083 = vld [vmem:[%s3 + $0x570] sm:$0xff]
        %v3084 = vld [vmem:[%s3 + $0x578] sm:$0xff]
        %v3085 = vld [vmem:[%s3 + $0x580] sm:$0xff]
        %v3086 = vld [vmem:[%s3 + $0x588] sm:$0xff]
        %v3087 = vld [vmem:[%s3 + $0x590] sm:$0xff]
        %v3088 = vld [vmem:[%s3 + $0x598] sm:$0xff]
        %v3089 = vld [vmem:[%s3 + $0x5a0] sm:$0xff]
        %v3090 = vld [vmem:[%s3 + $0x5a8] sm:$0xff]
        %v3091 = vld [vmem:[%s3 + $0x5b0] sm:$0xff]
        %v3092 = vld [vmem:[%s3 + $0x5b8] sm:$0xff]
        %v3093 = vld [vmem:[%s3 + $0x5c0] sm:$0xff]
        %v3094 = vld [vmem:[%s3 + $0x5c8] sm:$0xff]
        %v3095 = vld [vmem:[%s3 + $0x5d0] sm:$0xff]
        %v3096 = vld [vmem:[%s3 + $0x5d8] sm:$0xff]
        %v3097 = vld [vmem:[%s3 + $0x5e0] sm:$0xff]
        %v3098 = vld [vmem:[%s3 + $0x5e8] sm:$0xff]
        %v3099 = vld [vmem:[%s3 + $0x5f0] sm:$0xff]
        %v3100 = vld [vmem:[%s3 + $0x5f8] sm:$0xff]
        %3101 = vmatprep.subr.mxu0 %v2910
        %3102 = vmatpush1.msra.mxu0 %v2909
        %3103 = vmatprep.subr.mxu0 %v2913
        %3104 = vmatpush1.msra.mxu0 %v2912
        %3105 = vmatprep.subr.mxu0 %v2916
        %3106 = vmatpush1.msra.mxu0 %v2915
        %3107 = vmatprep.subr.mxu0 %v2919
        %3108 = vmatpush1.msra.mxu0 %v2918
        %3109 = vmatprep.subr.mxu0 %v2922
        %3110 = vmatpush1.msra.mxu0 %v2921
        %3111 = vmatprep.subr.mxu0 %v2925
        %3112 = vmatpush1.msra.mxu0 %v2924
        %3113 = vmatprep.subr.mxu0 %v2928
        %3114 = vmatpush1.msra.mxu0 %v2927
        %3115 = vmatprep.subr.mxu0 %v2931
        %3116 = vmatpush1.msra.mxu0 %v2930
        %3117 = vmatprep.subr.mxu0 %v2934
        %3118 = vmatpush1.msra.mxu0 %v2933
        %3119 = vmatprep.subr.mxu0 %v2937
        %3120 = vmatpush1.msra.mxu0 %v2936
        %3121 = vmatprep.subr.mxu0 %v2940
        %3122 = vmatpush1.msra.mxu0 %v2939
        %3123 = vmatprep.subr.mxu0 %v2943
        %3124 = vmatpush1.msra.mxu0 %v2942
        %3125 = vmatprep.subr.mxu0 %v2946
        %3126 = vmatpush1.msra.mxu0 %v2945
        %3127 = vmatprep.subr.mxu0 %v2949
        %3128 = vmatpush1.msra.mxu0 %v2948
        %3129 = vmatprep.subr.mxu0 %v2952
        %3130 = vmatpush1.msra.mxu0 %v2951
        %3131 = vmatprep.subr.mxu0 %v2955
        %3132 = vmatpush1.msra.mxu0 %v2954
        %3133 = vmatprep.subr.mxu0 %v2958
        %3134 = vmatpush1.msra.mxu0 %v2957
        %3135 = vmatprep.subr.mxu0 %v2961
        %3136 = vmatpush1.msra.mxu0 %v2960
        %3137 = vmatprep.subr.mxu0 %v2964
        %3138 = vmatpush1.msra.mxu0 %v2963
        %3139 = vmatprep.subr.mxu0 %v2967
        %3140 = vmatpush1.msra.mxu0 %v2966
        %3141 = vmatprep.subr.mxu0 %v2970
        %3142 = vmatpush1.msra.mxu0 %v2969
        %3143 = vmatprep.subr.mxu0 %v2973
        %3144 = vmatpush1.msra.mxu0 %v2972
        %3145 = vmatprep.subr.mxu0 %v2976
        %3146 = vmatpush1.msra.mxu0 %v2975
        %3147 = vmatprep.subr.mxu0 %v2979
        %3148 = vmatpush1.msra.mxu0 %v2978
        %3149 = vmatprep.subr.mxu0 %v2982
        %3150 = vmatpush1.msra.mxu0 %v2981
        %3151 = vmatprep.subr.mxu0 %v2985
        %3152 = vmatpush1.msra.mxu0 %v2984
        %3153 = vmatprep.subr.mxu0 %v2988
        %3154 = vmatpush1.msra.mxu0 %v2987
        %3155 = vmatprep.subr.mxu0 %v2991
        %3156 = vmatpush1.msra.mxu0 %v2990
        %3157 = vmatprep.subr.mxu0 %v2994
        %3158 = vmatpush1.msra.mxu0 %v2993
        %3159 = vmatprep.subr.mxu0 %v2997
        %3160 = vmatpush1.msra.mxu0 %v2996
        %3161 = vmatprep.subr.mxu0 %v3000
        %3162 = vmatpush1.msra.mxu0 %v2999
        %3163 = vmatprep.subr.mxu0 %v3003
        %3164 = vmatpush1.msra.mxu0 %v3002
        %3165 = vmatprep.mubr.f32.mxu0 %v2846
        %3166 = vmatmul.mubr.f32.gmra.mrb[0].mxu0 %v2845
        %v3167 = vpop.f32.mrb[0].mxu0
        %v3168 = vadd.f32 0.0, %v3167
        %v3169 = vpop.f32.mrb[0].mxu0
        %v3170 = vadd.f32 0.0, %v3169
        %3171 = vmatprep.mubr.f32.mxu0 %v2850
        %3172 = vmatmul.mubr.f32.gmra.mrb[0].mxu0 %v2849
        %v3173 = vpop.f32.mrb[0].mxu0
        %v3174 = vadd.f32 0.0, %v3173
        %v3175 = vpop.f32.mrb[0].mxu0
        %v3176 = vadd.f32 0.0, %v3175
        %3177 = vmatprep.mubr.f32.mxu0 %v2854
        %3178 = vmatmul.mubr.f32.gmra.mrb[0].mxu0 %v2853
        %v3179 = vpop.f32.mrb[0].mxu0
        %v3180 = vadd.f32 0.0, %v3179
        %v3181 = vpop.f32.mrb[0].mxu0
        %v3182 = vadd.f32 0.0, %v3181
        %3183 = vmatprep.mubr.f32.mxu0 %v2858
        %3184 = vmatmul.mubr.f32.gmra.mrb[0].mxu0 %v2857
        %v3185 = vpop.f32.mrb[0].mxu0
        %v3186 = vadd.f32 0.0, %v3185
        %v3187 = vpop.f32.mrb[0].mxu0
        %v3188 = vadd.f32 0.0, %v3187
        %3189 = vmatprep.mubr.f32.mxu0 %v2862
        %3190 = vmatmul.mubr.f32.gmra.mrb[0].mxu0 %v2861
        %v3191 = vpop.f32.mrb[0].mxu0
        %v3192 = vadd.f32 0.0, %v3191
        %v3193 = vpop.f32.mrb[0].mxu0
        %v3194 = vadd.f32 0.0, %v3193
        %3195 = vmatprep.mubr.f32.mxu0 %v2866
        %3196 = vmatmul.mubr.f32.gmra.mrb[0].mxu0 %v2865
        %v3197 = vpop.f32.mrb[0].mxu0
        %v3198 = vadd.f32 0.0, %v3197
        %v3199 = vpop.f32.mrb[0].mxu0
        %v3200 = vadd.f32 0.0, %v3199
        %3201 = vmatprep.mubr.f32.mxu0 %v2870
        %3202 = vmatmul.mubr.f32.gmra.mrb[0].mxu0 %v2869
        %v3203 = vpop.f32.mrb[0].mxu0
        %v3204 = vadd.f32 0.0, %v3203
        %v3205 = vpop.f32.mrb[0].mxu0
        %v3206 = vadd.f32 0.0, %v3205
        %3207 = vmatprep.mubr.f32.mxu0 %v2874
        %3208 = vmatmul.mubr.f32.gmra.mrb[0].mxu0 %v2873
        %v3209 = vpop.f32.mrb[0].mxu0
        %v3210 = vadd.f32 0.0, %v3209
        %v3211 = vpop.f32.mrb[0].mxu0
        %v3212 = vadd.f32 0.0, %v3211
        %3213 = vmatprep.mubr.f32.mxu0 %v2878
        %3214 = vmatmul.mubr.f32.gmra.mrb[0].mxu0 %v2877
        %v3215 = vpop.f32.mrb[0].mxu0
        %v3216 = vadd.f32 0.0, %v3215
        %v3217 = vpop.f32.mrb[0].mxu0
        %v3218 = vadd.f32 0.0, %v3217
        %3219 = vmatprep.mubr.f32.mxu0 %v2882
        %3220 = vmatmul.mubr.f32.gmra.mrb[0].mxu0 %v2881
        %v3221 = vpop.f32.mrb[0].mxu0
        %v3222 = vadd.f32 0.0, %v3221
        %v3223 = vpop.f32.mrb[0].mxu0
        %v3224 = vadd.f32 0.0, %v3223
        %3225 = vmatprep.mubr.f32.mxu0 %v2886
        %3226 = vmatmul.mubr.f32.gmra.mrb[0].mxu0 %v2885
        %v3227 = vpop.f32.mrb[0].mxu0
        %v3228 = vadd.f32 0.0, %v3227
        %v3229 = vpop.f32.mrb[0].mxu0
        %v3230 = vadd.f32 0.0, %v3229
        %3231 = vmatprep.mubr.f32.mxu0 %v2890
        %3232 = vmatmul.mubr.f32.gmra.mrb[0].mxu0 %v2889
        %v3233 = vpop.f32.mrb[0].mxu0
        %v3234 = vadd.f32 0.0, %v3233
        %v3235 = vpop.f32.mrb[0].mxu0
        %v3236 = vadd.f32 0.0, %v3235
        %3237 = vmatprep.mubr.f32.mxu0 %v2894
        %3238 = vmatmul.mubr.f32.gmra.mrb[0].mxu0 %v2893
        %v3239 = vpop.f32.mrb[0].mxu0
        %v3240 = vadd.f32 0.0, %v3239
        %v3241 = vpop.f32.mrb[0].mxu0
        %v3242 = vadd.f32 0.0, %v3241
        %3243 = vmatprep.mubr.f32.mxu0 %v2898
        %3244 = vmatmul.mubr.f32.gmra.mrb[0].mxu0 %v2897
        %v3245 = vpop.f32.mrb[0].mxu0
        %v3246 = vadd.f32 0.0, %v3245
        %v3247 = vpop.f32.mrb[0].mxu0
        %v3248 = vadd.f32 0.0, %v3247
        %3249 = vmatprep.mubr.f32.mxu0 %v2902
        %3250 = vmatmul.mubr.f32.gmra.mrb[0].mxu0 %v2901
        %v3251 = vpop.f32.mrb[0].mxu0
        %v3252 = vadd.f32 0.0, %v3251
        %v3253 = vpop.f32.mrb[0].mxu0
        %v3254 = vadd.f32 0.0, %v3253
        %3255 = vmatprep.mubr.f32.mxu0 %v2906
        %3256 = vmatmul.mubr.f32.gmra.mrb[0].mxu0 %v2905
        %v3257 = vpop.f32.mrb[0].mxu0
        %v3258 = vadd.f32 0.0, %v3257
        %v3259 = vpop.f32.mrb[0].mxu0
        %v3260 = vadd.f32 0.0, %v3259
        %3261 = vdwg.mxu0
        %3262 = vmatprep.subr.mxu0 %v3006
        %3263 = vmatpush1.msra.mxu0 %v3005
        %3264 = vmatprep.subr.mxu0 %v3009
        %3265 = vmatpush1.msra.mxu0 %v3008
        %3266 = vmatprep.subr.mxu0 %v3012
        %3267 = vmatpush1.msra.mxu0 %v3011
        %3268 = vmatprep.subr.mxu0 %v3015
        %3269 = vmatpush1.msra.mxu0 %v3014
        %3270 = vmatprep.subr.mxu0 %v3018
        %3271 = vmatpush1.msra.mxu0 %v3017
        %3272 = vmatprep.subr.mxu0 %v3021
        %3273 = vmatpush1.msra.mxu0 %v3020
        %3274 = vmatprep.subr.mxu0 %v3024
        %3275 = vmatpush1.msra.mxu0 %v3023
        %3276 = vmatprep.subr.mxu0 %v3027
        %3277 = vmatpush1.msra.mxu0 %v3026
        %3278 = vmatprep.subr.mxu0 %v3030
        %3279 = vmatpush1.msra.mxu0 %v3029
        %3280 = vmatprep.subr.mxu0 %v3033
        %3281 = vmatpush1.msra.mxu0 %v3032
        %3282 = vmatprep.subr.mxu0 %v3036
        %3283 = vmatpush1.msra.mxu0 %v3035
        %3284 = vmatprep.subr.mxu0 %v3039
        %3285 = vmatpush1.msra.mxu0 %v3038
        %3286 = vmatprep.subr.mxu0 %v3042
        %3287 = vmatpush1.msra.mxu0 %v3041
        %3288 = vmatprep.subr.mxu0 %v3045
        %3289 = vmatpush1.msra.mxu0 %v3044
        %3290 = vmatprep.subr.mxu0 %v3048
        %3291 = vmatpush1.msra.mxu0 %v3047
        %3292 = vmatprep.subr.mxu0 %v3051
        %3293 = vmatpush1.msra.mxu0 %v3050
        %3294 = vmatprep.subr.mxu0 %v3054
        %3295 = vmatpush1.msra.mxu0 %v3053
        %3296 = vmatprep.subr.mxu0 %v3057
        %3297 = vmatpush1.msra.mxu0 %v3056
        %3298 = vmatprep.subr.mxu0 %v3060
        %3299 = vmatpush1.msra.mxu0 %v3059
        %3300 = vmatprep.subr.mxu0 %v3063
        %3301 = vmatpush1.msra.mxu0 %v3062
        %3302 = vmatprep.subr.mxu0 %v3066
        %3303 = vmatpush1.msra.mxu0 %v3065
        %3304 = vmatprep.subr.mxu0 %v3069
        %3305 = vmatpush1.msra.mxu0 %v3068
        %3306 = vmatprep.subr.mxu0 %v3072
        %3307 = vmatpush1.msra.mxu0 %v3071
        %3308 = vmatprep.subr.mxu0 %v3075
        %3309 = vmatpush1.msra.mxu0 %v3074
        %3310 = vmatprep.subr.mxu0 %v3078
        %3311 = vmatpush1.msra.mxu0 %v3077
        %3312 = vmatprep.subr.mxu0 %v3081
        %3313 = vmatpush1.msra.mxu0 %v3080
        %3314 = vmatprep.subr.mxu0 %v3084
        %3315 = vmatpush1.msra.mxu0 %v3083
        %3316 = vmatprep.subr.mxu0 %v3087
        %3317 = vmatpush1.msra.mxu0 %v3086
        %3318 = vmatprep.subr.mxu0 %v3090
        %3319 = vmatpush1.msra.mxu0 %v3089
        %3320 = vmatprep.subr.mxu0 %v3093
        %3321 = vmatpush1.msra.mxu0 %v3092
        %3322 = vmatprep.subr.mxu0 %v3096
        %3323 = vmatpush1.msra.mxu0 %v3095
        %3324 = vmatprep.subr.mxu0 %v3099
        %3325 = vmatpush1.msra.mxu0 %v3098
        %3326 = vmatprep.mubr.f32.mxu0 %v2848
        %3327 = vmatmul.mubr.f32.gmra.mrb[0].mxu0 %v2847
        %v3328 = vpop.f32.mrb[0].mxu0
        %v3329 = vadd.f32 %v3168, %v3328
        %v3330 = vpop.f32.mrb[0].mxu0
        %v3331 = vadd.f32 %v3170, %v3330
        %3332 = vmatprep.mubr.f32.mxu0 %v2852
        %3333 = vmatmul.mubr.f32.gmra.mrb[0].mxu0 %v2851
        %v3334 = vpop.f32.mrb[0].mxu0
        %v3335 = vadd.f32 %v3174, %v3334
        %v3336 = vpop.f32.mrb[0].mxu0
        %v3337 = vadd.f32 %v3176, %v3336
        %3338 = vmatprep.mubr.f32.mxu0 %v2856
        %3339 = vmatmul.mubr.f32.gmra.mrb[0].mxu0 %v2855
        %v3340 = vpop.f32.mrb[0].mxu0
        %v3341 = vadd.f32 %v3180, %v3340
        %v3342 = vpop.f32.mrb[0].mxu0
        %v3343 = vadd.f32 %v3182, %v3342
        %3344 = vmatprep.mubr.f32.mxu0 %v2860
        %3345 = vmatmul.mubr.f32.gmra.mrb[0].mxu0 %v2859
        %v3346 = vpop.f32.mrb[0].mxu0
        %v3347 = vadd.f32 %v3186, %v3346
        %v3348 = vpop.f32.mrb[0].mxu0
        %v3349 = vadd.f32 %v3188, %v3348
        %3350 = vmatprep.mubr.f32.mxu0 %v2864
        %3351 = vmatmul.mubr.f32.gmra.mrb[0].mxu0 %v2863
        %v3352 = vpop.f32.mrb[0].mxu0
        %v3353 = vadd.f32 %v3192, %v3352
        %v3354 = vpop.f32.mrb[0].mxu0
        %v3355 = vadd.f32 %v3194, %v3354
        %3356 = vmatprep.mubr.f32.mxu0 %v2868
        %3357 = vmatmul.mubr.f32.gmra.mrb[0].mxu0 %v2867
        %v3358 = vpop.f32.mrb[0].mxu0
        %v3359 = vadd.f32 %v3198, %v3358
        %v3360 = vpop.f32.mrb[0].mxu0
        %v3361 = vadd.f32 %v3200, %v3360
        %3362 = vmatprep.mubr.f32.mxu0 %v2872
        %3363 = vmatmul.mubr.f32.gmra.mrb[0].mxu0 %v2871
        %v3364 = vpop.f32.mrb[0].mxu0
        %v3365 = vadd.f32 %v3204, %v3364
        %v3366 = vpop.f32.mrb[0].mxu0
        %v3367 = vadd.f32 %v3206, %v3366
        %3368 = vmatprep.mubr.f32.mxu0 %v2876
        %3369 = vmatmul.mubr.f32.gmra.mrb[0].mxu0 %v2875
        %v3370 = vpop.f32.mrb[0].mxu0
        %v3371 = vadd.f32 %v3210, %v3370
        %v3372 = vpop.f32.mrb[0].mxu0
        %v3373 = vadd.f32 %v3212, %v3372
        %3374 = vmatprep.mubr.f32.mxu0 %v2880
        %3375 = vmatmul.mubr.f32.gmra.mrb[0].mxu0 %v2879
        %v3376 = vpop.f32.mrb[0].mxu0
        %v3377 = vadd.f32 %v3216, %v3376
        %v3378 = vpop.f32.mrb[0].mxu0
        %v3379 = vadd.f32 %v3218, %v3378
        %3380 = vmatprep.mubr.f32.mxu0 %v2884
        %3381 = vmatmul.mubr.f32.gmra.mrb[0].mxu0 %v2883
        %v3382 = vpop.f32.mrb[0].mxu0
        %v3383 = vadd.f32 %v3222, %v3382
        %v3384 = vpop.f32.mrb[0].mxu0
        %v3385 = vadd.f32 %v3224, %v3384
        %3386 = vmatprep.mubr.f32.mxu0 %v2888
        %3387 = vmatmul.mubr.f32.gmra.mrb[0].mxu0 %v2887
        %v3388 = vpop.f32.mrb[0].mxu0
        %v3389 = vadd.f32 %v3228, %v3388
        %v3390 = vpop.f32.mrb[0].mxu0
        %v3391 = vadd.f32 %v3230, %v3390
        %3392 = vmatprep.mubr.f32.mxu0 %v2892
        %3393 = vmatmul.mubr.f32.gmra.mrb[0].mxu0 %v2891
        %v3394 = vpop.f32.mrb[0].mxu0
        %v3395 = vadd.f32 %v3234, %v3394
        %v3396 = vpop.f32.mrb[0].mxu0
        %v3397 = vadd.f32 %v3236, %v3396
        %3398 = vmatprep.mubr.f32.mxu0 %v2896
        %3399 = vmatmul.mubr.f32.gmra.mrb[0].mxu0 %v2895
        %v3400 = vpop.f32.mrb[0].mxu0
        %v3401 = vadd.f32 %v3240, %v3400
        %v3402 = vpop.f32.mrb[0].mxu0
        %v3403 = vadd.f32 %v3242, %v3402
        %3404 = vmatprep.mubr.f32.mxu0 %v2900
        %3405 = vmatmul.mubr.f32.gmra.mrb[0].mxu0 %v2899
        %v3406 = vpop.f32.mrb[0].mxu0
        %v3407 = vadd.f32 %v3246, %v3406
        %v3408 = vpop.f32.mrb[0].mxu0
        %v3409 = vadd.f32 %v3248, %v3408
        %3410 = vmatprep.mubr.f32.mxu0 %v2904
        %3411 = vmatmul.mubr.f32.gmra.mrb[0].mxu0 %v2903
        %v3412 = vpop.f32.mrb[0].mxu0
        %v3413 = vadd.f32 %v3252, %v3412
        %v3414 = vpop.f32.mrb[0].mxu0
        %v3415 = vadd.f32 %v3254, %v3414
        %3416 = vmatprep.mubr.f32.mxu0 %v2908
        %3417 = vmatmul.mubr.f32.gmra.mrb[0].mxu0 %v2907
        %v3418 = vpop.f32.mrb[0].mxu0
        %v3419 = vadd.f32 %v3258, %v3418
        %v3420 = vpop.f32.mrb[0].mxu0
        %v3421 = vadd.f32 %v3260, %v3420
        %3422 = vdwg.mxu0
        %3423 = vmatprep.subr.mxu0 0.0
        %3424 = vmatpush1.msra.mxu0 %v2911
        %3425 = vmatprep.subr.mxu0 0.0
        %3426 = vmatpush1.msra.mxu0 %v2914
        %3427 = vmatprep.subr.mxu0 0.0
        %3428 = vmatpush1.msra.mxu0 %v2917
        %3429 = vmatprep.subr.mxu0 0.0
        %3430 = vmatpush1.msra.mxu0 %v2920
        %3431 = vmatprep.subr.mxu0 0.0
        %3432 = vmatpush1.msra.mxu0 %v2923
        %3433 = vmatprep.subr.mxu0 0.0
        %3434 = vmatpush1.msra.mxu0 %v2926
        %3435 = vmatprep.subr.mxu0 0.0
        %3436 = vmatpush1.msra.mxu0 %v2929
        %3437 = vmatprep.subr.mxu0 0.0
        %3438 = vmatpush1.msra.mxu0 %v2932
        %3439 = vmatprep.subr.mxu0 0.0
        %3440 = vmatpush1.msra.mxu0 %v2935
        %3441 = vmatprep.subr.mxu0 0.0
        %3442 = vmatpush1.msra.mxu0 %v2938
        %3443 = vmatprep.subr.mxu0 0.0
        %3444 = vmatpush1.msra.mxu0 %v2941
        %3445 = vmatprep.subr.mxu0 0.0
        %3446 = vmatpush1.msra.mxu0 %v2944
        %3447 = vmatprep.subr.mxu0 0.0
        %3448 = vmatpush1.msra.mxu0 %v2947
        %3449 = vmatprep.subr.mxu0 0.0
        %3450 = vmatpush1.msra.mxu0 %v2950
        %3451 = vmatprep.subr.mxu0 0.0
        %3452 = vmatpush1.msra.mxu0 %v2953
        %3453 = vmatprep.subr.mxu0 0.0
        %3454 = vmatpush1.msra.mxu0 %v2956
        %3455 = vmatprep.subr.mxu0 0.0
        %3456 = vmatpush1.msra.mxu0 %v2959
        %3457 = vmatprep.subr.mxu0 0.0
        %3458 = vmatpush1.msra.mxu0 %v2962
        %3459 = vmatprep.subr.mxu0 0.0
        %3460 = vmatpush1.msra.mxu0 %v2965
        %3461 = vmatprep.subr.mxu0 0.0
        %3462 = vmatpush1.msra.mxu0 %v2968
        %3463 = vmatprep.subr.mxu0 0.0
        %3464 = vmatpush1.msra.mxu0 %v2971
        %3465 = vmatprep.subr.mxu0 0.0
        %3466 = vmatpush1.msra.mxu0 %v2974
        %3467 = vmatprep.subr.mxu0 0.0
        %3468 = vmatpush1.msra.mxu0 %v2977
        %3469 = vmatprep.subr.mxu0 0.0
        %3470 = vmatpush1.msra.mxu0 %v2980
        %3471 = vmatprep.subr.mxu0 0.0
        %3472 = vmatpush1.msra.mxu0 %v2983
        %3473 = vmatprep.subr.mxu0 0.0
        %3474 = vmatpush1.msra.mxu0 %v2986
        %3475 = vmatprep.subr.mxu0 0.0
        %3476 = vmatpush1.msra.mxu0 %v2989
        %3477 = vmatprep.subr.mxu0 0.0
        %3478 = vmatpush1.msra.mxu0 %v2992
        %3479 = vmatprep.subr.mxu0 0.0
        %3480 = vmatpush1.msra.mxu0 %v2995
        %3481 = vmatprep.subr.mxu0 0.0
        %3482 = vmatpush1.msra.mxu0 %v2998
        %3483 = vmatprep.subr.mxu0 0.0
        %3484 = vmatpush1.msra.mxu0 %v3001
        %3485 = vmatprep.subr.mxu0 0.0
        %3486 = vmatpush1.msra.mxu0 %v3004
        %3487 = vmatprep.mubr.f32.mxu0 %v2846
        %3488 = vmatmul.mubr.f32.gmra.mrb[0].mxu0 %v2845
        %v3489 = vpop.f32.mrb[0].mxu0
        %v3490 = vadd.f32 0.0, %v3489
        %v3491 = vpop.f32.mrb[0].mxu0
        %3492 = vmatprep.mubr.f32.mxu0 %v2850
        %3493 = vmatmul.mubr.f32.gmra.mrb[0].mxu0 %v2849
        %v3494 = vpop.f32.mrb[0].mxu0
        %v3495 = vadd.f32 0.0, %v3494
        %v3496 = vpop.f32.mrb[0].mxu0
        %3497 = vmatprep.mubr.f32.mxu0 %v2854
        %3498 = vmatmul.mubr.f32.gmra.mrb[0].mxu0 %v2853
        %v3499 = vpop.f32.mrb[0].mxu0
        %v3500 = vadd.f32 0.0, %v3499
        %v3501 = vpop.f32.mrb[0].mxu0
        %3502 = vmatprep.mubr.f32.mxu0 %v2858
        %3503 = vmatmul.mubr.f32.gmra.mrb[0].mxu0 %v2857
        %v3504 = vpop.f32.mrb[0].mxu0
        %v3505 = vadd.f32 0.0, %v3504
        %v3506 = vpop.f32.mrb[0].mxu0
        %3507 = vmatprep.mubr.f32.mxu0 %v2862
        %3508 = vmatmul.mubr.f32.gmra.mrb[0].mxu0 %v2861
        %v3509 = vpop.f32.mrb[0].mxu0
        %v3510 = vadd.f32 0.0, %v3509
        %v3511 = vpop.f32.mrb[0].mxu0
        %3512 = vmatprep.mubr.f32.mxu0 %v2866
        %3513 = vmatmul.mubr.f32.gmra.mrb[0].mxu0 %v2865
        %v3514 = vpop.f32.mrb[0].mxu0
        %v3515 = vadd.f32 0.0, %v3514
        %v3516 = vpop.f32.mrb[0].mxu0
        %3517 = vmatprep.mubr.f32.mxu0 %v2870
        %3518 = vmatmul.mubr.f32.gmra.mrb[0].mxu0 %v2869
        %v3519 = vpop.f32.mrb[0].mxu0
        %v3520 = vadd.f32 0.0, %v3519
        %v3521 = vpop.f32.mrb[0].mxu0
        %3522 = vmatprep.mubr.f32.mxu0 %v2874
        %3523 = vmatmul.mubr.f32.gmra.mrb[0].mxu0 %v2873
        %v3524 = vpop.f32.mrb[0].mxu0
        %v3525 = vadd.f32 0.0, %v3524
        %v3526 = vpop.f32.mrb[0].mxu0
        %3527 = vmatprep.mubr.f32.mxu0 %v2878
        %3528 = vmatmul.mubr.f32.gmra.mrb[0].mxu0 %v2877
        %v3529 = vpop.f32.mrb[0].mxu0
        %v3530 = vadd.f32 0.0, %v3529
        %v3531 = vpop.f32.mrb[0].mxu0
        %3532 = vmatprep.mubr.f32.mxu0 %v2882
        %3533 = vmatmul.mubr.f32.gmra.mrb[0].mxu0 %v2881
        %v3534 = vpop.f32.mrb[0].mxu0
        %v3535 = vadd.f32 0.0, %v3534
        %v3536 = vpop.f32.mrb[0].mxu0
        %3537 = vmatprep.mubr.f32.mxu0 %v2886
        %3538 = vmatmul.mubr.f32.gmra.mrb[0].mxu0 %v2885
        %v3539 = vpop.f32.mrb[0].mxu0
        %v3540 = vadd.f32 0.0, %v3539
        %v3541 = vpop.f32.mrb[0].mxu0
        %3542 = vmatprep.mubr.f32.mxu0 %v2890
        %3543 = vmatmul.mubr.f32.gmra.mrb[0].mxu0 %v2889
        %v3544 = vpop.f32.mrb[0].mxu0
        %v3545 = vadd.f32 0.0, %v3544
        %v3546 = vpop.f32.mrb[0].mxu0
        %3547 = vmatprep.mubr.f32.mxu0 %v2894
        %3548 = vmatmul.mubr.f32.gmra.mrb[0].mxu0 %v2893
        %v3549 = vpop.f32.mrb[0].mxu0
        %v3550 = vadd.f32 0.0, %v3549
        %v3551 = vpop.f32.mrb[0].mxu0
        %3552 = vmatprep.mubr.f32.mxu0 %v2898
        %3553 = vmatmul.mubr.f32.gmra.mrb[0].mxu0 %v2897
        %v3554 = vpop.f32.mrb[0].mxu0
        %v3555 = vadd.f32 0.0, %v3554
        %v3556 = vpop.f32.mrb[0].mxu0
        %3557 = vmatprep.mubr.f32.mxu0 %v2902
        %3558 = vmatmul.mubr.f32.gmra.mrb[0].mxu0 %v2901
        %v3559 = vpop.f32.mrb[0].mxu0
        %v3560 = vadd.f32 0.0, %v3559
        %v3561 = vpop.f32.mrb[0].mxu0
        %3562 = vmatprep.mubr.f32.mxu0 %v2906
        %3563 = vmatmul.mubr.f32.gmra.mrb[0].mxu0 %v2905
        %v3564 = vpop.f32.mrb[0].mxu0
        %v3565 = vadd.f32 0.0, %v3564
        %v3566 = vpop.f32.mrb[0].mxu0
        %3567 = vdwg.mxu0
        %3568 = vmatprep.subr.mxu0 0.0
        %3569 = vmatpush1.msra.mxu0 %v3007
        %3570 = vmatprep.subr.mxu0 0.0
        %3571 = vmatpush1.msra.mxu0 %v3010
        %3572 = vmatprep.subr.mxu0 0.0
        %3573 = vmatpush1.msra.mxu0 %v3013
        %3574 = vmatprep.subr.mxu0 0.0
        %3575 = vmatpush1.msra.mxu0 %v3016
        %3576 = vmatprep.subr.mxu0 0.0
        %3577 = vmatpush1.msra.mxu0 %v3019
        %3578 = vmatprep.subr.mxu0 0.0
        %3579 = vmatpush1.msra.mxu0 %v3022
        %3580 = vmatprep.subr.mxu0 0.0
        %3581 = vmatpush1.msra.mxu0 %v3025
        %3582 = vmatprep.subr.mxu0 0.0
        %3583 = vmatpush1.msra.mxu0 %v3028
        %3584 = vmatprep.subr.mxu0 0.0
        %3585 = vmatpush1.msra.mxu0 %v3031
        %3586 = vmatprep.subr.mxu0 0.0
        %3587 = vmatpush1.msra.mxu0 %v3034
        %3588 = vmatprep.subr.mxu0 0.0
        %3589 = vmatpush1.msra.mxu0 %v3037
        %3590 = vmatprep.subr.mxu0 0.0
        %3591 = vmatpush1.msra.mxu0 %v3040
        %3592 = vmatprep.subr.mxu0 0.0
        %3593 = vmatpush1.msra.mxu0 %v3043
        %3594 = vmatprep.subr.mxu0 0.0
        %3595 = vmatpush1.msra.mxu0 %v3046
        %3596 = vmatprep.subr.mxu0 0.0
        %3597 = vmatpush1.msra.mxu0 %v3049
        %3598 = vmatprep.subr.mxu0 0.0
        %3599 = vmatpush1.msra.mxu0 %v3052
        %3600 = vmatprep.subr.mxu0 0.0
        %3601 = vmatpush1.msra.mxu0 %v3055
        %3602 = vmatprep.subr.mxu0 0.0
        %3603 = vmatpush1.msra.mxu0 %v3058
        %3604 = vmatprep.subr.mxu0 0.0
        %3605 = vmatpush1.msra.mxu0 %v3061
        %3606 = vmatprep.subr.mxu0 0.0
        %3607 = vmatpush1.msra.mxu0 %v3064
        %3608 = vmatprep.subr.mxu0 0.0
        %3609 = vmatpush1.msra.mxu0 %v3067
        %3610 = vmatprep.subr.mxu0 0.0
        %3611 = vmatpush1.msra.mxu0 %v3070
        %3612 = vmatprep.subr.mxu0 0.0
        %3613 = vmatpush1.msra.mxu0 %v3073
        %3614 = vmatprep.subr.mxu0 0.0
        %3615 = vmatpush1.msra.mxu0 %v3076
        %3616 = vmatprep.subr.mxu0 0.0
        %3617 = vmatpush1.msra.mxu0 %v3079
        %3618 = vmatprep.subr.mxu0 0.0
        %3619 = vmatpush1.msra.mxu0 %v3082
        %3620 = vmatprep.subr.mxu0 0.0
        %3621 = vmatpush1.msra.mxu0 %v3085
        %3622 = vmatprep.subr.mxu0 0.0
        %3623 = vmatpush1.msra.mxu0 %v3088
        %3624 = vmatprep.subr.mxu0 0.0
        %3625 = vmatpush1.msra.mxu0 %v3091
        %3626 = vmatprep.subr.mxu0 0.0
        %3627 = vmatpush1.msra.mxu0 %v3094
        %3628 = vmatprep.subr.mxu0 0.0
        %3629 = vmatpush1.msra.mxu0 %v3097
        %3630 = vmatprep.subr.mxu0 0.0
        %3631 = vmatpush1.msra.mxu0 %v3100
        %3632 = vmatprep.mubr.f32.mxu0 %v2848
        %3633 = vmatmul.mubr.f32.gmra.mrb[0].mxu0 %v2847
        %v3634 = vpop.f32.mrb[0].mxu0
        %v3635 = vadd.f32 %v3490, %v3634
        %v3636 = vpop.f32.mrb[0].mxu0
        %3637 = vmatprep.mubr.f32.mxu0 %v2852
        %3638 = vmatmul.mubr.f32.gmra.mrb[0].mxu0 %v2851
        %v3639 = vpop.f32.mrb[0].mxu0
        %v3640 = vadd.f32 %v3495, %v3639
        %v3641 = vpop.f32.mrb[0].mxu0
        %3642 = vmatprep.mubr.f32.mxu0 %v2856
        %3643 = vmatmul.mubr.f32.gmra.mrb[0].mxu0 %v2855
        %v3644 = vpop.f32.mrb[0].mxu0
        %v3645 = vadd.f32 %v3500, %v3644
        %v3646 = vpop.f32.mrb[0].mxu0
        %3647 = vmatprep.mubr.f32.mxu0 %v2860
        %3648 = vmatmul.mubr.f32.gmra.mrb[0].mxu0 %v2859
        %v3649 = vpop.f32.mrb[0].mxu0
        %v3650 = vadd.f32 %v3505, %v3649
        %v3651 = vpop.f32.mrb[0].mxu0
        %3652 = vmatprep.mubr.f32.mxu0 %v2864
        %3653 = vmatmul.mubr.f32.gmra.mrb[0].mxu0 %v2863
        %v3654 = vpop.f32.mrb[0].mxu0
        %v3655 = vadd.f32 %v3510, %v3654
        %v3656 = vpop.f32.mrb[0].mxu0
        %3657 = vmatprep.mubr.f32.mxu0 %v2868
        %3658 = vmatmul.mubr.f32.gmra.mrb[0].mxu0 %v2867
        %v3659 = vpop.f32.mrb[0].mxu0
        %v3660 = vadd.f32 %v3515, %v3659
        %v3661 = vpop.f32.mrb[0].mxu0
        %3662 = vmatprep.mubr.f32.mxu0 %v2872
        %3663 = vmatmul.mubr.f32.gmra.mrb[0].mxu0 %v2871
        %v3664 = vpop.f32.mrb[0].mxu0
        %v3665 = vadd.f32 %v3520, %v3664
        %v3666 = vpop.f32.mrb[0].mxu0
        %3667 = vmatprep.mubr.f32.mxu0 %v2876
        %3668 = vmatmul.mubr.f32.gmra.mrb[0].mxu0 %v2875
        %v3669 = vpop.f32.mrb[0].mxu0
        %v3670 = vadd.f32 %v3525, %v3669
        %v3671 = vpop.f32.mrb[0].mxu0
        %3672 = vmatprep.mubr.f32.mxu0 %v2880
        %3673 = vmatmul.mubr.f32.gmra.mrb[0].mxu0 %v2879
        %v3674 = vpop.f32.mrb[0].mxu0
        %v3675 = vadd.f32 %v3530, %v3674
        %v3676 = vpop.f32.mrb[0].mxu0
        %3677 = vmatprep.mubr.f32.mxu0 %v2884
        %3678 = vmatmul.mubr.f32.gmra.mrb[0].mxu0 %v2883
        %v3679 = vpop.f32.mrb[0].mxu0
        %v3680 = vadd.f32 %v3535, %v3679
        %v3681 = vpop.f32.mrb[0].mxu0
        %3682 = vmatprep.mubr.f32.mxu0 %v2888
        %3683 = vmatmul.mubr.f32.gmra.mrb[0].mxu0 %v2887
        %v3684 = vpop.f32.mrb[0].mxu0
        %v3685 = vadd.f32 %v3540, %v3684
        %v3686 = vpop.f32.mrb[0].mxu0
        %3687 = vmatprep.mubr.f32.mxu0 %v2892
        %3688 = vmatmul.mubr.f32.gmra.mrb[0].mxu0 %v2891
        %v3689 = vpop.f32.mrb[0].mxu0
        %v3690 = vadd.f32 %v3545, %v3689
        %v3691 = vpop.f32.mrb[0].mxu0
        %3692 = vmatprep.mubr.f32.mxu0 %v2896
        %3693 = vmatmul.mubr.f32.gmra.mrb[0].mxu0 %v2895
        %v3694 = vpop.f32.mrb[0].mxu0
        %v3695 = vadd.f32 %v3550, %v3694
        %v3696 = vpop.f32.mrb[0].mxu0
        %3697 = vmatprep.mubr.f32.mxu0 %v2900
        %3698 = vmatmul.mubr.f32.gmra.mrb[0].mxu0 %v2899
        %v3699 = vpop.f32.mrb[0].mxu0
        %v3700 = vadd.f32 %v3555, %v3699
        %v3701 = vpop.f32.mrb[0].mxu0
        %3702 = vmatprep.mubr.f32.mxu0 %v2904
        %3703 = vmatmul.mubr.f32.gmra.mrb[0].mxu0 %v2903
        %v3704 = vpop.f32.mrb[0].mxu0
        %v3705 = vadd.f32 %v3560, %v3704
        %v3706 = vpop.f32.mrb[0].mxu0
        %3707 = vmatprep.mubr.f32.mxu0 %v2908
        %3708 = vmatmul.mubr.f32.gmra.mrb[0].mxu0 %v2907
        %v3709 = vpop.f32.mrb[0].mxu0
        %v3710 = vadd.f32 %v3565, %v3709
        %v3711 = vpop.f32.mrb[0].mxu0
        %3712 = vdwg.mxu0
        %v3713 = vld [vmem:[%s4] sm:$0xff]
        %v3714 = vld [vmem:[%s4 + $0x8] sm:$0xff]
        %v3715 = vld [vmem:[%s4 + $0x10] sm:$0xff]
        %v3716 = vld [vmem:[%s4 + $0x18] sm:$0xff]
        %v3717 = vld [vmem:[%s4 + $0x20] sm:$0xff]
        %v3718 = vld [vmem:[%s4 + $0x28] sm:$0xff]
        %v3719 = vld [vmem:[%s4 + $0x30] sm:$0xff]
        %v3720 = vld [vmem:[%s4 + $0x38] sm:$0xff]
        %v3721 = vld [vmem:[%s4 + $0x40] sm:$0xff]
        %v3722 = vld [vmem:[%s4 + $0x48] sm:$0xff]
        %v3723 = vld [vmem:[%s4 + $0x50] sm:$0xff]
        %v3724 = vld [vmem:[%s4 + $0x58] sm:$0xff]
        %v3725 = vld [vmem:[%s4 + $0x60] sm:$0xff]
        %v3726 = vld [vmem:[%s4 + $0x68] sm:$0xff]
        %v3727 = vld [vmem:[%s4 + $0x70] sm:$0xff]
        %v3728 = vld [vmem:[%s4 + $0x78] sm:$0xff]
        %v3729 = vld [vmem:[%s4 + $0x80] sm:$0xff]
        %v3730 = vld [vmem:[%s4 + $0x88] sm:$0xff]
        %v3731 = vld [vmem:[%s4 + $0x90] sm:$0xff]
        %v3732 = vld [vmem:[%s4 + $0x98] sm:$0xff]
        %v3733 = vld [vmem:[%s4 + $0xa0] sm:$0xff]
        %v3734 = vld [vmem:[%s4 + $0xa8] sm:$0xff]
        %v3735 = vld [vmem:[%s4 + $0xb0] sm:$0xff]
        %v3736 = vld [vmem:[%s4 + $0xb8] sm:$0xff]
        %v3737 = vld [vmem:[%s4 + $0xc0] sm:$0xff]
        %v3738 = vld [vmem:[%s4 + $0xc8] sm:$0xff]
        %v3739 = vld [vmem:[%s4 + $0xd0] sm:$0xff]
        %v3740 = vld [vmem:[%s4 + $0xd8] sm:$0xff]
        %v3741 = vld [vmem:[%s4 + $0xe0] sm:$0xff]
        %v3742 = vld [vmem:[%s4 + $0xe8] sm:$0xff]
        %v3743 = vld [vmem:[%s4 + $0xf0] sm:$0xff]
        %v3744 = vld [vmem:[%s4 + $0xf8] sm:$0xff]
        %v3745 = vld [vmem:[%s4 + $0x100] sm:$0xff]
        %v3746 = vld [vmem:[%s4 + $0x108] sm:$0xff]
        %v3747 = vld [vmem:[%s4 + $0x110] sm:$0xff]
        %v3748 = vld [vmem:[%s4 + $0x118] sm:$0xff]
        %v3749 = vld [vmem:[%s4 + $0x120] sm:$0xff]
        %v3750 = vld [vmem:[%s4 + $0x128] sm:$0xff]
        %v3751 = vld [vmem:[%s4 + $0x130] sm:$0xff]
        %v3752 = vld [vmem:[%s4 + $0x138] sm:$0xff]
        %v3753 = vld [vmem:[%s4 + $0x140] sm:$0xff]
        %v3754 = vld [vmem:[%s4 + $0x148] sm:$0xff]
        %v3755 = vld [vmem:[%s4 + $0x150] sm:$0xff]
        %v3756 = vld [vmem:[%s4 + $0x158] sm:$0xff]
        %v3757 = vld [vmem:[%s4 + $0x160] sm:$0xff]
        %v3758 = vld [vmem:[%s4 + $0x168] sm:$0xff]
        %v3759 = vld [vmem:[%s4 + $0x170] sm:$0xff]
        %v3760 = vld [vmem:[%s4 + $0x178] sm:$0xff]
        %v3761 = vld [vmem:[%s4 + $0x180] sm:$0xff]
        %v3762 = vld [vmem:[%s4 + $0x188] sm:$0xff]
        %v3763 = vld [vmem:[%s4 + $0x190] sm:$0xff]
        %v3764 = vld [vmem:[%s4 + $0x198] sm:$0xff]
        %v3765 = vld [vmem:[%s4 + $0x1a0] sm:$0xff]
        %v3766 = vld [vmem:[%s4 + $0x1a8] sm:$0xff]
        %v3767 = vld [vmem:[%s4 + $0x1b0] sm:$0xff]
        %v3768 = vld [vmem:[%s4 + $0x1b8] sm:$0xff]
        %v3769 = vld [vmem:[%s4 + $0x1c0] sm:$0xff]
        %v3770 = vld [vmem:[%s4 + $0x1c8] sm:$0xff]
        %v3771 = vld [vmem:[%s4 + $0x1d0] sm:$0xff]
        %v3772 = vld [vmem:[%s4 + $0x1d8] sm:$0xff]
        %v3773 = vld [vmem:[%s4 + $0x1e0] sm:$0xff]
        %v3774 = vld [vmem:[%s4 + $0x1e8] sm:$0xff]
        %v3775 = vld [vmem:[%s4 + $0x1f0] sm:$0xff]
        %v3776 = vld [vmem:[%s4 + $0x1f8] sm:$0xff]
        %v3777 = vld [vmem:[%s4 + $0x200] sm:$0xff]
        %v3778 = vld [vmem:[%s4 + $0x208] sm:$0xff]
        %v3779 = vld [vmem:[%s4 + $0x210] sm:$0xff]
        %v3780 = vld [vmem:[%s4 + $0x218] sm:$0xff]
        %v3781 = vld [vmem:[%s4 + $0x220] sm:$0xff]
        %v3782 = vld [vmem:[%s4 + $0x228] sm:$0xff]
        %v3783 = vld [vmem:[%s4 + $0x230] sm:$0xff]
        %v3784 = vld [vmem:[%s4 + $0x238] sm:$0xff]
        %v3785 = vld [vmem:[%s4 + $0x240] sm:$0xff]
        %v3786 = vld [vmem:[%s4 + $0x248] sm:$0xff]
        %v3787 = vld [vmem:[%s4 + $0x250] sm:$0xff]
        %v3788 = vld [vmem:[%s4 + $0x258] sm:$0xff]
        %v3789 = vld [vmem:[%s4 + $0x260] sm:$0xff]
        %v3790 = vld [vmem:[%s4 + $0x268] sm:$0xff]
        %v3791 = vld [vmem:[%s4 + $0x270] sm:$0xff]
        %v3792 = vld [vmem:[%s4 + $0x278] sm:$0xff]
        %v3793 = vld [vmem:[%s4 + $0x280] sm:$0xff]
        %v3794 = vld [vmem:[%s4 + $0x288] sm:$0xff]
        %v3795 = vld [vmem:[%s4 + $0x290] sm:$0xff]
        %v3796 = vld [vmem:[%s4 + $0x298] sm:$0xff]
        %v3797 = vld [vmem:[%s4 + $0x2a0] sm:$0xff]
        %v3798 = vld [vmem:[%s4 + $0x2a8] sm:$0xff]
        %v3799 = vld [vmem:[%s4 + $0x2b0] sm:$0xff]
        %v3800 = vld [vmem:[%s4 + $0x2b8] sm:$0xff]
        %v3801 = vld [vmem:[%s4 + $0x2c0] sm:$0xff]
        %v3802 = vld [vmem:[%s4 + $0x2c8] sm:$0xff]
        %v3803 = vld [vmem:[%s4 + $0x2d0] sm:$0xff]
        %v3804 = vld [vmem:[%s4 + $0x2d8] sm:$0xff]
        %v3805 = vld [vmem:[%s4 + $0x2e0] sm:$0xff]
        %v3806 = vld [vmem:[%s4 + $0x2e8] sm:$0xff]
        %v3807 = vld [vmem:[%s4 + $0x2f0] sm:$0xff]
        %v3808 = vld [vmem:[%s4 + $0x2f8] sm:$0xff]
        %v3809 = vld [vmem:[%s4 + $0x300] sm:$0xff]
        %v3810 = vld [vmem:[%s4 + $0x308] sm:$0xff]
        %v3811 = vld [vmem:[%s4 + $0x310] sm:$0xff]
        %v3812 = vld [vmem:[%s4 + $0x318] sm:$0xff]
        %v3813 = vld [vmem:[%s4 + $0x320] sm:$0xff]
        %v3814 = vld [vmem:[%s4 + $0x328] sm:$0xff]
        %v3815 = vld [vmem:[%s4 + $0x330] sm:$0xff]
        %v3816 = vld [vmem:[%s4 + $0x338] sm:$0xff]
        %v3817 = vld [vmem:[%s4 + $0x340] sm:$0xff]
        %v3818 = vld [vmem:[%s4 + $0x348] sm:$0xff]
        %v3819 = vld [vmem:[%s4 + $0x350] sm:$0xff]
        %v3820 = vld [vmem:[%s4 + $0x358] sm:$0xff]
        %v3821 = vld [vmem:[%s4 + $0x360] sm:$0xff]
        %v3822 = vld [vmem:[%s4 + $0x368] sm:$0xff]
        %v3823 = vld [vmem:[%s4 + $0x370] sm:$0xff]
        %v3824 = vld [vmem:[%s4 + $0x378] sm:$0xff]
        %v3825 = vld [vmem:[%s4 + $0x380] sm:$0xff]
        %v3826 = vld [vmem:[%s4 + $0x388] sm:$0xff]
        %v3827 = vld [vmem:[%s4 + $0x390] sm:$0xff]
        %v3828 = vld [vmem:[%s4 + $0x398] sm:$0xff]
        %v3829 = vld [vmem:[%s4 + $0x3a0] sm:$0xff]
        %v3830 = vld [vmem:[%s4 + $0x3a8] sm:$0xff]
        %v3831 = vld [vmem:[%s4 + $0x3b0] sm:$0xff]
        %v3832 = vld [vmem:[%s4 + $0x3b8] sm:$0xff]
        %v3833 = vld [vmem:[%s4 + $0x3c0] sm:$0xff]
        %v3834 = vld [vmem:[%s4 + $0x3c8] sm:$0xff]
        %v3835 = vld [vmem:[%s4 + $0x3d0] sm:$0xff]
        %v3836 = vld [vmem:[%s4 + $0x3d8] sm:$0xff]
        %v3837 = vld [vmem:[%s4 + $0x3e0] sm:$0xff]
        %v3838 = vld [vmem:[%s4 + $0x3e8] sm:$0xff]
        %v3839 = vld [vmem:[%s4 + $0x3f0] sm:$0xff]
        %v3840 = vld [vmem:[%s4 + $0x3f8] sm:$0xff]
        %v3841 = vld [vmem:[%s4 + $0x400] sm:$0xff]
        %v3842 = vld [vmem:[%s4 + $0x408] sm:$0xff]
        %v3843 = vld [vmem:[%s4 + $0x410] sm:$0xff]
        %v3844 = vld [vmem:[%s4 + $0x418] sm:$0xff]
        %v3845 = vld [vmem:[%s4 + $0x420] sm:$0xff]
        %v3846 = vld [vmem:[%s4 + $0x428] sm:$0xff]
        %v3847 = vld [vmem:[%s4 + $0x430] sm:$0xff]
        %v3848 = vld [vmem:[%s4 + $0x438] sm:$0xff]
        %v3849 = vld [vmem:[%s4 + $0x440] sm:$0xff]
        %v3850 = vld [vmem:[%s4 + $0x448] sm:$0xff]
        %v3851 = vld [vmem:[%s4 + $0x450] sm:$0xff]
        %v3852 = vld [vmem:[%s4 + $0x458] sm:$0xff]
        %v3853 = vld [vmem:[%s4 + $0x460] sm:$0xff]
        %v3854 = vld [vmem:[%s4 + $0x468] sm:$0xff]
        %v3855 = vld [vmem:[%s4 + $0x470] sm:$0xff]
        %v3856 = vld [vmem:[%s4 + $0x478] sm:$0xff]
        %v3857 = vld [vmem:[%s4 + $0x480] sm:$0xff]
        %v3858 = vld [vmem:[%s4 + $0x488] sm:$0xff]
        %v3859 = vld [vmem:[%s4 + $0x490] sm:$0xff]
        %v3860 = vld [vmem:[%s4 + $0x498] sm:$0xff]
        %v3861 = vld [vmem:[%s4 + $0x4a0] sm:$0xff]
        %v3862 = vld [vmem:[%s4 + $0x4a8] sm:$0xff]
        %v3863 = vld [vmem:[%s4 + $0x4b0] sm:$0xff]
        %v3864 = vld [vmem:[%s4 + $0x4b8] sm:$0xff]
        %v3865 = vld [vmem:[%s4 + $0x4c0] sm:$0xff]
        %v3866 = vld [vmem:[%s4 + $0x4c8] sm:$0xff]
        %v3867 = vld [vmem:[%s4 + $0x4d0] sm:$0xff]
        %v3868 = vld [vmem:[%s4 + $0x4d8] sm:$0xff]
        %v3869 = vld [vmem:[%s4 + $0x4e0] sm:$0xff]
        %v3870 = vld [vmem:[%s4 + $0x4e8] sm:$0xff]
        %v3871 = vld [vmem:[%s4 + $0x4f0] sm:$0xff]
        %v3872 = vld [vmem:[%s4 + $0x4f8] sm:$0xff]
        %v3873 = vld [vmem:[%s4 + $0x500] sm:$0xff]
        %v3874 = vld [vmem:[%s4 + $0x508] sm:$0xff]
        %v3875 = vld [vmem:[%s4 + $0x510] sm:$0xff]
        %v3876 = vld [vmem:[%s4 + $0x518] sm:$0xff]
        %v3877 = vld [vmem:[%s4 + $0x520] sm:$0xff]
        %v3878 = vld [vmem:[%s4 + $0x528] sm:$0xff]
        %v3879 = vld [vmem:[%s4 + $0x530] sm:$0xff]
        %v3880 = vld [vmem:[%s4 + $0x538] sm:$0xff]
        %v3881 = vld [vmem:[%s4 + $0x540] sm:$0xff]
        %v3882 = vld [vmem:[%s4 + $0x548] sm:$0xff]
        %v3883 = vld [vmem:[%s4 + $0x550] sm:$0xff]
        %v3884 = vld [vmem:[%s4 + $0x558] sm:$0xff]
        %v3885 = vld [vmem:[%s4 + $0x560] sm:$0xff]
        %v3886 = vld [vmem:[%s4 + $0x568] sm:$0xff]
        %v3887 = vld [vmem:[%s4 + $0x570] sm:$0xff]
        %v3888 = vld [vmem:[%s4 + $0x578] sm:$0xff]
        %v3889 = vld [vmem:[%s4 + $0x580] sm:$0xff]
        %v3890 = vld [vmem:[%s4 + $0x588] sm:$0xff]
        %v3891 = vld [vmem:[%s4 + $0x590] sm:$0xff]
        %v3892 = vld [vmem:[%s4 + $0x598] sm:$0xff]
        %v3893 = vld [vmem:[%s4 + $0x5a0] sm:$0xff]
        %v3894 = vld [vmem:[%s4 + $0x5a8] sm:$0xff]
        %v3895 = vld [vmem:[%s4 + $0x5b0] sm:$0xff]
        %v3896 = vld [vmem:[%s4 + $0x5b8] sm:$0xff]
        %v3897 = vld [vmem:[%s4 + $0x5c0] sm:$0xff]
        %v3898 = vld [vmem:[%s4 + $0x5c8] sm:$0xff]
        %v3899 = vld [vmem:[%s4 + $0x5d0] sm:$0xff]
        %v3900 = vld [vmem:[%s4 + $0x5d8] sm:$0xff]
        %v3901 = vld [vmem:[%s4 + $0x5e0] sm:$0xff]
        %v3902 = vld [vmem:[%s4 + $0x5e8] sm:$0xff]
        %v3903 = vld [vmem:[%s4 + $0x5f0] sm:$0xff]
        %v3904 = vld [vmem:[%s4 + $0x5f8] sm:$0xff]
        %3905 = vmatprep.subr.mxu0 %v3714
        %3906 = vmatpush1.msra.mxu0 %v3713
        %3907 = vmatprep.subr.mxu0 %v3717
        %3908 = vmatpush1.msra.mxu0 %v3716
        %3909 = vmatprep.subr.mxu0 %v3720
        %3910 = vmatpush1.msra.mxu0 %v3719
        %3911 = vmatprep.subr.mxu0 %v3723
        %3912 = vmatpush1.msra.mxu0 %v3722
        %3913 = vmatprep.subr.mxu0 %v3726
        %3914 = vmatpush1.msra.mxu0 %v3725
        %3915 = vmatprep.subr.mxu0 %v3729
        %3916 = vmatpush1.msra.mxu0 %v3728
        %3917 = vmatprep.subr.mxu0 %v3732
        %3918 = vmatpush1.msra.mxu0 %v3731
        %3919 = vmatprep.subr.mxu0 %v3735
        %3920 = vmatpush1.msra.mxu0 %v3734
        %3921 = vmatprep.subr.mxu0 %v3738
        %3922 = vmatpush1.msra.mxu0 %v3737
        %3923 = vmatprep.subr.mxu0 %v3741
        %3924 = vmatpush1.msra.mxu0 %v3740
        %3925 = vmatprep.subr.mxu0 %v3744
        %3926 = vmatpush1.msra.mxu0 %v3743
        %3927 = vmatprep.subr.mxu0 %v3747
        %3928 = vmatpush1.msra.mxu0 %v3746
        %3929 = vmatprep.subr.mxu0 %v3750
        %3930 = vmatpush1.msra.mxu0 %v3749
        %3931 = vmatprep.subr.mxu0 %v3753
        %3932 = vmatpush1.msra.mxu0 %v3752
        %3933 = vmatprep.subr.mxu0 %v3756
        %3934 = vmatpush1.msra.mxu0 %v3755
        %3935 = vmatprep.subr.mxu0 %v3759
        %3936 = vmatpush1.msra.mxu0 %v3758
        %3937 = vmatprep.subr.mxu0 %v3762
        %3938 = vmatpush1.msra.mxu0 %v3761
        %3939 = vmatprep.subr.mxu0 %v3765
        %3940 = vmatpush1.msra.mxu0 %v3764
        %3941 = vmatprep.subr.mxu0 %v3768
        %3942 = vmatpush1.msra.mxu0 %v3767
        %3943 = vmatprep.subr.mxu0 %v3771
        %3944 = vmatpush1.msra.mxu0 %v3770
        %3945 = vmatprep.subr.mxu0 %v3774
        %3946 = vmatpush1.msra.mxu0 %v3773
        %3947 = vmatprep.subr.mxu0 %v3777
        %3948 = vmatpush1.msra.mxu0 %v3776
        %3949 = vmatprep.subr.mxu0 %v3780
        %3950 = vmatpush1.msra.mxu0 %v3779
        %3951 = vmatprep.subr.mxu0 %v3783
        %3952 = vmatpush1.msra.mxu0 %v3782
        %3953 = vmatprep.subr.mxu0 %v3786
        %3954 = vmatpush1.msra.mxu0 %v3785
        %3955 = vmatprep.subr.mxu0 %v3789
        %3956 = vmatpush1.msra.mxu0 %v3788
        %3957 = vmatprep.subr.mxu0 %v3792
        %3958 = vmatpush1.msra.mxu0 %v3791
        %3959 = vmatprep.subr.mxu0 %v3795
        %3960 = vmatpush1.msra.mxu0 %v3794
        %3961 = vmatprep.subr.mxu0 %v3798
        %3962 = vmatpush1.msra.mxu0 %v3797
        %3963 = vmatprep.subr.mxu0 %v3801
        %3964 = vmatpush1.msra.mxu0 %v3800
        %3965 = vmatprep.subr.mxu0 %v3804
        %3966 = vmatpush1.msra.mxu0 %v3803
        %3967 = vmatprep.subr.mxu0 %v3807
        %3968 = vmatpush1.msra.mxu0 %v3806
        %3969 = vmatprep.mubr.f32.mxu0 %v2846
        %3970 = vmatmul.mubr.f32.gmra.mrb[0].mxu0 %v2845
        %v3971 = vpop.f32.mrb[0].mxu0
        %v3972 = vadd.f32 0.0, %v3971
        %v3973 = vpop.f32.mrb[0].mxu0
        %v3974 = vadd.f32 0.0, %v3973
        %3975 = vmatprep.mubr.f32.mxu0 %v2850
        %3976 = vmatmul.mubr.f32.gmra.mrb[0].mxu0 %v2849
        %v3977 = vpop.f32.mrb[0].mxu0
        %v3978 = vadd.f32 0.0, %v3977
        %v3979 = vpop.f32.mrb[0].mxu0
        %v3980 = vadd.f32 0.0, %v3979
        %3981 = vmatprep.mubr.f32.mxu0 %v2854
        %3982 = vmatmul.mubr.f32.gmra.mrb[0].mxu0 %v2853
        %v3983 = vpop.f32.mrb[0].mxu0
        %v3984 = vadd.f32 0.0, %v3983
        %v3985 = vpop.f32.mrb[0].mxu0
        %v3986 = vadd.f32 0.0, %v3985
        %3987 = vmatprep.mubr.f32.mxu0 %v2858
        %3988 = vmatmul.mubr.f32.gmra.mrb[0].mxu0 %v2857
        %v3989 = vpop.f32.mrb[0].mxu0
        %v3990 = vadd.f32 0.0, %v3989
        %v3991 = vpop.f32.mrb[0].mxu0
        %v3992 = vadd.f32 0.0, %v3991
        %3993 = vmatprep.mubr.f32.mxu0 %v2862
        %3994 = vmatmul.mubr.f32.gmra.mrb[0].mxu0 %v2861
        %v3995 = vpop.f32.mrb[0].mxu0
        %v3996 = vadd.f32 0.0, %v3995
        %v3997 = vpop.f32.mrb[0].mxu0
        %v3998 = vadd.f32 0.0, %v3997
        %3999 = vmatprep.mubr.f32.mxu0 %v2866
        %4000 = vmatmul.mubr.f32.gmra.mrb[0].mxu0 %v2865
        %v4001 = vpop.f32.mrb[0].mxu0
        %v4002 = vadd.f32 0.0, %v4001
        %v4003 = vpop.f32.mrb[0].mxu0
        %v4004 = vadd.f32 0.0, %v4003
        %4005 = vmatprep.mubr.f32.mxu0 %v2870
        %4006 = vmatmul.mubr.f32.gmra.mrb[0].mxu0 %v2869
        %v4007 = vpop.f32.mrb[0].mxu0
        %v4008 = vadd.f32 0.0, %v4007
        %v4009 = vpop.f32.mrb[0].mxu0
        %v4010 = vadd.f32 0.0, %v4009
        %4011 = vmatprep.mubr.f32.mxu0 %v2874
        %4012 = vmatmul.mubr.f32.gmra.mrb[0].mxu0 %v2873
        %v4013 = vpop.f32.mrb[0].mxu0
        %v4014 = vadd.f32 0.0, %v4013
        %v4015 = vpop.f32.mrb[0].mxu0
        %v4016 = vadd.f32 0.0, %v4015
        %4017 = vmatprep.mubr.f32.mxu0 %v2878
        %4018 = vmatmul.mubr.f32.gmra.mrb[0].mxu0 %v2877
        %v4019 = vpop.f32.mrb[0].mxu0
        %v4020 = vadd.f32 0.0, %v4019
        %v4021 = vpop.f32.mrb[0].mxu0
        %v4022 = vadd.f32 0.0, %v4021
        %4023 = vmatprep.mubr.f32.mxu0 %v2882
        %4024 = vmatmul.mubr.f32.gmra.mrb[0].mxu0 %v2881
        %v4025 = vpop.f32.mrb[0].mxu0
        %v4026 = vadd.f32 0.0, %v4025
        %v4027 = vpop.f32.mrb[0].mxu0
        %v4028 = vadd.f32 0.0, %v4027
        %4029 = vmatprep.mubr.f32.mxu0 %v2886
        %4030 = vmatmul.mubr.f32.gmra.mrb[0].mxu0 %v2885
        %v4031 = vpop.f32.mrb[0].mxu0
        %v4032 = vadd.f32 0.0, %v4031
        %v4033 = vpop.f32.mrb[0].mxu0
        %v4034 = vadd.f32 0.0, %v4033
        %4035 = vmatprep.mubr.f32.mxu0 %v2890
        %4036 = vmatmul.mubr.f32.gmra.mrb[0].mxu0 %v2889
        %v4037 = vpop.f32.mrb[0].mxu0
        %v4038 = vadd.f32 0.0, %v4037
        %v4039 = vpop.f32.mrb[0].mxu0
        %v4040 = vadd.f32 0.0, %v4039
        %4041 = vmatprep.mubr.f32.mxu0 %v2894
        %4042 = vmatmul.mubr.f32.gmra.mrb[0].mxu0 %v2893
        %v4043 = vpop.f32.mrb[0].mxu0
        %v4044 = vadd.f32 0.0, %v4043
        %v4045 = vpop.f32.mrb[0].mxu0
        %v4046 = vadd.f32 0.0, %v4045
        %4047 = vmatprep.mubr.f32.mxu0 %v2898
        %4048 = vmatmul.mubr.f32.gmra.mrb[0].mxu0 %v2897
        %v4049 = vpop.f32.mrb[0].mxu0
        %v4050 = vadd.f32 0.0, %v4049
        %v4051 = vpop.f32.mrb[0].mxu0
        %v4052 = vadd.f32 0.0, %v4051
        %4053 = vmatprep.mubr.f32.mxu0 %v2902
        %4054 = vmatmul.mubr.f32.gmra.mrb[0].mxu0 %v2901
        %v4055 = vpop.f32.mrb[0].mxu0
        %v4056 = vadd.f32 0.0, %v4055
        %v4057 = vpop.f32.mrb[0].mxu0
        %v4058 = vadd.f32 0.0, %v4057
        %4059 = vmatprep.mubr.f32.mxu0 %v2906
        %4060 = vmatmul.mubr.f32.gmra.mrb[0].mxu0 %v2905
        %v4061 = vpop.f32.mrb[0].mxu0
        %v4062 = vadd.f32 0.0, %v4061
        %v4063 = vpop.f32.mrb[0].mxu0
        %v4064 = vadd.f32 0.0, %v4063
        %4065 = vdwg.mxu0
        %4066 = vmatprep.subr.mxu0 %v3810
        %4067 = vmatpush1.msra.mxu0 %v3809
        %4068 = vmatprep.subr.mxu0 %v3813
        %4069 = vmatpush1.msra.mxu0 %v3812
        %4070 = vmatprep.subr.mxu0 %v3816
        %4071 = vmatpush1.msra.mxu0 %v3815
        %4072 = vmatprep.subr.mxu0 %v3819
        %4073 = vmatpush1.msra.mxu0 %v3818
        %4074 = vmatprep.subr.mxu0 %v3822
        %4075 = vmatpush1.msra.mxu0 %v3821
        %4076 = vmatprep.subr.mxu0 %v3825
        %4077 = vmatpush1.msra.mxu0 %v3824
        %4078 = vmatprep.subr.mxu0 %v3828
        %4079 = vmatpush1.msra.mxu0 %v3827
        %4080 = vmatprep.subr.mxu0 %v3831
        %4081 = vmatpush1.msra.mxu0 %v3830
        %4082 = vmatprep.subr.mxu0 %v3834
        %4083 = vmatpush1.msra.mxu0 %v3833
        %4084 = vmatprep.subr.mxu0 %v3837
        %4085 = vmatpush1.msra.mxu0 %v3836
        %4086 = vmatprep.subr.mxu0 %v3840
        %4087 = vmatpush1.msra.mxu0 %v3839
        %4088 = vmatprep.subr.mxu0 %v3843
        %4089 = vmatpush1.msra.mxu0 %v3842
        %4090 = vmatprep.subr.mxu0 %v3846
        %4091 = vmatpush1.msra.mxu0 %v3845
        %4092 = vmatprep.subr.mxu0 %v3849
        %4093 = vmatpush1.msra.mxu0 %v3848
        %4094 = vmatprep.subr.mxu0 %v3852
        %4095 = vmatpush1.msra.mxu0 %v3851
        %4096 = vmatprep.subr.mxu0 %v3855
        %4097 = vmatpush1.msra.mxu0 %v3854
        %4098 = vmatprep.subr.mxu0 %v3858
        %4099 = vmatpush1.msra.mxu0 %v3857
        %4100 = vmatprep.subr.mxu0 %v3861
        %4101 = vmatpush1.msra.mxu0 %v3860
        %4102 = vmatprep.subr.mxu0 %v3864
        %4103 = vmatpush1.msra.mxu0 %v3863
        %4104 = vmatprep.subr.mxu0 %v3867
        %4105 = vmatpush1.msra.mxu0 %v3866
        %4106 = vmatprep.subr.mxu0 %v3870
        %4107 = vmatpush1.msra.mxu0 %v3869
        %4108 = vmatprep.subr.mxu0 %v3873
        %4109 = vmatpush1.msra.mxu0 %v3872
        %4110 = vmatprep.subr.mxu0 %v3876
        %4111 = vmatpush1.msra.mxu0 %v3875
        %4112 = vmatprep.subr.mxu0 %v3879
        %4113 = vmatpush1.msra.mxu0 %v3878
        %4114 = vmatprep.subr.mxu0 %v3882
        %4115 = vmatpush1.msra.mxu0 %v3881
        %4116 = vmatprep.subr.mxu0 %v3885
        %4117 = vmatpush1.msra.mxu0 %v3884
        %4118 = vmatprep.subr.mxu0 %v3888
        %4119 = vmatpush1.msra.mxu0 %v3887
        %4120 = vmatprep.subr.mxu0 %v3891
        %4121 = vmatpush1.msra.mxu0 %v3890
        %4122 = vmatprep.subr.mxu0 %v3894
        %4123 = vmatpush1.msra.mxu0 %v3893
        %4124 = vmatprep.subr.mxu0 %v3897
        %4125 = vmatpush1.msra.mxu0 %v3896
        %4126 = vmatprep.subr.mxu0 %v3900
        %4127 = vmatpush1.msra.mxu0 %v3899
        %4128 = vmatprep.subr.mxu0 %v3903
        %4129 = vmatpush1.msra.mxu0 %v3902
        %4130 = vmatprep.mubr.f32.mxu0 %v2848
        %4131 = vmatmul.mubr.f32.gmra.mrb[0].mxu0 %v2847
        %v4132 = vpop.f32.mrb[0].mxu0
        %v4133 = vadd.f32 %v3972, %v4132
        %v4134 = vpop.f32.mrb[0].mxu0
        %v4135 = vadd.f32 %v3974, %v4134
        %4136 = vmatprep.mubr.f32.mxu0 %v2852
        %4137 = vmatmul.mubr.f32.gmra.mrb[0].mxu0 %v2851
        %v4138 = vpop.f32.mrb[0].mxu0
        %v4139 = vadd.f32 %v3978, %v4138
        %v4140 = vpop.f32.mrb[0].mxu0
        %v4141 = vadd.f32 %v3980, %v4140
        %4142 = vmatprep.mubr.f32.mxu0 %v2856
        %4143 = vmatmul.mubr.f32.gmra.mrb[0].mxu0 %v2855
        %v4144 = vpop.f32.mrb[0].mxu0
        %v4145 = vadd.f32 %v3984, %v4144
        %v4146 = vpop.f32.mrb[0].mxu0
        %v4147 = vadd.f32 %v3986, %v4146
        %4148 = vmatprep.mubr.f32.mxu0 %v2860
        %4149 = vmatmul.mubr.f32.gmra.mrb[0].mxu0 %v2859
        %v4150 = vpop.f32.mrb[0].mxu0
        %v4151 = vadd.f32 %v3990, %v4150
        %v4152 = vpop.f32.mrb[0].mxu0
        %v4153 = vadd.f32 %v3992, %v4152
        %4154 = vmatprep.mubr.f32.mxu0 %v2864
        %4155 = vmatmul.mubr.f32.gmra.mrb[0].mxu0 %v2863
        %v4156 = vpop.f32.mrb[0].mxu0
        %v4157 = vadd.f32 %v3996, %v4156
        %v4158 = vpop.f32.mrb[0].mxu0
        %v4159 = vadd.f32 %v3998, %v4158
        %4160 = vmatprep.mubr.f32.mxu0 %v2868
        %4161 = vmatmul.mubr.f32.gmra.mrb[0].mxu0 %v2867
        %v4162 = vpop.f32.mrb[0].mxu0
        %v4163 = vadd.f32 %v4002, %v4162
        %v4164 = vpop.f32.mrb[0].mxu0
        %v4165 = vadd.f32 %v4004, %v4164
        %4166 = vmatprep.mubr.f32.mxu0 %v2872
        %4167 = vmatmul.mubr.f32.gmra.mrb[0].mxu0 %v2871
        %v4168 = vpop.f32.mrb[0].mxu0
        %v4169 = vadd.f32 %v4008, %v4168
        %v4170 = vpop.f32.mrb[0].mxu0
        %v4171 = vadd.f32 %v4010, %v4170
        %4172 = vmatprep.mubr.f32.mxu0 %v2876
        %4173 = vmatmul.mubr.f32.gmra.mrb[0].mxu0 %v2875
        %v4174 = vpop.f32.mrb[0].mxu0
        %v4175 = vadd.f32 %v4014, %v4174
        %v4176 = vpop.f32.mrb[0].mxu0
        %v4177 = vadd.f32 %v4016, %v4176
        %4178 = vmatprep.mubr.f32.mxu0 %v2880
        %4179 = vmatmul.mubr.f32.gmra.mrb[0].mxu0 %v2879
        %v4180 = vpop.f32.mrb[0].mxu0
        %v4181 = vadd.f32 %v4020, %v4180
        %v4182 = vpop.f32.mrb[0].mxu0
        %v4183 = vadd.f32 %v4022, %v4182
        %4184 = vmatprep.mubr.f32.mxu0 %v2884
        %4185 = vmatmul.mubr.f32.gmra.mrb[0].mxu0 %v2883
        %v4186 = vpop.f32.mrb[0].mxu0
        %v4187 = vadd.f32 %v4026, %v4186
        %v4188 = vpop.f32.mrb[0].mxu0
        %v4189 = vadd.f32 %v4028, %v4188
        %4190 = vmatprep.mubr.f32.mxu0 %v2888
        %4191 = vmatmul.mubr.f32.gmra.mrb[0].mxu0 %v2887
        %v4192 = vpop.f32.mrb[0].mxu0
        %v4193 = vadd.f32 %v4032, %v4192
        %v4194 = vpop.f32.mrb[0].mxu0
        %v4195 = vadd.f32 %v4034, %v4194
        %4196 = vmatprep.mubr.f32.mxu0 %v2892
        %4197 = vmatmul.mubr.f32.gmra.mrb[0].mxu0 %v2891
        %v4198 = vpop.f32.mrb[0].mxu0
        %v4199 = vadd.f32 %v4038, %v4198
        %v4200 = vpop.f32.mrb[0].mxu0
        %v4201 = vadd.f32 %v4040, %v4200
        %4202 = vmatprep.mubr.f32.mxu0 %v2896
        %4203 = vmatmul.mubr.f32.gmra.mrb[0].mxu0 %v2895
        %v4204 = vpop.f32.mrb[0].mxu0
        %v4205 = vadd.f32 %v4044, %v4204
        %v4206 = vpop.f32.mrb[0].mxu0
        %v4207 = vadd.f32 %v4046, %v4206
        %4208 = vmatprep.mubr.f32.mxu0 %v2900
        %4209 = vmatmul.mubr.f32.gmra.mrb[0].mxu0 %v2899
        %v4210 = vpop.f32.mrb[0].mxu0
        %v4211 = vadd.f32 %v4050, %v4210
        %v4212 = vpop.f32.mrb[0].mxu0
        %v4213 = vadd.f32 %v4052, %v4212
        %4214 = vmatprep.mubr.f32.mxu0 %v2904
        %4215 = vmatmul.mubr.f32.gmra.mrb[0].mxu0 %v2903
        %v4216 = vpop.f32.mrb[0].mxu0
        %v4217 = vadd.f32 %v4056, %v4216
        %v4218 = vpop.f32.mrb[0].mxu0
        %v4219 = vadd.f32 %v4058, %v4218
        %4220 = vmatprep.mubr.f32.mxu0 %v2908
        %4221 = vmatmul.mubr.f32.gmra.mrb[0].mxu0 %v2907
        %v4222 = vpop.f32.mrb[0].mxu0
        %v4223 = vadd.f32 %v4062, %v4222
        %v4224 = vpop.f32.mrb[0].mxu0
        %v4225 = vadd.f32 %v4064, %v4224
        %4226 = vdwg.mxu0
        %4227 = vmatprep.subr.mxu0 0.0
        %4228 = vmatpush1.msra.mxu0 %v3715
        %4229 = vmatprep.subr.mxu0 0.0
        %4230 = vmatpush1.msra.mxu0 %v3718
        %4231 = vmatprep.subr.mxu0 0.0
        %4232 = vmatpush1.msra.mxu0 %v3721
        %4233 = vmatprep.subr.mxu0 0.0
        %4234 = vmatpush1.msra.mxu0 %v3724
        %4235 = vmatprep.subr.mxu0 0.0
        %4236 = vmatpush1.msra.mxu0 %v3727
        %4237 = vmatprep.subr.mxu0 0.0
        %4238 = vmatpush1.msra.mxu0 %v3730
        %4239 = vmatprep.subr.mxu0 0.0
        %4240 = vmatpush1.msra.mxu0 %v3733
        %4241 = vmatprep.subr.mxu0 0.0
        %4242 = vmatpush1.msra.mxu0 %v3736
        %4243 = vmatprep.subr.mxu0 0.0
        %4244 = vmatpush1.msra.mxu0 %v3739
        %4245 = vmatprep.subr.mxu0 0.0
        %4246 = vmatpush1.msra.mxu0 %v3742
        %4247 = vmatprep.subr.mxu0 0.0
        %4248 = vmatpush1.msra.mxu0 %v3745
        %4249 = vmatprep.subr.mxu0 0.0
        %4250 = vmatpush1.msra.mxu0 %v3748
        %4251 = vmatprep.subr.mxu0 0.0
        %4252 = vmatpush1.msra.mxu0 %v3751
        %4253 = vmatprep.subr.mxu0 0.0
        %4254 = vmatpush1.msra.mxu0 %v3754
        %4255 = vmatprep.subr.mxu0 0.0
        %4256 = vmatpush1.msra.mxu0 %v3757
        %4257 = vmatprep.subr.mxu0 0.0
        %4258 = vmatpush1.msra.mxu0 %v3760
        %4259 = vmatprep.subr.mxu0 0.0
        %4260 = vmatpush1.msra.mxu0 %v3763
        %4261 = vmatprep.subr.mxu0 0.0
        %4262 = vmatpush1.msra.mxu0 %v3766
        %4263 = vmatprep.subr.mxu0 0.0
        %4264 = vmatpush1.msra.mxu0 %v3769
        %4265 = vmatprep.subr.mxu0 0.0
        %4266 = vmatpush1.msra.mxu0 %v3772
        %4267 = vmatprep.subr.mxu0 0.0
        %4268 = vmatpush1.msra.mxu0 %v3775
        %4269 = vmatprep.subr.mxu0 0.0
        %4270 = vmatpush1.msra.mxu0 %v3778
        %4271 = vmatprep.subr.mxu0 0.0
        %4272 = vmatpush1.msra.mxu0 %v3781
        %4273 = vmatprep.subr.mxu0 0.0
        %4274 = vmatpush1.msra.mxu0 %v3784
        %4275 = vmatprep.subr.mxu0 0.0
        %4276 = vmatpush1.msra.mxu0 %v3787
        %4277 = vmatprep.subr.mxu0 0.0
        %4278 = vmatpush1.msra.mxu0 %v3790
        %4279 = vmatprep.subr.mxu0 0.0
        %4280 = vmatpush1.msra.mxu0 %v3793
        %4281 = vmatprep.subr.mxu0 0.0
        %4282 = vmatpush1.msra.mxu0 %v3796
        %4283 = vmatprep.subr.mxu0 0.0
        %4284 = vmatpush1.msra.mxu0 %v3799
        %4285 = vmatprep.subr.mxu0 0.0
        %4286 = vmatpush1.msra.mxu0 %v3802
        %4287 = vmatprep.subr.mxu0 0.0
        %4288 = vmatpush1.msra.mxu0 %v3805
        %4289 = vmatprep.subr.mxu0 0.0
        %4290 = vmatpush1.msra.mxu0 %v3808
        %4291 = vmatprep.mubr.f32.mxu0 %v2846
        %4292 = vmatmul.mubr.f32.gmra.mrb[0].mxu0 %v2845
        %v4293 = vpop.f32.mrb[0].mxu0
        %v4294 = vadd.f32 0.0, %v4293
        %v4295 = vpop.f32.mrb[0].mxu0
        %4296 = vmatprep.mubr.f32.mxu0 %v2850
        %4297 = vmatmul.mubr.f32.gmra.mrb[0].mxu0 %v2849
        %v4298 = vpop.f32.mrb[0].mxu0
        %v4299 = vadd.f32 0.0, %v4298
        %v4300 = vpop.f32.mrb[0].mxu0
        %4301 = vmatprep.mubr.f32.mxu0 %v2854
        %4302 = vmatmul.mubr.f32.gmra.mrb[0].mxu0 %v2853
        %v4303 = vpop.f32.mrb[0].mxu0
        %v4304 = vadd.f32 0.0, %v4303
        %v4305 = vpop.f32.mrb[0].mxu0
        %4306 = vmatprep.mubr.f32.mxu0 %v2858
        %4307 = vmatmul.mubr.f32.gmra.mrb[0].mxu0 %v2857
        %v4308 = vpop.f32.mrb[0].mxu0
        %v4309 = vadd.f32 0.0, %v4308
        %v4310 = vpop.f32.mrb[0].mxu0
        %4311 = vmatprep.mubr.f32.mxu0 %v2862
        %4312 = vmatmul.mubr.f32.gmra.mrb[0].mxu0 %v2861
        %v4313 = vpop.f32.mrb[0].mxu0
        %v4314 = vadd.f32 0.0, %v4313
        %v4315 = vpop.f32.mrb[0].mxu0
        %4316 = vmatprep.mubr.f32.mxu0 %v2866
        %4317 = vmatmul.mubr.f32.gmra.mrb[0].mxu0 %v2865
        %v4318 = vpop.f32.mrb[0].mxu0
        %v4319 = vadd.f32 0.0, %v4318
        %v4320 = vpop.f32.mrb[0].mxu0
        %4321 = vmatprep.mubr.f32.mxu0 %v2870
        %4322 = vmatmul.mubr.f32.gmra.mrb[0].mxu0 %v2869
        %v4323 = vpop.f32.mrb[0].mxu0
        %v4324 = vadd.f32 0.0, %v4323
        %v4325 = vpop.f32.mrb[0].mxu0
        %4326 = vmatprep.mubr.f32.mxu0 %v2874
        %4327 = vmatmul.mubr.f32.gmra.mrb[0].mxu0 %v2873
        %v4328 = vpop.f32.mrb[0].mxu0
        %v4329 = vadd.f32 0.0, %v4328
        %v4330 = vpop.f32.mrb[0].mxu0
        %4331 = vmatprep.mubr.f32.mxu0 %v2878
        %4332 = vmatmul.mubr.f32.gmra.mrb[0].mxu0 %v2877
        %v4333 = vpop.f32.mrb[0].mxu0
        %v4334 = vadd.f32 0.0, %v4333
        %v4335 = vpop.f32.mrb[0].mxu0
        %4336 = vmatprep.mubr.f32.mxu0 %v2882
        %4337 = vmatmul.mubr.f32.gmra.mrb[0].mxu0 %v2881
        %v4338 = vpop.f32.mrb[0].mxu0
        %v4339 = vadd.f32 0.0, %v4338
        %v4340 = vpop.f32.mrb[0].mxu0
        %4341 = vmatprep.mubr.f32.mxu0 %v2886
        %4342 = vmatmul.mubr.f32.gmra.mrb[0].mxu0 %v2885
        %v4343 = vpop.f32.mrb[0].mxu0
        %v4344 = vadd.f32 0.0, %v4343
        %v4345 = vpop.f32.mrb[0].mxu0
        %4346 = vmatprep.mubr.f32.mxu0 %v2890
        %4347 = vmatmul.mubr.f32.gmra.mrb[0].mxu0 %v2889
        %v4348 = vpop.f32.mrb[0].mxu0
        %v4349 = vadd.f32 0.0, %v4348
        %v4350 = vpop.f32.mrb[0].mxu0
        %4351 = vmatprep.mubr.f32.mxu0 %v2894
        %4352 = vmatmul.mubr.f32.gmra.mrb[0].mxu0 %v2893
        %v4353 = vpop.f32.mrb[0].mxu0
        %v4354 = vadd.f32 0.0, %v4353
        %v4355 = vpop.f32.mrb[0].mxu0
        %4356 = vmatprep.mubr.f32.mxu0 %v2898
        %4357 = vmatmul.mubr.f32.gmra.mrb[0].mxu0 %v2897
        %v4358 = vpop.f32.mrb[0].mxu0
        %v4359 = vadd.f32 0.0, %v4358
        %v4360 = vpop.f32.mrb[0].mxu0
        %4361 = vmatprep.mubr.f32.mxu0 %v2902
        %4362 = vmatmul.mubr.f32.gmra.mrb[0].mxu0 %v2901
        %v4363 = vpop.f32.mrb[0].mxu0
        %v4364 = vadd.f32 0.0, %v4363
        %v4365 = vpop.f32.mrb[0].mxu0
        %4366 = vmatprep.mubr.f32.mxu0 %v2906
        %4367 = vmatmul.mubr.f32.gmra.mrb[0].mxu0 %v2905
        %v4368 = vpop.f32.mrb[0].mxu0
        %v4369 = vadd.f32 0.0, %v4368
        %v4370 = vpop.f32.mrb[0].mxu0
        %4371 = vdwg.mxu0
        %4372 = vmatprep.subr.mxu0 0.0
        %4373 = vmatpush1.msra.mxu0 %v3811
        %4374 = vmatprep.subr.mxu0 0.0
        %4375 = vmatpush1.msra.mxu0 %v3814
        %4376 = vmatprep.subr.mxu0 0.0
        %4377 = vmatpush1.msra.mxu0 %v3817
        %4378 = vmatprep.subr.mxu0 0.0
        %4379 = vmatpush1.msra.mxu0 %v3820
        %4380 = vmatprep.subr.mxu0 0.0
        %4381 = vmatpush1.msra.mxu0 %v3823
        %4382 = vmatprep.subr.mxu0 0.0
        %4383 = vmatpush1.msra.mxu0 %v3826
        %4384 = vmatprep.subr.mxu0 0.0
        %4385 = vmatpush1.msra.mxu0 %v3829
        %4386 = vmatprep.subr.mxu0 0.0
        %4387 = vmatpush1.msra.mxu0 %v3832
        %4388 = vmatprep.subr.mxu0 0.0
        %4389 = vmatpush1.msra.mxu0 %v3835
        %4390 = vmatprep.subr.mxu0 0.0
        %4391 = vmatpush1.msra.mxu0 %v3838
        %4392 = vmatprep.subr.mxu0 0.0
        %4393 = vmatpush1.msra.mxu0 %v3841
        %4394 = vmatprep.subr.mxu0 0.0
        %4395 = vmatpush1.msra.mxu0 %v3844
        %4396 = vmatprep.subr.mxu0 0.0
        %4397 = vmatpush1.msra.mxu0 %v3847
        %4398 = vmatprep.subr.mxu0 0.0
        %4399 = vmatpush1.msra.mxu0 %v3850
        %4400 = vmatprep.subr.mxu0 0.0
        %4401 = vmatpush1.msra.mxu0 %v3853
        %4402 = vmatprep.subr.mxu0 0.0
        %4403 = vmatpush1.msra.mxu0 %v3856
        %4404 = vmatprep.subr.mxu0 0.0
        %4405 = vmatpush1.msra.mxu0 %v3859
        %4406 = vmatprep.subr.mxu0 0.0
        %4407 = vmatpush1.msra.mxu0 %v3862
        %4408 = vmatprep.subr.mxu0 0.0
        %4409 = vmatpush1.msra.mxu0 %v3865
        %4410 = vmatprep.subr.mxu0 0.0
        %4411 = vmatpush1.msra.mxu0 %v3868
        %4412 = vmatprep.subr.mxu0 0.0
        %4413 = vmatpush1.msra.mxu0 %v3871
        %4414 = vmatprep.subr.mxu0 0.0
        %4415 = vmatpush1.msra.mxu0 %v3874
        %4416 = vmatprep.subr.mxu0 0.0
        %4417 = vmatpush1.msra.mxu0 %v3877
        %4418 = vmatprep.subr.mxu0 0.0
        %4419 = vmatpush1.msra.mxu0 %v3880
        %4420 = vmatprep.subr.mxu0 0.0
        %4421 = vmatpush1.msra.mxu0 %v3883
        %4422 = vmatprep.subr.mxu0 0.0
        %4423 = vmatpush1.msra.mxu0 %v3886
        %4424 = vmatprep.subr.mxu0 0.0
        %4425 = vmatpush1.msra.mxu0 %v3889
        %4426 = vmatprep.subr.mxu0 0.0
        %4427 = vmatpush1.msra.mxu0 %v3892
        %4428 = vmatprep.subr.mxu0 0.0
        %4429 = vmatpush1.msra.mxu0 %v3895
        %4430 = vmatprep.subr.mxu0 0.0
        %4431 = vmatpush1.msra.mxu0 %v3898
        %4432 = vmatprep.subr.mxu0 0.0
        %4433 = vmatpush1.msra.mxu0 %v3901
        %4434 = vmatprep.subr.mxu0 0.0
        %4435 = vmatpush1.msra.mxu0 %v3904
        %4436 = vmatprep.mubr.f32.mxu0 %v2848
        %4437 = vmatmul.mubr.f32.gmra.mrb[0].mxu0 %v2847
        %v4438 = vpop.f32.mrb[0].mxu0
        %v4439 = vadd.f32 %v4294, %v4438
        %v4440 = vpop.f32.mrb[0].mxu0
        %4441 = vmatprep.mubr.f32.mxu0 %v2852
        %4442 = vmatmul.mubr.f32.gmra.mrb[0].mxu0 %v2851
        %v4443 = vpop.f32.mrb[0].mxu0
        %v4444 = vadd.f32 %v4299, %v4443
        %v4445 = vpop.f32.mrb[0].mxu0
        %4446 = vmatprep.mubr.f32.mxu0 %v2856
        %4447 = vmatmul.mubr.f32.gmra.mrb[0].mxu0 %v2855
        %v4448 = vpop.f32.mrb[0].mxu0
        %v4449 = vadd.f32 %v4304, %v4448
        %v4450 = vpop.f32.mrb[0].mxu0
        %4451 = vmatprep.mubr.f32.mxu0 %v2860
        %4452 = vmatmul.mubr.f32.gmra.mrb[0].mxu0 %v2859
        %v4453 = vpop.f32.mrb[0].mxu0
        %v4454 = vadd.f32 %v4309, %v4453
        %v4455 = vpop.f32.mrb[0].mxu0
        %4456 = vmatprep.mubr.f32.mxu0 %v2864
        %4457 = vmatmul.mubr.f32.gmra.mrb[0].mxu0 %v2863
        %v4458 = vpop.f32.mrb[0].mxu0
        %v4459 = vadd.f32 %v4314, %v4458
        %v4460 = vpop.f32.mrb[0].mxu0
        %4461 = vmatprep.mubr.f32.mxu0 %v2868
        %4462 = vmatmul.mubr.f32.gmra.mrb[0].mxu0 %v2867
        %v4463 = vpop.f32.mrb[0].mxu0
        %v4464 = vadd.f32 %v4319, %v4463
        %v4465 = vpop.f32.mrb[0].mxu0
        %4466 = vmatprep.mubr.f32.mxu0 %v2872
        %4467 = vmatmul.mubr.f32.gmra.mrb[0].mxu0 %v2871
        %v4468 = vpop.f32.mrb[0].mxu0
        %v4469 = vadd.f32 %v4324, %v4468
        %v4470 = vpop.f32.mrb[0].mxu0
        %4471 = vmatprep.mubr.f32.mxu0 %v2876
        %4472 = vmatmul.mubr.f32.gmra.mrb[0].mxu0 %v2875
        %v4473 = vpop.f32.mrb[0].mxu0
        %v4474 = vadd.f32 %v4329, %v4473
        %v4475 = vpop.f32.mrb[0].mxu0
        %4476 = vmatprep.mubr.f32.mxu0 %v2880
        %4477 = vmatmul.mubr.f32.gmra.mrb[0].mxu0 %v2879
        %v4478 = vpop.f32.mrb[0].mxu0
        %v4479 = vadd.f32 %v4334, %v4478
        %v4480 = vpop.f32.mrb[0].mxu0
        %4481 = vmatprep.mubr.f32.mxu0 %v2884
        %4482 = vmatmul.mubr.f32.gmra.mrb[0].mxu0 %v2883
        %v4483 = vpop.f32.mrb[0].mxu0
        %v4484 = vadd.f32 %v4339, %v4483
        %v4485 = vpop.f32.mrb[0].mxu0
        %4486 = vmatprep.mubr.f32.mxu0 %v2888
        %4487 = vmatmul.mubr.f32.gmra.mrb[0].mxu0 %v2887
        %v4488 = vpop.f32.mrb[0].mxu0
        %v4489 = vadd.f32 %v4344, %v4488
        %v4490 = vpop.f32.mrb[0].mxu0
        %4491 = vmatprep.mubr.f32.mxu0 %v2892
        %4492 = vmatmul.mubr.f32.gmra.mrb[0].mxu0 %v2891
        %v4493 = vpop.f32.mrb[0].mxu0
        %v4494 = vadd.f32 %v4349, %v4493
        %v4495 = vpop.f32.mrb[0].mxu0
        %4496 = vmatprep.mubr.f32.mxu0 %v2896
        %4497 = vmatmul.mubr.f32.gmra.mrb[0].mxu0 %v2895
        %v4498 = vpop.f32.mrb[0].mxu0
        %v4499 = vadd.f32 %v4354, %v4498
        %v4500 = vpop.f32.mrb[0].mxu0
        %4501 = vmatprep.mubr.f32.mxu0 %v2900
        %4502 = vmatmul.mubr.f32.gmra.mrb[0].mxu0 %v2899
        %v4503 = vpop.f32.mrb[0].mxu0
        %v4504 = vadd.f32 %v4359, %v4503
        %v4505 = vpop.f32.mrb[0].mxu0
        %4506 = vmatprep.mubr.f32.mxu0 %v2904
        %4507 = vmatmul.mubr.f32.gmra.mrb[0].mxu0 %v2903
        %v4508 = vpop.f32.mrb[0].mxu0
        %v4509 = vadd.f32 %v4364, %v4508
        %v4510 = vpop.f32.mrb[0].mxu0
        %4511 = vmatprep.mubr.f32.mxu0 %v2908
        %4512 = vmatmul.mubr.f32.gmra.mrb[0].mxu0 %v2907
        %v4513 = vpop.f32.mrb[0].mxu0
        %v4514 = vadd.f32 %v4369, %v4513
        %v4515 = vpop.f32.mrb[0].mxu0
        %4516 = vdwg.mxu0
        %v4517 = vmax.f32 %v3329, %v4133
        %v4518 = vmax.f32 %v3331, %v4135
        %v4519 = vmax.f32 %v3635, %v4439
        %v4520 = vmax.f32 %v3335, %v4139
        %v4521 = vmax.f32 %v3337, %v4141
        %v4522 = vmax.f32 %v3640, %v4444
        %v4523 = vmax.f32 %v3341, %v4145
        %v4524 = vmax.f32 %v3343, %v4147
        %v4525 = vmax.f32 %v3645, %v4449
        %v4526 = vmax.f32 %v3347, %v4151
        %v4527 = vmax.f32 %v3349, %v4153
        %v4528 = vmax.f32 %v3650, %v4454
        %v4529 = vmax.f32 %v3353, %v4157
        %v4530 = vmax.f32 %v3355, %v4159
        %v4531 = vmax.f32 %v3655, %v4459
        %v4532 = vmax.f32 %v3359, %v4163
        %v4533 = vmax.f32 %v3361, %v4165
        %v4534 = vmax.f32 %v3660, %v4464
        %v4535 = vmax.f32 %v3365, %v4169
        %v4536 = vmax.f32 %v3367, %v4171
        %v4537 = vmax.f32 %v3665, %v4469
        %v4538 = vmax.f32 %v3371, %v4175
        %v4539 = vmax.f32 %v3373, %v4177
        %v4540 = vmax.f32 %v3670, %v4474
        %v4541 = vmax.f32 %v3377, %v4181
        %v4542 = vmax.f32 %v3379, %v4183
        %v4543 = vmax.f32 %v3675, %v4479
        %v4544 = vmax.f32 %v3383, %v4187
        %v4545 = vmax.f32 %v3385, %v4189
        %v4546 = vmax.f32 %v3680, %v4484
        %v4547 = vmax.f32 %v3389, %v4193
        %v4548 = vmax.f32 %v3391, %v4195
        %v4549 = vmax.f32 %v3685, %v4489
        %v4550 = vmax.f32 %v3395, %v4199
        %v4551 = vmax.f32 %v3397, %v4201
        %v4552 = vmax.f32 %v3690, %v4494
        %v4553 = vmax.f32 %v3401, %v4205
        %v4554 = vmax.f32 %v3403, %v4207
        %v4555 = vmax.f32 %v3695, %v4499
        %v4556 = vmax.f32 %v3407, %v4211
        %v4557 = vmax.f32 %v3409, %v4213
        %v4558 = vmax.f32 %v3700, %v4504
        %v4559 = vmax.f32 %v3413, %v4217
        %v4560 = vmax.f32 %v3415, %v4219
        %v4561 = vmax.f32 %v3705, %v4509
        %v4562 = vmax.f32 %v3419, %v4223
        %v4563 = vmax.f32 %v3421, %v4225
        %v4564 = vmax.f32 %v3710, %v4514
        %v4565 = vld [vmem:[%s5] sm:$0xff]
        %v4566 = vld [vmem:[%s5 + $0x8] sm:$0xff]
        %v4567 = vld [vmem:[%s5 + $0x10] sm:$0xff]
        %v4568 = vld [vmem:[%s5 + $0x18] sm:$0xff]
        %v4569 = vld [vmem:[%s5 + $0x20] sm:$0xff]
        %v4570 = vld [vmem:[%s5 + $0x28] sm:$0xff]
        %v4571 = vld [vmem:[%s5 + $0x30] sm:$0xff]
        %v4572 = vld [vmem:[%s5 + $0x38] sm:$0xff]
        %v4573 = vld [vmem:[%s5 + $0x40] sm:$0xff]
        %v4574 = vld [vmem:[%s5 + $0x48] sm:$0xff]
        %v4575 = vld [vmem:[%s5 + $0x50] sm:$0xff]
        %v4576 = vld [vmem:[%s5 + $0x58] sm:$0xff]
        %v4577 = vld [vmem:[%s5 + $0x60] sm:$0xff]
        %v4578 = vld [vmem:[%s5 + $0x68] sm:$0xff]
        %v4579 = vld [vmem:[%s5 + $0x70] sm:$0xff]
        %v4580 = vld [vmem:[%s5 + $0x78] sm:$0xff]
        %v4581 = vld [vmem:[%s5 + $0x80] sm:$0xff]
        %v4582 = vld [vmem:[%s5 + $0x88] sm:$0xff]
        %v4583 = vld [vmem:[%s5 + $0x90] sm:$0xff]
        %v4584 = vld [vmem:[%s5 + $0x98] sm:$0xff]
        %v4585 = vld [vmem:[%s5 + $0xa0] sm:$0xff]
        %v4586 = vld [vmem:[%s5 + $0xa8] sm:$0xff]
        %v4587 = vld [vmem:[%s5 + $0xb0] sm:$0xff]
        %v4588 = vld [vmem:[%s5 + $0xb8] sm:$0xff]
        %v4589 = vld [vmem:[%s5 + $0xc0] sm:$0xff]
        %v4590 = vld [vmem:[%s5 + $0xc8] sm:$0xff]
        %v4591 = vld [vmem:[%s5 + $0xd0] sm:$0xff]
        %v4592 = vld [vmem:[%s5 + $0xd8] sm:$0xff]
        %v4593 = vld [vmem:[%s5 + $0xe0] sm:$0xff]
        %v4594 = vld [vmem:[%s5 + $0xe8] sm:$0xff]
        %v4595 = vld [vmem:[%s5 + $0xf0] sm:$0xff]
        %v4596 = vld [vmem:[%s5 + $0xf8] sm:$0xff]
        %v4597 = vld [vmem:[%s5 + $0x100] sm:$0xff]
        %v4598 = vld [vmem:[%s5 + $0x108] sm:$0xff]
        %v4599 = vld [vmem:[%s5 + $0x110] sm:$0xff]
        %v4600 = vld [vmem:[%s5 + $0x118] sm:$0xff]
        %v4601 = vld [vmem:[%s5 + $0x120] sm:$0xff]
        %v4602 = vld [vmem:[%s5 + $0x128] sm:$0xff]
        %v4603 = vld [vmem:[%s5 + $0x130] sm:$0xff]
        %v4604 = vld [vmem:[%s5 + $0x138] sm:$0xff]
        %v4605 = vld [vmem:[%s5 + $0x140] sm:$0xff]
        %v4606 = vld [vmem:[%s5 + $0x148] sm:$0xff]
        %v4607 = vld [vmem:[%s5 + $0x150] sm:$0xff]
        %v4608 = vld [vmem:[%s5 + $0x158] sm:$0xff]
        %v4609 = vld [vmem:[%s5 + $0x160] sm:$0xff]
        %v4610 = vld [vmem:[%s5 + $0x168] sm:$0xff]
        %v4611 = vld [vmem:[%s5 + $0x170] sm:$0xff]
        %v4612 = vld [vmem:[%s5 + $0x178] sm:$0xff]
        %v4613 = vld [vmem:[%s5 + $0x180] sm:$0xff]
        %v4614 = vld [vmem:[%s5 + $0x188] sm:$0xff]
        %v4615 = vld [vmem:[%s5 + $0x190] sm:$0xff]
        %v4616 = vld [vmem:[%s5 + $0x198] sm:$0xff]
        %v4617 = vld [vmem:[%s5 + $0x1a0] sm:$0xff]
        %v4618 = vld [vmem:[%s5 + $0x1a8] sm:$0xff]
        %v4619 = vld [vmem:[%s5 + $0x1b0] sm:$0xff]
        %v4620 = vld [vmem:[%s5 + $0x1b8] sm:$0xff]
        %v4621 = vld [vmem:[%s5 + $0x1c0] sm:$0xff]
        %v4622 = vld [vmem:[%s5 + $0x1c8] sm:$0xff]
        %v4623 = vld [vmem:[%s5 + $0x1d0] sm:$0xff]
        %v4624 = vld [vmem:[%s5 + $0x1d8] sm:$0xff]
        %v4625 = vld [vmem:[%s5 + $0x1e0] sm:$0xff]
        %v4626 = vld [vmem:[%s5 + $0x1e8] sm:$0xff]
        %v4627 = vld [vmem:[%s5 + $0x1f0] sm:$0xff]
        %v4628 = vld [vmem:[%s5 + $0x1f8] sm:$0xff]
        %v4629 = vld [vmem:[%s5 + $0x200] sm:$0xff]
        %v4630 = vld [vmem:[%s5 + $0x208] sm:$0xff]
        %v4631 = vld [vmem:[%s5 + $0x210] sm:$0xff]
        %v4632 = vld [vmem:[%s5 + $0x218] sm:$0xff]
        %v4633 = vld [vmem:[%s5 + $0x220] sm:$0xff]
        %v4634 = vld [vmem:[%s5 + $0x228] sm:$0xff]
        %v4635 = vld [vmem:[%s5 + $0x230] sm:$0xff]
        %v4636 = vld [vmem:[%s5 + $0x238] sm:$0xff]
        %v4637 = vld [vmem:[%s5 + $0x240] sm:$0xff]
        %v4638 = vld [vmem:[%s5 + $0x248] sm:$0xff]
        %v4639 = vld [vmem:[%s5 + $0x250] sm:$0xff]
        %v4640 = vld [vmem:[%s5 + $0x258] sm:$0xff]
        %v4641 = vld [vmem:[%s5 + $0x260] sm:$0xff]
        %v4642 = vld [vmem:[%s5 + $0x268] sm:$0xff]
        %v4643 = vld [vmem:[%s5 + $0x270] sm:$0xff]
        %v4644 = vld [vmem:[%s5 + $0x278] sm:$0xff]
        %v4645 = vld [vmem:[%s5 + $0x280] sm:$0xff]
        %v4646 = vld [vmem:[%s5 + $0x288] sm:$0xff]
        %v4647 = vld [vmem:[%s5 + $0x290] sm:$0xff]
        %v4648 = vld [vmem:[%s5 + $0x298] sm:$0xff]
        %v4649 = vld [vmem:[%s5 + $0x2a0] sm:$0xff]
        %v4650 = vld [vmem:[%s5 + $0x2a8] sm:$0xff]
        %v4651 = vld [vmem:[%s5 + $0x2b0] sm:$0xff]
        %v4652 = vld [vmem:[%s5 + $0x2b8] sm:$0xff]
        %v4653 = vld [vmem:[%s5 + $0x2c0] sm:$0xff]
        %v4654 = vld [vmem:[%s5 + $0x2c8] sm:$0xff]
        %v4655 = vld [vmem:[%s5 + $0x2d0] sm:$0xff]
        %v4656 = vld [vmem:[%s5 + $0x2d8] sm:$0xff]
        %v4657 = vld [vmem:[%s5 + $0x2e0] sm:$0xff]
        %v4658 = vld [vmem:[%s5 + $0x2e8] sm:$0xff]
        %v4659 = vld [vmem:[%s5 + $0x2f0] sm:$0xff]
        %v4660 = vld [vmem:[%s5 + $0x2f8] sm:$0xff]
        %v4661 = vld [vmem:[%s5 + $0x300] sm:$0xff]
        %v4662 = vld [vmem:[%s5 + $0x308] sm:$0xff]
        %v4663 = vld [vmem:[%s5 + $0x310] sm:$0xff]
        %v4664 = vld [vmem:[%s5 + $0x318] sm:$0xff]
        %v4665 = vld [vmem:[%s5 + $0x320] sm:$0xff]
        %v4666 = vld [vmem:[%s5 + $0x328] sm:$0xff]
        %v4667 = vld [vmem:[%s5 + $0x330] sm:$0xff]
        %v4668 = vld [vmem:[%s5 + $0x338] sm:$0xff]
        %v4669 = vld [vmem:[%s5 + $0x340] sm:$0xff]
        %v4670 = vld [vmem:[%s5 + $0x348] sm:$0xff]
        %v4671 = vld [vmem:[%s5 + $0x350] sm:$0xff]
        %v4672 = vld [vmem:[%s5 + $0x358] sm:$0xff]
        %v4673 = vld [vmem:[%s5 + $0x360] sm:$0xff]
        %v4674 = vld [vmem:[%s5 + $0x368] sm:$0xff]
        %v4675 = vld [vmem:[%s5 + $0x370] sm:$0xff]
        %v4676 = vld [vmem:[%s5 + $0x378] sm:$0xff]
        %v4677 = vld [vmem:[%s5 + $0x380] sm:$0xff]
        %v4678 = vld [vmem:[%s5 + $0x388] sm:$0xff]
        %v4679 = vld [vmem:[%s5 + $0x390] sm:$0xff]
        %v4680 = vld [vmem:[%s5 + $0x398] sm:$0xff]
        %v4681 = vld [vmem:[%s5 + $0x3a0] sm:$0xff]
        %v4682 = vld [vmem:[%s5 + $0x3a8] sm:$0xff]
        %v4683 = vld [vmem:[%s5 + $0x3b0] sm:$0xff]
        %v4684 = vld [vmem:[%s5 + $0x3b8] sm:$0xff]
        %v4685 = vld [vmem:[%s5 + $0x3c0] sm:$0xff]
        %v4686 = vld [vmem:[%s5 + $0x3c8] sm:$0xff]
        %v4687 = vld [vmem:[%s5 + $0x3d0] sm:$0xff]
        %v4688 = vld [vmem:[%s5 + $0x3d8] sm:$0xff]
        %v4689 = vld [vmem:[%s5 + $0x3e0] sm:$0xff]
        %v4690 = vld [vmem:[%s5 + $0x3e8] sm:$0xff]
        %v4691 = vld [vmem:[%s5 + $0x3f0] sm:$0xff]
        %v4692 = vld [vmem:[%s5 + $0x3f8] sm:$0xff]
        %v4693 = vld [vmem:[%s5 + $0x400] sm:$0xff]
        %v4694 = vld [vmem:[%s5 + $0x408] sm:$0xff]
        %v4695 = vld [vmem:[%s5 + $0x410] sm:$0xff]
        %v4696 = vld [vmem:[%s5 + $0x418] sm:$0xff]
        %v4697 = vld [vmem:[%s5 + $0x420] sm:$0xff]
        %v4698 = vld [vmem:[%s5 + $0x428] sm:$0xff]
        %v4699 = vld [vmem:[%s5 + $0x430] sm:$0xff]
        %v4700 = vld [vmem:[%s5 + $0x438] sm:$0xff]
        %v4701 = vld [vmem:[%s5 + $0x440] sm:$0xff]
        %v4702 = vld [vmem:[%s5 + $0x448] sm:$0xff]
        %v4703 = vld [vmem:[%s5 + $0x450] sm:$0xff]
        %v4704 = vld [vmem:[%s5 + $0x458] sm:$0xff]
        %v4705 = vld [vmem:[%s5 + $0x460] sm:$0xff]
        %v4706 = vld [vmem:[%s5 + $0x468] sm:$0xff]
        %v4707 = vld [vmem:[%s5 + $0x470] sm:$0xff]
        %v4708 = vld [vmem:[%s5 + $0x478] sm:$0xff]
        %s4709 = scalar_lea.vmem %s5, 1152
        %v4710 = vld [vmem:[%s4709] sm:$0xff]
        %v4711 = vld [vmem:[%s4709 + $0x8] sm:$0xff]
        %v4712 = vld [vmem:[%s4709 + $0x10] sm:$0xff]
        %v4713 = vld [vmem:[%s4709 + $0x18] sm:$0xff]
        %v4714 = vld [vmem:[%s4709 + $0x20] sm:$0xff]
        %v4715 = vld [vmem:[%s4709 + $0x28] sm:$0xff]
        %v4716 = vld [vmem:[%s4709 + $0x30] sm:$0xff]
        %v4717 = vld [vmem:[%s4709 + $0x38] sm:$0xff]
        %v4718 = vld [vmem:[%s4709 + $0x40] sm:$0xff]
        %v4719 = vld [vmem:[%s4709 + $0x48] sm:$0xff]
        %v4720 = vld [vmem:[%s4709 + $0x50] sm:$0xff]
        %v4721 = vld [vmem:[%s4709 + $0x58] sm:$0xff]
        %v4722 = vld [vmem:[%s4709 + $0x60] sm:$0xff]
        %v4723 = vld [vmem:[%s4709 + $0x68] sm:$0xff]
        %v4724 = vld [vmem:[%s4709 + $0x70] sm:$0xff]
        %v4725 = vld [vmem:[%s4709 + $0x78] sm:$0xff]
        %v4726 = vld [vmem:[%s4709 + $0x80] sm:$0xff]
        %v4727 = vld [vmem:[%s4709 + $0x88] sm:$0xff]
        %v4728 = vld [vmem:[%s4709 + $0x90] sm:$0xff]
        %v4729 = vld [vmem:[%s4709 + $0x98] sm:$0xff]
        %v4730 = vld [vmem:[%s4709 + $0xa0] sm:$0xff]
        %v4731 = vld [vmem:[%s4709 + $0xa8] sm:$0xff]
        %v4732 = vld [vmem:[%s4709 + $0xb0] sm:$0xff]
        %v4733 = vld [vmem:[%s4709 + $0xb8] sm:$0xff]
        %v4734 = vld [vmem:[%s4709 + $0xc0] sm:$0xff]
        %v4735 = vld [vmem:[%s4709 + $0xc8] sm:$0xff]
        %v4736 = vld [vmem:[%s4709 + $0xd0] sm:$0xff]
        %v4737 = vld [vmem:[%s4709 + $0xd8] sm:$0xff]
        %v4738 = vld [vmem:[%s4709 + $0xe0] sm:$0xff]
        %v4739 = vld [vmem:[%s4709 + $0xe8] sm:$0xff]
        %v4740 = vld [vmem:[%s4709 + $0xf0] sm:$0xff]
        %v4741 = vld [vmem:[%s4709 + $0xf8] sm:$0xff]
        %v4742 = vld [vmem:[%s4709 + $0x100] sm:$0xff]
        %v4743 = vld [vmem:[%s4709 + $0x108] sm:$0xff]
        %v4744 = vld [vmem:[%s4709 + $0x110] sm:$0xff]
        %v4745 = vld [vmem:[%s4709 + $0x118] sm:$0xff]
        %v4746 = vld [vmem:[%s4709 + $0x120] sm:$0xff]
        %v4747 = vld [vmem:[%s4709 + $0x128] sm:$0xff]
        %v4748 = vld [vmem:[%s4709 + $0x130] sm:$0xff]
        %v4749 = vld [vmem:[%s4709 + $0x138] sm:$0xff]
        %v4750 = vld [vmem:[%s4709 + $0x140] sm:$0xff]
        %v4751 = vld [vmem:[%s4709 + $0x148] sm:$0xff]
        %v4752 = vld [vmem:[%s4709 + $0x150] sm:$0xff]
        %v4753 = vld [vmem:[%s4709 + $0x158] sm:$0xff]
        %v4754 = vld [vmem:[%s4709 + $0x160] sm:$0xff]
        %v4755 = vld [vmem:[%s4709 + $0x168] sm:$0xff]
        %v4756 = vld [vmem:[%s4709 + $0x170] sm:$0xff]
        %v4757 = vld [vmem:[%s4709 + $0x178] sm:$0xff]
        %v4758 = vld [vmem:[%s4709 + $0x180] sm:$0xff]
        %v4759 = vld [vmem:[%s4709 + $0x188] sm:$0xff]
        %v4760 = vld [vmem:[%s4709 + $0x190] sm:$0xff]
        %v4761 = vld [vmem:[%s4709 + $0x198] sm:$0xff]
        %v4762 = vld [vmem:[%s4709 + $0x1a0] sm:$0xff]
        %v4763 = vld [vmem:[%s4709 + $0x1a8] sm:$0xff]
        %v4764 = vld [vmem:[%s4709 + $0x1b0] sm:$0xff]
        %v4765 = vld [vmem:[%s4709 + $0x1b8] sm:$0xff]
        %v4766 = vld [vmem:[%s4709 + $0x1c0] sm:$0xff]
        %v4767 = vld [vmem:[%s4709 + $0x1c8] sm:$0xff]
        %v4768 = vld [vmem:[%s4709 + $0x1d0] sm:$0xff]
        %v4769 = vld [vmem:[%s4709 + $0x1d8] sm:$0xff]
        %v4770 = vld [vmem:[%s4709 + $0x1e0] sm:$0xff]
        %v4771 = vld [vmem:[%s4709 + $0x1e8] sm:$0xff]
        %v4772 = vld [vmem:[%s4709 + $0x1f0] sm:$0xff]
        %v4773 = vld [vmem:[%s4709 + $0x1f8] sm:$0xff]
        %v4774 = vld [vmem:[%s4709 + $0x200] sm:$0xff]
        %v4775 = vld [vmem:[%s4709 + $0x208] sm:$0xff]
        %v4776 = vld [vmem:[%s4709 + $0x210] sm:$0xff]
        %v4777 = vld [vmem:[%s4709 + $0x218] sm:$0xff]
        %v4778 = vld [vmem:[%s4709 + $0x220] sm:$0xff]
        %v4779 = vld [vmem:[%s4709 + $0x228] sm:$0xff]
        %v4780 = vld [vmem:[%s4709 + $0x230] sm:$0xff]
        %v4781 = vld [vmem:[%s4709 + $0x238] sm:$0xff]
        %v4782 = vld [vmem:[%s4709 + $0x240] sm:$0xff]
        %v4783 = vld [vmem:[%s4709 + $0x248] sm:$0xff]
        %v4784 = vld [vmem:[%s4709 + $0x250] sm:$0xff]
        %v4785 = vld [vmem:[%s4709 + $0x258] sm:$0xff]
        %v4786 = vld [vmem:[%s4709 + $0x260] sm:$0xff]
        %v4787 = vld [vmem:[%s4709 + $0x268] sm:$0xff]
        %v4788 = vld [vmem:[%s4709 + $0x270] sm:$0xff]
        %v4789 = vld [vmem:[%s4709 + $0x278] sm:$0xff]
        %v4790 = vld [vmem:[%s4709 + $0x280] sm:$0xff]
        %v4791 = vld [vmem:[%s4709 + $0x288] sm:$0xff]
        %v4792 = vld [vmem:[%s4709 + $0x290] sm:$0xff]
        %v4793 = vld [vmem:[%s4709 + $0x298] sm:$0xff]
        %v4794 = vld [vmem:[%s4709 + $0x2a0] sm:$0xff]
        %v4795 = vld [vmem:[%s4709 + $0x2a8] sm:$0xff]
        %v4796 = vld [vmem:[%s4709 + $0x2b0] sm:$0xff]
        %v4797 = vld [vmem:[%s4709 + $0x2b8] sm:$0xff]
        %v4798 = vld [vmem:[%s4709 + $0x2c0] sm:$0xff]
        %v4799 = vld [vmem:[%s4709 + $0x2c8] sm:$0xff]
        %v4800 = vld [vmem:[%s4709 + $0x2d0] sm:$0xff]
        %v4801 = vld [vmem:[%s4709 + $0x2d8] sm:$0xff]
        %v4802 = vld [vmem:[%s4709 + $0x2e0] sm:$0xff]
        %v4803 = vld [vmem:[%s4709 + $0x2e8] sm:$0xff]
        %v4804 = vld [vmem:[%s4709 + $0x2f0] sm:$0xff]
        %v4805 = vld [vmem:[%s4709 + $0x2f8] sm:$0xff]
        %v4806 = vld [vmem:[%s4709 + $0x300] sm:$0xff]
        %v4807 = vld [vmem:[%s4709 + $0x308] sm:$0xff]
        %v4808 = vld [vmem:[%s4709 + $0x310] sm:$0xff]
        %v4809 = vld [vmem:[%s4709 + $0x318] sm:$0xff]
        %v4810 = vld [vmem:[%s4709 + $0x320] sm:$0xff]
        %v4811 = vld [vmem:[%s4709 + $0x328] sm:$0xff]
        %v4812 = vld [vmem:[%s4709 + $0x330] sm:$0xff]
        %v4813 = vld [vmem:[%s4709 + $0x338] sm:$0xff]
        %v4814 = vld [vmem:[%s4709 + $0x340] sm:$0xff]
        %v4815 = vld [vmem:[%s4709 + $0x348] sm:$0xff]
        %v4816 = vld [vmem:[%s4709 + $0x350] sm:$0xff]
        %v4817 = vld [vmem:[%s4709 + $0x358] sm:$0xff]
        %v4818 = vld [vmem:[%s4709 + $0x360] sm:$0xff]
        %v4819 = vld [vmem:[%s4709 + $0x368] sm:$0xff]
        %v4820 = vld [vmem:[%s4709 + $0x370] sm:$0xff]
        %v4821 = vld [vmem:[%s4709 + $0x378] sm:$0xff]
        %v4822 = vld [vmem:[%s4709 + $0x380] sm:$0xff]
        %v4823 = vld [vmem:[%s4709 + $0x388] sm:$0xff]
        %v4824 = vld [vmem:[%s4709 + $0x390] sm:$0xff]
        %v4825 = vld [vmem:[%s4709 + $0x398] sm:$0xff]
        %v4826 = vld [vmem:[%s4709 + $0x3a0] sm:$0xff]
        %v4827 = vld [vmem:[%s4709 + $0x3a8] sm:$0xff]
        %v4828 = vld [vmem:[%s4709 + $0x3b0] sm:$0xff]
        %v4829 = vld [vmem:[%s4709 + $0x3b8] sm:$0xff]
        %v4830 = vld [vmem:[%s4709 + $0x3c0] sm:$0xff]
        %v4831 = vld [vmem:[%s4709 + $0x3c8] sm:$0xff]
        %v4832 = vld [vmem:[%s4709 + $0x3d0] sm:$0xff]
        %v4833 = vld [vmem:[%s4709 + $0x3d8] sm:$0xff]
        %v4834 = vld [vmem:[%s4709 + $0x3e0] sm:$0xff]
        %v4835 = vld [vmem:[%s4709 + $0x3e8] sm:$0xff]
        %v4836 = vld [vmem:[%s4709 + $0x3f0] sm:$0xff]
        %v4837 = vld [vmem:[%s4709 + $0x3f8] sm:$0xff]
        %v4838 = vld [vmem:[%s4709 + $0x400] sm:$0xff]
        %v4839 = vld [vmem:[%s4709 + $0x408] sm:$0xff]
        %v4840 = vld [vmem:[%s4709 + $0x410] sm:$0xff]
        %v4841 = vld [vmem:[%s4709 + $0x418] sm:$0xff]
        %v4842 = vld [vmem:[%s4709 + $0x420] sm:$0xff]
        %v4843 = vld [vmem:[%s4709 + $0x428] sm:$0xff]
        %v4844 = vld [vmem:[%s4709 + $0x430] sm:$0xff]
        %v4845 = vld [vmem:[%s4709 + $0x438] sm:$0xff]
        %v4846 = vld [vmem:[%s4709 + $0x440] sm:$0xff]
        %v4847 = vld [vmem:[%s4709 + $0x448] sm:$0xff]
        %v4848 = vld [vmem:[%s4709 + $0x450] sm:$0xff]
        %v4849 = vld [vmem:[%s4709 + $0x458] sm:$0xff]
        %v4850 = vld [vmem:[%s4709 + $0x460] sm:$0xff]
        %v4851 = vld [vmem:[%s4709 + $0x468] sm:$0xff]
        %v4852 = vld [vmem:[%s4709 + $0x470] sm:$0xff]
        %v4853 = vld [vmem:[%s4709 + $0x478] sm:$0xff]
        %vm4854 = vcmask 261120
        %v4856 = vsel %vm4854, %v4519, 0
        %v4859 = vsel %vm4854, %v4522, 0
        %v4862 = vsel %vm4854, %v4525, 0
        %v4865 = vsel %vm4854, %v4528, 0
        %v4868 = vsel %vm4854, %v4531, 0
        %v4871 = vsel %vm4854, %v4534, 0
        %v4874 = vsel %vm4854, %v4537, 0
        %v4877 = vsel %vm4854, %v4540, 0
        %v4880 = vsel %vm4854, %v4543, 0
        %v4883 = vsel %vm4854, %v4546, 0
        %v4886 = vsel %vm4854, %v4549, 0
        %v4889 = vsel %vm4854, %v4552, 0
        %v4892 = vsel %vm4854, %v4555, 0
        %v4895 = vsel %vm4854, %v4558, 0
        %v4898 = vsel %vm4854, %v4561, 0
        %v4901 = vsel %vm4854, %v4564, 0
        %4903 = vmatprep.subr.mxu0 %v4711
        %4904 = vmatpush1.msra.mxu0 %v4710
        %4905 = vmatprep.subr.mxu0 %v4715
        %4906 = vmatpush1.msra.mxu0 %v4714
        %4907 = vmatprep.subr.mxu0 %v4719
        %4908 = vmatpush1.msra.mxu0 %v4718
        %4909 = vmatprep.subr.mxu0 %v4723
        %4910 = vmatpush1.msra.mxu0 %v4722
        %4911 = vmatprep.subr.mxu0 %v4727
        %4912 = vmatpush1.msra.mxu0 %v4726
        %4913 = vmatprep.subr.mxu0 %v4731
        %4914 = vmatpush1.msra.mxu0 %v4730
        %4915 = vmatprep.subr.mxu0 %v4735
        %4916 = vmatpush1.msra.mxu0 %v4734
        %4917 = vmatprep.subr.mxu0 %v4739
        %4918 = vmatpush1.msra.mxu0 %v4738
        %4919 = vmatprep.subr.mxu0 %v4743
        %4920 = vmatpush1.msra.mxu0 %v4742
        %4921 = vmatprep.subr.mxu0 %v4747
        %4922 = vmatpush1.msra.mxu0 %v4746
        %4923 = vmatprep.subr.mxu0 %v4751
        %4924 = vmatpush1.msra.mxu0 %v4750
        %4925 = vmatprep.subr.mxu0 %v4755
        %4926 = vmatpush1.msra.mxu0 %v4754
        %4927 = vmatprep.subr.mxu0 %v4759
        %4928 = vmatpush1.msra.mxu0 %v4758
        %4929 = vmatprep.subr.mxu0 %v4763
        %4930 = vmatpush1.msra.mxu0 %v4762
        %4931 = vmatprep.subr.mxu0 %v4767
        %4932 = vmatpush1.msra.mxu0 %v4766
        %4933 = vmatprep.subr.mxu0 %v4771
        %4934 = vmatpush1.msra.mxu0 %v4770
        %4935 = vmatprep.subr.mxu0 %v4775
        %4936 = vmatpush1.msra.mxu0 %v4774
        %4937 = vmatprep.subr.mxu0 %v4779
        %4938 = vmatpush1.msra.mxu0 %v4778
        %4939 = vmatprep.subr.mxu0 %v4783
        %4940 = vmatpush1.msra.mxu0 %v4782
        %4941 = vmatprep.subr.mxu0 %v4787
        %4942 = vmatpush1.msra.mxu0 %v4786
        %4943 = vmatprep.subr.mxu0 %v4791
        %4944 = vmatpush1.msra.mxu0 %v4790
        %4945 = vmatprep.subr.mxu0 %v4795
        %4946 = vmatpush1.msra.mxu0 %v4794
        %4947 = vmatprep.subr.mxu0 %v4799
        %4948 = vmatpush1.msra.mxu0 %v4798
        %4949 = vmatprep.subr.mxu0 %v4803
        %4950 = vmatpush1.msra.mxu0 %v4802
        %4951 = vmatprep.subr.mxu0 %v4807
        %4952 = vmatpush1.msra.mxu0 %v4806
        %4953 = vmatprep.subr.mxu0 %v4811
        %4954 = vmatpush1.msra.mxu0 %v4810
        %4955 = vmatprep.subr.mxu0 %v4815
        %4956 = vmatpush1.msra.mxu0 %v4814
        %4957 = vmatprep.subr.mxu0 %v4819
        %4958 = vmatpush1.msra.mxu0 %v4818
        %4959 = vmatprep.subr.mxu0 %v4823
        %4960 = vmatpush1.msra.mxu0 %v4822
        %4961 = vmatprep.subr.mxu0 %v4827
        %4962 = vmatpush1.msra.mxu0 %v4826
        %4963 = vmatprep.subr.mxu0 %v4831
        %4964 = vmatpush1.msra.mxu0 %v4830
        %4965 = vmatprep.subr.mxu0 %v4835
        %4966 = vmatpush1.msra.mxu0 %v4834
        %4967 = vmatprep.mubr.f32.mxu0 %v4518
        %4968 = vmatmul.mubr.f32.gmra.mrb[0].mxu0 %v4517
        %v4969 = vpop.f32.mrb[0].mxu0
        %v4970 = vadd.f32 0.0, %v4969
        %v4971 = vpop.f32.mrb[0].mxu0
        %v4972 = vadd.f32 0.0, %v4971
        %4973 = vmatprep.mubr.f32.mxu0 %v4521
        %4974 = vmatmul.mubr.f32.gmra.mrb[0].mxu0 %v4520
        %v4975 = vpop.f32.mrb[0].mxu0
        %v4976 = vadd.f32 0.0, %v4975
        %v4977 = vpop.f32.mrb[0].mxu0
        %v4978 = vadd.f32 0.0, %v4977
        %4979 = vmatprep.mubr.f32.mxu0 %v4524
        %4980 = vmatmul.mubr.f32.gmra.mrb[0].mxu0 %v4523
        %v4981 = vpop.f32.mrb[0].mxu0
        %v4982 = vadd.f32 0.0, %v4981
        %v4983 = vpop.f32.mrb[0].mxu0
        %v4984 = vadd.f32 0.0, %v4983
        %4985 = vmatprep.mubr.f32.mxu0 %v4527
        %4986 = vmatmul.mubr.f32.gmra.mrb[0].mxu0 %v4526
        %v4987 = vpop.f32.mrb[0].mxu0
        %v4988 = vadd.f32 0.0, %v4987
        %v4989 = vpop.f32.mrb[0].mxu0
        %v4990 = vadd.f32 0.0, %v4989
        %4991 = vmatprep.mubr.f32.mxu0 %v4530
        %4992 = vmatmul.mubr.f32.gmra.mrb[0].mxu0 %v4529
        %v4993 = vpop.f32.mrb[0].mxu0
        %v4994 = vadd.f32 0.0, %v4993
        %v4995 = vpop.f32.mrb[0].mxu0
        %v4996 = vadd.f32 0.0, %v4995
        %4997 = vmatprep.mubr.f32.mxu0 %v4533
        %4998 = vmatmul.mubr.f32.gmra.mrb[0].mxu0 %v4532
        %v4999 = vpop.f32.mrb[0].mxu0
        %v5000 = vadd.f32 0.0, %v4999
        %v5001 = vpop.f32.mrb[0].mxu0
        %v5002 = vadd.f32 0.0, %v5001
        %5003 = vmatprep.mubr.f32.mxu0 %v4536
        %5004 = vmatmul.mubr.f32.gmra.mrb[0].mxu0 %v4535
        %v5005 = vpop.f32.mrb[0].mxu0
        %v5006 = vadd.f32 0.0, %v5005
        %v5007 = vpop.f32.mrb[0].mxu0
        %v5008 = vadd.f32 0.0, %v5007
        %5009 = vmatprep.mubr.f32.mxu0 %v4539
        %5010 = vmatmul.mubr.f32.gmra.mrb[0].mxu0 %v4538
        %v5011 = vpop.f32.mrb[0].mxu0
        %v5012 = vadd.f32 0.0, %v5011
        %v5013 = vpop.f32.mrb[0].mxu0
        %v5014 = vadd.f32 0.0, %v5013
        %5015 = vmatprep.mubr.f32.mxu0 %v4542
        %5016 = vmatmul.mubr.f32.gmra.mrb[0].mxu0 %v4541
        %v5017 = vpop.f32.mrb[0].mxu0
        %v5018 = vadd.f32 0.0, %v5017
        %v5019 = vpop.f32.mrb[0].mxu0
        %v5020 = vadd.f32 0.0, %v5019
        %5021 = vmatprep.mubr.f32.mxu0 %v4545
        %5022 = vmatmul.mubr.f32.gmra.mrb[0].mxu0 %v4544
        %v5023 = vpop.f32.mrb[0].mxu0
        %v5024 = vadd.f32 0.0, %v5023
        %v5025 = vpop.f32.mrb[0].mxu0
        %v5026 = vadd.f32 0.0, %v5025
        %5027 = vmatprep.mubr.f32.mxu0 %v4548
        %5028 = vmatmul.mubr.f32.gmra.mrb[0].mxu0 %v4547
        %v5029 = vpop.f32.mrb[0].mxu0
        %v5030 = vadd.f32 0.0, %v5029
        %v5031 = vpop.f32.mrb[0].mxu0
        %v5032 = vadd.f32 0.0, %v5031
        %5033 = vmatprep.mubr.f32.mxu0 %v4551
        %5034 = vmatmul.mubr.f32.gmra.mrb[0].mxu0 %v4550
        %v5035 = vpop.f32.mrb[0].mxu0
        %v5036 = vadd.f32 0.0, %v5035
        %v5037 = vpop.f32.mrb[0].mxu0
        %v5038 = vadd.f32 0.0, %v5037
        %5039 = vmatprep.mubr.f32.mxu0 %v4554
        %5040 = vmatmul.mubr.f32.gmra.mrb[0].mxu0 %v4553
        %v5041 = vpop.f32.mrb[0].mxu0
        %v5042 = vadd.f32 0.0, %v5041
        %v5043 = vpop.f32.mrb[0].mxu0
        %v5044 = vadd.f32 0.0, %v5043
        %5045 = vmatprep.mubr.f32.mxu0 %v4557
        %5046 = vmatmul.mubr.f32.gmra.mrb[0].mxu0 %v4556
        %v5047 = vpop.f32.mrb[0].mxu0
        %v5048 = vadd.f32 0.0, %v5047
        %v5049 = vpop.f32.mrb[0].mxu0
        %v5050 = vadd.f32 0.0, %v5049
        %5051 = vmatprep.mubr.f32.mxu0 %v4560
        %5052 = vmatmul.mubr.f32.gmra.mrb[0].mxu0 %v4559
        %v5053 = vpop.f32.mrb[0].mxu0
        %v5054 = vadd.f32 0.0, %v5053
        %v5055 = vpop.f32.mrb[0].mxu0
        %v5056 = vadd.f32 0.0, %v5055
        %5057 = vmatprep.mubr.f32.mxu0 %v4563
        %5058 = vmatmul.mubr.f32.gmra.mrb[0].mxu0 %v4562
        %v5059 = vpop.f32.mrb[0].mxu0
        %v5060 = vadd.f32 0.0, %v5059
        %v5061 = vpop.f32.mrb[0].mxu0
        %v5062 = vadd.f32 0.0, %v5061
        %5063 = vdwg.mxu0
        %5064 = vmatprep.subr.mxu0 %v4839
        %5065 = vmatpush1.msra.mxu0 %v4838
        %5066 = vmatprep.subr.mxu0 %v4843
        %5067 = vmatpush1.msra.mxu0 %v4842
        %5068 = vmatprep.subr.mxu0 %v4847
        %5069 = vmatpush1.msra.mxu0 %v4846
        %5070 = vmatprep.subr.mxu0 %v4851
        %5071 = vmatpush1.msra.mxu0 %v4850
        %5072 = vmatprep.subr.mxu0 0.0
        %5073 = vmatpush1.msra.mxu0 0.0
        %5074 = vmatprep.subr.mxu0 0.0
        %5075 = vmatpush1.msra.mxu0 0.0
        %5076 = vmatprep.subr.mxu0 0.0
        %5077 = vmatpush1.msra.mxu0 0.0
        %5078 = vmatprep.subr.mxu0 0.0
        %5079 = vmatpush1.msra.mxu0 0.0
        %5080 = vmatprep.subr.mxu0 0.0
        %5081 = vmatpush1.msra.mxu0 0.0
        %5082 = vmatprep.subr.mxu0 0.0
        %5083 = vmatpush1.msra.mxu0 0.0
        %5084 = vmatprep.subr.mxu0 0.0
        %5085 = vmatpush1.msra.mxu0 0.0
        %5086 = vmatprep.subr.mxu0 0.0
        %5087 = vmatpush1.msra.mxu0 0.0
        %5088 = vmatprep.subr.mxu0 0.0
        %5089 = vmatpush1.msra.mxu0 0.0
        %5090 = vmatprep.subr.mxu0 0.0
        %5091 = vmatpush1.msra.mxu0 0.0
        %5092 = vmatprep.subr.mxu0 0.0
        %5093 = vmatpush1.msra.mxu0 0.0
        %5094 = vmatprep.subr.mxu0 0.0
        %5095 = vmatpush1.msra.mxu0 0.0
        %5096 = vmatprep.subr.mxu0 0.0
        %5097 = vmatpush1.msra.mxu0 0.0
        %5098 = vmatprep.subr.mxu0 0.0
        %5099 = vmatpush1.msra.mxu0 0.0
        %5100 = vmatprep.subr.mxu0 0.0
        %5101 = vmatpush1.msra.mxu0 0.0
        %5102 = vmatprep.subr.mxu0 0.0
        %5103 = vmatpush1.msra.mxu0 0.0
        %5104 = vmatprep.subr.mxu0 0.0
        %5105 = vmatpush1.msra.mxu0 0.0
        %5106 = vmatprep.subr.mxu0 0.0
        %5107 = vmatpush1.msra.mxu0 0.0
        %5108 = vmatprep.subr.mxu0 0.0
        %5109 = vmatpush1.msra.mxu0 0.0
        %5110 = vmatprep.subr.mxu0 0.0
        %5111 = vmatpush1.msra.mxu0 0.0
        %5112 = vmatprep.subr.mxu0 0.0
        %5113 = vmatpush1.msra.mxu0 0.0
        %5114 = vmatprep.subr.mxu0 0.0
        %5115 = vmatpush1.msra.mxu0 0.0
        %5116 = vmatprep.subr.mxu0 0.0
        %5117 = vmatpush1.msra.mxu0 0.0
        %5118 = vmatprep.subr.mxu0 0.0
        %5119 = vmatpush1.msra.mxu0 0.0
        %5120 = vmatprep.subr.mxu0 0.0
        %5121 = vmatpush1.msra.mxu0 0.0
        %5122 = vmatprep.subr.mxu0 0.0
        %5123 = vmatpush1.msra.mxu0 0.0
        %5124 = vmatprep.subr.mxu0 0.0
        %5125 = vmatpush1.msra.mxu0 0.0
        %5126 = vmatprep.subr.mxu0 0.0
        %5127 = vmatpush1.msra.mxu0 0.0
        %5128 = vmatprep.mubr.f32.mxu0 0.0
        %5129 = vmatmul.mubr.f32.gmra.mrb[0].mxu0 %v4856
        %v5130 = vpop.f32.mrb[0].mxu0
        %v5131 = vadd.f32 %v4970, %v5130
        %v5132 = vpop.f32.mrb[0].mxu0
        %v5133 = vadd.f32 %v4972, %v5132
        %5134 = vmatprep.mubr.f32.mxu0 0.0
        %5135 = vmatmul.mubr.f32.gmra.mrb[0].mxu0 %v4859
        %v5136 = vpop.f32.mrb[0].mxu0
        %v5137 = vadd.f32 %v4976, %v5136
        %v5138 = vpop.f32.mrb[0].mxu0
        %v5139 = vadd.f32 %v4978, %v5138
        %5140 = vmatprep.mubr.f32.mxu0 0.0
        %5141 = vmatmul.mubr.f32.gmra.mrb[0].mxu0 %v4862
        %v5142 = vpop.f32.mrb[0].mxu0
        %v5143 = vadd.f32 %v4982, %v5142
        %v5144 = vpop.f32.mrb[0].mxu0
        %v5145 = vadd.f32 %v4984, %v5144
        %5146 = vmatprep.mubr.f32.mxu0 0.0
        %5147 = vmatmul.mubr.f32.gmra.mrb[0].mxu0 %v4865
        %v5148 = vpop.f32.mrb[0].mxu0
        %v5149 = vadd.f32 %v4988, %v5148
        %v5150 = vpop.f32.mrb[0].mxu0
        %v5151 = vadd.f32 %v4990, %v5150
        %5152 = vmatprep.mubr.f32.mxu0 0.0
        %5153 = vmatmul.mubr.f32.gmra.mrb[0].mxu0 %v4868
        %v5154 = vpop.f32.mrb[0].mxu0
        %v5155 = vadd.f32 %v4994, %v5154
        %v5156 = vpop.f32.mrb[0].mxu0
        %v5157 = vadd.f32 %v4996, %v5156
        %5158 = vmatprep.mubr.f32.mxu0 0.0
        %5159 = vmatmul.mubr.f32.gmra.mrb[0].mxu0 %v4871
        %v5160 = vpop.f32.mrb[0].mxu0
        %v5161 = vadd.f32 %v5000, %v5160
        %v5162 = vpop.f32.mrb[0].mxu0
        %v5163 = vadd.f32 %v5002, %v5162
        %5164 = vmatprep.mubr.f32.mxu0 0.0
        %5165 = vmatmul.mubr.f32.gmra.mrb[0].mxu0 %v4874
        %v5166 = vpop.f32.mrb[0].mxu0
        %v5167 = vadd.f32 %v5006, %v5166
        %v5168 = vpop.f32.mrb[0].mxu0
        %v5169 = vadd.f32 %v5008, %v5168
        %5170 = vmatprep.mubr.f32.mxu0 0.0
        %5171 = vmatmul.mubr.f32.gmra.mrb[0].mxu0 %v4877
        %v5172 = vpop.f32.mrb[0].mxu0
        %v5173 = vadd.f32 %v5012, %v5172
        %v5174 = vpop.f32.mrb[0].mxu0
        %v5175 = vadd.f32 %v5014, %v5174
        %5176 = vmatprep.mubr.f32.mxu0 0.0
        %5177 = vmatmul.mubr.f32.gmra.mrb[0].mxu0 %v4880
        %v5178 = vpop.f32.mrb[0].mxu0
        %v5179 = vadd.f32 %v5018, %v5178
        %v5180 = vpop.f32.mrb[0].mxu0
        %v5181 = vadd.f32 %v5020, %v5180
        %5182 = vmatprep.mubr.f32.mxu0 0.0
        %5183 = vmatmul.mubr.f32.gmra.mrb[0].mxu0 %v4883
        %v5184 = vpop.f32.mrb[0].mxu0
        %v5185 = vadd.f32 %v5024, %v5184
        %v5186 = vpop.f32.mrb[0].mxu0
        %v5187 = vadd.f32 %v5026, %v5186
        %5188 = vmatprep.mubr.f32.mxu0 0.0
        %5189 = vmatmul.mubr.f32.gmra.mrb[0].mxu0 %v4886
        %v5190 = vpop.f32.mrb[0].mxu0
        %v5191 = vadd.f32 %v5030, %v5190
        %v5192 = vpop.f32.mrb[0].mxu0
        %v5193 = vadd.f32 %v5032, %v5192
        %5194 = vmatprep.mubr.f32.mxu0 0.0
        %5195 = vmatmul.mubr.f32.gmra.mrb[0].mxu0 %v4889
        %v5196 = vpop.f32.mrb[0].mxu0
        %v5197 = vadd.f32 %v5036, %v5196
        %v5198 = vpop.f32.mrb[0].mxu0
        %v5199 = vadd.f32 %v5038, %v5198
        %5200 = vmatprep.mubr.f32.mxu0 0.0
        %5201 = vmatmul.mubr.f32.gmra.mrb[0].mxu0 %v4892
        %v5202 = vpop.f32.mrb[0].mxu0
        %v5203 = vadd.f32 %v5042, %v5202
        %v5204 = vpop.f32.mrb[0].mxu0
        %v5205 = vadd.f32 %v5044, %v5204
        %5206 = vmatprep.mubr.f32.mxu0 0.0
        %5207 = vmatmul.mubr.f32.gmra.mrb[0].mxu0 %v4895
        %v5208 = vpop.f32.mrb[0].mxu0
        %v5209 = vadd.f32 %v5048, %v5208
        %v5210 = vpop.f32.mrb[0].mxu0
        %v5211 = vadd.f32 %v5050, %v5210
        %5212 = vmatprep.mubr.f32.mxu0 0.0
        %5213 = vmatmul.mubr.f32.gmra.mrb[0].mxu0 %v4898
        %v5214 = vpop.f32.mrb[0].mxu0
        %v5215 = vadd.f32 %v5054, %v5214
        %v5216 = vpop.f32.mrb[0].mxu0
        %v5217 = vadd.f32 %v5056, %v5216
        %5218 = vmatprep.mubr.f32.mxu0 0.0
        %5219 = vmatmul.mubr.f32.gmra.mrb[0].mxu0 %v4901
        %v5220 = vpop.f32.mrb[0].mxu0
        %v5221 = vadd.f32 %v5060, %v5220
        %v5222 = vpop.f32.mrb[0].mxu0
        %v5223 = vadd.f32 %v5062, %v5222
        %5224 = vdwg.mxu0
        %5225 = vmatprep.subr.mxu0 %v4713
        %5226 = vmatpush1.msra.mxu0 %v4712
        %5227 = vmatprep.subr.mxu0 %v4717
        %5228 = vmatpush1.msra.mxu0 %v4716
        %5229 = vmatprep.subr.mxu0 %v4721
        %5230 = vmatpush1.msra.mxu0 %v4720
        %5231 = vmatprep.subr.mxu0 %v4725
        %5232 = vmatpush1.msra.mxu0 %v4724
        %5233 = vmatprep.subr.mxu0 %v4729
        %5234 = vmatpush1.msra.mxu0 %v4728
        %5235 = vmatprep.subr.mxu0 %v4733
        %5236 = vmatpush1.msra.mxu0 %v4732
        %5237 = vmatprep.subr.mxu0 %v4737
        %5238 = vmatpush1.msra.mxu0 %v4736
        %5239 = vmatprep.subr.mxu0 %v4741
        %5240 = vmatpush1.msra.mxu0 %v4740
        %5241 = vmatprep.subr.mxu0 %v4745
        %5242 = vmatpush1.msra.mxu0 %v4744
        %5243 = vmatprep.subr.mxu0 %v4749
        %5244 = vmatpush1.msra.mxu0 %v4748
        %5245 = vmatprep.subr.mxu0 %v4753
        %5246 = vmatpush1.msra.mxu0 %v4752
        %5247 = vmatprep.subr.mxu0 %v4757
        %5248 = vmatpush1.msra.mxu0 %v4756
        %5249 = vmatprep.subr.mxu0 %v4761
        %5250 = vmatpush1.msra.mxu0 %v4760
        %5251 = vmatprep.subr.mxu0 %v4765
        %5252 = vmatpush1.msra.mxu0 %v4764
        %5253 = vmatprep.subr.mxu0 %v4769
        %5254 = vmatpush1.msra.mxu0 %v4768
        %5255 = vmatprep.subr.mxu0 %v4773
        %5256 = vmatpush1.msra.mxu0 %v4772
        %5257 = vmatprep.subr.mxu0 %v4777
        %5258 = vmatpush1.msra.mxu0 %v4776
        %5259 = vmatprep.subr.mxu0 %v4781
        %5260 = vmatpush1.msra.mxu0 %v4780
        %5261 = vmatprep.subr.mxu0 %v4785
        %5262 = vmatpush1.msra.mxu0 %v4784
        %5263 = vmatprep.subr.mxu0 %v4789
        %5264 = vmatpush1.msra.mxu0 %v4788
        %5265 = vmatprep.subr.mxu0 %v4793
        %5266 = vmatpush1.msra.mxu0 %v4792
        %5267 = vmatprep.subr.mxu0 %v4797
        %5268 = vmatpush1.msra.mxu0 %v4796
        %5269 = vmatprep.subr.mxu0 %v4801
        %5270 = vmatpush1.msra.mxu0 %v4800
        %5271 = vmatprep.subr.mxu0 %v4805
        %5272 = vmatpush1.msra.mxu0 %v4804
        %5273 = vmatprep.subr.mxu0 %v4809
        %5274 = vmatpush1.msra.mxu0 %v4808
        %5275 = vmatprep.subr.mxu0 %v4813
        %5276 = vmatpush1.msra.mxu0 %v4812
        %5277 = vmatprep.subr.mxu0 %v4817
        %5278 = vmatpush1.msra.mxu0 %v4816
        %5279 = vmatprep.subr.mxu0 %v4821
        %5280 = vmatpush1.msra.mxu0 %v4820
        %5281 = vmatprep.subr.mxu0 %v4825
        %5282 = vmatpush1.msra.mxu0 %v4824
        %5283 = vmatprep.subr.mxu0 %v4829
        %5284 = vmatpush1.msra.mxu0 %v4828
        %5285 = vmatprep.subr.mxu0 %v4833
        %5286 = vmatpush1.msra.mxu0 %v4832
        %5287 = vmatprep.subr.mxu0 %v4837
        %5288 = vmatpush1.msra.mxu0 %v4836
        %5289 = vmatprep.mubr.f32.mxu0 %v4518
        %5290 = vmatmul.mubr.f32.gmra.mrb[0].mxu0 %v4517
        %v5291 = vpop.f32.mrb[0].mxu0
        %v5292 = vadd.f32 0.0, %v5291
        %v5293 = vpop.f32.mrb[0].mxu0
        %v5294 = vadd.f32 0.0, %v5293
        %5295 = vmatprep.mubr.f32.mxu0 %v4521
        %5296 = vmatmul.mubr.f32.gmra.mrb[0].mxu0 %v4520
        %v5297 = vpop.f32.mrb[0].mxu0
        %v5298 = vadd.f32 0.0, %v5297
        %v5299 = vpop.f32.mrb[0].mxu0
        %v5300 = vadd.f32 0.0, %v5299
        %5301 = vmatprep.mubr.f32.mxu0 %v4524
        %5302 = vmatmul.mubr.f32.gmra.mrb[0].mxu0 %v4523
        %v5303 = vpop.f32.mrb[0].mxu0
        %v5304 = vadd.f32 0.0, %v5303
        %v5305 = vpop.f32.mrb[0].mxu0
        %v5306 = vadd.f32 0.0, %v5305
        %5307 = vmatprep.mubr.f32.mxu0 %v4527
        %5308 = vmatmul.mubr.f32.gmra.mrb[0].mxu0 %v4526
        %v5309 = vpop.f32.mrb[0].mxu0
        %v5310 = vadd.f32 0.0, %v5309
        %v5311 = vpop.f32.mrb[0].mxu0
        %v5312 = vadd.f32 0.0, %v5311
        %5313 = vmatprep.mubr.f32.mxu0 %v4530
        %5314 = vmatmul.mubr.f32.gmra.mrb[0].mxu0 %v4529
        %v5315 = vpop.f32.mrb[0].mxu0
        %v5316 = vadd.f32 0.0, %v5315
        %v5317 = vpop.f32.mrb[0].mxu0
        %v5318 = vadd.f32 0.0, %v5317
        %5319 = vmatprep.mubr.f32.mxu0 %v4533
        %5320 = vmatmul.mubr.f32.gmra.mrb[0].mxu0 %v4532
        %v5321 = vpop.f32.mrb[0].mxu0
        %v5322 = vadd.f32 0.0, %v5321
        %v5323 = vpop.f32.mrb[0].mxu0
        %v5324 = vadd.f32 0.0, %v5323
        %5325 = vmatprep.mubr.f32.mxu0 %v4536
        %5326 = vmatmul.mubr.f32.gmra.mrb[0].mxu0 %v4535
        %v5327 = vpop.f32.mrb[0].mxu0
        %v5328 = vadd.f32 0.0, %v5327
        %v5329 = vpop.f32.mrb[0].mxu0
        %v5330 = vadd.f32 0.0, %v5329
        %5331 = vmatprep.mubr.f32.mxu0 %v4539
        %5332 = vmatmul.mubr.f32.gmra.mrb[0].mxu0 %v4538
        %v5333 = vpop.f32.mrb[0].mxu0
        %v5334 = vadd.f32 0.0, %v5333
        %v5335 = vpop.f32.mrb[0].mxu0
        %v5336 = vadd.f32 0.0, %v5335
        %5337 = vmatprep.mubr.f32.mxu0 %v4542
        %5338 = vmatmul.mubr.f32.gmra.mrb[0].mxu0 %v4541
        %v5339 = vpop.f32.mrb[0].mxu0
        %v5340 = vadd.f32 0.0, %v5339
        %v5341 = vpop.f32.mrb[0].mxu0
        %v5342 = vadd.f32 0.0, %v5341
        %5343 = vmatprep.mubr.f32.mxu0 %v4545
        %5344 = vmatmul.mubr.f32.gmra.mrb[0].mxu0 %v4544
        %v5345 = vpop.f32.mrb[0].mxu0
        %v5346 = vadd.f32 0.0, %v5345
        %v5347 = vpop.f32.mrb[0].mxu0
        %v5348 = vadd.f32 0.0, %v5347
        %5349 = vmatprep.mubr.f32.mxu0 %v4548
        %5350 = vmatmul.mubr.f32.gmra.mrb[0].mxu0 %v4547
        %v5351 = vpop.f32.mrb[0].mxu0
        %v5352 = vadd.f32 0.0, %v5351
        %v5353 = vpop.f32.mrb[0].mxu0
        %v5354 = vadd.f32 0.0, %v5353
        %5355 = vmatprep.mubr.f32.mxu0 %v4551
        %5356 = vmatmul.mubr.f32.gmra.mrb[0].mxu0 %v4550
        %v5357 = vpop.f32.mrb[0].mxu0
        %v5358 = vadd.f32 0.0, %v5357
        %v5359 = vpop.f32.mrb[0].mxu0
        %v5360 = vadd.f32 0.0, %v5359
        %5361 = vmatprep.mubr.f32.mxu0 %v4554
        %5362 = vmatmul.mubr.f32.gmra.mrb[0].mxu0 %v4553
        %v5363 = vpop.f32.mrb[0].mxu0
        %v5364 = vadd.f32 0.0, %v5363
        %v5365 = vpop.f32.mrb[0].mxu0
        %v5366 = vadd.f32 0.0, %v5365
        %5367 = vmatprep.mubr.f32.mxu0 %v4557
        %5368 = vmatmul.mubr.f32.gmra.mrb[0].mxu0 %v4556
        %v5369 = vpop.f32.mrb[0].mxu0
        %v5370 = vadd.f32 0.0, %v5369
        %v5371 = vpop.f32.mrb[0].mxu0
        %v5372 = vadd.f32 0.0, %v5371
        %5373 = vmatprep.mubr.f32.mxu0 %v4560
        %5374 = vmatmul.mubr.f32.gmra.mrb[0].mxu0 %v4559
        %v5375 = vpop.f32.mrb[0].mxu0
        %v5376 = vadd.f32 0.0, %v5375
        %v5377 = vpop.f32.mrb[0].mxu0
        %v5378 = vadd.f32 0.0, %v5377
        %5379 = vmatprep.mubr.f32.mxu0 %v4563
        %5380 = vmatmul.mubr.f32.gmra.mrb[0].mxu0 %v4562
        %v5381 = vpop.f32.mrb[0].mxu0
        %v5382 = vadd.f32 0.0, %v5381
        %v5383 = vpop.f32.mrb[0].mxu0
        %v5384 = vadd.f32 0.0, %v5383
        %5385 = vdwg.mxu0
        %5386 = vmatprep.subr.mxu0 %v4841
        %5387 = vmatpush1.msra.mxu0 %v4840
        %5388 = vmatprep.subr.mxu0 %v4845
        %5389 = vmatpush1.msra.mxu0 %v4844
        %5390 = vmatprep.subr.mxu0 %v4849
        %5391 = vmatpush1.msra.mxu0 %v4848
        %5392 = vmatprep.subr.mxu0 %v4853
        %5393 = vmatpush1.msra.mxu0 %v4852
        %5394 = vmatprep.subr.mxu0 0.0
        %5395 = vmatpush1.msra.mxu0 0.0
        %5396 = vmatprep.subr.mxu0 0.0
        %5397 = vmatpush1.msra.mxu0 0.0
        %5398 = vmatprep.subr.mxu0 0.0
        %5399 = vmatpush1.msra.mxu0 0.0
        %5400 = vmatprep.subr.mxu0 0.0
        %5401 = vmatpush1.msra.mxu0 0.0
        %5402 = vmatprep.subr.mxu0 0.0
        %5403 = vmatpush1.msra.mxu0 0.0
        %5404 = vmatprep.subr.mxu0 0.0
        %5405 = vmatpush1.msra.mxu0 0.0
        %5406 = vmatprep.subr.mxu0 0.0
        %5407 = vmatpush1.msra.mxu0 0.0
        %5408 = vmatprep.subr.mxu0 0.0
        %5409 = vmatpush1.msra.mxu0 0.0
        %5410 = vmatprep.subr.mxu0 0.0
        %5411 = vmatpush1.msra.mxu0 0.0
        %5412 = vmatprep.subr.mxu0 0.0
        %5413 = vmatpush1.msra.mxu0 0.0
        %5414 = vmatprep.subr.mxu0 0.0
        %5415 = vmatpush1.msra.mxu0 0.0
        %5416 = vmatprep.subr.mxu0 0.0
        %5417 = vmatpush1.msra.mxu0 0.0
        %5418 = vmatprep.subr.mxu0 0.0
        %5419 = vmatpush1.msra.mxu0 0.0
        %5420 = vmatprep.subr.mxu0 0.0
        %5421 = vmatpush1.msra.mxu0 0.0
        %5422 = vmatprep.subr.mxu0 0.0
        %5423 = vmatpush1.msra.mxu0 0.0
        %5424 = vmatprep.subr.mxu0 0.0
        %5425 = vmatpush1.msra.mxu0 0.0
        %5426 = vmatprep.subr.mxu0 0.0
        %5427 = vmatpush1.msra.mxu0 0.0
        %5428 = vmatprep.subr.mxu0 0.0
        %5429 = vmatpush1.msra.mxu0 0.0
        %5430 = vmatprep.subr.mxu0 0.0
        %5431 = vmatpush1.msra.mxu0 0.0
        %5432 = vmatprep.subr.mxu0 0.0
        %5433 = vmatpush1.msra.mxu0 0.0
        %5434 = vmatprep.subr.mxu0 0.0
        %5435 = vmatpush1.msra.mxu0 0.0
        %5436 = vmatprep.subr.mxu0 0.0
        %5437 = vmatpush1.msra.mxu0 0.0
        %5438 = vmatprep.subr.mxu0 0.0
        %5439 = vmatpush1.msra.mxu0 0.0
        %5440 = vmatprep.subr.mxu0 0.0
        %5441 = vmatpush1.msra.mxu0 0.0
        %5442 = vmatprep.subr.mxu0 0.0
        %5443 = vmatpush1.msra.mxu0 0.0
        %5444 = vmatprep.subr.mxu0 0.0
        %5445 = vmatpush1.msra.mxu0 0.0
        %5446 = vmatprep.subr.mxu0 0.0
        %5447 = vmatpush1.msra.mxu0 0.0
        %5448 = vmatprep.subr.mxu0 0.0
        %5449 = vmatpush1.msra.mxu0 0.0
        %5450 = vmatprep.mubr.f32.mxu0 0.0
        %5451 = vmatmul.mubr.f32.gmra.mrb[0].mxu0 %v4856
        %v5452 = vpop.f32.mrb[0].mxu0
        %v5453 = vadd.f32 %v5292, %v5452
        %v5454 = vpop.f32.mrb[0].mxu0
        %v5455 = vadd.f32 %v5294, %v5454
        %5456 = vmatprep.mubr.f32.mxu0 0.0
        %5457 = vmatmul.mubr.f32.gmra.mrb[0].mxu0 %v4859
        %v5458 = vpop.f32.mrb[0].mxu0
        %v5459 = vadd.f32 %v5298, %v5458
        %v5460 = vpop.f32.mrb[0].mxu0
        %v5461 = vadd.f32 %v5300, %v5460
        %5462 = vmatprep.mubr.f32.mxu0 0.0
        %5463 = vmatmul.mubr.f32.gmra.mrb[0].mxu0 %v4862
        %v5464 = vpop.f32.mrb[0].mxu0
        %v5465 = vadd.f32 %v5304, %v5464
        %v5466 = vpop.f32.mrb[0].mxu0
        %v5467 = vadd.f32 %v5306, %v5466
        %5468 = vmatprep.mubr.f32.mxu0 0.0
        %5469 = vmatmul.mubr.f32.gmra.mrb[0].mxu0 %v4865
        %v5470 = vpop.f32.mrb[0].mxu0
        %v5471 = vadd.f32 %v5310, %v5470
        %v5472 = vpop.f32.mrb[0].mxu0
        %v5473 = vadd.f32 %v5312, %v5472
        %5474 = vmatprep.mubr.f32.mxu0 0.0
        %5475 = vmatmul.mubr.f32.gmra.mrb[0].mxu0 %v4868
        %v5476 = vpop.f32.mrb[0].mxu0
        %v5477 = vadd.f32 %v5316, %v5476
        %v5478 = vpop.f32.mrb[0].mxu0
        %v5479 = vadd.f32 %v5318, %v5478
        %5480 = vmatprep.mubr.f32.mxu0 0.0
        %5481 = vmatmul.mubr.f32.gmra.mrb[0].mxu0 %v4871
        %v5482 = vpop.f32.mrb[0].mxu0
        %v5483 = vadd.f32 %v5322, %v5482
        %v5484 = vpop.f32.mrb[0].mxu0
        %v5485 = vadd.f32 %v5324, %v5484
        %5486 = vmatprep.mubr.f32.mxu0 0.0
        %5487 = vmatmul.mubr.f32.gmra.mrb[0].mxu0 %v4874
        %v5488 = vpop.f32.mrb[0].mxu0
        %v5489 = vadd.f32 %v5328, %v5488
        %v5490 = vpop.f32.mrb[0].mxu0
        %v5491 = vadd.f32 %v5330, %v5490
        %5492 = vmatprep.mubr.f32.mxu0 0.0
        %5493 = vmatmul.mubr.f32.gmra.mrb[0].mxu0 %v4877
        %v5494 = vpop.f32.mrb[0].mxu0
        %v5495 = vadd.f32 %v5334, %v5494
        %v5496 = vpop.f32.mrb[0].mxu0
        %v5497 = vadd.f32 %v5336, %v5496
        %5498 = vmatprep.mubr.f32.mxu0 0.0
        %5499 = vmatmul.mubr.f32.gmra.mrb[0].mxu0 %v4880
        %v5500 = vpop.f32.mrb[0].mxu0
        %v5501 = vadd.f32 %v5340, %v5500
        %v5502 = vpop.f32.mrb[0].mxu0
        %v5503 = vadd.f32 %v5342, %v5502
        %5504 = vmatprep.mubr.f32.mxu0 0.0
        %5505 = vmatmul.mubr.f32.gmra.mrb[0].mxu0 %v4883
        %v5506 = vpop.f32.mrb[0].mxu0
        %v5507 = vadd.f32 %v5346, %v5506
        %v5508 = vpop.f32.mrb[0].mxu0
        %v5509 = vadd.f32 %v5348, %v5508
        %5510 = vmatprep.mubr.f32.mxu0 0.0
        %5511 = vmatmul.mubr.f32.gmra.mrb[0].mxu0 %v4886
        %v5512 = vpop.f32.mrb[0].mxu0
        %v5513 = vadd.f32 %v5352, %v5512
        %v5514 = vpop.f32.mrb[0].mxu0
        %v5515 = vadd.f32 %v5354, %v5514
        %5516 = vmatprep.mubr.f32.mxu0 0.0
        %5517 = vmatmul.mubr.f32.gmra.mrb[0].mxu0 %v4889
        %v5518 = vpop.f32.mrb[0].mxu0
        %v5519 = vadd.f32 %v5358, %v5518
        %v5520 = vpop.f32.mrb[0].mxu0
        %v5521 = vadd.f32 %v5360, %v5520
        %5522 = vmatprep.mubr.f32.mxu0 0.0
        %5523 = vmatmul.mubr.f32.gmra.mrb[0].mxu0 %v4892
        %v5524 = vpop.f32.mrb[0].mxu0
        %v5525 = vadd.f32 %v5364, %v5524
        %v5526 = vpop.f32.mrb[0].mxu0
        %v5527 = vadd.f32 %v5366, %v5526
        %5528 = vmatprep.mubr.f32.mxu0 0.0
        %5529 = vmatmul.mubr.f32.gmra.mrb[0].mxu0 %v4895
        %v5530 = vpop.f32.mrb[0].mxu0
        %v5531 = vadd.f32 %v5370, %v5530
        %v5532 = vpop.f32.mrb[0].mxu0
        %v5533 = vadd.f32 %v5372, %v5532
        %5534 = vmatprep.mubr.f32.mxu0 0.0
        %5535 = vmatmul.mubr.f32.gmra.mrb[0].mxu0 %v4898
        %v5536 = vpop.f32.mrb[0].mxu0
        %v5537 = vadd.f32 %v5376, %v5536
        %v5538 = vpop.f32.mrb[0].mxu0
        %v5539 = vadd.f32 %v5378, %v5538
        %5540 = vmatprep.mubr.f32.mxu0 0.0
        %5541 = vmatmul.mubr.f32.gmra.mrb[0].mxu0 %v4901
        %v5542 = vpop.f32.mrb[0].mxu0
        %v5543 = vadd.f32 %v5382, %v5542
        %v5544 = vpop.f32.mrb[0].mxu0
        %v5545 = vadd.f32 %v5384, %v5544
        %5546 = vdwg.mxu0
        %v5548 = vsel %vm4854, 0.0, 0
        %5550 = vmatprep.subr.mxu0 %v4566
        %5551 = vmatpush1.msra.mxu0 %v4565
        %5552 = vmatprep.subr.mxu0 %v4570
        %5553 = vmatpush1.msra.mxu0 %v4569
        %5554 = vmatprep.subr.mxu0 %v4574
        %5555 = vmatpush1.msra.mxu0 %v4573
        %5556 = vmatprep.subr.mxu0 %v4578
        %5557 = vmatpush1.msra.mxu0 %v4577
        %5558 = vmatprep.subr.mxu0 %v4582
        %5559 = vmatpush1.msra.mxu0 %v4581
        %5560 = vmatprep.subr.mxu0 %v4586
        %5561 = vmatpush1.msra.mxu0 %v4585
        %5562 = vmatprep.subr.mxu0 %v4590
        %5563 = vmatpush1.msra.mxu0 %v4589
        %5564 = vmatprep.subr.mxu0 %v4594
        %5565 = vmatpush1.msra.mxu0 %v4593
        %5566 = vmatprep.subr.mxu0 %v4598
        %5567 = vmatpush1.msra.mxu0 %v4597
        %5568 = vmatprep.subr.mxu0 %v4602
        %5569 = vmatpush1.msra.mxu0 %v4601
        %5570 = vmatprep.subr.mxu0 %v4606
        %5571 = vmatpush1.msra.mxu0 %v4605
        %5572 = vmatprep.subr.mxu0 %v4610
        %5573 = vmatpush1.msra.mxu0 %v4609
        %5574 = vmatprep.subr.mxu0 %v4614
        %5575 = vmatpush1.msra.mxu0 %v4613
        %5576 = vmatprep.subr.mxu0 %v4618
        %5577 = vmatpush1.msra.mxu0 %v4617
        %5578 = vmatprep.subr.mxu0 %v4622
        %5579 = vmatpush1.msra.mxu0 %v4621
        %5580 = vmatprep.subr.mxu0 %v4626
        %5581 = vmatpush1.msra.mxu0 %v4625
        %5582 = vmatprep.subr.mxu0 %v4630
        %5583 = vmatpush1.msra.mxu0 %v4629
        %5584 = vmatprep.subr.mxu0 %v4634
        %5585 = vmatpush1.msra.mxu0 %v4633
        %5586 = vmatprep.subr.mxu0 %v4638
        %5587 = vmatpush1.msra.mxu0 %v4637
        %5588 = vmatprep.subr.mxu0 %v4642
        %5589 = vmatpush1.msra.mxu0 %v4641
        %5590 = vmatprep.subr.mxu0 %v4646
        %5591 = vmatpush1.msra.mxu0 %v4645
        %5592 = vmatprep.subr.mxu0 %v4650
        %5593 = vmatpush1.msra.mxu0 %v4649
        %5594 = vmatprep.subr.mxu0 %v4654
        %5595 = vmatpush1.msra.mxu0 %v4653
        %5596 = vmatprep.subr.mxu0 %v4658
        %5597 = vmatpush1.msra.mxu0 %v4657
        %5598 = vmatprep.subr.mxu0 %v4662
        %5599 = vmatpush1.msra.mxu0 %v4661
        %5600 = vmatprep.subr.mxu0 %v4666
        %5601 = vmatpush1.msra.mxu0 %v4665
        %5602 = vmatprep.subr.mxu0 %v4670
        %5603 = vmatpush1.msra.mxu0 %v4669
        %5604 = vmatprep.subr.mxu0 %v4674
        %5605 = vmatpush1.msra.mxu0 %v4673
        %5606 = vmatprep.subr.mxu0 %v4678
        %5607 = vmatpush1.msra.mxu0 %v4677
        %5608 = vmatprep.subr.mxu0 %v4682
        %5609 = vmatpush1.msra.mxu0 %v4681
        %5610 = vmatprep.subr.mxu0 %v4686
        %5611 = vmatpush1.msra.mxu0 %v4685
        %5612 = vmatprep.subr.mxu0 %v4690
        %5613 = vmatpush1.msra.mxu0 %v4689
        %5614 = vmatprep.mubr.f32.mxu0 0.0
        %5615 = vmatmul.mubr.f32.gmra.mrb[0].mxu0 0.0
        %v5616 = vpop.f32.mrb[0].mxu0
        %v5617 = vadd.f32 %v5131, %v5616
        %v5618 = vpop.f32.mrb[0].mxu0
        %v5619 = vadd.f32 %v5133, %v5618
        %5620 = vmatprep.mubr.f32.mxu0 %v4518
        %5621 = vmatmul.mubr.f32.gmra.mrb[0].mxu0 %v4517
        %v5622 = vpop.f32.mrb[0].mxu0
        %v5623 = vadd.f32 %v5137, %v5622
        %v5624 = vpop.f32.mrb[0].mxu0
        %v5625 = vadd.f32 %v5139, %v5624
        %5626 = vmatprep.mubr.f32.mxu0 %v4521
        %5627 = vmatmul.mubr.f32.gmra.mrb[0].mxu0 %v4520
        %v5628 = vpop.f32.mrb[0].mxu0
        %v5629 = vadd.f32 %v5143, %v5628
        %v5630 = vpop.f32.mrb[0].mxu0
        %v5631 = vadd.f32 %v5145, %v5630
        %5632 = vmatprep.mubr.f32.mxu0 %v4524
        %5633 = vmatmul.mubr.f32.gmra.mrb[0].mxu0 %v4523
        %v5634 = vpop.f32.mrb[0].mxu0
        %v5635 = vadd.f32 %v5149, %v5634
        %v5636 = vpop.f32.mrb[0].mxu0
        %v5637 = vadd.f32 %v5151, %v5636
        %5638 = vmatprep.mubr.f32.mxu0 %v4527
        %5639 = vmatmul.mubr.f32.gmra.mrb[0].mxu0 %v4526
        %v5640 = vpop.f32.mrb[0].mxu0
        %v5641 = vadd.f32 %v5155, %v5640
        %v5642 = vpop.f32.mrb[0].mxu0
        %v5643 = vadd.f32 %v5157, %v5642
        %5644 = vmatprep.mubr.f32.mxu0 %v4530
        %5645 = vmatmul.mubr.f32.gmra.mrb[0].mxu0 %v4529
        %v5646 = vpop.f32.mrb[0].mxu0
        %v5647 = vadd.f32 %v5161, %v5646
        %v5648 = vpop.f32.mrb[0].mxu0
        %v5649 = vadd.f32 %v5163, %v5648
        %5650 = vmatprep.mubr.f32.mxu0 %v4533
        %5651 = vmatmul.mubr.f32.gmra.mrb[0].mxu0 %v4532
        %v5652 = vpop.f32.mrb[0].mxu0
        %v5653 = vadd.f32 %v5167, %v5652
        %v5654 = vpop.f32.mrb[0].mxu0
        %v5655 = vadd.f32 %v5169, %v5654
        %5656 = vmatprep.mubr.f32.mxu0 %v4536
        %5657 = vmatmul.mubr.f32.gmra.mrb[0].mxu0 %v4535
        %v5658 = vpop.f32.mrb[0].mxu0
        %v5659 = vadd.f32 %v5173, %v5658
        %v5660 = vpop.f32.mrb[0].mxu0
        %v5661 = vadd.f32 %v5175, %v5660
        %5662 = vmatprep.mubr.f32.mxu0 %v4539
        %5663 = vmatmul.mubr.f32.gmra.mrb[0].mxu0 %v4538
        %v5664 = vpop.f32.mrb[0].mxu0
        %v5665 = vadd.f32 %v5179, %v5664
        %v5666 = vpop.f32.mrb[0].mxu0
        %v5667 = vadd.f32 %v5181, %v5666
        %5668 = vmatprep.mubr.f32.mxu0 %v4542
        %5669 = vmatmul.mubr.f32.gmra.mrb[0].mxu0 %v4541
        %v5670 = vpop.f32.mrb[0].mxu0
        %v5671 = vadd.f32 %v5185, %v5670
        %v5672 = vpop.f32.mrb[0].mxu0
        %v5673 = vadd.f32 %v5187, %v5672
        %5674 = vmatprep.mubr.f32.mxu0 %v4545
        %5675 = vmatmul.mubr.f32.gmra.mrb[0].mxu0 %v4544
        %v5676 = vpop.f32.mrb[0].mxu0
        %v5677 = vadd.f32 %v5191, %v5676
        %v5678 = vpop.f32.mrb[0].mxu0
        %v5679 = vadd.f32 %v5193, %v5678
        %5680 = vmatprep.mubr.f32.mxu0 %v4548
        %5681 = vmatmul.mubr.f32.gmra.mrb[0].mxu0 %v4547
        %v5682 = vpop.f32.mrb[0].mxu0
        %v5683 = vadd.f32 %v5197, %v5682
        %v5684 = vpop.f32.mrb[0].mxu0
        %v5685 = vadd.f32 %v5199, %v5684
        %5686 = vmatprep.mubr.f32.mxu0 %v4551
        %5687 = vmatmul.mubr.f32.gmra.mrb[0].mxu0 %v4550
        %v5688 = vpop.f32.mrb[0].mxu0
        %v5689 = vadd.f32 %v5203, %v5688
        %v5690 = vpop.f32.mrb[0].mxu0
        %v5691 = vadd.f32 %v5205, %v5690
        %5692 = vmatprep.mubr.f32.mxu0 %v4554
        %5693 = vmatmul.mubr.f32.gmra.mrb[0].mxu0 %v4553
        %v5694 = vpop.f32.mrb[0].mxu0
        %v5695 = vadd.f32 %v5209, %v5694
        %v5696 = vpop.f32.mrb[0].mxu0
        %v5697 = vadd.f32 %v5211, %v5696
        %5698 = vmatprep.mubr.f32.mxu0 %v4557
        %5699 = vmatmul.mubr.f32.gmra.mrb[0].mxu0 %v4556
        %v5700 = vpop.f32.mrb[0].mxu0
        %v5701 = vadd.f32 %v5215, %v5700
        %v5702 = vpop.f32.mrb[0].mxu0
        %v5703 = vadd.f32 %v5217, %v5702
        %5704 = vmatprep.mubr.f32.mxu0 %v4560
        %5705 = vmatmul.mubr.f32.gmra.mrb[0].mxu0 %v4559
        %v5706 = vpop.f32.mrb[0].mxu0
        %v5707 = vadd.f32 %v5221, %v5706
        %v5708 = vpop.f32.mrb[0].mxu0
        %v5709 = vadd.f32 %v5223, %v5708
        %5710 = vdwg.mxu0
        %5711 = vmatprep.subr.mxu0 %v4694
        %5712 = vmatpush1.msra.mxu0 %v4693
        %5713 = vmatprep.subr.mxu0 %v4698
        %5714 = vmatpush1.msra.mxu0 %v4697
        %5715 = vmatprep.subr.mxu0 %v4702
        %5716 = vmatpush1.msra.mxu0 %v4701
        %5717 = vmatprep.subr.mxu0 %v4706
        %5718 = vmatpush1.msra.mxu0 %v4705
        %5719 = vmatprep.subr.mxu0 0.0
        %5720 = vmatpush1.msra.mxu0 0.0
        %5721 = vmatprep.subr.mxu0 0.0
        %5722 = vmatpush1.msra.mxu0 0.0
        %5723 = vmatprep.subr.mxu0 0.0
        %5724 = vmatpush1.msra.mxu0 0.0
        %5725 = vmatprep.subr.mxu0 0.0
        %5726 = vmatpush1.msra.mxu0 0.0
        %5727 = vmatprep.subr.mxu0 0.0
        %5728 = vmatpush1.msra.mxu0 0.0
        %5729 = vmatprep.subr.mxu0 0.0
        %5730 = vmatpush1.msra.mxu0 0.0
        %5731 = vmatprep.subr.mxu0 0.0
        %5732 = vmatpush1.msra.mxu0 0.0
        %5733 = vmatprep.subr.mxu0 0.0
        %5734 = vmatpush1.msra.mxu0 0.0
        %5735 = vmatprep.subr.mxu0 0.0
        %5736 = vmatpush1.msra.mxu0 0.0
        %5737 = vmatprep.subr.mxu0 0.0
        %5738 = vmatpush1.msra.mxu0 0.0
        %5739 = vmatprep.subr.mxu0 0.0
        %5740 = vmatpush1.msra.mxu0 0.0
        %5741 = vmatprep.subr.mxu0 0.0
        %5742 = vmatpush1.msra.mxu0 0.0
        %5743 = vmatprep.subr.mxu0 0.0
        %5744 = vmatpush1.msra.mxu0 0.0
        %5745 = vmatprep.subr.mxu0 0.0
        %5746 = vmatpush1.msra.mxu0 0.0
        %5747 = vmatprep.subr.mxu0 0.0
        %5748 = vmatpush1.msra.mxu0 0.0
        %5749 = vmatprep.subr.mxu0 0.0
        %5750 = vmatpush1.msra.mxu0 0.0
        %5751 = vmatprep.subr.mxu0 0.0
        %5752 = vmatpush1.msra.mxu0 0.0
        %5753 = vmatprep.subr.mxu0 0.0
        %5754 = vmatpush1.msra.mxu0 0.0
        %5755 = vmatprep.subr.mxu0 0.0
        %5756 = vmatpush1.msra.mxu0 0.0
        %5757 = vmatprep.subr.mxu0 0.0
        %5758 = vmatpush1.msra.mxu0 0.0
        %5759 = vmatprep.subr.mxu0 0.0
        %5760 = vmatpush1.msra.mxu0 0.0
        %5761 = vmatprep.subr.mxu0 0.0
        %5762 = vmatpush1.msra.mxu0 0.0
        %5763 = vmatprep.subr.mxu0 0.0
        %5764 = vmatpush1.msra.mxu0 0.0
        %5765 = vmatprep.subr.mxu0 0.0
        %5766 = vmatpush1.msra.mxu0 0.0
        %5767 = vmatprep.subr.mxu0 0.0
        %5768 = vmatpush1.msra.mxu0 0.0
        %5769 = vmatprep.subr.mxu0 0.0
        %5770 = vmatpush1.msra.mxu0 0.0
        %5771 = vmatprep.subr.mxu0 0.0
        %5772 = vmatpush1.msra.mxu0 0.0
        %5773 = vmatprep.subr.mxu0 0.0
        %5774 = vmatpush1.msra.mxu0 0.0
        %5775 = vmatprep.mubr.f32.mxu0 0.0
        %5776 = vmatmul.mubr.f32.gmra.mrb[0].mxu0 %v5548
        %v5777 = vpop.f32.mrb[0].mxu0
        %v5778 = vadd.f32 %v5617, %v5777
        %v5779 = vpop.f32.mrb[0].mxu0
        %v5780 = vadd.f32 %v5619, %v5779
        %5781 = vmatprep.mubr.f32.mxu0 0.0
        %5782 = vmatmul.mubr.f32.gmra.mrb[0].mxu0 %v4856
        %v5783 = vpop.f32.mrb[0].mxu0
        %v5784 = vadd.f32 %v5623, %v5783
        %v5785 = vpop.f32.mrb[0].mxu0
        %v5786 = vadd.f32 %v5625, %v5785
        %5787 = vmatprep.mubr.f32.mxu0 0.0
        %5788 = vmatmul.mubr.f32.gmra.mrb[0].mxu0 %v4859
        %v5789 = vpop.f32.mrb[0].mxu0
        %v5790 = vadd.f32 %v5629, %v5789
        %v5791 = vpop.f32.mrb[0].mxu0
        %v5792 = vadd.f32 %v5631, %v5791
        %5793 = vmatprep.mubr.f32.mxu0 0.0
        %5794 = vmatmul.mubr.f32.gmra.mrb[0].mxu0 %v4862
        %v5795 = vpop.f32.mrb[0].mxu0
        %v5796 = vadd.f32 %v5635, %v5795
        %v5797 = vpop.f32.mrb[0].mxu0
        %v5798 = vadd.f32 %v5637, %v5797
        %5799 = vmatprep.mubr.f32.mxu0 0.0
        %5800 = vmatmul.mubr.f32.gmra.mrb[0].mxu0 %v4865
        %v5801 = vpop.f32.mrb[0].mxu0
        %v5802 = vadd.f32 %v5641, %v5801
        %v5803 = vpop.f32.mrb[0].mxu0
        %v5804 = vadd.f32 %v5643, %v5803
        %5805 = vmatprep.mubr.f32.mxu0 0.0
        %5806 = vmatmul.mubr.f32.gmra.mrb[0].mxu0 %v4868
        %v5807 = vpop.f32.mrb[0].mxu0
        %v5808 = vadd.f32 %v5647, %v5807
        %v5809 = vpop.f32.mrb[0].mxu0
        %v5810 = vadd.f32 %v5649, %v5809
        %5811 = vmatprep.mubr.f32.mxu0 0.0
        %5812 = vmatmul.mubr.f32.gmra.mrb[0].mxu0 %v4871
        %v5813 = vpop.f32.mrb[0].mxu0
        %v5814 = vadd.f32 %v5653, %v5813
        %v5815 = vpop.f32.mrb[0].mxu0
        %v5816 = vadd.f32 %v5655, %v5815
        %5817 = vmatprep.mubr.f32.mxu0 0.0
        %5818 = vmatmul.mubr.f32.gmra.mrb[0].mxu0 %v4874
        %v5819 = vpop.f32.mrb[0].mxu0
        %v5820 = vadd.f32 %v5659, %v5819
        %v5821 = vpop.f32.mrb[0].mxu0
        %v5822 = vadd.f32 %v5661, %v5821
        %5823 = vmatprep.mubr.f32.mxu0 0.0
        %5824 = vmatmul.mubr.f32.gmra.mrb[0].mxu0 %v4877
        %v5825 = vpop.f32.mrb[0].mxu0
        %v5826 = vadd.f32 %v5665, %v5825
        %v5827 = vpop.f32.mrb[0].mxu0
        %v5828 = vadd.f32 %v5667, %v5827
        %5829 = vmatprep.mubr.f32.mxu0 0.0
        %5830 = vmatmul.mubr.f32.gmra.mrb[0].mxu0 %v4880
        %v5831 = vpop.f32.mrb[0].mxu0
        %v5832 = vadd.f32 %v5671, %v5831
        %v5833 = vpop.f32.mrb[0].mxu0
        %v5834 = vadd.f32 %v5673, %v5833
        %5835 = vmatprep.mubr.f32.mxu0 0.0
        %5836 = vmatmul.mubr.f32.gmra.mrb[0].mxu0 %v4883
        %v5837 = vpop.f32.mrb[0].mxu0
        %v5838 = vadd.f32 %v5677, %v5837
        %v5839 = vpop.f32.mrb[0].mxu0
        %v5840 = vadd.f32 %v5679, %v5839
        %5841 = vmatprep.mubr.f32.mxu0 0.0
        %5842 = vmatmul.mubr.f32.gmra.mrb[0].mxu0 %v4886
        %v5843 = vpop.f32.mrb[0].mxu0
        %v5844 = vadd.f32 %v5683, %v5843
        %v5845 = vpop.f32.mrb[0].mxu0
        %v5846 = vadd.f32 %v5685, %v5845
        %5847 = vmatprep.mubr.f32.mxu0 0.0
        %5848 = vmatmul.mubr.f32.gmra.mrb[0].mxu0 %v4889
        %v5849 = vpop.f32.mrb[0].mxu0
        %v5850 = vadd.f32 %v5689, %v5849
        %v5851 = vpop.f32.mrb[0].mxu0
        %v5852 = vadd.f32 %v5691, %v5851
        %5853 = vmatprep.mubr.f32.mxu0 0.0
        %5854 = vmatmul.mubr.f32.gmra.mrb[0].mxu0 %v4892
        %v5855 = vpop.f32.mrb[0].mxu0
        %v5856 = vadd.f32 %v5695, %v5855
        %v5857 = vpop.f32.mrb[0].mxu0
        %v5858 = vadd.f32 %v5697, %v5857
        %5859 = vmatprep.mubr.f32.mxu0 0.0
        %5860 = vmatmul.mubr.f32.gmra.mrb[0].mxu0 %v4895
        %v5861 = vpop.f32.mrb[0].mxu0
        %v5862 = vadd.f32 %v5701, %v5861
        %v5863 = vpop.f32.mrb[0].mxu0
        %v5864 = vadd.f32 %v5703, %v5863
        %5865 = vmatprep.mubr.f32.mxu0 0.0
        %5866 = vmatmul.mubr.f32.gmra.mrb[0].mxu0 %v4898
        %v5867 = vpop.f32.mrb[0].mxu0
        %v5868 = vadd.f32 %v5707, %v5867
        %v5869 = vpop.f32.mrb[0].mxu0
        %v5870 = vadd.f32 %v5709, %v5869
        %5871 = vdwg.mxu0
        %5872 = vmatprep.subr.mxu0 %v4568
        %5873 = vmatpush1.msra.mxu0 %v4567
        %5874 = vmatprep.subr.mxu0 %v4572
        %5875 = vmatpush1.msra.mxu0 %v4571
        %5876 = vmatprep.subr.mxu0 %v4576
        %5877 = vmatpush1.msra.mxu0 %v4575
        %5878 = vmatprep.subr.mxu0 %v4580
        %5879 = vmatpush1.msra.mxu0 %v4579
        %5880 = vmatprep.subr.mxu0 %v4584
        %5881 = vmatpush1.msra.mxu0 %v4583
        %5882 = vmatprep.subr.mxu0 %v4588
        %5883 = vmatpush1.msra.mxu0 %v4587
        %5884 = vmatprep.subr.mxu0 %v4592
        %5885 = vmatpush1.msra.mxu0 %v4591
        %5886 = vmatprep.subr.mxu0 %v4596
        %5887 = vmatpush1.msra.mxu0 %v4595
        %5888 = vmatprep.subr.mxu0 %v4600
        %5889 = vmatpush1.msra.mxu0 %v4599
        %5890 = vmatprep.subr.mxu0 %v4604
        %5891 = vmatpush1.msra.mxu0 %v4603
        %5892 = vmatprep.subr.mxu0 %v4608
        %5893 = vmatpush1.msra.mxu0 %v4607
        %5894 = vmatprep.subr.mxu0 %v4612
        %5895 = vmatpush1.msra.mxu0 %v4611
        %5896 = vmatprep.subr.mxu0 %v4616
        %5897 = vmatpush1.msra.mxu0 %v4615
        %5898 = vmatprep.subr.mxu0 %v4620
        %5899 = vmatpush1.msra.mxu0 %v4619
        %5900 = vmatprep.subr.mxu0 %v4624
        %5901 = vmatpush1.msra.mxu0 %v4623
        %5902 = vmatprep.subr.mxu0 %v4628
        %5903 = vmatpush1.msra.mxu0 %v4627
        %5904 = vmatprep.subr.mxu0 %v4632
        %5905 = vmatpush1.msra.mxu0 %v4631
        %5906 = vmatprep.subr.mxu0 %v4636
        %5907 = vmatpush1.msra.mxu0 %v4635
        %5908 = vmatprep.subr.mxu0 %v4640
        %5909 = vmatpush1.msra.mxu0 %v4639
        %5910 = vmatprep.subr.mxu0 %v4644
        %5911 = vmatpush1.msra.mxu0 %v4643
        %5912 = vmatprep.subr.mxu0 %v4648
        %5913 = vmatpush1.msra.mxu0 %v4647
        %5914 = vmatprep.subr.mxu0 %v4652
        %5915 = vmatpush1.msra.mxu0 %v4651
        %5916 = vmatprep.subr.mxu0 %v4656
        %5917 = vmatpush1.msra.mxu0 %v4655
        %5918 = vmatprep.subr.mxu0 %v4660
        %5919 = vmatpush1.msra.mxu0 %v4659
        %5920 = vmatprep.subr.mxu0 %v4664
        %5921 = vmatpush1.msra.mxu0 %v4663
        %5922 = vmatprep.subr.mxu0 %v4668
        %5923 = vmatpush1.msra.mxu0 %v4667
        %5924 = vmatprep.subr.mxu0 %v4672
        %5925 = vmatpush1.msra.mxu0 %v4671
        %5926 = vmatprep.subr.mxu0 %v4676
        %5927 = vmatpush1.msra.mxu0 %v4675
        %5928 = vmatprep.subr.mxu0 %v4680
        %5929 = vmatpush1.msra.mxu0 %v4679
        %5930 = vmatprep.subr.mxu0 %v4684
        %5931 = vmatpush1.msra.mxu0 %v4683
        %5932 = vmatprep.subr.mxu0 %v4688
        %5933 = vmatpush1.msra.mxu0 %v4687
        %5934 = vmatprep.subr.mxu0 %v4692
        %5935 = vmatpush1.msra.mxu0 %v4691
        %5936 = vmatprep.mubr.f32.mxu0 0.0
        %5937 = vmatmul.mubr.f32.gmra.mrb[0].mxu0 0.0
        %v5938 = vpop.f32.mrb[0].mxu0
        %v5939 = vadd.f32 %v5453, %v5938
        %v5940 = vpop.f32.mrb[0].mxu0
        %v5941 = vadd.f32 %v5455, %v5940
        %5942 = vmatprep.mubr.f32.mxu0 %v4518
        %5943 = vmatmul.mubr.f32.gmra.mrb[0].mxu0 %v4517
        %v5944 = vpop.f32.mrb[0].mxu0
        %v5945 = vadd.f32 %v5459, %v5944
        %v5946 = vpop.f32.mrb[0].mxu0
        %v5947 = vadd.f32 %v5461, %v5946
        %5948 = vmatprep.mubr.f32.mxu0 %v4521
        %5949 = vmatmul.mubr.f32.gmra.mrb[0].mxu0 %v4520
        %v5950 = vpop.f32.mrb[0].mxu0
        %v5951 = vadd.f32 %v5465, %v5950
        %v5952 = vpop.f32.mrb[0].mxu0
        %v5953 = vadd.f32 %v5467, %v5952
        %5954 = vmatprep.mubr.f32.mxu0 %v4524
        %5955 = vmatmul.mubr.f32.gmra.mrb[0].mxu0 %v4523
        %v5956 = vpop.f32.mrb[0].mxu0
        %v5957 = vadd.f32 %v5471, %v5956
        %v5958 = vpop.f32.mrb[0].mxu0
        %v5959 = vadd.f32 %v5473, %v5958
        %5960 = vmatprep.mubr.f32.mxu0 %v4527
        %5961 = vmatmul.mubr.f32.gmra.mrb[0].mxu0 %v4526
        %v5962 = vpop.f32.mrb[0].mxu0
        %v5963 = vadd.f32 %v5477, %v5962
        %v5964 = vpop.f32.mrb[0].mxu0
        %v5965 = vadd.f32 %v5479, %v5964
        %5966 = vmatprep.mubr.f32.mxu0 %v4530
        %5967 = vmatmul.mubr.f32.gmra.mrb[0].mxu0 %v4529
        %v5968 = vpop.f32.mrb[0].mxu0
        %v5969 = vadd.f32 %v5483, %v5968
        %v5970 = vpop.f32.mrb[0].mxu0
        %v5971 = vadd.f32 %v5485, %v5970
        %5972 = vmatprep.mubr.f32.mxu0 %v4533
        %5973 = vmatmul.mubr.f32.gmra.mrb[0].mxu0 %v4532
        %v5974 = vpop.f32.mrb[0].mxu0
        %v5975 = vadd.f32 %v5489, %v5974
        %v5976 = vpop.f32.mrb[0].mxu0
        %v5977 = vadd.f32 %v5491, %v5976
        %5978 = vmatprep.mubr.f32.mxu0 %v4536
        %5979 = vmatmul.mubr.f32.gmra.mrb[0].mxu0 %v4535
        %v5980 = vpop.f32.mrb[0].mxu0
        %v5981 = vadd.f32 %v5495, %v5980
        %v5982 = vpop.f32.mrb[0].mxu0
        %v5983 = vadd.f32 %v5497, %v5982
        %5984 = vmatprep.mubr.f32.mxu0 %v4539
        %5985 = vmatmul.mubr.f32.gmra.mrb[0].mxu0 %v4538
        %v5986 = vpop.f32.mrb[0].mxu0
        %v5987 = vadd.f32 %v5501, %v5986
        %v5988 = vpop.f32.mrb[0].mxu0
        %v5989 = vadd.f32 %v5503, %v5988
        %5990 = vmatprep.mubr.f32.mxu0 %v4542
        %5991 = vmatmul.mubr.f32.gmra.mrb[0].mxu0 %v4541
        %v5992 = vpop.f32.mrb[0].mxu0
        %v5993 = vadd.f32 %v5507, %v5992
        %v5994 = vpop.f32.mrb[0].mxu0
        %v5995 = vadd.f32 %v5509, %v5994
        %5996 = vmatprep.mubr.f32.mxu0 %v4545
        %5997 = vmatmul.mubr.f32.gmra.mrb[0].mxu0 %v4544
        %v5998 = vpop.f32.mrb[0].mxu0
        %v5999 = vadd.f32 %v5513, %v5998
        %v6000 = vpop.f32.mrb[0].mxu0
        %v6001 = vadd.f32 %v5515, %v6000
        %6002 = vmatprep.mubr.f32.mxu0 %v4548
        %6003 = vmatmul.mubr.f32.gmra.mrb[0].mxu0 %v4547
        %v6004 = vpop.f32.mrb[0].mxu0
        %v6005 = vadd.f32 %v5519, %v6004
        %v6006 = vpop.f32.mrb[0].mxu0
        %v6007 = vadd.f32 %v5521, %v6006
        %6008 = vmatprep.mubr.f32.mxu0 %v4551
        %6009 = vmatmul.mubr.f32.gmra.mrb[0].mxu0 %v4550
        %v6010 = vpop.f32.mrb[0].mxu0
        %v6011 = vadd.f32 %v5525, %v6010
        %v6012 = vpop.f32.mrb[0].mxu0
        %v6013 = vadd.f32 %v5527, %v6012
        %6014 = vmatprep.mubr.f32.mxu0 %v4554
        %6015 = vmatmul.mubr.f32.gmra.mrb[0].mxu0 %v4553
        %v6016 = vpop.f32.mrb[0].mxu0
        %v6017 = vadd.f32 %v5531, %v6016
        %v6018 = vpop.f32.mrb[0].mxu0
        %v6019 = vadd.f32 %v5533, %v6018
        %6020 = vmatprep.mubr.f32.mxu0 %v4557
        %6021 = vmatmul.mubr.f32.gmra.mrb[0].mxu0 %v4556
        %v6022 = vpop.f32.mrb[0].mxu0
        %v6023 = vadd.f32 %v5537, %v6022
        %v6024 = vpop.f32.mrb[0].mxu0
        %v6025 = vadd.f32 %v5539, %v6024
        %6026 = vmatprep.mubr.f32.mxu0 %v4560
        %6027 = vmatmul.mubr.f32.gmra.mrb[0].mxu0 %v4559
        %v6028 = vpop.f32.mrb[0].mxu0
        %v6029 = vadd.f32 %v5543, %v6028
        %v6030 = vpop.f32.mrb[0].mxu0
        %v6031 = vadd.f32 %v5545, %v6030
        %6032 = vdwg.mxu0
        %6033 = vmatprep.subr.mxu0 %v4696
        %6034 = vmatpush1.msra.mxu0 %v4695
        %6035 = vmatprep.subr.mxu0 %v4700
        %6036 = vmatpush1.msra.mxu0 %v4699
        %6037 = vmatprep.subr.mxu0 %v4704
        %6038 = vmatpush1.msra.mxu0 %v4703
        %6039 = vmatprep.subr.mxu0 %v4708
        %6040 = vmatpush1.msra.mxu0 %v4707
        %6041 = vmatprep.subr.mxu0 0.0
        %6042 = vmatpush1.msra.mxu0 0.0
        %6043 = vmatprep.subr.mxu0 0.0
        %6044 = vmatpush1.msra.mxu0 0.0
        %6045 = vmatprep.subr.mxu0 0.0
        %6046 = vmatpush1.msra.mxu0 0.0
        %6047 = vmatprep.subr.mxu0 0.0
        %6048 = vmatpush1.msra.mxu0 0.0
        %6049 = vmatprep.subr.mxu0 0.0
        %6050 = vmatpush1.msra.mxu0 0.0
        %6051 = vmatprep.subr.mxu0 0.0
        %6052 = vmatpush1.msra.mxu0 0.0
        %6053 = vmatprep.subr.mxu0 0.0
        %6054 = vmatpush1.msra.mxu0 0.0
        %6055 = vmatprep.subr.mxu0 0.0
        %6056 = vmatpush1.msra.mxu0 0.0
        %6057 = vmatprep.subr.mxu0 0.0
        %6058 = vmatpush1.msra.mxu0 0.0
        %6059 = vmatprep.subr.mxu0 0.0
        %6060 = vmatpush1.msra.mxu0 0.0
        %6061 = vmatprep.subr.mxu0 0.0
        %6062 = vmatpush1.msra.mxu0 0.0
        %6063 = vmatprep.subr.mxu0 0.0
        %6064 = vmatpush1.msra.mxu0 0.0
        %6065 = vmatprep.subr.mxu0 0.0
        %6066 = vmatpush1.msra.mxu0 0.0
        %6067 = vmatprep.subr.mxu0 0.0
        %6068 = vmatpush1.msra.mxu0 0.0
        %6069 = vmatprep.subr.mxu0 0.0
        %6070 = vmatpush1.msra.mxu0 0.0
        %6071 = vmatprep.subr.mxu0 0.0
        %6072 = vmatpush1.msra.mxu0 0.0
        %6073 = vmatprep.subr.mxu0 0.0
        %6074 = vmatpush1.msra.mxu0 0.0
        %6075 = vmatprep.subr.mxu0 0.0
        %6076 = vmatpush1.msra.mxu0 0.0
        %6077 = vmatprep.subr.mxu0 0.0
        %6078 = vmatpush1.msra.mxu0 0.0
        %6079 = vmatprep.subr.mxu0 0.0
        %6080 = vmatpush1.msra.mxu0 0.0
        %6081 = vmatprep.subr.mxu0 0.0
        %6082 = vmatpush1.msra.mxu0 0.0
        %6083 = vmatprep.subr.mxu0 0.0
        %6084 = vmatpush1.msra.mxu0 0.0
        %6085 = vmatprep.subr.mxu0 0.0
        %6086 = vmatpush1.msra.mxu0 0.0
        %6087 = vmatprep.subr.mxu0 0.0
        %6088 = vmatpush1.msra.mxu0 0.0
        %6089 = vmatprep.subr.mxu0 0.0
        %6090 = vmatpush1.msra.mxu0 0.0
        %6091 = vmatprep.subr.mxu0 0.0
        %6092 = vmatpush1.msra.mxu0 0.0
        %6093 = vmatprep.subr.mxu0 0.0
        %6094 = vmatpush1.msra.mxu0 0.0
        %6095 = vmatprep.subr.mxu0 0.0
        %6096 = vmatpush1.msra.mxu0 0.0
        %6097 = vmatprep.mubr.f32.mxu0 0.0
        %6098 = vmatmul.mubr.f32.gmra.mrb[0].mxu0 %v5548
        %v6099 = vpop.f32.mrb[0].mxu0
        %v6100 = vadd.f32 %v5939, %v6099
        %v6101 = vpop.f32.mrb[0].mxu0
        %v6102 = vadd.f32 %v5941, %v6101
        %6103 = vmatprep.mubr.f32.mxu0 0.0
        %6104 = vmatmul.mubr.f32.gmra.mrb[0].mxu0 %v4856
        %v6105 = vpop.f32.mrb[0].mxu0
        %v6106 = vadd.f32 %v5945, %v6105
        %v6107 = vpop.f32.mrb[0].mxu0
        %v6108 = vadd.f32 %v5947, %v6107
        %6109 = vmatprep.mubr.f32.mxu0 0.0
        %6110 = vmatmul.mubr.f32.gmra.mrb[0].mxu0 %v4859
        %v6111 = vpop.f32.mrb[0].mxu0
        %v6112 = vadd.f32 %v5951, %v6111
        %v6113 = vpop.f32.mrb[0].mxu0
        %v6114 = vadd.f32 %v5953, %v6113
        %6115 = vmatprep.mubr.f32.mxu0 0.0
        %6116 = vmatmul.mubr.f32.gmra.mrb[0].mxu0 %v4862
        %v6117 = vpop.f32.mrb[0].mxu0
        %v6118 = vadd.f32 %v5957, %v6117
        %v6119 = vpop.f32.mrb[0].mxu0
        %v6120 = vadd.f32 %v5959, %v6119
        %6121 = vmatprep.mubr.f32.mxu0 0.0
        %6122 = vmatmul.mubr.f32.gmra.mrb[0].mxu0 %v4865
        %v6123 = vpop.f32.mrb[0].mxu0
        %v6124 = vadd.f32 %v5963, %v6123
        %v6125 = vpop.f32.mrb[0].mxu0
        %v6126 = vadd.f32 %v5965, %v6125
        %6127 = vmatprep.mubr.f32.mxu0 0.0
        %6128 = vmatmul.mubr.f32.gmra.mrb[0].mxu0 %v4868
        %v6129 = vpop.f32.mrb[0].mxu0
        %v6130 = vadd.f32 %v5969, %v6129
        %v6131 = vpop.f32.mrb[0].mxu0
        %v6132 = vadd.f32 %v5971, %v6131
        %6133 = vmatprep.mubr.f32.mxu0 0.0
        %6134 = vmatmul.mubr.f32.gmra.mrb[0].mxu0 %v4871
        %v6135 = vpop.f32.mrb[0].mxu0
        %v6136 = vadd.f32 %v5975, %v6135
        %v6137 = vpop.f32.mrb[0].mxu0
        %v6138 = vadd.f32 %v5977, %v6137
        %6139 = vmatprep.mubr.f32.mxu0 0.0
        %6140 = vmatmul.mubr.f32.gmra.mrb[0].mxu0 %v4874
        %v6141 = vpop.f32.mrb[0].mxu0
        %v6142 = vadd.f32 %v5981, %v6141
        %v6143 = vpop.f32.mrb[0].mxu0
        %v6144 = vadd.f32 %v5983, %v6143
        %6145 = vmatprep.mubr.f32.mxu0 0.0
        %6146 = vmatmul.mubr.f32.gmra.mrb[0].mxu0 %v4877
        %v6147 = vpop.f32.mrb[0].mxu0
        %v6148 = vadd.f32 %v5987, %v6147
        %v6149 = vpop.f32.mrb[0].mxu0
        %v6150 = vadd.f32 %v5989, %v6149
        %6151 = vmatprep.mubr.f32.mxu0 0.0
        %6152 = vmatmul.mubr.f32.gmra.mrb[0].mxu0 %v4880
        %v6153 = vpop.f32.mrb[0].mxu0
        %v6154 = vadd.f32 %v5993, %v6153
        %v6155 = vpop.f32.mrb[0].mxu0
        %v6156 = vadd.f32 %v5995, %v6155
        %6157 = vmatprep.mubr.f32.mxu0 0.0
        %6158 = vmatmul.mubr.f32.gmra.mrb[0].mxu0 %v4883
        %v6159 = vpop.f32.mrb[0].mxu0
        %v6160 = vadd.f32 %v5999, %v6159
        %v6161 = vpop.f32.mrb[0].mxu0
        %v6162 = vadd.f32 %v6001, %v6161
        %6163 = vmatprep.mubr.f32.mxu0 0.0
        %6164 = vmatmul.mubr.f32.gmra.mrb[0].mxu0 %v4886
        %v6165 = vpop.f32.mrb[0].mxu0
        %v6166 = vadd.f32 %v6005, %v6165
        %v6167 = vpop.f32.mrb[0].mxu0
        %v6168 = vadd.f32 %v6007, %v6167
        %6169 = vmatprep.mubr.f32.mxu0 0.0
        %6170 = vmatmul.mubr.f32.gmra.mrb[0].mxu0 %v4889
        %v6171 = vpop.f32.mrb[0].mxu0
        %v6172 = vadd.f32 %v6011, %v6171
        %v6173 = vpop.f32.mrb[0].mxu0
        %v6174 = vadd.f32 %v6013, %v6173
        %6175 = vmatprep.mubr.f32.mxu0 0.0
        %6176 = vmatmul.mubr.f32.gmra.mrb[0].mxu0 %v4892
        %v6177 = vpop.f32.mrb[0].mxu0
        %v6178 = vadd.f32 %v6017, %v6177
        %v6179 = vpop.f32.mrb[0].mxu0
        %v6180 = vadd.f32 %v6019, %v6179
        %6181 = vmatprep.mubr.f32.mxu0 0.0
        %6182 = vmatmul.mubr.f32.gmra.mrb[0].mxu0 %v4895
        %v6183 = vpop.f32.mrb[0].mxu0
        %v6184 = vadd.f32 %v6023, %v6183
        %v6185 = vpop.f32.mrb[0].mxu0
        %v6186 = vadd.f32 %v6025, %v6185
        %6187 = vmatprep.mubr.f32.mxu0 0.0
        %6188 = vmatmul.mubr.f32.gmra.mrb[0].mxu0 %v4898
        %v6189 = vpop.f32.mrb[0].mxu0
        %v6190 = vadd.f32 %v6029, %v6189
        %v6191 = vpop.f32.mrb[0].mxu0
        %v6192 = vadd.f32 %v6031, %v6191
        %6193 = vdwg.mxu0
        %s6194 = scalar_lea.vmem %s5, 2304
        %v6195 = vld [vmem:[%s6194] sm:$0xff]
        %v6196 = vld [vmem:[%s6194 + $0x8] sm:$0xff]
        %v6197 = vld [vmem:[%s6194 + $0x10] sm:$0xff]
        %v6198 = vld [vmem:[%s6194 + $0x18] sm:$0xff]
        %v6199 = vld [vmem:[%s6194 + $0x20] sm:$0xff]
        %v6200 = vld [vmem:[%s6194 + $0x28] sm:$0xff]
        %v6201 = vld [vmem:[%s6194 + $0x30] sm:$0xff]
        %v6202 = vld [vmem:[%s6194 + $0x38] sm:$0xff]
        %v6203 = vld [vmem:[%s6194 + $0x40] sm:$0xff]
        %v6204 = vld [vmem:[%s6194 + $0x48] sm:$0xff]
        %v6205 = vld [vmem:[%s6194 + $0x50] sm:$0xff]
        %v6206 = vld [vmem:[%s6194 + $0x58] sm:$0xff]
        %v6207 = vld [vmem:[%s6194 + $0x60] sm:$0xff]
        %v6208 = vld [vmem:[%s6194 + $0x68] sm:$0xff]
        %v6209 = vld [vmem:[%s6194 + $0x70] sm:$0xff]
        %v6210 = vld [vmem:[%s6194 + $0x78] sm:$0xff]
        %v6211 = vld [vmem:[%s6194 + $0x80] sm:$0xff]
        %v6212 = vld [vmem:[%s6194 + $0x88] sm:$0xff]
        %v6213 = vld [vmem:[%s6194 + $0x90] sm:$0xff]
        %v6214 = vld [vmem:[%s6194 + $0x98] sm:$0xff]
        %v6215 = vld [vmem:[%s6194 + $0xa0] sm:$0xff]
        %v6216 = vld [vmem:[%s6194 + $0xa8] sm:$0xff]
        %v6217 = vld [vmem:[%s6194 + $0xb0] sm:$0xff]
        %v6218 = vld [vmem:[%s6194 + $0xb8] sm:$0xff]
        %v6219 = vld [vmem:[%s6194 + $0xc0] sm:$0xff]
        %v6220 = vld [vmem:[%s6194 + $0xc8] sm:$0xff]
        %v6221 = vld [vmem:[%s6194 + $0xd0] sm:$0xff]
        %v6222 = vld [vmem:[%s6194 + $0xd8] sm:$0xff]
        %v6223 = vld [vmem:[%s6194 + $0xe0] sm:$0xff]
        %v6224 = vld [vmem:[%s6194 + $0xe8] sm:$0xff]
        %v6225 = vld [vmem:[%s6194 + $0xf0] sm:$0xff]
        %v6226 = vld [vmem:[%s6194 + $0xf8] sm:$0xff]
        %v6227 = vld [vmem:[%s6194 + $0x100] sm:$0xff]
        %v6228 = vld [vmem:[%s6194 + $0x108] sm:$0xff]
        %v6229 = vld [vmem:[%s6194 + $0x110] sm:$0xff]
        %v6230 = vld [vmem:[%s6194 + $0x118] sm:$0xff]
        %v6231 = vld [vmem:[%s6194 + $0x120] sm:$0xff]
        %v6232 = vld [vmem:[%s6194 + $0x128] sm:$0xff]
        %v6233 = vld [vmem:[%s6194 + $0x130] sm:$0xff]
        %v6234 = vld [vmem:[%s6194 + $0x138] sm:$0xff]
        %v6235 = vld [vmem:[%s6194 + $0x140] sm:$0xff]
        %v6236 = vld [vmem:[%s6194 + $0x148] sm:$0xff]
        %v6237 = vld [vmem:[%s6194 + $0x150] sm:$0xff]
        %v6238 = vld [vmem:[%s6194 + $0x158] sm:$0xff]
        %v6239 = vld [vmem:[%s6194 + $0x160] sm:$0xff]
        %v6240 = vld [vmem:[%s6194 + $0x168] sm:$0xff]
        %v6241 = vld [vmem:[%s6194 + $0x170] sm:$0xff]
        %v6242 = vld [vmem:[%s6194 + $0x178] sm:$0xff]
        %v6243 = vld [vmem:[%s6194 + $0x180] sm:$0xff]
        %v6244 = vld [vmem:[%s6194 + $0x188] sm:$0xff]
        %v6245 = vld [vmem:[%s6194 + $0x190] sm:$0xff]
        %v6246 = vld [vmem:[%s6194 + $0x198] sm:$0xff]
        %v6247 = vld [vmem:[%s6194 + $0x1a0] sm:$0xff]
        %v6248 = vld [vmem:[%s6194 + $0x1a8] sm:$0xff]
        %v6249 = vld [vmem:[%s6194 + $0x1b0] sm:$0xff]
        %v6250 = vld [vmem:[%s6194 + $0x1b8] sm:$0xff]
        %v6251 = vld [vmem:[%s6194 + $0x1c0] sm:$0xff]
        %v6252 = vld [vmem:[%s6194 + $0x1c8] sm:$0xff]
        %v6253 = vld [vmem:[%s6194 + $0x1d0] sm:$0xff]
        %v6254 = vld [vmem:[%s6194 + $0x1d8] sm:$0xff]
        %v6255 = vld [vmem:[%s6194 + $0x1e0] sm:$0xff]
        %v6256 = vld [vmem:[%s6194 + $0x1e8] sm:$0xff]
        %v6257 = vld [vmem:[%s6194 + $0x1f0] sm:$0xff]
        %v6258 = vld [vmem:[%s6194 + $0x1f8] sm:$0xff]
        %v6259 = vld [vmem:[%s6194 + $0x200] sm:$0xff]
        %v6260 = vld [vmem:[%s6194 + $0x208] sm:$0xff]
        %v6261 = vld [vmem:[%s6194 + $0x210] sm:$0xff]
        %v6262 = vld [vmem:[%s6194 + $0x218] sm:$0xff]
        %v6263 = vld [vmem:[%s6194 + $0x220] sm:$0xff]
        %v6264 = vld [vmem:[%s6194 + $0x228] sm:$0xff]
        %v6265 = vld [vmem:[%s6194 + $0x230] sm:$0xff]
        %v6266 = vld [vmem:[%s6194 + $0x238] sm:$0xff]
        %v6267 = vld [vmem:[%s6194 + $0x240] sm:$0xff]
        %v6268 = vld [vmem:[%s6194 + $0x248] sm:$0xff]
        %v6269 = vld [vmem:[%s6194 + $0x250] sm:$0xff]
        %v6270 = vld [vmem:[%s6194 + $0x258] sm:$0xff]
        %v6271 = vld [vmem:[%s6194 + $0x260] sm:$0xff]
        %v6272 = vld [vmem:[%s6194 + $0x268] sm:$0xff]
        %v6273 = vld [vmem:[%s6194 + $0x270] sm:$0xff]
        %v6274 = vld [vmem:[%s6194 + $0x278] sm:$0xff]
        %v6275 = vld [vmem:[%s6194 + $0x280] sm:$0xff]
        %v6276 = vld [vmem:[%s6194 + $0x288] sm:$0xff]
        %v6277 = vld [vmem:[%s6194 + $0x290] sm:$0xff]
        %v6278 = vld [vmem:[%s6194 + $0x298] sm:$0xff]
        %v6279 = vld [vmem:[%s6194 + $0x2a0] sm:$0xff]
        %v6280 = vld [vmem:[%s6194 + $0x2a8] sm:$0xff]
        %v6281 = vld [vmem:[%s6194 + $0x2b0] sm:$0xff]
        %v6282 = vld [vmem:[%s6194 + $0x2b8] sm:$0xff]
        %v6283 = vld [vmem:[%s6194 + $0x2c0] sm:$0xff]
        %v6284 = vld [vmem:[%s6194 + $0x2c8] sm:$0xff]
        %v6285 = vld [vmem:[%s6194 + $0x2d0] sm:$0xff]
        %v6286 = vld [vmem:[%s6194 + $0x2d8] sm:$0xff]
        %v6287 = vld [vmem:[%s6194 + $0x2e0] sm:$0xff]
        %v6288 = vld [vmem:[%s6194 + $0x2e8] sm:$0xff]
        %v6289 = vld [vmem:[%s6194 + $0x2f0] sm:$0xff]
        %v6290 = vld [vmem:[%s6194 + $0x2f8] sm:$0xff]
        %v6291 = vld [vmem:[%s6194 + $0x300] sm:$0xff]
        %v6292 = vld [vmem:[%s6194 + $0x308] sm:$0xff]
        %v6293 = vld [vmem:[%s6194 + $0x310] sm:$0xff]
        %v6294 = vld [vmem:[%s6194 + $0x318] sm:$0xff]
        %v6295 = vld [vmem:[%s6194 + $0x320] sm:$0xff]
        %v6296 = vld [vmem:[%s6194 + $0x328] sm:$0xff]
        %v6297 = vld [vmem:[%s6194 + $0x330] sm:$0xff]
        %v6298 = vld [vmem:[%s6194 + $0x338] sm:$0xff]
        %v6299 = vld [vmem:[%s6194 + $0x340] sm:$0xff]
        %v6300 = vld [vmem:[%s6194 + $0x348] sm:$0xff]
        %v6301 = vld [vmem:[%s6194 + $0x350] sm:$0xff]
        %v6302 = vld [vmem:[%s6194 + $0x358] sm:$0xff]
        %v6303 = vld [vmem:[%s6194 + $0x360] sm:$0xff]
        %v6304 = vld [vmem:[%s6194 + $0x368] sm:$0xff]
        %v6305 = vld [vmem:[%s6194 + $0x370] sm:$0xff]
        %v6306 = vld [vmem:[%s6194 + $0x378] sm:$0xff]
        %v6307 = vld [vmem:[%s6194 + $0x380] sm:$0xff]
        %v6308 = vld [vmem:[%s6194 + $0x388] sm:$0xff]
        %v6309 = vld [vmem:[%s6194 + $0x390] sm:$0xff]
        %v6310 = vld [vmem:[%s6194 + $0x398] sm:$0xff]
        %v6311 = vld [vmem:[%s6194 + $0x3a0] sm:$0xff]
        %v6312 = vld [vmem:[%s6194 + $0x3a8] sm:$0xff]
        %v6313 = vld [vmem:[%s6194 + $0x3b0] sm:$0xff]
        %v6314 = vld [vmem:[%s6194 + $0x3b8] sm:$0xff]
        %v6315 = vld [vmem:[%s6194 + $0x3c0] sm:$0xff]
        %v6316 = vld [vmem:[%s6194 + $0x3c8] sm:$0xff]
        %v6317 = vld [vmem:[%s6194 + $0x3d0] sm:$0xff]
        %v6318 = vld [vmem:[%s6194 + $0x3d8] sm:$0xff]
        %v6319 = vld [vmem:[%s6194 + $0x3e0] sm:$0xff]
        %v6320 = vld [vmem:[%s6194 + $0x3e8] sm:$0xff]
        %v6321 = vld [vmem:[%s6194 + $0x3f0] sm:$0xff]
        %v6322 = vld [vmem:[%s6194 + $0x3f8] sm:$0xff]
        %v6323 = vld [vmem:[%s6194 + $0x400] sm:$0xff]
        %v6324 = vld [vmem:[%s6194 + $0x408] sm:$0xff]
        %v6325 = vld [vmem:[%s6194 + $0x410] sm:$0xff]
        %v6326 = vld [vmem:[%s6194 + $0x418] sm:$0xff]
        %v6327 = vld [vmem:[%s6194 + $0x420] sm:$0xff]
        %v6328 = vld [vmem:[%s6194 + $0x428] sm:$0xff]
        %v6329 = vld [vmem:[%s6194 + $0x430] sm:$0xff]
        %v6330 = vld [vmem:[%s6194 + $0x438] sm:$0xff]
        %v6331 = vld [vmem:[%s6194 + $0x440] sm:$0xff]
        %v6332 = vld [vmem:[%s6194 + $0x448] sm:$0xff]
        %v6333 = vld [vmem:[%s6194 + $0x450] sm:$0xff]
        %v6334 = vld [vmem:[%s6194 + $0x458] sm:$0xff]
        %v6335 = vld [vmem:[%s6194 + $0x460] sm:$0xff]
        %v6336 = vld [vmem:[%s6194 + $0x468] sm:$0xff]
        %v6337 = vld [vmem:[%s6194 + $0x470] sm:$0xff]
        %v6338 = vld [vmem:[%s6194 + $0x478] sm:$0xff]
        %6339 = vmatprep.subr.mxu0 %v6196
        %6340 = vmatpush1.msra.mxu0 %v6195
        %6341 = vmatprep.subr.mxu0 %v6200
        %6342 = vmatpush1.msra.mxu0 %v6199
        %6343 = vmatprep.subr.mxu0 %v6204
        %6344 = vmatpush1.msra.mxu0 %v6203
        %6345 = vmatprep.subr.mxu0 %v6208
        %6346 = vmatpush1.msra.mxu0 %v6207
        %6347 = vmatprep.subr.mxu0 %v6212
        %6348 = vmatpush1.msra.mxu0 %v6211
        %6349 = vmatprep.subr.mxu0 %v6216
        %6350 = vmatpush1.msra.mxu0 %v6215
        %6351 = vmatprep.subr.mxu0 %v6220
        %6352 = vmatpush1.msra.mxu0 %v6219
        %6353 = vmatprep.subr.mxu0 %v6224
        %6354 = vmatpush1.msra.mxu0 %v6223
        %6355 = vmatprep.subr.mxu0 %v6228
        %6356 = vmatpush1.msra.mxu0 %v6227
        %6357 = vmatprep.subr.mxu0 %v6232
        %6358 = vmatpush1.msra.mxu0 %v6231
        %6359 = vmatprep.subr.mxu0 %v6236
        %6360 = vmatpush1.msra.mxu0 %v6235
        %6361 = vmatprep.subr.mxu0 %v6240
        %6362 = vmatpush1.msra.mxu0 %v6239
        %6363 = vmatprep.subr.mxu0 %v6244
        %6364 = vmatpush1.msra.mxu0 %v6243
        %6365 = vmatprep.subr.mxu0 %v6248
        %6366 = vmatpush1.msra.mxu0 %v6247
        %6367 = vmatprep.subr.mxu0 %v6252
        %6368 = vmatpush1.msra.mxu0 %v6251
        %6369 = vmatprep.subr.mxu0 %v6256
        %6370 = vmatpush1.msra.mxu0 %v6255
        %6371 = vmatprep.subr.mxu0 %v6260
        %6372 = vmatpush1.msra.mxu0 %v6259
        %6373 = vmatprep.subr.mxu0 %v6264
        %6374 = vmatpush1.msra.mxu0 %v6263
        %6375 = vmatprep.subr.mxu0 %v6268
        %6376 = vmatpush1.msra.mxu0 %v6267
        %6377 = vmatprep.subr.mxu0 %v6272
        %6378 = vmatpush1.msra.mxu0 %v6271
        %6379 = vmatprep.subr.mxu0 %v6276
        %6380 = vmatpush1.msra.mxu0 %v6275
        %6381 = vmatprep.subr.mxu0 %v6280
        %6382 = vmatpush1.msra.mxu0 %v6279
        %6383 = vmatprep.subr.mxu0 %v6284
        %6384 = vmatpush1.msra.mxu0 %v6283
        %6385 = vmatprep.subr.mxu0 %v6288
        %6386 = vmatpush1.msra.mxu0 %v6287
        %6387 = vmatprep.subr.mxu0 %v6292
        %6388 = vmatpush1.msra.mxu0 %v6291
        %6389 = vmatprep.subr.mxu0 %v6296
        %6390 = vmatpush1.msra.mxu0 %v6295
        %6391 = vmatprep.subr.mxu0 %v6300
        %6392 = vmatpush1.msra.mxu0 %v6299
        %6393 = vmatprep.subr.mxu0 %v6304
        %6394 = vmatpush1.msra.mxu0 %v6303
        %6395 = vmatprep.subr.mxu0 %v6308
        %6396 = vmatpush1.msra.mxu0 %v6307
        %6397 = vmatprep.subr.mxu0 %v6312
        %6398 = vmatpush1.msra.mxu0 %v6311
        %6399 = vmatprep.subr.mxu0 %v6316
        %6400 = vmatpush1.msra.mxu0 %v6315
        %6401 = vmatprep.subr.mxu0 %v6320
        %6402 = vmatpush1.msra.mxu0 %v6319
        %6403 = vmatprep.mubr.f32.mxu0 %v4521
        %6404 = vmatmul.mubr.f32.gmra.mrb[0].mxu0 %v4520
        %v6405 = vpop.f32.mrb[0].mxu0
        %v6406 = vadd.f32 0.0, %v6405
        %v6407 = vpop.f32.mrb[0].mxu0
        %v6408 = vadd.f32 0.0, %v6407
        %6409 = vmatprep.mubr.f32.mxu0 %v4524
        %6410 = vmatmul.mubr.f32.gmra.mrb[0].mxu0 %v4523
        %v6411 = vpop.f32.mrb[0].mxu0
        %v6412 = vadd.f32 0.0, %v6411
        %v6413 = vpop.f32.mrb[0].mxu0
        %v6414 = vadd.f32 0.0, %v6413
        %6415 = vmatprep.mubr.f32.mxu0 %v4527
        %6416 = vmatmul.mubr.f32.gmra.mrb[0].mxu0 %v4526
        %v6417 = vpop.f32.mrb[0].mxu0
        %v6418 = vadd.f32 0.0, %v6417
        %v6419 = vpop.f32.mrb[0].mxu0
        %v6420 = vadd.f32 0.0, %v6419
        %6421 = vmatprep.mubr.f32.mxu0 %v4530
        %6422 = vmatmul.mubr.f32.gmra.mrb[0].mxu0 %v4529
        %v6423 = vpop.f32.mrb[0].mxu0
        %v6424 = vadd.f32 0.0, %v6423
        %v6425 = vpop.f32.mrb[0].mxu0
        %v6426 = vadd.f32 0.0, %v6425
        %6427 = vmatprep.mubr.f32.mxu0 %v4533
        %6428 = vmatmul.mubr.f32.gmra.mrb[0].mxu0 %v4532
        %v6429 = vpop.f32.mrb[0].mxu0
        %v6430 = vadd.f32 0.0, %v6429
        %v6431 = vpop.f32.mrb[0].mxu0
        %v6432 = vadd.f32 0.0, %v6431
        %6433 = vmatprep.mubr.f32.mxu0 %v4536
        %6434 = vmatmul.mubr.f32.gmra.mrb[0].mxu0 %v4535
        %v6435 = vpop.f32.mrb[0].mxu0
        %v6436 = vadd.f32 0.0, %v6435
        %v6437 = vpop.f32.mrb[0].mxu0
        %v6438 = vadd.f32 0.0, %v6437
        %6439 = vmatprep.mubr.f32.mxu0 %v4539
        %6440 = vmatmul.mubr.f32.gmra.mrb[0].mxu0 %v4538
        %v6441 = vpop.f32.mrb[0].mxu0
        %v6442 = vadd.f32 0.0, %v6441
        %v6443 = vpop.f32.mrb[0].mxu0
        %v6444 = vadd.f32 0.0, %v6443
        %6445 = vmatprep.mubr.f32.mxu0 %v4542
        %6446 = vmatmul.mubr.f32.gmra.mrb[0].mxu0 %v4541
        %v6447 = vpop.f32.mrb[0].mxu0
        %v6448 = vadd.f32 0.0, %v6447
        %v6449 = vpop.f32.mrb[0].mxu0
        %v6450 = vadd.f32 0.0, %v6449
        %6451 = vmatprep.mubr.f32.mxu0 %v4545
        %6452 = vmatmul.mubr.f32.gmra.mrb[0].mxu0 %v4544
        %v6453 = vpop.f32.mrb[0].mxu0
        %v6454 = vadd.f32 0.0, %v6453
        %v6455 = vpop.f32.mrb[0].mxu0
        %v6456 = vadd.f32 0.0, %v6455
        %6457 = vmatprep.mubr.f32.mxu0 %v4548
        %6458 = vmatmul.mubr.f32.gmra.mrb[0].mxu0 %v4547
        %v6459 = vpop.f32.mrb[0].mxu0
        %v6460 = vadd.f32 0.0, %v6459
        %v6461 = vpop.f32.mrb[0].mxu0
        %v6462 = vadd.f32 0.0, %v6461
        %6463 = vmatprep.mubr.f32.mxu0 %v4551
        %6464 = vmatmul.mubr.f32.gmra.mrb[0].mxu0 %v4550
        %v6465 = vpop.f32.mrb[0].mxu0
        %v6466 = vadd.f32 0.0, %v6465
        %v6467 = vpop.f32.mrb[0].mxu0
        %v6468 = vadd.f32 0.0, %v6467
        %6469 = vmatprep.mubr.f32.mxu0 %v4554
        %6470 = vmatmul.mubr.f32.gmra.mrb[0].mxu0 %v4553
        %v6471 = vpop.f32.mrb[0].mxu0
        %v6472 = vadd.f32 0.0, %v6471
        %v6473 = vpop.f32.mrb[0].mxu0
        %v6474 = vadd.f32 0.0, %v6473
        %6475 = vmatprep.mubr.f32.mxu0 %v4557
        %6476 = vmatmul.mubr.f32.gmra.mrb[0].mxu0 %v4556
        %v6477 = vpop.f32.mrb[0].mxu0
        %v6478 = vadd.f32 0.0, %v6477
        %v6479 = vpop.f32.mrb[0].mxu0
        %v6480 = vadd.f32 0.0, %v6479
        %6481 = vmatprep.mubr.f32.mxu0 %v4560
        %6482 = vmatmul.mubr.f32.gmra.mrb[0].mxu0 %v4559
        %v6483 = vpop.f32.mrb[0].mxu0
        %v6484 = vadd.f32 0.0, %v6483
        %v6485 = vpop.f32.mrb[0].mxu0
        %v6486 = vadd.f32 0.0, %v6485
        %6487 = vmatprep.mubr.f32.mxu0 %v4563
        %6488 = vmatmul.mubr.f32.gmra.mrb[0].mxu0 %v4562
        %v6489 = vpop.f32.mrb[0].mxu0
        %v6490 = vadd.f32 0.0, %v6489
        %v6491 = vpop.f32.mrb[0].mxu0
        %v6492 = vadd.f32 0.0, %v6491
        %6493 = vmatprep.mubr.f32.mxu0 0.0
        %6494 = vmatmul.mubr.f32.gmra.mrb[0].mxu0 0.0
        %v6495 = vpop.f32.mrb[0].mxu0
        %v6496 = vadd.f32 0.0, %v6495
        %v6497 = vpop.f32.mrb[0].mxu0
        %v6498 = vadd.f32 0.0, %v6497
        %6499 = vdwg.mxu0
        %6500 = vmatprep.subr.mxu0 %v6324
        %6501 = vmatpush1.msra.mxu0 %v6323
        %6502 = vmatprep.subr.mxu0 %v6328
        %6503 = vmatpush1.msra.mxu0 %v6327
        %6504 = vmatprep.subr.mxu0 %v6332
        %6505 = vmatpush1.msra.mxu0 %v6331
        %6506 = vmatprep.subr.mxu0 %v6336
        %6507 = vmatpush1.msra.mxu0 %v6335
        %6508 = vmatprep.subr.mxu0 0.0
        %6509 = vmatpush1.msra.mxu0 0.0
        %6510 = vmatprep.subr.mxu0 0.0
        %6511 = vmatpush1.msra.mxu0 0.0
        %6512 = vmatprep.subr.mxu0 0.0
        %6513 = vmatpush1.msra.mxu0 0.0
        %6514 = vmatprep.subr.mxu0 0.0
        %6515 = vmatpush1.msra.mxu0 0.0
        %6516 = vmatprep.subr.mxu0 0.0
        %6517 = vmatpush1.msra.mxu0 0.0
        %6518 = vmatprep.subr.mxu0 0.0
        %6519 = vmatpush1.msra.mxu0 0.0
        %6520 = vmatprep.subr.mxu0 0.0
        %6521 = vmatpush1.msra.mxu0 0.0
        %6522 = vmatprep.subr.mxu0 0.0
        %6523 = vmatpush1.msra.mxu0 0.0
        %6524 = vmatprep.subr.mxu0 0.0
        %6525 = vmatpush1.msra.mxu0 0.0
        %6526 = vmatprep.subr.mxu0 0.0
        %6527 = vmatpush1.msra.mxu0 0.0
        %6528 = vmatprep.subr.mxu0 0.0
        %6529 = vmatpush1.msra.mxu0 0.0
        %6530 = vmatprep.subr.mxu0 0.0
        %6531 = vmatpush1.msra.mxu0 0.0
        %6532 = vmatprep.subr.mxu0 0.0
        %6533 = vmatpush1.msra.mxu0 0.0
        %6534 = vmatprep.subr.mxu0 0.0
        %6535 = vmatpush1.msra.mxu0 0.0
        %6536 = vmatprep.subr.mxu0 0.0
        %6537 = vmatpush1.msra.mxu0 0.0
        %6538 = vmatprep.subr.mxu0 0.0
        %6539 = vmatpush1.msra.mxu0 0.0
        %6540 = vmatprep.subr.mxu0 0.0
        %6541 = vmatpush1.msra.mxu0 0.0
        %6542 = vmatprep.subr.mxu0 0.0
        %6543 = vmatpush1.msra.mxu0 0.0
        %6544 = vmatprep.subr.mxu0 0.0
        %6545 = vmatpush1.msra.mxu0 0.0
        %6546 = vmatprep.subr.mxu0 0.0
        %6547 = vmatpush1.msra.mxu0 0.0
        %6548 = vmatprep.subr.mxu0 0.0
        %6549 = vmatpush1.msra.mxu0 0.0
        %6550 = vmatprep.subr.mxu0 0.0
        %6551 = vmatpush1.msra.mxu0 0.0
        %6552 = vmatprep.subr.mxu0 0.0
        %6553 = vmatpush1.msra.mxu0 0.0
        %6554 = vmatprep.subr.mxu0 0.0
        %6555 = vmatpush1.msra.mxu0 0.0
        %6556 = vmatprep.subr.mxu0 0.0
        %6557 = vmatpush1.msra.mxu0 0.0
        %6558 = vmatprep.subr.mxu0 0.0
        %6559 = vmatpush1.msra.mxu0 0.0
        %6560 = vmatprep.subr.mxu0 0.0
        %6561 = vmatpush1.msra.mxu0 0.0
        %6562 = vmatprep.subr.mxu0 0.0
        %6563 = vmatpush1.msra.mxu0 0.0
        %6564 = vmatprep.mubr.f32.mxu0 0.0
        %6565 = vmatmul.mubr.f32.gmra.mrb[0].mxu0 %v4859
        %v6566 = vpop.f32.mrb[0].mxu0
        %v6567 = vadd.f32 %v6406, %v6566
        %v6568 = vpop.f32.mrb[0].mxu0
        %v6569 = vadd.f32 %v6408, %v6568
        %6570 = vmatprep.mubr.f32.mxu0 0.0
        %6571 = vmatmul.mubr.f32.gmra.mrb[0].mxu0 %v4862
        %v6572 = vpop.f32.mrb[0].mxu0
        %v6573 = vadd.f32 %v6412, %v6572
        %v6574 = vpop.f32.mrb[0].mxu0
        %v6575 = vadd.f32 %v6414, %v6574
        %6576 = vmatprep.mubr.f32.mxu0 0.0
        %6577 = vmatmul.mubr.f32.gmra.mrb[0].mxu0 %v4865
        %v6578 = vpop.f32.mrb[0].mxu0
        %v6579 = vadd.f32 %v6418, %v6578
        %v6580 = vpop.f32.mrb[0].mxu0
        %v6581 = vadd.f32 %v6420, %v6580
        %6582 = vmatprep.mubr.f32.mxu0 0.0
        %6583 = vmatmul.mubr.f32.gmra.mrb[0].mxu0 %v4868
        %v6584 = vpop.f32.mrb[0].mxu0
        %v6585 = vadd.f32 %v6424, %v6584
        %v6586 = vpop.f32.mrb[0].mxu0
        %v6587 = vadd.f32 %v6426, %v6586
        %6588 = vmatprep.mubr.f32.mxu0 0.0
        %6589 = vmatmul.mubr.f32.gmra.mrb[0].mxu0 %v4871
        %v6590 = vpop.f32.mrb[0].mxu0
        %v6591 = vadd.f32 %v6430, %v6590
        %v6592 = vpop.f32.mrb[0].mxu0
        %v6593 = vadd.f32 %v6432, %v6592
        %6594 = vmatprep.mubr.f32.mxu0 0.0
        %6595 = vmatmul.mubr.f32.gmra.mrb[0].mxu0 %v4874
        %v6596 = vpop.f32.mrb[0].mxu0
        %v6597 = vadd.f32 %v6436, %v6596
        %v6598 = vpop.f32.mrb[0].mxu0
        %v6599 = vadd.f32 %v6438, %v6598
        %6600 = vmatprep.mubr.f32.mxu0 0.0
        %6601 = vmatmul.mubr.f32.gmra.mrb[0].mxu0 %v4877
        %v6602 = vpop.f32.mrb[0].mxu0
        %v6603 = vadd.f32 %v6442, %v6602
        %v6604 = vpop.f32.mrb[0].mxu0
        %v6605 = vadd.f32 %v6444, %v6604
        %6606 = vmatprep.mubr.f32.mxu0 0.0
        %6607 = vmatmul.mubr.f32.gmra.mrb[0].mxu0 %v4880
        %v6608 = vpop.f32.mrb[0].mxu0
        %v6609 = vadd.f32 %v6448, %v6608
        %v6610 = vpop.f32.mrb[0].mxu0
        %v6611 = vadd.f32 %v6450, %v6610
        %6612 = vmatprep.mubr.f32.mxu0 0.0
        %6613 = vmatmul.mubr.f32.gmra.mrb[0].mxu0 %v4883
        %v6614 = vpop.f32.mrb[0].mxu0
        %v6615 = vadd.f32 %v6454, %v6614
        %v6616 = vpop.f32.mrb[0].mxu0
        %v6617 = vadd.f32 %v6456, %v6616
        %6618 = vmatprep.mubr.f32.mxu0 0.0
        %6619 = vmatmul.mubr.f32.gmra.mrb[0].mxu0 %v4886
        %v6620 = vpop.f32.mrb[0].mxu0
        %v6621 = vadd.f32 %v6460, %v6620
        %v6622 = vpop.f32.mrb[0].mxu0
        %v6623 = vadd.f32 %v6462, %v6622
        %6624 = vmatprep.mubr.f32.mxu0 0.0
        %6625 = vmatmul.mubr.f32.gmra.mrb[0].mxu0 %v4889
        %v6626 = vpop.f32.mrb[0].mxu0
        %v6627 = vadd.f32 %v6466, %v6626
        %v6628 = vpop.f32.mrb[0].mxu0
        %v6629 = vadd.f32 %v6468, %v6628
        %6630 = vmatprep.mubr.f32.mxu0 0.0
        %6631 = vmatmul.mubr.f32.gmra.mrb[0].mxu0 %v4892
        %v6632 = vpop.f32.mrb[0].mxu0
        %v6633 = vadd.f32 %v6472, %v6632
        %v6634 = vpop.f32.mrb[0].mxu0
        %v6635 = vadd.f32 %v6474, %v6634
        %6636 = vmatprep.mubr.f32.mxu0 0.0
        %6637 = vmatmul.mubr.f32.gmra.mrb[0].mxu0 %v4895
        %v6638 = vpop.f32.mrb[0].mxu0
        %v6639 = vadd.f32 %v6478, %v6638
        %v6640 = vpop.f32.mrb[0].mxu0
        %v6641 = vadd.f32 %v6480, %v6640
        %6642 = vmatprep.mubr.f32.mxu0 0.0
        %6643 = vmatmul.mubr.f32.gmra.mrb[0].mxu0 %v4898
        %v6644 = vpop.f32.mrb[0].mxu0
        %v6645 = vadd.f32 %v6484, %v6644
        %v6646 = vpop.f32.mrb[0].mxu0
        %v6647 = vadd.f32 %v6486, %v6646
        %6648 = vmatprep.mubr.f32.mxu0 0.0
        %6649 = vmatmul.mubr.f32.gmra.mrb[0].mxu0 %v4901
        %v6650 = vpop.f32.mrb[0].mxu0
        %v6651 = vadd.f32 %v6490, %v6650
        %v6652 = vpop.f32.mrb[0].mxu0
        %v6653 = vadd.f32 %v6492, %v6652
        %6654 = vmatprep.mubr.f32.mxu0 0.0
        %6655 = vmatmul.mubr.f32.gmra.mrb[0].mxu0 %v5548
        %v6656 = vpop.f32.mrb[0].mxu0
        %v6657 = vadd.f32 %v6496, %v6656
        %v6658 = vpop.f32.mrb[0].mxu0
        %v6659 = vadd.f32 %v6498, %v6658
        %6660 = vdwg.mxu0
        %6661 = vmatprep.subr.mxu0 %v6198
        %6662 = vmatpush1.msra.mxu0 %v6197
        %6663 = vmatprep.subr.mxu0 %v6202
        %6664 = vmatpush1.msra.mxu0 %v6201
        %6665 = vmatprep.subr.mxu0 %v6206
        %6666 = vmatpush1.msra.mxu0 %v6205
        %6667 = vmatprep.subr.mxu0 %v6210
        %6668 = vmatpush1.msra.mxu0 %v6209
        %6669 = vmatprep.subr.mxu0 %v6214
        %6670 = vmatpush1.msra.mxu0 %v6213
        %6671 = vmatprep.subr.mxu0 %v6218
        %6672 = vmatpush1.msra.mxu0 %v6217
        %6673 = vmatprep.subr.mxu0 %v6222
        %6674 = vmatpush1.msra.mxu0 %v6221
        %6675 = vmatprep.subr.mxu0 %v6226
        %6676 = vmatpush1.msra.mxu0 %v6225
        %6677 = vmatprep.subr.mxu0 %v6230
        %6678 = vmatpush1.msra.mxu0 %v6229
        %6679 = vmatprep.subr.mxu0 %v6234
        %6680 = vmatpush1.msra.mxu0 %v6233
        %6681 = vmatprep.subr.mxu0 %v6238
        %6682 = vmatpush1.msra.mxu0 %v6237
        %6683 = vmatprep.subr.mxu0 %v6242
        %6684 = vmatpush1.msra.mxu0 %v6241
        %6685 = vmatprep.subr.mxu0 %v6246
        %6686 = vmatpush1.msra.mxu0 %v6245
        %6687 = vmatprep.subr.mxu0 %v6250
        %6688 = vmatpush1.msra.mxu0 %v6249
        %6689 = vmatprep.subr.mxu0 %v6254
        %6690 = vmatpush1.msra.mxu0 %v6253
        %6691 = vmatprep.subr.mxu0 %v6258
        %6692 = vmatpush1.msra.mxu0 %v6257
        %6693 = vmatprep.subr.mxu0 %v6262
        %6694 = vmatpush1.msra.mxu0 %v6261
        %6695 = vmatprep.subr.mxu0 %v6266
        %6696 = vmatpush1.msra.mxu0 %v6265
        %6697 = vmatprep.subr.mxu0 %v6270
        %6698 = vmatpush1.msra.mxu0 %v6269
        %6699 = vmatprep.subr.mxu0 %v6274
        %6700 = vmatpush1.msra.mxu0 %v6273
        %6701 = vmatprep.subr.mxu0 %v6278
        %6702 = vmatpush1.msra.mxu0 %v6277
        %6703 = vmatprep.subr.mxu0 %v6282
        %6704 = vmatpush1.msra.mxu0 %v6281
        %6705 = vmatprep.subr.mxu0 %v6286
        %6706 = vmatpush1.msra.mxu0 %v6285
        %6707 = vmatprep.subr.mxu0 %v6290
        %6708 = vmatpush1.msra.mxu0 %v6289
        %6709 = vmatprep.subr.mxu0 %v6294
        %6710 = vmatpush1.msra.mxu0 %v6293
        %6711 = vmatprep.subr.mxu0 %v6298
        %6712 = vmatpush1.msra.mxu0 %v6297
        %6713 = vmatprep.subr.mxu0 %v6302
        %6714 = vmatpush1.msra.mxu0 %v6301
        %6715 = vmatprep.subr.mxu0 %v6306
        %6716 = vmatpush1.msra.mxu0 %v6305
        %6717 = vmatprep.subr.mxu0 %v6310
        %6718 = vmatpush1.msra.mxu0 %v6309
        %6719 = vmatprep.subr.mxu0 %v6314
        %6720 = vmatpush1.msra.mxu0 %v6313
        %6721 = vmatprep.subr.mxu0 %v6318
        %6722 = vmatpush1.msra.mxu0 %v6317
        %6723 = vmatprep.subr.mxu0 %v6322
        %6724 = vmatpush1.msra.mxu0 %v6321
        %6725 = vmatprep.mubr.f32.mxu0 %v4521
        %6726 = vmatmul.mubr.f32.gmra.mrb[0].mxu0 %v4520
        %v6727 = vpop.f32.mrb[0].mxu0
        %v6728 = vadd.f32 0.0, %v6727
        %v6729 = vpop.f32.mrb[0].mxu0
        %v6730 = vadd.f32 0.0, %v6729
        %6731 = vmatprep.mubr.f32.mxu0 %v4524
        %6732 = vmatmul.mubr.f32.gmra.mrb[0].mxu0 %v4523
        %v6733 = vpop.f32.mrb[0].mxu0
        %v6734 = vadd.f32 0.0, %v6733
        %v6735 = vpop.f32.mrb[0].mxu0
        %v6736 = vadd.f32 0.0, %v6735
        %6737 = vmatprep.mubr.f32.mxu0 %v4527
        %6738 = vmatmul.mubr.f32.gmra.mrb[0].mxu0 %v4526
        %v6739 = vpop.f32.mrb[0].mxu0
        %v6740 = vadd.f32 0.0, %v6739
        %v6741 = vpop.f32.mrb[0].mxu0
        %v6742 = vadd.f32 0.0, %v6741
        %6743 = vmatprep.mubr.f32.mxu0 %v4530
        %6744 = vmatmul.mubr.f32.gmra.mrb[0].mxu0 %v4529
        %v6745 = vpop.f32.mrb[0].mxu0
        %v6746 = vadd.f32 0.0, %v6745
        %v6747 = vpop.f32.mrb[0].mxu0
        %v6748 = vadd.f32 0.0, %v6747
        %6749 = vmatprep.mubr.f32.mxu0 %v4533
        %6750 = vmatmul.mubr.f32.gmra.mrb[0].mxu0 %v4532
        %v6751 = vpop.f32.mrb[0].mxu0
        %v6752 = vadd.f32 0.0, %v6751
        %v6753 = vpop.f32.mrb[0].mxu0
        %v6754 = vadd.f32 0.0, %v6753
        %6755 = vmatprep.mubr.f32.mxu0 %v4536
        %6756 = vmatmul.mubr.f32.gmra.mrb[0].mxu0 %v4535
        %v6757 = vpop.f32.mrb[0].mxu0
        %v6758 = vadd.f32 0.0, %v6757
        %v6759 = vpop.f32.mrb[0].mxu0
        %v6760 = vadd.f32 0.0, %v6759
        %6761 = vmatprep.mubr.f32.mxu0 %v4539
        %6762 = vmatmul.mubr.f32.gmra.mrb[0].mxu0 %v4538
        %v6763 = vpop.f32.mrb[0].mxu0
        %v6764 = vadd.f32 0.0, %v6763
        %v6765 = vpop.f32.mrb[0].mxu0
        %v6766 = vadd.f32 0.0, %v6765
        %6767 = vmatprep.mubr.f32.mxu0 %v4542
        %6768 = vmatmul.mubr.f32.gmra.mrb[0].mxu0 %v4541
        %v6769 = vpop.f32.mrb[0].mxu0
        %v6770 = vadd.f32 0.0, %v6769
        %v6771 = vpop.f32.mrb[0].mxu0
        %v6772 = vadd.f32 0.0, %v6771
        %6773 = vmatprep.mubr.f32.mxu0 %v4545
        %6774 = vmatmul.mubr.f32.gmra.mrb[0].mxu0 %v4544
        %v6775 = vpop.f32.mrb[0].mxu0
        %v6776 = vadd.f32 0.0, %v6775
        %v6777 = vpop.f32.mrb[0].mxu0
        %v6778 = vadd.f32 0.0, %v6777
        %6779 = vmatprep.mubr.f32.mxu0 %v4548
        %6780 = vmatmul.mubr.f32.gmra.mrb[0].mxu0 %v4547
        %v6781 = vpop.f32.mrb[0].mxu0
        %v6782 = vadd.f32 0.0, %v6781
        %v6783 = vpop.f32.mrb[0].mxu0
        %v6784 = vadd.f32 0.0, %v6783
        %6785 = vmatprep.mubr.f32.mxu0 %v4551
        %6786 = vmatmul.mubr.f32.gmra.mrb[0].mxu0 %v4550
        %v6787 = vpop.f32.mrb[0].mxu0
        %v6788 = vadd.f32 0.0, %v6787
        %v6789 = vpop.f32.mrb[0].mxu0
        %v6790 = vadd.f32 0.0, %v6789
        %6791 = vmatprep.mubr.f32.mxu0 %v4554
        %6792 = vmatmul.mubr.f32.gmra.mrb[0].mxu0 %v4553
        %v6793 = vpop.f32.mrb[0].mxu0
        %v6794 = vadd.f32 0.0, %v6793
        %v6795 = vpop.f32.mrb[0].mxu0
        %v6796 = vadd.f32 0.0, %v6795
        %6797 = vmatprep.mubr.f32.mxu0 %v4557
        %6798 = vmatmul.mubr.f32.gmra.mrb[0].mxu0 %v4556
        %v6799 = vpop.f32.mrb[0].mxu0
        %v6800 = vadd.f32 0.0, %v6799
        %v6801 = vpop.f32.mrb[0].mxu0
        %v6802 = vadd.f32 0.0, %v6801
        %6803 = vmatprep.mubr.f32.mxu0 %v4560
        %6804 = vmatmul.mubr.f32.gmra.mrb[0].mxu0 %v4559
        %v6805 = vpop.f32.mrb[0].mxu0
        %v6806 = vadd.f32 0.0, %v6805
        %v6807 = vpop.f32.mrb[0].mxu0
        %v6808 = vadd.f32 0.0, %v6807
        %6809 = vmatprep.mubr.f32.mxu0 %v4563
        %6810 = vmatmul.mubr.f32.gmra.mrb[0].mxu0 %v4562
        %v6811 = vpop.f32.mrb[0].mxu0
        %v6812 = vadd.f32 0.0, %v6811
        %v6813 = vpop.f32.mrb[0].mxu0
        %v6814 = vadd.f32 0.0, %v6813
        %6815 = vmatprep.mubr.f32.mxu0 0.0
        %6816 = vmatmul.mubr.f32.gmra.mrb[0].mxu0 0.0
        %v6817 = vpop.f32.mrb[0].mxu0
        %v6818 = vadd.f32 0.0, %v6817
        %v6819 = vpop.f32.mrb[0].mxu0
        %v6820 = vadd.f32 0.0, %v6819
        %6821 = vdwg.mxu0
        %6822 = vmatprep.subr.mxu0 %v6326
        %6823 = vmatpush1.msra.mxu0 %v6325
        %6824 = vmatprep.subr.mxu0 %v6330
        %6825 = vmatpush1.msra.mxu0 %v6329
        %6826 = vmatprep.subr.mxu0 %v6334
        %6827 = vmatpush1.msra.mxu0 %v6333
        %6828 = vmatprep.subr.mxu0 %v6338
        %6829 = vmatpush1.msra.mxu0 %v6337
        %6830 = vmatprep.subr.mxu0 0.0
        %6831 = vmatpush1.msra.mxu0 0.0
        %6832 = vmatprep.subr.mxu0 0.0
        %6833 = vmatpush1.msra.mxu0 0.0
        %6834 = vmatprep.subr.mxu0 0.0
        %6835 = vmatpush1.msra.mxu0 0.0
        %6836 = vmatprep.subr.mxu0 0.0
        %6837 = vmatpush1.msra.mxu0 0.0
        %6838 = vmatprep.subr.mxu0 0.0
        %6839 = vmatpush1.msra.mxu0 0.0
        %6840 = vmatprep.subr.mxu0 0.0
        %6841 = vmatpush1.msra.mxu0 0.0
        %6842 = vmatprep.subr.mxu0 0.0
        %6843 = vmatpush1.msra.mxu0 0.0
        %6844 = vmatprep.subr.mxu0 0.0
        %6845 = vmatpush1.msra.mxu0 0.0
        %6846 = vmatprep.subr.mxu0 0.0
        %6847 = vmatpush1.msra.mxu0 0.0
        %6848 = vmatprep.subr.mxu0 0.0
        %6849 = vmatpush1.msra.mxu0 0.0
        %6850 = vmatprep.subr.mxu0 0.0
        %6851 = vmatpush1.msra.mxu0 0.0
        %6852 = vmatprep.subr.mxu0 0.0
        %6853 = vmatpush1.msra.mxu0 0.0
        %6854 = vmatprep.subr.mxu0 0.0
        %6855 = vmatpush1.msra.mxu0 0.0
        %6856 = vmatprep.subr.mxu0 0.0
        %6857 = vmatpush1.msra.mxu0 0.0
        %6858 = vmatprep.subr.mxu0 0.0
        %6859 = vmatpush1.msra.mxu0 0.0
        %6860 = vmatprep.subr.mxu0 0.0
        %6861 = vmatpush1.msra.mxu0 0.0
        %6862 = vmatprep.subr.mxu0 0.0
        %6863 = vmatpush1.msra.mxu0 0.0
        %6864 = vmatprep.subr.mxu0 0.0
        %6865 = vmatpush1.msra.mxu0 0.0
        %6866 = vmatprep.subr.mxu0 0.0
        %6867 = vmatpush1.msra.mxu0 0.0
        %6868 = vmatprep.subr.mxu0 0.0
        %6869 = vmatpush1.msra.mxu0 0.0
        %6870 = vmatprep.subr.mxu0 0.0
        %6871 = vmatpush1.msra.mxu0 0.0
        %6872 = vmatprep.subr.mxu0 0.0
        %6873 = vmatpush1.msra.mxu0 0.0
        %6874 = vmatprep.subr.mxu0 0.0
        %6875 = vmatpush1.msra.mxu0 0.0
        %6876 = vmatprep.subr.mxu0 0.0
        %6877 = vmatpush1.msra.mxu0 0.0
        %6878 = vmatprep.subr.mxu0 0.0
        %6879 = vmatpush1.msra.mxu0 0.0
        %6880 = vmatprep.subr.mxu0 0.0
        %6881 = vmatpush1.msra.mxu0 0.0
        %6882 = vmatprep.subr.mxu0 0.0
        %6883 = vmatpush1.msra.mxu0 0.0
        %6884 = vmatprep.subr.mxu0 0.0
        %6885 = vmatpush1.msra.mxu0 0.0
        %6886 = vmatprep.mubr.f32.mxu0 0.0
        %6887 = vmatmul.mubr.f32.gmra.mrb[0].mxu0 %v4859
        %v6888 = vpop.f32.mrb[0].mxu0
        %v6889 = vadd.f32 %v6728, %v6888
        %v6890 = vpop.f32.mrb[0].mxu0
        %v6891 = vadd.f32 %v6730, %v6890
        %6892 = vmatprep.mubr.f32.mxu0 0.0
        %6893 = vmatmul.mubr.f32.gmra.mrb[0].mxu0 %v4862
        %v6894 = vpop.f32.mrb[0].mxu0
        %v6895 = vadd.f32 %v6734, %v6894
        %v6896 = vpop.f32.mrb[0].mxu0
        %v6897 = vadd.f32 %v6736, %v6896
        %6898 = vmatprep.mubr.f32.mxu0 0.0
        %6899 = vmatmul.mubr.f32.gmra.mrb[0].mxu0 %v4865
        %v6900 = vpop.f32.mrb[0].mxu0
        %v6901 = vadd.f32 %v6740, %v6900
        %v6902 = vpop.f32.mrb[0].mxu0
        %v6903 = vadd.f32 %v6742, %v6902
        %6904 = vmatprep.mubr.f32.mxu0 0.0
        %6905 = vmatmul.mubr.f32.gmra.mrb[0].mxu0 %v4868
        %v6906 = vpop.f32.mrb[0].mxu0
        %v6907 = vadd.f32 %v6746, %v6906
        %v6908 = vpop.f32.mrb[0].mxu0
        %v6909 = vadd.f32 %v6748, %v6908
        %6910 = vmatprep.mubr.f32.mxu0 0.0
        %6911 = vmatmul.mubr.f32.gmra.mrb[0].mxu0 %v4871
        %v6912 = vpop.f32.mrb[0].mxu0
        %v6913 = vadd.f32 %v6752, %v6912
        %v6914 = vpop.f32.mrb[0].mxu0
        %v6915 = vadd.f32 %v6754, %v6914
        %6916 = vmatprep.mubr.f32.mxu0 0.0
        %6917 = vmatmul.mubr.f32.gmra.mrb[0].mxu0 %v4874
        %v6918 = vpop.f32.mrb[0].mxu0
        %v6919 = vadd.f32 %v6758, %v6918
        %v6920 = vpop.f32.mrb[0].mxu0
        %v6921 = vadd.f32 %v6760, %v6920
        %6922 = vmatprep.mubr.f32.mxu0 0.0
        %6923 = vmatmul.mubr.f32.gmra.mrb[0].mxu0 %v4877
        %v6924 = vpop.f32.mrb[0].mxu0
        %v6925 = vadd.f32 %v6764, %v6924
        %v6926 = vpop.f32.mrb[0].mxu0
        %v6927 = vadd.f32 %v6766, %v6926
        %6928 = vmatprep.mubr.f32.mxu0 0.0
        %6929 = vmatmul.mubr.f32.gmra.mrb[0].mxu0 %v4880
        %v6930 = vpop.f32.mrb[0].mxu0
        %v6931 = vadd.f32 %v6770, %v6930
        %v6932 = vpop.f32.mrb[0].mxu0
        %v6933 = vadd.f32 %v6772, %v6932
        %6934 = vmatprep.mubr.f32.mxu0 0.0
        %6935 = vmatmul.mubr.f32.gmra.mrb[0].mxu0 %v4883
        %v6936 = vpop.f32.mrb[0].mxu0
        %v6937 = vadd.f32 %v6776, %v6936
        %v6938 = vpop.f32.mrb[0].mxu0
        %v6939 = vadd.f32 %v6778, %v6938
        %6940 = vmatprep.mubr.f32.mxu0 0.0
        %6941 = vmatmul.mubr.f32.gmra.mrb[0].mxu0 %v4886
        %v6942 = vpop.f32.mrb[0].mxu0
        %v6943 = vadd.f32 %v6782, %v6942
        %v6944 = vpop.f32.mrb[0].mxu0
        %v6945 = vadd.f32 %v6784, %v6944
        %6946 = vmatprep.mubr.f32.mxu0 0.0
        %6947 = vmatmul.mubr.f32.gmra.mrb[0].mxu0 %v4889
        %v6948 = vpop.f32.mrb[0].mxu0
        %v6949 = vadd.f32 %v6788, %v6948
        %v6950 = vpop.f32.mrb[0].mxu0
        %v6951 = vadd.f32 %v6790, %v6950
        %6952 = vmatprep.mubr.f32.mxu0 0.0
        %6953 = vmatmul.mubr.f32.gmra.mrb[0].mxu0 %v4892
        %v6954 = vpop.f32.mrb[0].mxu0
        %v6955 = vadd.f32 %v6794, %v6954
        %v6956 = vpop.f32.mrb[0].mxu0
        %v6957 = vadd.f32 %v6796, %v6956
        %6958 = vmatprep.mubr.f32.mxu0 0.0
        %6959 = vmatmul.mubr.f32.gmra.mrb[0].mxu0 %v4895
        %v6960 = vpop.f32.mrb[0].mxu0
        %v6961 = vadd.f32 %v6800, %v6960
        %v6962 = vpop.f32.mrb[0].mxu0
        %v6963 = vadd.f32 %v6802, %v6962
        %6964 = vmatprep.mubr.f32.mxu0 0.0
        %6965 = vmatmul.mubr.f32.gmra.mrb[0].mxu0 %v4898
        %v6966 = vpop.f32.mrb[0].mxu0
        %v6967 = vadd.f32 %v6806, %v6966
        %v6968 = vpop.f32.mrb[0].mxu0
        %v6969 = vadd.f32 %v6808, %v6968
        %6970 = vmatprep.mubr.f32.mxu0 0.0
        %6971 = vmatmul.mubr.f32.gmra.mrb[0].mxu0 %v4901
        %v6972 = vpop.f32.mrb[0].mxu0
        %v6973 = vadd.f32 %v6812, %v6972
        %v6974 = vpop.f32.mrb[0].mxu0
        %v6975 = vadd.f32 %v6814, %v6974
        %6976 = vmatprep.mubr.f32.mxu0 0.0
        %6977 = vmatmul.mubr.f32.gmra.mrb[0].mxu0 %v5548
        %v6978 = vpop.f32.mrb[0].mxu0
        %v6979 = vadd.f32 %v6818, %v6978
        %v6980 = vpop.f32.mrb[0].mxu0
        %v6981 = vadd.f32 %v6820, %v6980
        %6982 = vdwg.mxu0
        %v6983 = vadd.f32 %v5778, %v6567
        %v6984 = vadd.f32 %v5780, %v6569
        %v6985 = vadd.f32 %v6100, %v6889
        %v6986 = vadd.f32 %v6102, %v6891
        %v6987 = vadd.f32 %v5784, %v6573
        %v6988 = vadd.f32 %v5786, %v6575
        %v6989 = vadd.f32 %v6106, %v6895
        %v6990 = vadd.f32 %v6108, %v6897
        %v6991 = vadd.f32 %v5790, %v6579
        %v6992 = vadd.f32 %v5792, %v6581
        %v6993 = vadd.f32 %v6112, %v6901
        %v6994 = vadd.f32 %v6114, %v6903
        %v6995 = vadd.f32 %v5796, %v6585
        %v6996 = vadd.f32 %v5798, %v6587
        %v6997 = vadd.f32 %v6118, %v6907
        %v6998 = vadd.f32 %v6120, %v6909
        %v6999 = vadd.f32 %v5802, %v6591
        %v7000 = vadd.f32 %v5804, %v6593
        %v7001 = vadd.f32 %v6124, %v6913
        %v7002 = vadd.f32 %v6126, %v6915
        %v7003 = vadd.f32 %v5808, %v6597
        %v7004 = vadd.f32 %v5810, %v6599
        %v7005 = vadd.f32 %v6130, %v6919
        %v7006 = vadd.f32 %v6132, %v6921
        %v7007 = vadd.f32 %v5814, %v6603
        %v7008 = vadd.f32 %v5816, %v6605
        %v7009 = vadd.f32 %v6136, %v6925
        %v7010 = vadd.f32 %v6138, %v6927
        %v7011 = vadd.f32 %v5820, %v6609
        %v7012 = vadd.f32 %v5822, %v6611
        %v7013 = vadd.f32 %v6142, %v6931
        %v7014 = vadd.f32 %v6144, %v6933
        %v7015 = vadd.f32 %v5826, %v6615
        %v7016 = vadd.f32 %v5828, %v6617
        %v7017 = vadd.f32 %v6148, %v6937
        %v7018 = vadd.f32 %v6150, %v6939
        %v7019 = vadd.f32 %v5832, %v6621
        %v7020 = vadd.f32 %v5834, %v6623
        %v7021 = vadd.f32 %v6154, %v6943
        %v7022 = vadd.f32 %v6156, %v6945
        %v7023 = vadd.f32 %v5838, %v6627
        %v7024 = vadd.f32 %v5840, %v6629
        %v7025 = vadd.f32 %v6160, %v6949
        %v7026 = vadd.f32 %v6162, %v6951
        %v7027 = vadd.f32 %v5844, %v6633
        %v7028 = vadd.f32 %v5846, %v6635
        %v7029 = vadd.f32 %v6166, %v6955
        %v7030 = vadd.f32 %v6168, %v6957
        %v7031 = vadd.f32 %v5850, %v6639
        %v7032 = vadd.f32 %v5852, %v6641
        %v7033 = vadd.f32 %v6172, %v6961
        %v7034 = vadd.f32 %v6174, %v6963
        %v7035 = vadd.f32 %v5856, %v6645
        %v7036 = vadd.f32 %v5858, %v6647
        %v7037 = vadd.f32 %v6178, %v6967
        %v7038 = vadd.f32 %v6180, %v6969
        %v7039 = vadd.f32 %v5862, %v6651
        %v7040 = vadd.f32 %v5864, %v6653
        %v7041 = vadd.f32 %v6184, %v6973
        %v7042 = vadd.f32 %v6186, %v6975
        %v7043 = vadd.f32 %v5868, %v6657
        %v7044 = vadd.f32 %v5870, %v6659
        %v7045 = vadd.f32 %v6190, %v6979
        %v7046 = vadd.f32 %v6192, %v6981
        %v7047 = vld [vmem:[%s6] sm:$0xf]
        %v7049 = vlaneseq
        %v7050 = vshrl.u32 %v7049, 7
        %v7051 = vsub.s32 0, %v7050
        %v7052 = vrot.slane %v7047, %v7051
        %v7053 = vlaneseq
        %v7054 = vshrl.u32 %v7053, 7
        %v7055 = vsub.s32 1, %v7054
        %v7056 = vrot.slane %v7047, %v7055
        %v7057 = vlaneseq
        %v7058 = vshrl.u32 %v7057, 7
        %v7059 = vsub.s32 2, %v7058
        %v7060 = vrot.slane %v7047, %v7059
        %v7061 = vlaneseq
        %v7062 = vshrl.u32 %v7061, 7
        %v7063 = vsub.s32 3, %v7062
        %v7064 = vrot.slane %v7047, %v7063
        %v7069 = vadd.f32 %v6983, %v7052
        %v7070 = vadd.f32 %v6984, %v7056
        %v7071 = vadd.f32 %v6985, %v7060
        %v7072 = vadd.f32 %v6986, %v7064
        %v7073 = vadd.f32 %v6987, %v7052
        %v7074 = vadd.f32 %v6988, %v7056
        %v7075 = vadd.f32 %v6989, %v7060
        %v7076 = vadd.f32 %v6990, %v7064
        %v7077 = vadd.f32 %v6991, %v7052
        %v7078 = vadd.f32 %v6992, %v7056
        %v7079 = vadd.f32 %v6993, %v7060
        %v7080 = vadd.f32 %v6994, %v7064
        %v7081 = vadd.f32 %v6995, %v7052
        %v7082 = vadd.f32 %v6996, %v7056
        %v7083 = vadd.f32 %v6997, %v7060
        %v7084 = vadd.f32 %v6998, %v7064
        %v7085 = vadd.f32 %v6999, %v7052
        %v7086 = vadd.f32 %v7000, %v7056
        %v7087 = vadd.f32 %v7001, %v7060
        %v7088 = vadd.f32 %v7002, %v7064
        %v7089 = vadd.f32 %v7003, %v7052
        %v7090 = vadd.f32 %v7004, %v7056
        %v7091 = vadd.f32 %v7005, %v7060
        %v7092 = vadd.f32 %v7006, %v7064
        %v7093 = vadd.f32 %v7007, %v7052
        %v7094 = vadd.f32 %v7008, %v7056
        %v7095 = vadd.f32 %v7009, %v7060
        %v7096 = vadd.f32 %v7010, %v7064
        %v7097 = vadd.f32 %v7011, %v7052
        %v7098 = vadd.f32 %v7012, %v7056
        %v7099 = vadd.f32 %v7013, %v7060
        %v7100 = vadd.f32 %v7014, %v7064
        %v7101 = vadd.f32 %v7015, %v7052
        %v7102 = vadd.f32 %v7016, %v7056
        %v7103 = vadd.f32 %v7017, %v7060
        %v7104 = vadd.f32 %v7018, %v7064
        %v7105 = vadd.f32 %v7019, %v7052
        %v7106 = vadd.f32 %v7020, %v7056
        %v7107 = vadd.f32 %v7021, %v7060
        %v7108 = vadd.f32 %v7022, %v7064
        %v7109 = vadd.f32 %v7023, %v7052
        %v7110 = vadd.f32 %v7024, %v7056
        %v7111 = vadd.f32 %v7025, %v7060
        %v7112 = vadd.f32 %v7026, %v7064
        %v7113 = vadd.f32 %v7027, %v7052
        %v7114 = vadd.f32 %v7028, %v7056
        %v7115 = vadd.f32 %v7029, %v7060
        %v7116 = vadd.f32 %v7030, %v7064
        %v7117 = vadd.f32 %v7031, %v7052
        %v7118 = vadd.f32 %v7032, %v7056
        %v7119 = vadd.f32 %v7033, %v7060
        %v7120 = vadd.f32 %v7034, %v7064
        %v7121 = vadd.f32 %v7035, %v7052
        %v7122 = vadd.f32 %v7036, %v7056
        %v7123 = vadd.f32 %v7037, %v7060
        %v7124 = vadd.f32 %v7038, %v7064
        %v7125 = vadd.f32 %v7039, %v7052
        %v7126 = vadd.f32 %v7040, %v7056
        %v7127 = vadd.f32 %v7041, %v7060
        %v7128 = vadd.f32 %v7042, %v7064
        %v7129 = vadd.f32 %v7043, %v7052
        %v7130 = vadd.f32 %v7044, %v7056
        %v7131 = vadd.f32 %v7045, %v7060
        %v7132 = vadd.f32 %v7046, %v7064
        %v7133 = vmax.f32 %v7069, 0.0
        %v7134 = vmax.f32 %v7070, 0.0
        %v7135 = vmax.f32 %v7071, 0.0
        %v7136 = vmax.f32 %v7072, 0.0
        %v7137 = vmax.f32 %v7073, 0.0
        %v7138 = vmax.f32 %v7074, 0.0
        %v7139 = vmax.f32 %v7075, 0.0
        %v7140 = vmax.f32 %v7076, 0.0
        %v7141 = vmax.f32 %v7077, 0.0
        %v7142 = vmax.f32 %v7078, 0.0
        %v7143 = vmax.f32 %v7079, 0.0
        %v7144 = vmax.f32 %v7080, 0.0
        %v7145 = vmax.f32 %v7081, 0.0
        %v7146 = vmax.f32 %v7082, 0.0
        %v7147 = vmax.f32 %v7083, 0.0
        %v7148 = vmax.f32 %v7084, 0.0
        %v7149 = vmax.f32 %v7085, 0.0
        %v7150 = vmax.f32 %v7086, 0.0
        %v7151 = vmax.f32 %v7087, 0.0
        %v7152 = vmax.f32 %v7088, 0.0
        %v7153 = vmax.f32 %v7089, 0.0
        %v7154 = vmax.f32 %v7090, 0.0
        %v7155 = vmax.f32 %v7091, 0.0
        %v7156 = vmax.f32 %v7092, 0.0
        %v7157 = vmax.f32 %v7093, 0.0
        %v7158 = vmax.f32 %v7094, 0.0
        %v7159 = vmax.f32 %v7095, 0.0
        %v7160 = vmax.f32 %v7096, 0.0
        %v7161 = vmax.f32 %v7097, 0.0
        %v7162 = vmax.f32 %v7098, 0.0
        %v7163 = vmax.f32 %v7099, 0.0
        %v7164 = vmax.f32 %v7100, 0.0
        %v7165 = vmax.f32 %v7101, 0.0
        %v7166 = vmax.f32 %v7102, 0.0
        %v7167 = vmax.f32 %v7103, 0.0
        %v7168 = vmax.f32 %v7104, 0.0
        %v7169 = vmax.f32 %v7105, 0.0
        %v7170 = vmax.f32 %v7106, 0.0
        %v7171 = vmax.f32 %v7107, 0.0
        %v7172 = vmax.f32 %v7108, 0.0
        %v7173 = vmax.f32 %v7109, 0.0
        %v7174 = vmax.f32 %v7110, 0.0
        %v7175 = vmax.f32 %v7111, 0.0
        %v7176 = vmax.f32 %v7112, 0.0
        %v7177 = vmax.f32 %v7113, 0.0
        %v7178 = vmax.f32 %v7114, 0.0
        %v7179 = vmax.f32 %v7115, 0.0
        %v7180 = vmax.f32 %v7116, 0.0
        %v7181 = vmax.f32 %v7117, 0.0
        %v7182 = vmax.f32 %v7118, 0.0
        %v7183 = vmax.f32 %v7119, 0.0
        %v7184 = vmax.f32 %v7120, 0.0
        %v7185 = vmax.f32 %v7121, 0.0
        %v7186 = vmax.f32 %v7122, 0.0
        %v7187 = vmax.f32 %v7123, 0.0
        %v7188 = vmax.f32 %v7124, 0.0
        %v7189 = vmax.f32 %v7125, 0.0
        %v7190 = vmax.f32 %v7126, 0.0
        %v7191 = vmax.f32 %v7127, 0.0
        %v7192 = vmax.f32 %v7128, 0.0
        %v7193 = vmax.f32 %v7129, 0.0
        %v7194 = vmax.f32 %v7130, 0.0
        %v7195 = vmax.f32 %v7131, 0.0
        %v7196 = vmax.f32 %v7132, 0.0
        %v7197 = vmax.f32 %v7133, %v7137
        %v7198 = vmax.f32 %v7134, %v7138
        %v7199 = vmax.f32 %v7135, %v7139
        %v7200 = vmax.f32 %v7136, %v7140
        %v7201 = vmax.f32 %v7141, %v7145
        %v7202 = vmax.f32 %v7142, %v7146
        %v7203 = vmax.f32 %v7143, %v7147
        %v7204 = vmax.f32 %v7144, %v7148
        %v7205 = vmax.f32 %v7149, %v7153
        %v7206 = vmax.f32 %v7150, %v7154
        %v7207 = vmax.f32 %v7151, %v7155
        %v7208 = vmax.f32 %v7152, %v7156
        %v7209 = vmax.f32 %v7157, %v7161
        %v7210 = vmax.f32 %v7158, %v7162
        %v7211 = vmax.f32 %v7159, %v7163
        %v7212 = vmax.f32 %v7160, %v7164
        %v7213 = vmax.f32 %v7165, %v7169
        %v7214 = vmax.f32 %v7166, %v7170
        %v7215 = vmax.f32 %v7167, %v7171
        %v7216 = vmax.f32 %v7168, %v7172
        %v7217 = vmax.f32 %v7173, %v7177
        %v7218 = vmax.f32 %v7174, %v7178
        %v7219 = vmax.f32 %v7175, %v7179
        %v7220 = vmax.f32 %v7176, %v7180
        %v7221 = vmax.f32 %v7181, %v7185
        %v7222 = vmax.f32 %v7182, %v7186
        %v7223 = vmax.f32 %v7183, %v7187
        %v7224 = vmax.f32 %v7184, %v7188
        %v7225 = vmax.f32 %v7189, %v7193
        %v7226 = vmax.f32 %v7190, %v7194
        %v7227 = vmax.f32 %v7191, %v7195
        %v7228 = vmax.f32 %v7192, %v7196
        %v7229 = vld [vmem:[%s7] sm:$0xff]
        %v7230 = vld [vmem:[%s7 + $0x8] sm:$0xff]
        %v7231 = vld [vmem:[%s7 + $0x10] sm:$0xff]
        %v7232 = vld [vmem:[%s7 + $0x18] sm:$0xff]
        %v7233 = vld [vmem:[%s7 + $0x20] sm:$0xff]
        %v7234 = vld [vmem:[%s7 + $0x28] sm:$0xff]
        %v7235 = vld [vmem:[%s7 + $0x30] sm:$0xff]
        %v7236 = vld [vmem:[%s7 + $0x38] sm:$0xff]
        %v7237 = vld [vmem:[%s7 + $0x40] sm:$0xff]
        %v7238 = vld [vmem:[%s7 + $0x48] sm:$0xff]
        %v7239 = vld [vmem:[%s7 + $0x50] sm:$0xff]
        %v7240 = vld [vmem:[%s7 + $0x58] sm:$0xff]
        %v7241 = vld [vmem:[%s7 + $0x60] sm:$0xff]
        %v7242 = vld [vmem:[%s7 + $0x68] sm:$0xff]
        %v7243 = vld [vmem:[%s7 + $0x70] sm:$0xff]
        %v7244 = vld [vmem:[%s7 + $0x78] sm:$0xff]
        %v7245 = vld [vmem:[%s7 + $0x80] sm:$0xff]
        %v7246 = vld [vmem:[%s7 + $0x88] sm:$0xff]
        %v7247 = vld [vmem:[%s7 + $0x90] sm:$0xff]
        %v7248 = vld [vmem:[%s7 + $0x98] sm:$0xff]
        %v7249 = vld [vmem:[%s7 + $0xa0] sm:$0xff]
        %v7250 = vld [vmem:[%s7 + $0xa8] sm:$0xff]
        %v7251 = vld [vmem:[%s7 + $0xb0] sm:$0xff]
        %v7252 = vld [vmem:[%s7 + $0xb8] sm:$0xff]
        %v7253 = vld [vmem:[%s7 + $0xc0] sm:$0xff]
        %v7254 = vld [vmem:[%s7 + $0xc8] sm:$0xff]
        %v7255 = vld [vmem:[%s7 + $0xd0] sm:$0xff]
        %v7256 = vld [vmem:[%s7 + $0xd8] sm:$0xff]
        %v7257 = vld [vmem:[%s7 + $0xe0] sm:$0xff]
        %v7258 = vld [vmem:[%s7 + $0xe8] sm:$0xff]
        %v7259 = vld [vmem:[%s7 + $0xf0] sm:$0xff]
        %v7260 = vld [vmem:[%s7 + $0xf8] sm:$0xff]
        %v7261 = vld [vmem:[%s7 + $0x100] sm:$0xff]
        %v7262 = vld [vmem:[%s7 + $0x108] sm:$0xff]
        %v7263 = vld [vmem:[%s7 + $0x110] sm:$0xff]
        %v7264 = vld [vmem:[%s7 + $0x118] sm:$0xff]
        %v7265 = vld [vmem:[%s7 + $0x120] sm:$0xff]
        %v7266 = vld [vmem:[%s7 + $0x128] sm:$0xff]
        %v7267 = vld [vmem:[%s7 + $0x130] sm:$0xff]
        %v7268 = vld [vmem:[%s7 + $0x138] sm:$0xff]
        %v7269 = vld [vmem:[%s7 + $0x140] sm:$0xff]
        %v7270 = vld [vmem:[%s7 + $0x148] sm:$0xff]
        %v7271 = vld [vmem:[%s7 + $0x150] sm:$0xff]
        %v7272 = vld [vmem:[%s7 + $0x158] sm:$0xff]
        %v7273 = vld [vmem:[%s7 + $0x160] sm:$0xff]
        %v7274 = vld [vmem:[%s7 + $0x168] sm:$0xff]
        %v7275 = vld [vmem:[%s7 + $0x170] sm:$0xff]
        %v7276 = vld [vmem:[%s7 + $0x178] sm:$0xff]
        %v7277 = vld [vmem:[%s7 + $0x180] sm:$0xff]
        %v7278 = vld [vmem:[%s7 + $0x188] sm:$0xff]
        %v7279 = vld [vmem:[%s7 + $0x190] sm:$0xff]
        %v7280 = vld [vmem:[%s7 + $0x198] sm:$0xff]
        %v7281 = vld [vmem:[%s7 + $0x1a0] sm:$0xff]
        %v7282 = vld [vmem:[%s7 + $0x1a8] sm:$0xff]
        %v7283 = vld [vmem:[%s7 + $0x1b0] sm:$0xff]
        %v7284 = vld [vmem:[%s7 + $0x1b8] sm:$0xff]
        %v7285 = vld [vmem:[%s7 + $0x1c0] sm:$0xff]
        %v7286 = vld [vmem:[%s7 + $0x1c8] sm:$0xff]
        %v7287 = vld [vmem:[%s7 + $0x1d0] sm:$0xff]
        %v7288 = vld [vmem:[%s7 + $0x1d8] sm:$0xff]
        %v7289 = vld [vmem:[%s7 + $0x1e0] sm:$0xff]
        %v7290 = vld [vmem:[%s7 + $0x1e8] sm:$0xff]
        %v7291 = vld [vmem:[%s7 + $0x1f0] sm:$0xff]
        %v7292 = vld [vmem:[%s7 + $0x1f8] sm:$0xff]
        %v7293 = vld [vmem:[%s7 + $0x200] sm:$0xff]
        %v7294 = vld [vmem:[%s7 + $0x208] sm:$0xff]
        %v7295 = vld [vmem:[%s7 + $0x210] sm:$0xff]
        %v7296 = vld [vmem:[%s7 + $0x218] sm:$0xff]
        %v7297 = vld [vmem:[%s7 + $0x220] sm:$0xff]
        %v7298 = vld [vmem:[%s7 + $0x228] sm:$0xff]
        %v7299 = vld [vmem:[%s7 + $0x230] sm:$0xff]
        %v7300 = vld [vmem:[%s7 + $0x238] sm:$0xff]
        %v7301 = vld [vmem:[%s7 + $0x240] sm:$0xff]
        %v7302 = vld [vmem:[%s7 + $0x248] sm:$0xff]
        %v7303 = vld [vmem:[%s7 + $0x250] sm:$0xff]
        %v7304 = vld [vmem:[%s7 + $0x258] sm:$0xff]
        %v7305 = vld [vmem:[%s7 + $0x260] sm:$0xff]
        %v7306 = vld [vmem:[%s7 + $0x268] sm:$0xff]
        %v7307 = vld [vmem:[%s7 + $0x270] sm:$0xff]
        %v7308 = vld [vmem:[%s7 + $0x278] sm:$0xff]
        %v7309 = vld [vmem:[%s7 + $0x280] sm:$0xff]
        %v7310 = vld [vmem:[%s7 + $0x288] sm:$0xff]
        %v7311 = vld [vmem:[%s7 + $0x290] sm:$0xff]
        %v7312 = vld [vmem:[%s7 + $0x298] sm:$0xff]
        %v7313 = vld [vmem:[%s7 + $0x2a0] sm:$0xff]
        %v7314 = vld [vmem:[%s7 + $0x2a8] sm:$0xff]
        %v7315 = vld [vmem:[%s7 + $0x2b0] sm:$0xff]
        %v7316 = vld [vmem:[%s7 + $0x2b8] sm:$0xff]
        %v7317 = vld [vmem:[%s7 + $0x2c0] sm:$0xff]
        %v7318 = vld [vmem:[%s7 + $0x2c8] sm:$0xff]
        %v7319 = vld [vmem:[%s7 + $0x2d0] sm:$0xff]
        %v7320 = vld [vmem:[%s7 + $0x2d8] sm:$0xff]
        %v7321 = vld [vmem:[%s7 + $0x2e0] sm:$0xff]
        %v7322 = vld [vmem:[%s7 + $0x2e8] sm:$0xff]
        %v7323 = vld [vmem:[%s7 + $0x2f0] sm:$0xff]
        %v7324 = vld [vmem:[%s7 + $0x2f8] sm:$0xff]
        %v7325 = vld [vmem:[%s7 + $0x300] sm:$0xff]
        %v7326 = vld [vmem:[%s7 + $0x308] sm:$0xff]
        %v7327 = vld [vmem:[%s7 + $0x310] sm:$0xff]
        %v7328 = vld [vmem:[%s7 + $0x318] sm:$0xff]
        %v7329 = vld [vmem:[%s7 + $0x320] sm:$0xff]
        %v7330 = vld [vmem:[%s7 + $0x328] sm:$0xff]
        %v7331 = vld [vmem:[%s7 + $0x330] sm:$0xff]
        %v7332 = vld [vmem:[%s7 + $0x338] sm:$0xff]
        %v7333 = vld [vmem:[%s7 + $0x340] sm:$0xff]
        %v7334 = vld [vmem:[%s7 + $0x348] sm:$0xff]
        %v7335 = vld [vmem:[%s7 + $0x350] sm:$0xff]
        %v7336 = vld [vmem:[%s7 + $0x358] sm:$0xff]
        %v7337 = vld [vmem:[%s7 + $0x360] sm:$0xff]
        %v7338 = vld [vmem:[%s7 + $0x368] sm:$0xff]
        %v7339 = vld [vmem:[%s7 + $0x370] sm:$0xff]
        %v7340 = vld [vmem:[%s7 + $0x378] sm:$0xff]
        %v7341 = vld [vmem:[%s7 + $0x380] sm:$0xff]
        %v7342 = vld [vmem:[%s7 + $0x388] sm:$0xff]
        %v7343 = vld [vmem:[%s7 + $0x390] sm:$0xff]
        %v7344 = vld [vmem:[%s7 + $0x398] sm:$0xff]
        %v7345 = vld [vmem:[%s7 + $0x3a0] sm:$0xff]
        %v7346 = vld [vmem:[%s7 + $0x3a8] sm:$0xff]
        %v7347 = vld [vmem:[%s7 + $0x3b0] sm:$0xff]
        %v7348 = vld [vmem:[%s7 + $0x3b8] sm:$0xff]
        %v7349 = vld [vmem:[%s7 + $0x3c0] sm:$0xff]
        %v7350 = vld [vmem:[%s7 + $0x3c8] sm:$0xff]
        %v7351 = vld [vmem:[%s7 + $0x3d0] sm:$0xff]
        %v7352 = vld [vmem:[%s7 + $0x3d8] sm:$0xff]
        %v7353 = vld [vmem:[%s7 + $0x3e0] sm:$0xff]
        %v7354 = vld [vmem:[%s7 + $0x3e8] sm:$0xff]
        %v7355 = vld [vmem:[%s7 + $0x3f0] sm:$0xff]
        %v7356 = vld [vmem:[%s7 + $0x3f8] sm:$0xff]
        %7357 = vmatprep.subr.mxu0 %v7230
        %7358 = vmatpush1.msra.mxu0 %v7229
        %7359 = vmatprep.subr.mxu0 %v7232
        %7360 = vmatpush1.msra.mxu0 %v7231
        %7361 = vmatprep.subr.mxu0 %v7234
        %7362 = vmatpush1.msra.mxu0 %v7233
        %7363 = vmatprep.subr.mxu0 %v7236
        %7364 = vmatpush1.msra.mxu0 %v7235
        %7365 = vmatprep.subr.mxu0 %v7238
        %7366 = vmatpush1.msra.mxu0 %v7237
        %7367 = vmatprep.subr.mxu0 %v7240
        %7368 = vmatpush1.msra.mxu0 %v7239
        %7369 = vmatprep.subr.mxu0 %v7242
        %7370 = vmatpush1.msra.mxu0 %v7241
        %7371 = vmatprep.subr.mxu0 %v7244
        %7372 = vmatpush1.msra.mxu0 %v7243
        %7373 = vmatprep.subr.mxu0 %v7246
        %7374 = vmatpush1.msra.mxu0 %v7245
        %7375 = vmatprep.subr.mxu0 %v7248
        %7376 = vmatpush1.msra.mxu0 %v7247
        %7377 = vmatprep.subr.mxu0 %v7250
        %7378 = vmatpush1.msra.mxu0 %v7249
        %7379 = vmatprep.subr.mxu0 %v7252
        %7380 = vmatpush1.msra.mxu0 %v7251
        %7381 = vmatprep.subr.mxu0 %v7254
        %7382 = vmatpush1.msra.mxu0 %v7253
        %7383 = vmatprep.subr.mxu0 %v7256
        %7384 = vmatpush1.msra.mxu0 %v7255
        %7385 = vmatprep.subr.mxu0 %v7258
        %7386 = vmatpush1.msra.mxu0 %v7257
        %7387 = vmatprep.subr.mxu0 %v7260
        %7388 = vmatpush1.msra.mxu0 %v7259
        %7389 = vmatprep.subr.mxu0 %v7262
        %7390 = vmatpush1.msra.mxu0 %v7261
        %7391 = vmatprep.subr.mxu0 %v7264
        %7392 = vmatpush1.msra.mxu0 %v7263
        %7393 = vmatprep.subr.mxu0 %v7266
        %7394 = vmatpush1.msra.mxu0 %v7265
        %7395 = vmatprep.subr.mxu0 %v7268
        %7396 = vmatpush1.msra.mxu0 %v7267
        %7397 = vmatprep.subr.mxu0 %v7270
        %7398 = vmatpush1.msra.mxu0 %v7269
        %7399 = vmatprep.subr.mxu0 %v7272
        %7400 = vmatpush1.msra.mxu0 %v7271
        %7401 = vmatprep.subr.mxu0 %v7274
        %7402 = vmatpush1.msra.mxu0 %v7273
        %7403 = vmatprep.subr.mxu0 %v7276
        %7404 = vmatpush1.msra.mxu0 %v7275
        %7405 = vmatprep.subr.mxu0 %v7278
        %7406 = vmatpush1.msra.mxu0 %v7277
        %7407 = vmatprep.subr.mxu0 %v7280
        %7408 = vmatpush1.msra.mxu0 %v7279
        %7409 = vmatprep.subr.mxu0 %v7282
        %7410 = vmatpush1.msra.mxu0 %v7281
        %7411 = vmatprep.subr.mxu0 %v7284
        %7412 = vmatpush1.msra.mxu0 %v7283
        %7413 = vmatprep.subr.mxu0 %v7286
        %7414 = vmatpush1.msra.mxu0 %v7285
        %7415 = vmatprep.subr.mxu0 %v7288
        %7416 = vmatpush1.msra.mxu0 %v7287
        %7417 = vmatprep.subr.mxu0 %v7290
        %7418 = vmatpush1.msra.mxu0 %v7289
        %7419 = vmatprep.subr.mxu0 %v7292
        %7420 = vmatpush1.msra.mxu0 %v7291
        %7421 = vmatprep.mubr.f32.mxu0 %v7198
        %7422 = vmatmul.mubr.f32.gmra.mrb[0].mxu0 %v7197
        %v7423 = vpop.f32.mrb[0].mxu0
        %v7424 = vadd.f32 0.0, %v7423
        %v7425 = vpop.f32.mrb[0].mxu0
        %v7426 = vadd.f32 0.0, %v7425
        %7427 = vmatprep.mubr.f32.mxu0 %v7202
        %7428 = vmatmul.mubr.f32.gmra.mrb[0].mxu0 %v7201
        %v7429 = vpop.f32.mrb[0].mxu0
        %v7430 = vadd.f32 0.0, %v7429
        %v7431 = vpop.f32.mrb[0].mxu0
        %v7432 = vadd.f32 0.0, %v7431
        %7433 = vmatprep.mubr.f32.mxu0 %v7206
        %7434 = vmatmul.mubr.f32.gmra.mrb[0].mxu0 %v7205
        %v7435 = vpop.f32.mrb[0].mxu0
        %v7436 = vadd.f32 0.0, %v7435
        %v7437 = vpop.f32.mrb[0].mxu0
        %v7438 = vadd.f32 0.0, %v7437
        %7439 = vmatprep.mubr.f32.mxu0 %v7210
        %7440 = vmatmul.mubr.f32.gmra.mrb[0].mxu0 %v7209
        %v7441 = vpop.f32.mrb[0].mxu0
        %v7442 = vadd.f32 0.0, %v7441
        %v7443 = vpop.f32.mrb[0].mxu0
        %v7444 = vadd.f32 0.0, %v7443
        %7445 = vmatprep.mubr.f32.mxu0 %v7214
        %7446 = vmatmul.mubr.f32.gmra.mrb[0].mxu0 %v7213
        %v7447 = vpop.f32.mrb[0].mxu0
        %v7448 = vadd.f32 0.0, %v7447
        %v7449 = vpop.f32.mrb[0].mxu0
        %v7450 = vadd.f32 0.0, %v7449
        %7451 = vmatprep.mubr.f32.mxu0 %v7218
        %7452 = vmatmul.mubr.f32.gmra.mrb[0].mxu0 %v7217
        %v7453 = vpop.f32.mrb[0].mxu0
        %v7454 = vadd.f32 0.0, %v7453
        %v7455 = vpop.f32.mrb[0].mxu0
        %v7456 = vadd.f32 0.0, %v7455
        %7457 = vmatprep.mubr.f32.mxu0 %v7222
        %7458 = vmatmul.mubr.f32.gmra.mrb[0].mxu0 %v7221
        %v7459 = vpop.f32.mrb[0].mxu0
        %v7460 = vadd.f32 0.0, %v7459
        %v7461 = vpop.f32.mrb[0].mxu0
        %v7462 = vadd.f32 0.0, %v7461
        %7463 = vmatprep.mubr.f32.mxu0 %v7226
        %7464 = vmatmul.mubr.f32.gmra.mrb[0].mxu0 %v7225
        %v7465 = vpop.f32.mrb[0].mxu0
        %v7466 = vadd.f32 0.0, %v7465
        %v7467 = vpop.f32.mrb[0].mxu0
        %v7468 = vadd.f32 0.0, %v7467
        %7469 = vdwg.mxu0
        %7470 = vmatprep.subr.mxu0 %v7294
        %7471 = vmatpush1.msra.mxu0 %v7293
        %7472 = vmatprep.subr.mxu0 %v7296
        %7473 = vmatpush1.msra.mxu0 %v7295
        %7474 = vmatprep.subr.mxu0 %v7298
        %7475 = vmatpush1.msra.mxu0 %v7297
        %7476 = vmatprep.subr.mxu0 %v7300
        %7477 = vmatpush1.msra.mxu0 %v7299
        %7478 = vmatprep.subr.mxu0 %v7302
        %7479 = vmatpush1.msra.mxu0 %v7301
        %7480 = vmatprep.subr.mxu0 %v7304
        %7481 = vmatpush1.msra.mxu0 %v7303
        %7482 = vmatprep.subr.mxu0 %v7306
        %7483 = vmatpush1.msra.mxu0 %v7305
        %7484 = vmatprep.subr.mxu0 %v7308
        %7485 = vmatpush1.msra.mxu0 %v7307
        %7486 = vmatprep.subr.mxu0 %v7310
        %7487 = vmatpush1.msra.mxu0 %v7309
        %7488 = vmatprep.subr.mxu0 %v7312
        %7489 = vmatpush1.msra.mxu0 %v7311
        %7490 = vmatprep.subr.mxu0 %v7314
        %7491 = vmatpush1.msra.mxu0 %v7313
        %7492 = vmatprep.subr.mxu0 %v7316
        %7493 = vmatpush1.msra.mxu0 %v7315
        %7494 = vmatprep.subr.mxu0 %v7318
        %7495 = vmatpush1.msra.mxu0 %v7317
        %7496 = vmatprep.subr.mxu0 %v7320
        %7497 = vmatpush1.msra.mxu0 %v7319
        %7498 = vmatprep.subr.mxu0 %v7322
        %7499 = vmatpush1.msra.mxu0 %v7321
        %7500 = vmatprep.subr.mxu0 %v7324
        %7501 = vmatpush1.msra.mxu0 %v7323
        %7502 = vmatprep.subr.mxu0 %v7326
        %7503 = vmatpush1.msra.mxu0 %v7325
        %7504 = vmatprep.subr.mxu0 %v7328
        %7505 = vmatpush1.msra.mxu0 %v7327
        %7506 = vmatprep.subr.mxu0 %v7330
        %7507 = vmatpush1.msra.mxu0 %v7329
        %7508 = vmatprep.subr.mxu0 %v7332
        %7509 = vmatpush1.msra.mxu0 %v7331
        %7510 = vmatprep.subr.mxu0 %v7334
        %7511 = vmatpush1.msra.mxu0 %v7333
        %7512 = vmatprep.subr.mxu0 %v7336
        %7513 = vmatpush1.msra.mxu0 %v7335
        %7514 = vmatprep.subr.mxu0 %v7338
        %7515 = vmatpush1.msra.mxu0 %v7337
        %7516 = vmatprep.subr.mxu0 %v7340
        %7517 = vmatpush1.msra.mxu0 %v7339
        %7518 = vmatprep.subr.mxu0 %v7342
        %7519 = vmatpush1.msra.mxu0 %v7341
        %7520 = vmatprep.subr.mxu0 %v7344
        %7521 = vmatpush1.msra.mxu0 %v7343
        %7522 = vmatprep.subr.mxu0 %v7346
        %7523 = vmatpush1.msra.mxu0 %v7345
        %7524 = vmatprep.subr.mxu0 %v7348
        %7525 = vmatpush1.msra.mxu0 %v7347
        %7526 = vmatprep.subr.mxu0 %v7350
        %7527 = vmatpush1.msra.mxu0 %v7349
        %7528 = vmatprep.subr.mxu0 %v7352
        %7529 = vmatpush1.msra.mxu0 %v7351
        %7530 = vmatprep.subr.mxu0 %v7354
        %7531 = vmatpush1.msra.mxu0 %v7353
        %7532 = vmatprep.subr.mxu0 %v7356
        %7533 = vmatpush1.msra.mxu0 %v7355
        %7534 = vmatprep.mubr.f32.mxu0 %v7200
        %7535 = vmatmul.mubr.f32.gmra.mrb[0].mxu0 %v7199
        %v7536 = vpop.f32.mrb[0].mxu0
        %v7537 = vadd.f32 %v7424, %v7536
        %v7538 = vpop.f32.mrb[0].mxu0
        %v7539 = vadd.f32 %v7426, %v7538
        %7540 = vmatprep.mubr.f32.mxu0 %v7204
        %7541 = vmatmul.mubr.f32.gmra.mrb[0].mxu0 %v7203
        %v7542 = vpop.f32.mrb[0].mxu0
        %v7543 = vadd.f32 %v7430, %v7542
        %v7544 = vpop.f32.mrb[0].mxu0
        %v7545 = vadd.f32 %v7432, %v7544
        %7546 = vmatprep.mubr.f32.mxu0 %v7208
        %7547 = vmatmul.mubr.f32.gmra.mrb[0].mxu0 %v7207
        %v7548 = vpop.f32.mrb[0].mxu0
        %v7549 = vadd.f32 %v7436, %v7548
        %v7550 = vpop.f32.mrb[0].mxu0
        %v7551 = vadd.f32 %v7438, %v7550
        %7552 = vmatprep.mubr.f32.mxu0 %v7212
        %7553 = vmatmul.mubr.f32.gmra.mrb[0].mxu0 %v7211
        %v7554 = vpop.f32.mrb[0].mxu0
        %v7555 = vadd.f32 %v7442, %v7554
        %v7556 = vpop.f32.mrb[0].mxu0
        %v7557 = vadd.f32 %v7444, %v7556
        %7558 = vmatprep.mubr.f32.mxu0 %v7216
        %7559 = vmatmul.mubr.f32.gmra.mrb[0].mxu0 %v7215
        %v7560 = vpop.f32.mrb[0].mxu0
        %v7561 = vadd.f32 %v7448, %v7560
        %v7562 = vpop.f32.mrb[0].mxu0
        %v7563 = vadd.f32 %v7450, %v7562
        %7564 = vmatprep.mubr.f32.mxu0 %v7220
        %7565 = vmatmul.mubr.f32.gmra.mrb[0].mxu0 %v7219
        %v7566 = vpop.f32.mrb[0].mxu0
        %v7567 = vadd.f32 %v7454, %v7566
        %v7568 = vpop.f32.mrb[0].mxu0
        %v7569 = vadd.f32 %v7456, %v7568
        %7570 = vmatprep.mubr.f32.mxu0 %v7224
        %7571 = vmatmul.mubr.f32.gmra.mrb[0].mxu0 %v7223
        %v7572 = vpop.f32.mrb[0].mxu0
        %v7573 = vadd.f32 %v7460, %v7572
        %v7574 = vpop.f32.mrb[0].mxu0
        %v7575 = vadd.f32 %v7462, %v7574
        %7576 = vmatprep.mubr.f32.mxu0 %v7228
        %7577 = vmatmul.mubr.f32.gmra.mrb[0].mxu0 %v7227
        %v7578 = vpop.f32.mrb[0].mxu0
        %v7579 = vadd.f32 %v7466, %v7578
        %v7580 = vpop.f32.mrb[0].mxu0
        %v7581 = vadd.f32 %v7468, %v7580
        %7582 = vdwg.mxu0
        %v7583 = vld [vmem:[%s8] sm:$0xff]
        %v7584 = vld [vmem:[%s8 + $0x8] sm:$0xff]
        %v7585 = vld [vmem:[%s8 + $0x10] sm:$0xff]
        %v7586 = vld [vmem:[%s8 + $0x18] sm:$0xff]
        %v7587 = vld [vmem:[%s8 + $0x20] sm:$0xff]
        %v7588 = vld [vmem:[%s8 + $0x28] sm:$0xff]
        %v7589 = vld [vmem:[%s8 + $0x30] sm:$0xff]
        %v7590 = vld [vmem:[%s8 + $0x38] sm:$0xff]
        %v7591 = vld [vmem:[%s8 + $0x40] sm:$0xff]
        %v7592 = vld [vmem:[%s8 + $0x48] sm:$0xff]
        %v7593 = vld [vmem:[%s8 + $0x50] sm:$0xff]
        %v7594 = vld [vmem:[%s8 + $0x58] sm:$0xff]
        %v7595 = vld [vmem:[%s8 + $0x60] sm:$0xff]
        %v7596 = vld [vmem:[%s8 + $0x68] sm:$0xff]
        %v7597 = vld [vmem:[%s8 + $0x70] sm:$0xff]
        %v7598 = vld [vmem:[%s8 + $0x78] sm:$0xff]
        %v7599 = vld [vmem:[%s8 + $0x80] sm:$0xff]
        %v7600 = vld [vmem:[%s8 + $0x88] sm:$0xff]
        %v7601 = vld [vmem:[%s8 + $0x90] sm:$0xff]
        %v7602 = vld [vmem:[%s8 + $0x98] sm:$0xff]
        %v7603 = vld [vmem:[%s8 + $0xa0] sm:$0xff]
        %v7604 = vld [vmem:[%s8 + $0xa8] sm:$0xff]
        %v7605 = vld [vmem:[%s8 + $0xb0] sm:$0xff]
        %v7606 = vld [vmem:[%s8 + $0xb8] sm:$0xff]
        %v7607 = vld [vmem:[%s8 + $0xc0] sm:$0xff]
        %v7608 = vld [vmem:[%s8 + $0xc8] sm:$0xff]
        %v7609 = vld [vmem:[%s8 + $0xd0] sm:$0xff]
        %v7610 = vld [vmem:[%s8 + $0xd8] sm:$0xff]
        %v7611 = vld [vmem:[%s8 + $0xe0] sm:$0xff]
        %v7612 = vld [vmem:[%s8 + $0xe8] sm:$0xff]
        %v7613 = vld [vmem:[%s8 + $0xf0] sm:$0xff]
        %v7614 = vld [vmem:[%s8 + $0xf8] sm:$0xff]
        %v7615 = vld [vmem:[%s8 + $0x100] sm:$0xff]
        %v7616 = vld [vmem:[%s8 + $0x108] sm:$0xff]
        %v7617 = vld [vmem:[%s8 + $0x110] sm:$0xff]
        %v7618 = vld [vmem:[%s8 + $0x118] sm:$0xff]
        %v7619 = vld [vmem:[%s8 + $0x120] sm:$0xff]
        %v7620 = vld [vmem:[%s8 + $0x128] sm:$0xff]
        %v7621 = vld [vmem:[%s8 + $0x130] sm:$0xff]
        %v7622 = vld [vmem:[%s8 + $0x138] sm:$0xff]
        %v7623 = vld [vmem:[%s8 + $0x140] sm:$0xff]
        %v7624 = vld [vmem:[%s8 + $0x148] sm:$0xff]
        %v7625 = vld [vmem:[%s8 + $0x150] sm:$0xff]
        %v7626 = vld [vmem:[%s8 + $0x158] sm:$0xff]
        %v7627 = vld [vmem:[%s8 + $0x160] sm:$0xff]
        %v7628 = vld [vmem:[%s8 + $0x168] sm:$0xff]
        %v7629 = vld [vmem:[%s8 + $0x170] sm:$0xff]
        %v7630 = vld [vmem:[%s8 + $0x178] sm:$0xff]
        %v7631 = vld [vmem:[%s8 + $0x180] sm:$0xff]
        %v7632 = vld [vmem:[%s8 + $0x188] sm:$0xff]
        %v7633 = vld [vmem:[%s8 + $0x190] sm:$0xff]
        %v7634 = vld [vmem:[%s8 + $0x198] sm:$0xff]
        %v7635 = vld [vmem:[%s8 + $0x1a0] sm:$0xff]
        %v7636 = vld [vmem:[%s8 + $0x1a8] sm:$0xff]
        %v7637 = vld [vmem:[%s8 + $0x1b0] sm:$0xff]
        %v7638 = vld [vmem:[%s8 + $0x1b8] sm:$0xff]
        %v7639 = vld [vmem:[%s8 + $0x1c0] sm:$0xff]
        %v7640 = vld [vmem:[%s8 + $0x1c8] sm:$0xff]
        %v7641 = vld [vmem:[%s8 + $0x1d0] sm:$0xff]
        %v7642 = vld [vmem:[%s8 + $0x1d8] sm:$0xff]
        %v7643 = vld [vmem:[%s8 + $0x1e0] sm:$0xff]
        %v7644 = vld [vmem:[%s8 + $0x1e8] sm:$0xff]
        %v7645 = vld [vmem:[%s8 + $0x1f0] sm:$0xff]
        %v7646 = vld [vmem:[%s8 + $0x1f8] sm:$0xff]
        %v7647 = vld [vmem:[%s8 + $0x200] sm:$0xff]
        %v7648 = vld [vmem:[%s8 + $0x208] sm:$0xff]
        %v7649 = vld [vmem:[%s8 + $0x210] sm:$0xff]
        %v7650 = vld [vmem:[%s8 + $0x218] sm:$0xff]
        %v7651 = vld [vmem:[%s8 + $0x220] sm:$0xff]
        %v7652 = vld [vmem:[%s8 + $0x228] sm:$0xff]
        %v7653 = vld [vmem:[%s8 + $0x230] sm:$0xff]
        %v7654 = vld [vmem:[%s8 + $0x238] sm:$0xff]
        %v7655 = vld [vmem:[%s8 + $0x240] sm:$0xff]
        %v7656 = vld [vmem:[%s8 + $0x248] sm:$0xff]
        %v7657 = vld [vmem:[%s8 + $0x250] sm:$0xff]
        %v7658 = vld [vmem:[%s8 + $0x258] sm:$0xff]
        %v7659 = vld [vmem:[%s8 + $0x260] sm:$0xff]
        %v7660 = vld [vmem:[%s8 + $0x268] sm:$0xff]
        %v7661 = vld [vmem:[%s8 + $0x270] sm:$0xff]
        %v7662 = vld [vmem:[%s8 + $0x278] sm:$0xff]
        %v7663 = vld [vmem:[%s8 + $0x280] sm:$0xff]
        %v7664 = vld [vmem:[%s8 + $0x288] sm:$0xff]
        %v7665 = vld [vmem:[%s8 + $0x290] sm:$0xff]
        %v7666 = vld [vmem:[%s8 + $0x298] sm:$0xff]
        %v7667 = vld [vmem:[%s8 + $0x2a0] sm:$0xff]
        %v7668 = vld [vmem:[%s8 + $0x2a8] sm:$0xff]
        %v7669 = vld [vmem:[%s8 + $0x2b0] sm:$0xff]
        %v7670 = vld [vmem:[%s8 + $0x2b8] sm:$0xff]
        %v7671 = vld [vmem:[%s8 + $0x2c0] sm:$0xff]
        %v7672 = vld [vmem:[%s8 + $0x2c8] sm:$0xff]
        %v7673 = vld [vmem:[%s8 + $0x2d0] sm:$0xff]
        %v7674 = vld [vmem:[%s8 + $0x2d8] sm:$0xff]
        %v7675 = vld [vmem:[%s8 + $0x2e0] sm:$0xff]
        %v7676 = vld [vmem:[%s8 + $0x2e8] sm:$0xff]
        %v7677 = vld [vmem:[%s8 + $0x2f0] sm:$0xff]
        %v7678 = vld [vmem:[%s8 + $0x2f8] sm:$0xff]
        %v7679 = vld [vmem:[%s8 + $0x300] sm:$0xff]
        %v7680 = vld [vmem:[%s8 + $0x308] sm:$0xff]
        %v7681 = vld [vmem:[%s8 + $0x310] sm:$0xff]
        %v7682 = vld [vmem:[%s8 + $0x318] sm:$0xff]
        %v7683 = vld [vmem:[%s8 + $0x320] sm:$0xff]
        %v7684 = vld [vmem:[%s8 + $0x328] sm:$0xff]
        %v7685 = vld [vmem:[%s8 + $0x330] sm:$0xff]
        %v7686 = vld [vmem:[%s8 + $0x338] sm:$0xff]
        %v7687 = vld [vmem:[%s8 + $0x340] sm:$0xff]
        %v7688 = vld [vmem:[%s8 + $0x348] sm:$0xff]
        %v7689 = vld [vmem:[%s8 + $0x350] sm:$0xff]
        %v7690 = vld [vmem:[%s8 + $0x358] sm:$0xff]
        %v7691 = vld [vmem:[%s8 + $0x360] sm:$0xff]
        %v7692 = vld [vmem:[%s8 + $0x368] sm:$0xff]
        %v7693 = vld [vmem:[%s8 + $0x370] sm:$0xff]
        %v7694 = vld [vmem:[%s8 + $0x378] sm:$0xff]
        %v7695 = vld [vmem:[%s8 + $0x380] sm:$0xff]
        %v7696 = vld [vmem:[%s8 + $0x388] sm:$0xff]
        %v7697 = vld [vmem:[%s8 + $0x390] sm:$0xff]
        %v7698 = vld [vmem:[%s8 + $0x398] sm:$0xff]
        %v7699 = vld [vmem:[%s8 + $0x3a0] sm:$0xff]
        %v7700 = vld [vmem:[%s8 + $0x3a8] sm:$0xff]
        %v7701 = vld [vmem:[%s8 + $0x3b0] sm:$0xff]
        %v7702 = vld [vmem:[%s8 + $0x3b8] sm:$0xff]
        %v7703 = vld [vmem:[%s8 + $0x3c0] sm:$0xff]
        %v7704 = vld [vmem:[%s8 + $0x3c8] sm:$0xff]
        %v7705 = vld [vmem:[%s8 + $0x3d0] sm:$0xff]
        %v7706 = vld [vmem:[%s8 + $0x3d8] sm:$0xff]
        %v7707 = vld [vmem:[%s8 + $0x3e0] sm:$0xff]
        %v7708 = vld [vmem:[%s8 + $0x3e8] sm:$0xff]
        %v7709 = vld [vmem:[%s8 + $0x3f0] sm:$0xff]
        %v7710 = vld [vmem:[%s8 + $0x3f8] sm:$0xff]
        %7711 = vmatprep.subr.mxu0 %v7584
        %7712 = vmatpush1.msra.mxu0 %v7583
        %7713 = vmatprep.subr.mxu0 %v7586
        %7714 = vmatpush1.msra.mxu0 %v7585
        %7715 = vmatprep.subr.mxu0 %v7588
        %7716 = vmatpush1.msra.mxu0 %v7587
        %7717 = vmatprep.subr.mxu0 %v7590
        %7718 = vmatpush1.msra.mxu0 %v7589
        %7719 = vmatprep.subr.mxu0 %v7592
        %7720 = vmatpush1.msra.mxu0 %v7591
        %7721 = vmatprep.subr.mxu0 %v7594
        %7722 = vmatpush1.msra.mxu0 %v7593
        %7723 = vmatprep.subr.mxu0 %v7596
        %7724 = vmatpush1.msra.mxu0 %v7595
        %7725 = vmatprep.subr.mxu0 %v7598
        %7726 = vmatpush1.msra.mxu0 %v7597
        %7727 = vmatprep.subr.mxu0 %v7600
        %7728 = vmatpush1.msra.mxu0 %v7599
        %7729 = vmatprep.subr.mxu0 %v7602
        %7730 = vmatpush1.msra.mxu0 %v7601
        %7731 = vmatprep.subr.mxu0 %v7604
        %7732 = vmatpush1.msra.mxu0 %v7603
        %7733 = vmatprep.subr.mxu0 %v7606
        %7734 = vmatpush1.msra.mxu0 %v7605
        %7735 = vmatprep.subr.mxu0 %v7608
        %7736 = vmatpush1.msra.mxu0 %v7607
        %7737 = vmatprep.subr.mxu0 %v7610
        %7738 = vmatpush1.msra.mxu0 %v7609
        %7739 = vmatprep.subr.mxu0 %v7612
        %7740 = vmatpush1.msra.mxu0 %v7611
        %7741 = vmatprep.subr.mxu0 %v7614
        %7742 = vmatpush1.msra.mxu0 %v7613
        %7743 = vmatprep.subr.mxu0 %v7616
        %7744 = vmatpush1.msra.mxu0 %v7615
        %7745 = vmatprep.subr.mxu0 %v7618
        %7746 = vmatpush1.msra.mxu0 %v7617
        %7747 = vmatprep.subr.mxu0 %v7620
        %7748 = vmatpush1.msra.mxu0 %v7619
        %7749 = vmatprep.subr.mxu0 %v7622
        %7750 = vmatpush1.msra.mxu0 %v7621
        %7751 = vmatprep.subr.mxu0 %v7624
        %7752 = vmatpush1.msra.mxu0 %v7623
        %7753 = vmatprep.subr.mxu0 %v7626
        %7754 = vmatpush1.msra.mxu0 %v7625
        %7755 = vmatprep.subr.mxu0 %v7628
        %7756 = vmatpush1.msra.mxu0 %v7627
        %7757 = vmatprep.subr.mxu0 %v7630
        %7758 = vmatpush1.msra.mxu0 %v7629
        %7759 = vmatprep.subr.mxu0 %v7632
        %7760 = vmatpush1.msra.mxu0 %v7631
        %7761 = vmatprep.subr.mxu0 %v7634
        %7762 = vmatpush1.msra.mxu0 %v7633
        %7763 = vmatprep.subr.mxu0 %v7636
        %7764 = vmatpush1.msra.mxu0 %v7635
        %7765 = vmatprep.subr.mxu0 %v7638
        %7766 = vmatpush1.msra.mxu0 %v7637
        %7767 = vmatprep.subr.mxu0 %v7640
        %7768 = vmatpush1.msra.mxu0 %v7639
        %7769 = vmatprep.subr.mxu0 %v7642
        %7770 = vmatpush1.msra.mxu0 %v7641
        %7771 = vmatprep.subr.mxu0 %v7644
        %7772 = vmatpush1.msra.mxu0 %v7643
        %7773 = vmatprep.subr.mxu0 %v7646
        %7774 = vmatpush1.msra.mxu0 %v7645
        %7775 = vmatprep.mubr.f32.mxu0 %v7198
        %7776 = vmatmul.mubr.f32.gmra.mrb[0].mxu0 %v7197
        %v7777 = vpop.f32.mrb[0].mxu0
        %v7778 = vadd.f32 0.0, %v7777
        %v7779 = vpop.f32.mrb[0].mxu0
        %v7780 = vadd.f32 0.0, %v7779
        %7781 = vmatprep.mubr.f32.mxu0 %v7202
        %7782 = vmatmul.mubr.f32.gmra.mrb[0].mxu0 %v7201
        %v7783 = vpop.f32.mrb[0].mxu0
        %v7784 = vadd.f32 0.0, %v7783
        %v7785 = vpop.f32.mrb[0].mxu0
        %v7786 = vadd.f32 0.0, %v7785
        %7787 = vmatprep.mubr.f32.mxu0 %v7206
        %7788 = vmatmul.mubr.f32.gmra.mrb[0].mxu0 %v7205
        %v7789 = vpop.f32.mrb[0].mxu0
        %v7790 = vadd.f32 0.0, %v7789
        %v7791 = vpop.f32.mrb[0].mxu0
        %v7792 = vadd.f32 0.0, %v7791
        %7793 = vmatprep.mubr.f32.mxu0 %v7210
        %7794 = vmatmul.mubr.f32.gmra.mrb[0].mxu0 %v7209
        %v7795 = vpop.f32.mrb[0].mxu0
        %v7796 = vadd.f32 0.0, %v7795
        %v7797 = vpop.f32.mrb[0].mxu0
        %v7798 = vadd.f32 0.0, %v7797
        %7799 = vmatprep.mubr.f32.mxu0 %v7214
        %7800 = vmatmul.mubr.f32.gmra.mrb[0].mxu0 %v7213
        %v7801 = vpop.f32.mrb[0].mxu0
        %v7802 = vadd.f32 0.0, %v7801
        %v7803 = vpop.f32.mrb[0].mxu0
        %v7804 = vadd.f32 0.0, %v7803
        %7805 = vmatprep.mubr.f32.mxu0 %v7218
        %7806 = vmatmul.mubr.f32.gmra.mrb[0].mxu0 %v7217
        %v7807 = vpop.f32.mrb[0].mxu0
        %v7808 = vadd.f32 0.0, %v7807
        %v7809 = vpop.f32.mrb[0].mxu0
        %v7810 = vadd.f32 0.0, %v7809
        %7811 = vmatprep.mubr.f32.mxu0 %v7222
        %7812 = vmatmul.mubr.f32.gmra.mrb[0].mxu0 %v7221
        %v7813 = vpop.f32.mrb[0].mxu0
        %v7814 = vadd.f32 0.0, %v7813
        %v7815 = vpop.f32.mrb[0].mxu0
        %v7816 = vadd.f32 0.0, %v7815
        %7817 = vmatprep.mubr.f32.mxu0 %v7226
        %7818 = vmatmul.mubr.f32.gmra.mrb[0].mxu0 %v7225
        %v7819 = vpop.f32.mrb[0].mxu0
        %v7820 = vadd.f32 0.0, %v7819
        %v7821 = vpop.f32.mrb[0].mxu0
        %v7822 = vadd.f32 0.0, %v7821
        %7823 = vdwg.mxu0
        %7824 = vmatprep.subr.mxu0 %v7648
        %7825 = vmatpush1.msra.mxu0 %v7647
        %7826 = vmatprep.subr.mxu0 %v7650
        %7827 = vmatpush1.msra.mxu0 %v7649
        %7828 = vmatprep.subr.mxu0 %v7652
        %7829 = vmatpush1.msra.mxu0 %v7651
        %7830 = vmatprep.subr.mxu0 %v7654
        %7831 = vmatpush1.msra.mxu0 %v7653
        %7832 = vmatprep.subr.mxu0 %v7656
        %7833 = vmatpush1.msra.mxu0 %v7655
        %7834 = vmatprep.subr.mxu0 %v7658
        %7835 = vmatpush1.msra.mxu0 %v7657
        %7836 = vmatprep.subr.mxu0 %v7660
        %7837 = vmatpush1.msra.mxu0 %v7659
        %7838 = vmatprep.subr.mxu0 %v7662
        %7839 = vmatpush1.msra.mxu0 %v7661
        %7840 = vmatprep.subr.mxu0 %v7664
        %7841 = vmatpush1.msra.mxu0 %v7663
        %7842 = vmatprep.subr.mxu0 %v7666
        %7843 = vmatpush1.msra.mxu0 %v7665
        %7844 = vmatprep.subr.mxu0 %v7668
        %7845 = vmatpush1.msra.mxu0 %v7667
        %7846 = vmatprep.subr.mxu0 %v7670
        %7847 = vmatpush1.msra.mxu0 %v7669
        %7848 = vmatprep.subr.mxu0 %v7672
        %7849 = vmatpush1.msra.mxu0 %v7671
        %7850 = vmatprep.subr.mxu0 %v7674
        %7851 = vmatpush1.msra.mxu0 %v7673
        %7852 = vmatprep.subr.mxu0 %v7676
        %7853 = vmatpush1.msra.mxu0 %v7675
        %7854 = vmatprep.subr.mxu0 %v7678
        %7855 = vmatpush1.msra.mxu0 %v7677
        %7856 = vmatprep.subr.mxu0 %v7680
        %7857 = vmatpush1.msra.mxu0 %v7679
        %7858 = vmatprep.subr.mxu0 %v7682
        %7859 = vmatpush1.msra.mxu0 %v7681
        %7860 = vmatprep.subr.mxu0 %v7684
        %7861 = vmatpush1.msra.mxu0 %v7683
        %7862 = vmatprep.subr.mxu0 %v7686
        %7863 = vmatpush1.msra.mxu0 %v7685
        %7864 = vmatprep.subr.mxu0 %v7688
        %7865 = vmatpush1.msra.mxu0 %v7687
        %7866 = vmatprep.subr.mxu0 %v7690
        %7867 = vmatpush1.msra.mxu0 %v7689
        %7868 = vmatprep.subr.mxu0 %v7692
        %7869 = vmatpush1.msra.mxu0 %v7691
        %7870 = vmatprep.subr.mxu0 %v7694
        %7871 = vmatpush1.msra.mxu0 %v7693
        %7872 = vmatprep.subr.mxu0 %v7696
        %7873 = vmatpush1.msra.mxu0 %v7695
        %7874 = vmatprep.subr.mxu0 %v7698
        %7875 = vmatpush1.msra.mxu0 %v7697
        %7876 = vmatprep.subr.mxu0 %v7700
        %7877 = vmatpush1.msra.mxu0 %v7699
        %7878 = vmatprep.subr.mxu0 %v7702
        %7879 = vmatpush1.msra.mxu0 %v7701
        %7880 = vmatprep.subr.mxu0 %v7704
        %7881 = vmatpush1.msra.mxu0 %v7703
        %7882 = vmatprep.subr.mxu0 %v7706
        %7883 = vmatpush1.msra.mxu0 %v7705
        %7884 = vmatprep.subr.mxu0 %v7708
        %7885 = vmatpush1.msra.mxu0 %v7707
        %7886 = vmatprep.subr.mxu0 %v7710
        %7887 = vmatpush1.msra.mxu0 %v7709
        %7888 = vmatprep.mubr.f32.mxu0 %v7200
        %7889 = vmatmul.mubr.f32.gmra.mrb[0].mxu0 %v7199
        %v7890 = vpop.f32.mrb[0].mxu0
        %v7891 = vadd.f32 %v7778, %v7890
        %v7892 = vpop.f32.mrb[0].mxu0
        %v7893 = vadd.f32 %v7780, %v7892
        %7894 = vmatprep.mubr.f32.mxu0 %v7204
        %7895 = vmatmul.mubr.f32.gmra.mrb[0].mxu0 %v7203
        %v7896 = vpop.f32.mrb[0].mxu0
        %v7897 = vadd.f32 %v7784, %v7896
        %v7898 = vpop.f32.mrb[0].mxu0
        %v7899 = vadd.f32 %v7786, %v7898
        %7900 = vmatprep.mubr.f32.mxu0 %v7208
        %7901 = vmatmul.mubr.f32.gmra.mrb[0].mxu0 %v7207
        %v7902 = vpop.f32.mrb[0].mxu0
        %v7903 = vadd.f32 %v7790, %v7902
        %v7904 = vpop.f32.mrb[0].mxu0
        %v7905 = vadd.f32 %v7792, %v7904
        %7906 = vmatprep.mubr.f32.mxu0 %v7212
        %7907 = vmatmul.mubr.f32.gmra.mrb[0].mxu0 %v7211
        %v7908 = vpop.f32.mrb[0].mxu0
        %v7909 = vadd.f32 %v7796, %v7908
        %v7910 = vpop.f32.mrb[0].mxu0
        %v7911 = vadd.f32 %v7798, %v7910
        %7912 = vmatprep.mubr.f32.mxu0 %v7216
        %7913 = vmatmul.mubr.f32.gmra.mrb[0].mxu0 %v7215
        %v7914 = vpop.f32.mrb[0].mxu0
        %v7915 = vadd.f32 %v7802, %v7914
        %v7916 = vpop.f32.mrb[0].mxu0
        %v7917 = vadd.f32 %v7804, %v7916
        %7918 = vmatprep.mubr.f32.mxu0 %v7220
        %7919 = vmatmul.mubr.f32.gmra.mrb[0].mxu0 %v7219
        %v7920 = vpop.f32.mrb[0].mxu0
        %v7921 = vadd.f32 %v7808, %v7920
        %v7922 = vpop.f32.mrb[0].mxu0
        %v7923 = vadd.f32 %v7810, %v7922
        %7924 = vmatprep.mubr.f32.mxu0 %v7224
        %7925 = vmatmul.mubr.f32.gmra.mrb[0].mxu0 %v7223
        %v7926 = vpop.f32.mrb[0].mxu0
        %v7927 = vadd.f32 %v7814, %v7926
        %v7928 = vpop.f32.mrb[0].mxu0
        %v7929 = vadd.f32 %v7816, %v7928
        %7930 = vmatprep.mubr.f32.mxu0 %v7228
        %7931 = vmatmul.mubr.f32.gmra.mrb[0].mxu0 %v7227
        %v7932 = vpop.f32.mrb[0].mxu0
        %v7933 = vadd.f32 %v7820, %v7932
        %v7934 = vpop.f32.mrb[0].mxu0
        %v7935 = vadd.f32 %v7822, %v7934
        %7936 = vdwg.mxu0
        %v7937 = vmax.f32 %v7537, %v7891
        %v7938 = vmax.f32 %v7539, %v7893
        %v7939 = vmax.f32 %v7543, %v7897
        %v7940 = vmax.f32 %v7545, %v7899
        %v7941 = vmax.f32 %v7549, %v7903
        %v7942 = vmax.f32 %v7551, %v7905
        %v7943 = vmax.f32 %v7555, %v7909
        %v7944 = vmax.f32 %v7557, %v7911
        %v7945 = vmax.f32 %v7561, %v7915
        %v7946 = vmax.f32 %v7563, %v7917
        %v7947 = vmax.f32 %v7567, %v7921
        %v7948 = vmax.f32 %v7569, %v7923
        %v7949 = vmax.f32 %v7573, %v7927
        %v7950 = vmax.f32 %v7575, %v7929
        %v7951 = vmax.f32 %v7579, %v7933
        %v7952 = vmax.f32 %v7581, %v7935
        %v7953 = vld [vmem:[%s9] sm:$0xff]
        %v7954 = vld [vmem:[%s9 + $0x8] sm:$0xff]
        %v7955 = vld [vmem:[%s9 + $0x10] sm:$0xff]
        %v7956 = vld [vmem:[%s9 + $0x18] sm:$0xff]
        %v7957 = vld [vmem:[%s9 + $0x20] sm:$0xff]
        %v7958 = vld [vmem:[%s9 + $0x28] sm:$0xff]
        %v7959 = vld [vmem:[%s9 + $0x30] sm:$0xff]
        %v7960 = vld [vmem:[%s9 + $0x38] sm:$0xff]
        %v7961 = vld [vmem:[%s9 + $0x40] sm:$0xff]
        %v7962 = vld [vmem:[%s9 + $0x48] sm:$0xff]
        %v7963 = vld [vmem:[%s9 + $0x50] sm:$0xff]
        %v7964 = vld [vmem:[%s9 + $0x58] sm:$0xff]
        %v7965 = vld [vmem:[%s9 + $0x60] sm:$0xff]
        %v7966 = vld [vmem:[%s9 + $0x68] sm:$0xff]
        %v7967 = vld [vmem:[%s9 + $0x70] sm:$0xff]
        %v7968 = vld [vmem:[%s9 + $0x78] sm:$0xff]
        %v7969 = vld [vmem:[%s9 + $0x80] sm:$0xff]
        %v7970 = vld [vmem:[%s9 + $0x88] sm:$0xff]
        %v7971 = vld [vmem:[%s9 + $0x90] sm:$0xff]
        %v7972 = vld [vmem:[%s9 + $0x98] sm:$0xff]
        %v7973 = vld [vmem:[%s9 + $0xa0] sm:$0xff]
        %v7974 = vld [vmem:[%s9 + $0xa8] sm:$0xff]
        %v7975 = vld [vmem:[%s9 + $0xb0] sm:$0xff]
        %v7976 = vld [vmem:[%s9 + $0xb8] sm:$0xff]
        %v7977 = vld [vmem:[%s9 + $0xc0] sm:$0xff]
        %v7978 = vld [vmem:[%s9 + $0xc8] sm:$0xff]
        %v7979 = vld [vmem:[%s9 + $0xd0] sm:$0xff]
        %v7980 = vld [vmem:[%s9 + $0xd8] sm:$0xff]
        %v7981 = vld [vmem:[%s9 + $0xe0] sm:$0xff]
        %v7982 = vld [vmem:[%s9 + $0xe8] sm:$0xff]
        %v7983 = vld [vmem:[%s9 + $0xf0] sm:$0xff]
        %v7984 = vld [vmem:[%s9 + $0xf8] sm:$0xff]
        %v7985 = vld [vmem:[%s9 + $0x100] sm:$0xff]
        %v7986 = vld [vmem:[%s9 + $0x108] sm:$0xff]
        %v7987 = vld [vmem:[%s9 + $0x110] sm:$0xff]
        %v7988 = vld [vmem:[%s9 + $0x118] sm:$0xff]
        %v7989 = vld [vmem:[%s9 + $0x120] sm:$0xff]
        %v7990 = vld [vmem:[%s9 + $0x128] sm:$0xff]
        %v7991 = vld [vmem:[%s9 + $0x130] sm:$0xff]
        %v7992 = vld [vmem:[%s9 + $0x138] sm:$0xff]
        %v7993 = vld [vmem:[%s9 + $0x140] sm:$0xff]
        %v7994 = vld [vmem:[%s9 + $0x148] sm:$0xff]
        %v7995 = vld [vmem:[%s9 + $0x150] sm:$0xff]
        %v7996 = vld [vmem:[%s9 + $0x158] sm:$0xff]
        %v7997 = vld [vmem:[%s9 + $0x160] sm:$0xff]
        %v7998 = vld [vmem:[%s9 + $0x168] sm:$0xff]
        %v7999 = vld [vmem:[%s9 + $0x170] sm:$0xff]
        %v8000 = vld [vmem:[%s9 + $0x178] sm:$0xff]
        %v8001 = vld [vmem:[%s9 + $0x180] sm:$0xff]
        %v8002 = vld [vmem:[%s9 + $0x188] sm:$0xff]
        %v8003 = vld [vmem:[%s9 + $0x190] sm:$0xff]
        %v8004 = vld [vmem:[%s9 + $0x198] sm:$0xff]
        %v8005 = vld [vmem:[%s9 + $0x1a0] sm:$0xff]
        %v8006 = vld [vmem:[%s9 + $0x1a8] sm:$0xff]
        %v8007 = vld [vmem:[%s9 + $0x1b0] sm:$0xff]
        %v8008 = vld [vmem:[%s9 + $0x1b8] sm:$0xff]
        %v8009 = vld [vmem:[%s9 + $0x1c0] sm:$0xff]
        %v8010 = vld [vmem:[%s9 + $0x1c8] sm:$0xff]
        %v8011 = vld [vmem:[%s9 + $0x1d0] sm:$0xff]
        %v8012 = vld [vmem:[%s9 + $0x1d8] sm:$0xff]
        %v8013 = vld [vmem:[%s9 + $0x1e0] sm:$0xff]
        %v8014 = vld [vmem:[%s9 + $0x1e8] sm:$0xff]
        %v8015 = vld [vmem:[%s9 + $0x1f0] sm:$0xff]
        %v8016 = vld [vmem:[%s9 + $0x1f8] sm:$0xff]
        %v8017 = vld [vmem:[%s9 + $0x200] sm:$0xff]
        %v8018 = vld [vmem:[%s9 + $0x208] sm:$0xff]
        %v8019 = vld [vmem:[%s9 + $0x210] sm:$0xff]
        %v8020 = vld [vmem:[%s9 + $0x218] sm:$0xff]
        %v8021 = vld [vmem:[%s9 + $0x220] sm:$0xff]
        %v8022 = vld [vmem:[%s9 + $0x228] sm:$0xff]
        %v8023 = vld [vmem:[%s9 + $0x230] sm:$0xff]
        %v8024 = vld [vmem:[%s9 + $0x238] sm:$0xff]
        %v8025 = vld [vmem:[%s9 + $0x240] sm:$0xff]
        %v8026 = vld [vmem:[%s9 + $0x248] sm:$0xff]
        %v8027 = vld [vmem:[%s9 + $0x250] sm:$0xff]
        %v8028 = vld [vmem:[%s9 + $0x258] sm:$0xff]
        %v8029 = vld [vmem:[%s9 + $0x260] sm:$0xff]
        %v8030 = vld [vmem:[%s9 + $0x268] sm:$0xff]
        %v8031 = vld [vmem:[%s9 + $0x270] sm:$0xff]
        %v8032 = vld [vmem:[%s9 + $0x278] sm:$0xff]
        %v8033 = vld [vmem:[%s9 + $0x280] sm:$0xff]
        %v8034 = vld [vmem:[%s9 + $0x288] sm:$0xff]
        %v8035 = vld [vmem:[%s9 + $0x290] sm:$0xff]
        %v8036 = vld [vmem:[%s9 + $0x298] sm:$0xff]
        %v8037 = vld [vmem:[%s9 + $0x2a0] sm:$0xff]
        %v8038 = vld [vmem:[%s9 + $0x2a8] sm:$0xff]
        %v8039 = vld [vmem:[%s9 + $0x2b0] sm:$0xff]
        %v8040 = vld [vmem:[%s9 + $0x2b8] sm:$0xff]
        %v8041 = vld [vmem:[%s9 + $0x2c0] sm:$0xff]
        %v8042 = vld [vmem:[%s9 + $0x2c8] sm:$0xff]
        %v8043 = vld [vmem:[%s9 + $0x2d0] sm:$0xff]
        %v8044 = vld [vmem:[%s9 + $0x2d8] sm:$0xff]
        %v8045 = vld [vmem:[%s9 + $0x2e0] sm:$0xff]
        %v8046 = vld [vmem:[%s9 + $0x2e8] sm:$0xff]
        %v8047 = vld [vmem:[%s9 + $0x2f0] sm:$0xff]
        %v8048 = vld [vmem:[%s9 + $0x2f8] sm:$0xff]
        %v8049 = vld [vmem:[%s9 + $0x300] sm:$0xff]
        %v8050 = vld [vmem:[%s9 + $0x308] sm:$0xff]
        %v8051 = vld [vmem:[%s9 + $0x310] sm:$0xff]
        %v8052 = vld [vmem:[%s9 + $0x318] sm:$0xff]
        %v8053 = vld [vmem:[%s9 + $0x320] sm:$0xff]
        %v8054 = vld [vmem:[%s9 + $0x328] sm:$0xff]
        %v8055 = vld [vmem:[%s9 + $0x330] sm:$0xff]
        %v8056 = vld [vmem:[%s9 + $0x338] sm:$0xff]
        %v8057 = vld [vmem:[%s9 + $0x340] sm:$0xff]
        %v8058 = vld [vmem:[%s9 + $0x348] sm:$0xff]
        %v8059 = vld [vmem:[%s9 + $0x350] sm:$0xff]
        %v8060 = vld [vmem:[%s9 + $0x358] sm:$0xff]
        %v8061 = vld [vmem:[%s9 + $0x360] sm:$0xff]
        %v8062 = vld [vmem:[%s9 + $0x368] sm:$0xff]
        %v8063 = vld [vmem:[%s9 + $0x370] sm:$0xff]
        %v8064 = vld [vmem:[%s9 + $0x378] sm:$0xff]
        %v8065 = vld [vmem:[%s9 + $0x380] sm:$0xff]
        %v8066 = vld [vmem:[%s9 + $0x388] sm:$0xff]
        %v8067 = vld [vmem:[%s9 + $0x390] sm:$0xff]
        %v8068 = vld [vmem:[%s9 + $0x398] sm:$0xff]
        %v8069 = vld [vmem:[%s9 + $0x3a0] sm:$0xff]
        %v8070 = vld [vmem:[%s9 + $0x3a8] sm:$0xff]
        %v8071 = vld [vmem:[%s9 + $0x3b0] sm:$0xff]
        %v8072 = vld [vmem:[%s9 + $0x3b8] sm:$0xff]
        %v8073 = vld [vmem:[%s9 + $0x3c0] sm:$0xff]
        %v8074 = vld [vmem:[%s9 + $0x3c8] sm:$0xff]
        %v8075 = vld [vmem:[%s9 + $0x3d0] sm:$0xff]
        %v8076 = vld [vmem:[%s9 + $0x3d8] sm:$0xff]
        %v8077 = vld [vmem:[%s9 + $0x3e0] sm:$0xff]
        %v8078 = vld [vmem:[%s9 + $0x3e8] sm:$0xff]
        %v8079 = vld [vmem:[%s9 + $0x3f0] sm:$0xff]
        %v8080 = vld [vmem:[%s9 + $0x3f8] sm:$0xff]
        %v8081 = vld [vmem:[%s9 + $0x400] sm:$0xff]
        %v8082 = vld [vmem:[%s9 + $0x408] sm:$0xff]
        %v8083 = vld [vmem:[%s9 + $0x410] sm:$0xff]
        %v8084 = vld [vmem:[%s9 + $0x418] sm:$0xff]
        %v8085 = vld [vmem:[%s9 + $0x420] sm:$0xff]
        %v8086 = vld [vmem:[%s9 + $0x428] sm:$0xff]
        %v8087 = vld [vmem:[%s9 + $0x430] sm:$0xff]
        %v8088 = vld [vmem:[%s9 + $0x438] sm:$0xff]
        %v8089 = vld [vmem:[%s9 + $0x440] sm:$0xff]
        %v8090 = vld [vmem:[%s9 + $0x448] sm:$0xff]
        %v8091 = vld [vmem:[%s9 + $0x450] sm:$0xff]
        %v8092 = vld [vmem:[%s9 + $0x458] sm:$0xff]
        %v8093 = vld [vmem:[%s9 + $0x460] sm:$0xff]
        %v8094 = vld [vmem:[%s9 + $0x468] sm:$0xff]
        %v8095 = vld [vmem:[%s9 + $0x470] sm:$0xff]
        %v8096 = vld [vmem:[%s9 + $0x478] sm:$0xff]
        %v8097 = vld [vmem:[%s9 + $0x480] sm:$0xff]
        %v8098 = vld [vmem:[%s9 + $0x488] sm:$0xff]
        %v8099 = vld [vmem:[%s9 + $0x490] sm:$0xff]
        %v8100 = vld [vmem:[%s9 + $0x498] sm:$0xff]
        %v8101 = vld [vmem:[%s9 + $0x4a0] sm:$0xff]
        %v8102 = vld [vmem:[%s9 + $0x4a8] sm:$0xff]
        %v8103 = vld [vmem:[%s9 + $0x4b0] sm:$0xff]
        %v8104 = vld [vmem:[%s9 + $0x4b8] sm:$0xff]
        %v8105 = vld [vmem:[%s9 + $0x4c0] sm:$0xff]
        %v8106 = vld [vmem:[%s9 + $0x4c8] sm:$0xff]
        %v8107 = vld [vmem:[%s9 + $0x4d0] sm:$0xff]
        %v8108 = vld [vmem:[%s9 + $0x4d8] sm:$0xff]
        %v8109 = vld [vmem:[%s9 + $0x4e0] sm:$0xff]
        %v8110 = vld [vmem:[%s9 + $0x4e8] sm:$0xff]
        %v8111 = vld [vmem:[%s9 + $0x4f0] sm:$0xff]
        %v8112 = vld [vmem:[%s9 + $0x4f8] sm:$0xff]
        %v8113 = vld [vmem:[%s9 + $0x500] sm:$0xff]
        %v8114 = vld [vmem:[%s9 + $0x508] sm:$0xff]
        %v8115 = vld [vmem:[%s9 + $0x510] sm:$0xff]
        %v8116 = vld [vmem:[%s9 + $0x518] sm:$0xff]
        %v8117 = vld [vmem:[%s9 + $0x520] sm:$0xff]
        %v8118 = vld [vmem:[%s9 + $0x528] sm:$0xff]
        %v8119 = vld [vmem:[%s9 + $0x530] sm:$0xff]
        %v8120 = vld [vmem:[%s9 + $0x538] sm:$0xff]
        %v8121 = vld [vmem:[%s9 + $0x540] sm:$0xff]
        %v8122 = vld [vmem:[%s9 + $0x548] sm:$0xff]
        %v8123 = vld [vmem:[%s9 + $0x550] sm:$0xff]
        %v8124 = vld [vmem:[%s9 + $0x558] sm:$0xff]
        %v8125 = vld [vmem:[%s9 + $0x560] sm:$0xff]
        %v8126 = vld [vmem:[%s9 + $0x568] sm:$0xff]
        %v8127 = vld [vmem:[%s9 + $0x570] sm:$0xff]
        %v8128 = vld [vmem:[%s9 + $0x578] sm:$0xff]
        %v8129 = vld [vmem:[%s9 + $0x580] sm:$0xff]
        %v8130 = vld [vmem:[%s9 + $0x588] sm:$0xff]
        %v8131 = vld [vmem:[%s9 + $0x590] sm:$0xff]
        %v8132 = vld [vmem:[%s9 + $0x598] sm:$0xff]
        %v8133 = vld [vmem:[%s9 + $0x5a0] sm:$0xff]
        %v8134 = vld [vmem:[%s9 + $0x5a8] sm:$0xff]
        %v8135 = vld [vmem:[%s9 + $0x5b0] sm:$0xff]
        %v8136 = vld [vmem:[%s9 + $0x5b8] sm:$0xff]
        %v8137 = vld [vmem:[%s9 + $0x5c0] sm:$0xff]
        %v8138 = vld [vmem:[%s9 + $0x5c8] sm:$0xff]
        %v8139 = vld [vmem:[%s9 + $0x5d0] sm:$0xff]
        %v8140 = vld [vmem:[%s9 + $0x5d8] sm:$0xff]
        %v8141 = vld [vmem:[%s9 + $0x5e0] sm:$0xff]
        %v8142 = vld [vmem:[%s9 + $0x5e8] sm:$0xff]
        %v8143 = vld [vmem:[%s9 + $0x5f0] sm:$0xff]
        %v8144 = vld [vmem:[%s9 + $0x5f8] sm:$0xff]
        %v8145 = vld [vmem:[%s9 + $0x600] sm:$0xff]
        %v8146 = vld [vmem:[%s9 + $0x608] sm:$0xff]
        %v8147 = vld [vmem:[%s9 + $0x610] sm:$0xff]
        %v8148 = vld [vmem:[%s9 + $0x618] sm:$0xff]
        %v8149 = vld [vmem:[%s9 + $0x620] sm:$0xff]
        %v8150 = vld [vmem:[%s9 + $0x628] sm:$0xff]
        %v8151 = vld [vmem:[%s9 + $0x630] sm:$0xff]
        %v8152 = vld [vmem:[%s9 + $0x638] sm:$0xff]
        %v8153 = vld [vmem:[%s9 + $0x640] sm:$0xff]
        %v8154 = vld [vmem:[%s9 + $0x648] sm:$0xff]
        %v8155 = vld [vmem:[%s9 + $0x650] sm:$0xff]
        %v8156 = vld [vmem:[%s9 + $0x658] sm:$0xff]
        %v8157 = vld [vmem:[%s9 + $0x660] sm:$0xff]
        %v8158 = vld [vmem:[%s9 + $0x668] sm:$0xff]
        %v8159 = vld [vmem:[%s9 + $0x670] sm:$0xff]
        %v8160 = vld [vmem:[%s9 + $0x678] sm:$0xff]
        %v8161 = vld [vmem:[%s9 + $0x680] sm:$0xff]
        %v8162 = vld [vmem:[%s9 + $0x688] sm:$0xff]
        %v8163 = vld [vmem:[%s9 + $0x690] sm:$0xff]
        %v8164 = vld [vmem:[%s9 + $0x698] sm:$0xff]
        %v8165 = vld [vmem:[%s9 + $0x6a0] sm:$0xff]
        %v8166 = vld [vmem:[%s9 + $0x6a8] sm:$0xff]
        %v8167 = vld [vmem:[%s9 + $0x6b0] sm:$0xff]
        %v8168 = vld [vmem:[%s9 + $0x6b8] sm:$0xff]
        %v8169 = vld [vmem:[%s9 + $0x6c0] sm:$0xff]
        %v8170 = vld [vmem:[%s9 + $0x6c8] sm:$0xff]
        %v8171 = vld [vmem:[%s9 + $0x6d0] sm:$0xff]
        %v8172 = vld [vmem:[%s9 + $0x6d8] sm:$0xff]
        %v8173 = vld [vmem:[%s9 + $0x6e0] sm:$0xff]
        %v8174 = vld [vmem:[%s9 + $0x6e8] sm:$0xff]
        %v8175 = vld [vmem:[%s9 + $0x6f0] sm:$0xff]
        %v8176 = vld [vmem:[%s9 + $0x6f8] sm:$0xff]
        %v8177 = vld [vmem:[%s9 + $0x700] sm:$0xff]
        %v8178 = vld [vmem:[%s9 + $0x708] sm:$0xff]
        %v8179 = vld [vmem:[%s9 + $0x710] sm:$0xff]
        %v8180 = vld [vmem:[%s9 + $0x718] sm:$0xff]
        %v8181 = vld [vmem:[%s9 + $0x720] sm:$0xff]
        %v8182 = vld [vmem:[%s9 + $0x728] sm:$0xff]
        %v8183 = vld [vmem:[%s9 + $0x730] sm:$0xff]
        %v8184 = vld [vmem:[%s9 + $0x738] sm:$0xff]
        %v8185 = vld [vmem:[%s9 + $0x740] sm:$0xff]
        %v8186 = vld [vmem:[%s9 + $0x748] sm:$0xff]
        %v8187 = vld [vmem:[%s9 + $0x750] sm:$0xff]
        %v8188 = vld [vmem:[%s9 + $0x758] sm:$0xff]
        %v8189 = vld [vmem:[%s9 + $0x760] sm:$0xff]
        %v8190 = vld [vmem:[%s9 + $0x768] sm:$0xff]
        %v8191 = vld [vmem:[%s9 + $0x770] sm:$0xff]
        %v8192 = vld [vmem:[%s9 + $0x778] sm:$0xff]
        %v8193 = vld [vmem:[%s9 + $0x780] sm:$0xff]
        %v8194 = vld [vmem:[%s9 + $0x788] sm:$0xff]
        %v8195 = vld [vmem:[%s9 + $0x790] sm:$0xff]
        %v8196 = vld [vmem:[%s9 + $0x798] sm:$0xff]
        %v8197 = vld [vmem:[%s9 + $0x7a0] sm:$0xff]
        %v8198 = vld [vmem:[%s9 + $0x7a8] sm:$0xff]
        %v8199 = vld [vmem:[%s9 + $0x7b0] sm:$0xff]
        %v8200 = vld [vmem:[%s9 + $0x7b8] sm:$0xff]
        %v8201 = vld [vmem:[%s9 + $0x7c0] sm:$0xff]
        %v8202 = vld [vmem:[%s9 + $0x7c8] sm:$0xff]
        %v8203 = vld [vmem:[%s9 + $0x7d0] sm:$0xff]
        %v8204 = vld [vmem:[%s9 + $0x7d8] sm:$0xff]
        %v8205 = vld [vmem:[%s9 + $0x7e0] sm:$0xff]
        %v8206 = vld [vmem:[%s9 + $0x7e8] sm:$0xff]
        %v8207 = vld [vmem:[%s9 + $0x7f0] sm:$0xff]
        %v8208 = vld [vmem:[%s9 + $0x7f8] sm:$0xff]
        %v8209 = vld [vmem:[%s10] sm:$0x1]
        %v8211 = vlaneseq
        %v8212 = vshrl.u32 %v8211, 7
        %v8213 = vsub.s32 0, %v8212
        %v8214 = vrot.slane %v8209, %v8213
        %8216 = vmatprep.subr.mxu0 0.0
        %8217 = vmatpush1.msra.mxu0 %v7953
        %8218 = vmatprep.subr.mxu0 0.0
        %8219 = vmatpush1.msra.mxu0 %v7954
        %8220 = vmatprep.subr.mxu0 0.0
        %8221 = vmatpush1.msra.mxu0 %v7955
        %8222 = vmatprep.subr.mxu0 0.0
        %8223 = vmatpush1.msra.mxu0 %v7956
        %8224 = vmatprep.subr.mxu0 0.0
        %8225 = vmatpush1.msra.mxu0 %v7957
        %8226 = vmatprep.subr.mxu0 0.0
        %8227 = vmatpush1.msra.mxu0 %v7958
        %8228 = vmatprep.subr.mxu0 0.0
        %8229 = vmatpush1.msra.mxu0 %v7959
        %8230 = vmatprep.subr.mxu0 0.0
        %8231 = vmatpush1.msra.mxu0 %v7960
        %8232 = vmatprep.subr.mxu0 0.0
        %8233 = vmatpush1.msra.mxu0 %v7961
        %8234 = vmatprep.subr.mxu0 0.0
        %8235 = vmatpush1.msra.mxu0 %v7962
        %8236 = vmatprep.subr.mxu0 0.0
        %8237 = vmatpush1.msra.mxu0 %v7963
        %8238 = vmatprep.subr.mxu0 0.0
        %8239 = vmatpush1.msra.mxu0 %v7964
        %8240 = vmatprep.subr.mxu0 0.0
        %8241 = vmatpush1.msra.mxu0 %v7965
        %8242 = vmatprep.subr.mxu0 0.0
        %8243 = vmatpush1.msra.mxu0 %v7966
        %8244 = vmatprep.subr.mxu0 0.0
        %8245 = vmatpush1.msra.mxu0 %v7967
        %8246 = vmatprep.subr.mxu0 0.0
        %8247 = vmatpush1.msra.mxu0 %v7968
        %8248 = vmatprep.subr.mxu0 0.0
        %8249 = vmatpush1.msra.mxu0 %v7969
        %8250 = vmatprep.subr.mxu0 0.0
        %8251 = vmatpush1.msra.mxu0 %v7970
        %8252 = vmatprep.subr.mxu0 0.0
        %8253 = vmatpush1.msra.mxu0 %v7971
        %8254 = vmatprep.subr.mxu0 0.0
        %8255 = vmatpush1.msra.mxu0 %v7972
        %8256 = vmatprep.subr.mxu0 0.0
        %8257 = vmatpush1.msra.mxu0 %v7973
        %8258 = vmatprep.subr.mxu0 0.0
        %8259 = vmatpush1.msra.mxu0 %v7974
        %8260 = vmatprep.subr.mxu0 0.0
        %8261 = vmatpush1.msra.mxu0 %v7975
        %8262 = vmatprep.subr.mxu0 0.0
        %8263 = vmatpush1.msra.mxu0 %v7976
        %8264 = vmatprep.subr.mxu0 0.0
        %8265 = vmatpush1.msra.mxu0 %v7977
        %8266 = vmatprep.subr.mxu0 0.0
        %8267 = vmatpush1.msra.mxu0 %v7978
        %8268 = vmatprep.subr.mxu0 0.0
        %8269 = vmatpush1.msra.mxu0 %v7979
        %8270 = vmatprep.subr.mxu0 0.0
        %8271 = vmatpush1.msra.mxu0 %v7980
        %8272 = vmatprep.subr.mxu0 0.0
        %8273 = vmatpush1.msra.mxu0 %v7981
        %8274 = vmatprep.subr.mxu0 0.0
        %8275 = vmatpush1.msra.mxu0 %v7982
        %8276 = vmatprep.subr.mxu0 0.0
        %8277 = vmatpush1.msra.mxu0 %v7983
        %8278 = vmatprep.subr.mxu0 0.0
        %8279 = vmatpush1.msra.mxu0 %v7984
        %8280 = vmatprep.mubr.f32.mxu0 %v7938
        %8281 = vmatmul.mubr.f32.gmra.mrb[0].mxu0 %v7937
        %v8282 = vpop.f32.mrb[0].mxu0
        %v8283 = vadd.f32 %v8214, %v8282
        %v8284 = vpop.f32.mrb[0].mxu0
        %8285 = vdwg.mxu0
        %8286 = vmatprep.subr.mxu0 0.0
        %8287 = vmatpush1.msra.mxu0 %v7985
        %8288 = vmatprep.subr.mxu0 0.0
        %8289 = vmatpush1.msra.mxu0 %v7986
        %8290 = vmatprep.subr.mxu0 0.0
        %8291 = vmatpush1.msra.mxu0 %v7987
        %8292 = vmatprep.subr.mxu0 0.0
        %8293 = vmatpush1.msra.mxu0 %v7988
        %8294 = vmatprep.subr.mxu0 0.0
        %8295 = vmatpush1.msra.mxu0 %v7989
        %8296 = vmatprep.subr.mxu0 0.0
        %8297 = vmatpush1.msra.mxu0 %v7990
        %8298 = vmatprep.subr.mxu0 0.0
        %8299 = vmatpush1.msra.mxu0 %v7991
        %8300 = vmatprep.subr.mxu0 0.0
        %8301 = vmatpush1.msra.mxu0 %v7992
        %8302 = vmatprep.subr.mxu0 0.0
        %8303 = vmatpush1.msra.mxu0 %v7993
        %8304 = vmatprep.subr.mxu0 0.0
        %8305 = vmatpush1.msra.mxu0 %v7994
        %8306 = vmatprep.subr.mxu0 0.0
        %8307 = vmatpush1.msra.mxu0 %v7995
        %8308 = vmatprep.subr.mxu0 0.0
        %8309 = vmatpush1.msra.mxu0 %v7996
        %8310 = vmatprep.subr.mxu0 0.0
        %8311 = vmatpush1.msra.mxu0 %v7997
        %8312 = vmatprep.subr.mxu0 0.0
        %8313 = vmatpush1.msra.mxu0 %v7998
        %8314 = vmatprep.subr.mxu0 0.0
        %8315 = vmatpush1.msra.mxu0 %v7999
        %8316 = vmatprep.subr.mxu0 0.0
        %8317 = vmatpush1.msra.mxu0 %v8000
        %8318 = vmatprep.subr.mxu0 0.0
        %8319 = vmatpush1.msra.mxu0 %v8001
        %8320 = vmatprep.subr.mxu0 0.0
        %8321 = vmatpush1.msra.mxu0 %v8002
        %8322 = vmatprep.subr.mxu0 0.0
        %8323 = vmatpush1.msra.mxu0 %v8003
        %8324 = vmatprep.subr.mxu0 0.0
        %8325 = vmatpush1.msra.mxu0 %v8004
        %8326 = vmatprep.subr.mxu0 0.0
        %8327 = vmatpush1.msra.mxu0 %v8005
        %8328 = vmatprep.subr.mxu0 0.0
        %8329 = vmatpush1.msra.mxu0 %v8006
        %8330 = vmatprep.subr.mxu0 0.0
        %8331 = vmatpush1.msra.mxu0 %v8007
        %8332 = vmatprep.subr.mxu0 0.0
        %8333 = vmatpush1.msra.mxu0 %v8008
        %8334 = vmatprep.subr.mxu0 0.0
        %8335 = vmatpush1.msra.mxu0 %v8009
        %8336 = vmatprep.subr.mxu0 0.0
        %8337 = vmatpush1.msra.mxu0 %v8010
        %8338 = vmatprep.subr.mxu0 0.0
        %8339 = vmatpush1.msra.mxu0 %v8011
        %8340 = vmatprep.subr.mxu0 0.0
        %8341 = vmatpush1.msra.mxu0 %v8012
        %8342 = vmatprep.subr.mxu0 0.0
        %8343 = vmatpush1.msra.mxu0 %v8013
        %8344 = vmatprep.subr.mxu0 0.0
        %8345 = vmatpush1.msra.mxu0 %v8014
        %8346 = vmatprep.subr.mxu0 0.0
        %8347 = vmatpush1.msra.mxu0 %v8015
        %8348 = vmatprep.subr.mxu0 0.0
        %8349 = vmatpush1.msra.mxu0 %v8016
        %8350 = vmatprep.mubr.f32.mxu0 %v7940
        %8351 = vmatmul.mubr.f32.gmra.mrb[0].mxu0 %v7939
        %v8352 = vpop.f32.mrb[0].mxu0
        %v8353 = vadd.f32 %v8283, %v8352
        %v8354 = vpop.f32.mrb[0].mxu0
        %8355 = vdwg.mxu0
        %8356 = vmatprep.subr.mxu0 0.0
        %8357 = vmatpush1.msra.mxu0 %v8017
        %8358 = vmatprep.subr.mxu0 0.0
        %8359 = vmatpush1.msra.mxu0 %v8018
        %8360 = vmatprep.subr.mxu0 0.0
        %8361 = vmatpush1.msra.mxu0 %v8019
        %8362 = vmatprep.subr.mxu0 0.0
        %8363 = vmatpush1.msra.mxu0 %v8020
        %8364 = vmatprep.subr.mxu0 0.0
        %8365 = vmatpush1.msra.mxu0 %v8021
        %8366 = vmatprep.subr.mxu0 0.0
        %8367 = vmatpush1.msra.mxu0 %v8022
        %8368 = vmatprep.subr.mxu0 0.0
        %8369 = vmatpush1.msra.mxu0 %v8023
        %8370 = vmatprep.subr.mxu0 0.0
        %8371 = vmatpush1.msra.mxu0 %v8024
        %8372 = vmatprep.subr.mxu0 0.0
        %8373 = vmatpush1.msra.mxu0 %v8025
        %8374 = vmatprep.subr.mxu0 0.0
        %8375 = vmatpush1.msra.mxu0 %v8026
        %8376 = vmatprep.subr.mxu0 0.0
        %8377 = vmatpush1.msra.mxu0 %v8027
        %8378 = vmatprep.subr.mxu0 0.0
        %8379 = vmatpush1.msra.mxu0 %v8028
        %8380 = vmatprep.subr.mxu0 0.0
        %8381 = vmatpush1.msra.mxu0 %v8029
        %8382 = vmatprep.subr.mxu0 0.0
        %8383 = vmatpush1.msra.mxu0 %v8030
        %8384 = vmatprep.subr.mxu0 0.0
        %8385 = vmatpush1.msra.mxu0 %v8031
        %8386 = vmatprep.subr.mxu0 0.0
        %8387 = vmatpush1.msra.mxu0 %v8032
        %8388 = vmatprep.subr.mxu0 0.0
        %8389 = vmatpush1.msra.mxu0 %v8033
        %8390 = vmatprep.subr.mxu0 0.0
        %8391 = vmatpush1.msra.mxu0 %v8034
        %8392 = vmatprep.subr.mxu0 0.0
        %8393 = vmatpush1.msra.mxu0 %v8035
        %8394 = vmatprep.subr.mxu0 0.0
        %8395 = vmatpush1.msra.mxu0 %v8036
        %8396 = vmatprep.subr.mxu0 0.0
        %8397 = vmatpush1.msra.mxu0 %v8037
        %8398 = vmatprep.subr.mxu0 0.0
        %8399 = vmatpush1.msra.mxu0 %v8038
        %8400 = vmatprep.subr.mxu0 0.0
        %8401 = vmatpush1.msra.mxu0 %v8039
        %8402 = vmatprep.subr.mxu0 0.0
        %8403 = vmatpush1.msra.mxu0 %v8040
        %8404 = vmatprep.subr.mxu0 0.0
        %8405 = vmatpush1.msra.mxu0 %v8041
        %8406 = vmatprep.subr.mxu0 0.0
        %8407 = vmatpush1.msra.mxu0 %v8042
        %8408 = vmatprep.subr.mxu0 0.0
        %8409 = vmatpush1.msra.mxu0 %v8043
        %8410 = vmatprep.subr.mxu0 0.0
        %8411 = vmatpush1.msra.mxu0 %v8044
        %8412 = vmatprep.subr.mxu0 0.0
        %8413 = vmatpush1.msra.mxu0 %v8045
        %8414 = vmatprep.subr.mxu0 0.0
        %8415 = vmatpush1.msra.mxu0 %v8046
        %8416 = vmatprep.subr.mxu0 0.0
        %8417 = vmatpush1.msra.mxu0 %v8047
        %8418 = vmatprep.subr.mxu0 0.0
        %8419 = vmatpush1.msra.mxu0 %v8048
        %8420 = vmatprep.mubr.f32.mxu0 %v7942
        %8421 = vmatmul.mubr.f32.gmra.mrb[0].mxu0 %v7941
        %v8422 = vpop.f32.mrb[0].mxu0
        %v8423 = vadd.f32 %v8353, %v8422
        %v8424 = vpop.f32.mrb[0].mxu0
        %8425 = vdwg.mxu0
        %8426 = vmatprep.subr.mxu0 0.0
        %8427 = vmatpush1.msra.mxu0 %v8049
        %8428 = vmatprep.subr.mxu0 0.0
        %8429 = vmatpush1.msra.mxu0 %v8050
        %8430 = vmatprep.subr.mxu0 0.0
        %8431 = vmatpush1.msra.mxu0 %v8051
        %8432 = vmatprep.subr.mxu0 0.0
        %8433 = vmatpush1.msra.mxu0 %v8052
        %8434 = vmatprep.subr.mxu0 0.0
        %8435 = vmatpush1.msra.mxu0 %v8053
        %8436 = vmatprep.subr.mxu0 0.0
        %8437 = vmatpush1.msra.mxu0 %v8054
        %8438 = vmatprep.subr.mxu0 0.0
        %8439 = vmatpush1.msra.mxu0 %v8055
        %8440 = vmatprep.subr.mxu0 0.0
        %8441 = vmatpush1.msra.mxu0 %v8056
        %8442 = vmatprep.subr.mxu0 0.0
        %8443 = vmatpush1.msra.mxu0 %v8057
        %8444 = vmatprep.subr.mxu0 0.0
        %8445 = vmatpush1.msra.mxu0 %v8058
        %8446 = vmatprep.subr.mxu0 0.0
        %8447 = vmatpush1.msra.mxu0 %v8059
        %8448 = vmatprep.subr.mxu0 0.0
        %8449 = vmatpush1.msra.mxu0 %v8060
        %8450 = vmatprep.subr.mxu0 0.0
        %8451 = vmatpush1.msra.mxu0 %v8061
        %8452 = vmatprep.subr.mxu0 0.0
        %8453 = vmatpush1.msra.mxu0 %v8062
        %8454 = vmatprep.subr.mxu0 0.0
        %8455 = vmatpush1.msra.mxu0 %v8063
        %8456 = vmatprep.subr.mxu0 0.0
        %8457 = vmatpush1.msra.mxu0 %v8064
        %8458 = vmatprep.subr.mxu0 0.0
        %8459 = vmatpush1.msra.mxu0 %v8065
        %8460 = vmatprep.subr.mxu0 0.0
        %8461 = vmatpush1.msra.mxu0 %v8066
        %8462 = vmatprep.subr.mxu0 0.0
        %8463 = vmatpush1.msra.mxu0 %v8067
        %8464 = vmatprep.subr.mxu0 0.0
        %8465 = vmatpush1.msra.mxu0 %v8068
        %8466 = vmatprep.subr.mxu0 0.0
        %8467 = vmatpush1.msra.mxu0 %v8069
        %8468 = vmatprep.subr.mxu0 0.0
        %8469 = vmatpush1.msra.mxu0 %v8070
        %8470 = vmatprep.subr.mxu0 0.0
        %8471 = vmatpush1.msra.mxu0 %v8071
        %8472 = vmatprep.subr.mxu0 0.0
        %8473 = vmatpush1.msra.mxu0 %v8072
        %8474 = vmatprep.subr.mxu0 0.0
        %8475 = vmatpush1.msra.mxu0 %v8073
        %8476 = vmatprep.subr.mxu0 0.0
        %8477 = vmatpush1.msra.mxu0 %v8074
        %8478 = vmatprep.subr.mxu0 0.0
        %8479 = vmatpush1.msra.mxu0 %v8075
        %8480 = vmatprep.subr.mxu0 0.0
        %8481 = vmatpush1.msra.mxu0 %v8076
        %8482 = vmatprep.subr.mxu0 0.0
        %8483 = vmatpush1.msra.mxu0 %v8077
        %8484 = vmatprep.subr.mxu0 0.0
        %8485 = vmatpush1.msra.mxu0 %v8078
        %8486 = vmatprep.subr.mxu0 0.0
        %8487 = vmatpush1.msra.mxu0 %v8079
        %8488 = vmatprep.subr.mxu0 0.0
        %8489 = vmatpush1.msra.mxu0 %v8080
        %8490 = vmatprep.mubr.f32.mxu0 %v7944
        %8491 = vmatmul.mubr.f32.gmra.mrb[0].mxu0 %v7943
        %v8492 = vpop.f32.mrb[0].mxu0
        %v8493 = vadd.f32 %v8423, %v8492
        %v8494 = vpop.f32.mrb[0].mxu0
        %8495 = vdwg.mxu0
        %8496 = vmatprep.subr.mxu0 0.0
        %8497 = vmatpush1.msra.mxu0 %v8081
        %8498 = vmatprep.subr.mxu0 0.0
        %8499 = vmatpush1.msra.mxu0 %v8082
        %8500 = vmatprep.subr.mxu0 0.0
        %8501 = vmatpush1.msra.mxu0 %v8083
        %8502 = vmatprep.subr.mxu0 0.0
        %8503 = vmatpush1.msra.mxu0 %v8084
        %8504 = vmatprep.subr.mxu0 0.0
        %8505 = vmatpush1.msra.mxu0 %v8085
        %8506 = vmatprep.subr.mxu0 0.0
        %8507 = vmatpush1.msra.mxu0 %v8086
        %8508 = vmatprep.subr.mxu0 0.0
        %8509 = vmatpush1.msra.mxu0 %v8087
        %8510 = vmatprep.subr.mxu0 0.0
        %8511 = vmatpush1.msra.mxu0 %v8088
        %8512 = vmatprep.subr.mxu0 0.0
        %8513 = vmatpush1.msra.mxu0 %v8089
        %8514 = vmatprep.subr.mxu0 0.0
        %8515 = vmatpush1.msra.mxu0 %v8090
        %8516 = vmatprep.subr.mxu0 0.0
        %8517 = vmatpush1.msra.mxu0 %v8091
        %8518 = vmatprep.subr.mxu0 0.0
        %8519 = vmatpush1.msra.mxu0 %v8092
        %8520 = vmatprep.subr.mxu0 0.0
        %8521 = vmatpush1.msra.mxu0 %v8093
        %8522 = vmatprep.subr.mxu0 0.0
        %8523 = vmatpush1.msra.mxu0 %v8094
        %8524 = vmatprep.subr.mxu0 0.0
        %8525 = vmatpush1.msra.mxu0 %v8095
        %8526 = vmatprep.subr.mxu0 0.0
        %8527 = vmatpush1.msra.mxu0 %v8096
        %8528 = vmatprep.subr.mxu0 0.0
        %8529 = vmatpush1.msra.mxu0 %v8097
        %8530 = vmatprep.subr.mxu0 0.0
        %8531 = vmatpush1.msra.mxu0 %v8098
        %8532 = vmatprep.subr.mxu0 0.0
        %8533 = vmatpush1.msra.mxu0 %v8099
        %8534 = vmatprep.subr.mxu0 0.0
        %8535 = vmatpush1.msra.mxu0 %v8100
        %8536 = vmatprep.subr.mxu0 0.0
        %8537 = vmatpush1.msra.mxu0 %v8101
        %8538 = vmatprep.subr.mxu0 0.0
        %8539 = vmatpush1.msra.mxu0 %v8102
        %8540 = vmatprep.subr.mxu0 0.0
        %8541 = vmatpush1.msra.mxu0 %v8103
        %8542 = vmatprep.subr.mxu0 0.0
        %8543 = vmatpush1.msra.mxu0 %v8104
        %8544 = vmatprep.subr.mxu0 0.0
        %8545 = vmatpush1.msra.mxu0 %v8105
        %8546 = vmatprep.subr.mxu0 0.0
        %8547 = vmatpush1.msra.mxu0 %v8106
        %8548 = vmatprep.subr.mxu0 0.0
        %8549 = vmatpush1.msra.mxu0 %v8107
        %8550 = vmatprep.subr.mxu0 0.0
        %8551 = vmatpush1.msra.mxu0 %v8108
        %8552 = vmatprep.subr.mxu0 0.0
        %8553 = vmatpush1.msra.mxu0 %v8109
        %8554 = vmatprep.subr.mxu0 0.0
        %8555 = vmatpush1.msra.mxu0 %v8110
        %8556 = vmatprep.subr.mxu0 0.0
        %8557 = vmatpush1.msra.mxu0 %v8111
        %8558 = vmatprep.subr.mxu0 0.0
        %8559 = vmatpush1.msra.mxu0 %v8112
        %8560 = vmatprep.mubr.f32.mxu0 %v7946
        %8561 = vmatmul.mubr.f32.gmra.mrb[0].mxu0 %v7945
        %v8562 = vpop.f32.mrb[0].mxu0
        %v8563 = vadd.f32 %v8493, %v8562
        %v8564 = vpop.f32.mrb[0].mxu0
        %8565 = vdwg.mxu0
        %8566 = vmatprep.subr.mxu0 0.0
        %8567 = vmatpush1.msra.mxu0 %v8113
        %8568 = vmatprep.subr.mxu0 0.0
        %8569 = vmatpush1.msra.mxu0 %v8114
        %8570 = vmatprep.subr.mxu0 0.0
        %8571 = vmatpush1.msra.mxu0 %v8115
        %8572 = vmatprep.subr.mxu0 0.0
        %8573 = vmatpush1.msra.mxu0 %v8116
        %8574 = vmatprep.subr.mxu0 0.0
        %8575 = vmatpush1.msra.mxu0 %v8117
        %8576 = vmatprep.subr.mxu0 0.0
        %8577 = vmatpush1.msra.mxu0 %v8118
        %8578 = vmatprep.subr.mxu0 0.0
        %8579 = vmatpush1.msra.mxu0 %v8119
        %8580 = vmatprep.subr.mxu0 0.0
        %8581 = vmatpush1.msra.mxu0 %v8120
        %8582 = vmatprep.subr.mxu0 0.0
        %8583 = vmatpush1.msra.mxu0 %v8121
        %8584 = vmatprep.subr.mxu0 0.0
        %8585 = vmatpush1.msra.mxu0 %v8122
        %8586 = vmatprep.subr.mxu0 0.0
        %8587 = vmatpush1.msra.mxu0 %v8123
        %8588 = vmatprep.subr.mxu0 0.0
        %8589 = vmatpush1.msra.mxu0 %v8124
        %8590 = vmatprep.subr.mxu0 0.0
        %8591 = vmatpush1.msra.mxu0 %v8125
        %8592 = vmatprep.subr.mxu0 0.0
        %8593 = vmatpush1.msra.mxu0 %v8126
        %8594 = vmatprep.subr.mxu0 0.0
        %8595 = vmatpush1.msra.mxu0 %v8127
        %8596 = vmatprep.subr.mxu0 0.0
        %8597 = vmatpush1.msra.mxu0 %v8128
        %8598 = vmatprep.subr.mxu0 0.0
        %8599 = vmatpush1.msra.mxu0 %v8129
        %8600 = vmatprep.subr.mxu0 0.0
        %8601 = vmatpush1.msra.mxu0 %v8130
        %8602 = vmatprep.subr.mxu0 0.0
        %8603 = vmatpush1.msra.mxu0 %v8131
        %8604 = vmatprep.subr.mxu0 0.0
        %8605 = vmatpush1.msra.mxu0 %v8132
        %8606 = vmatprep.subr.mxu0 0.0
        %8607 = vmatpush1.msra.mxu0 %v8133
        %8608 = vmatprep.subr.mxu0 0.0
        %8609 = vmatpush1.msra.mxu0 %v8134
        %8610 = vmatprep.subr.mxu0 0.0
        %8611 = vmatpush1.msra.mxu0 %v8135
        %8612 = vmatprep.subr.mxu0 0.0
        %8613 = vmatpush1.msra.mxu0 %v8136
        %8614 = vmatprep.subr.mxu0 0.0
        %8615 = vmatpush1.msra.mxu0 %v8137
        %8616 = vmatprep.subr.mxu0 0.0
        %8617 = vmatpush1.msra.mxu0 %v8138
        %8618 = vmatprep.subr.mxu0 0.0
        %8619 = vmatpush1.msra.mxu0 %v8139
        %8620 = vmatprep.subr.mxu0 0.0
        %8621 = vmatpush1.msra.mxu0 %v8140
        %8622 = vmatprep.subr.mxu0 0.0
        %8623 = vmatpush1.msra.mxu0 %v8141
        %8624 = vmatprep.subr.mxu0 0.0
        %8625 = vmatpush1.msra.mxu0 %v8142
        %8626 = vmatprep.subr.mxu0 0.0
        %8627 = vmatpush1.msra.mxu0 %v8143
        %8628 = vmatprep.subr.mxu0 0.0
        %8629 = vmatpush1.msra.mxu0 %v8144
        %8630 = vmatprep.mubr.f32.mxu0 %v7948
        %8631 = vmatmul.mubr.f32.gmra.mrb[0].mxu0 %v7947
        %v8632 = vpop.f32.mrb[0].mxu0
        %v8633 = vadd.f32 %v8563, %v8632
        %v8634 = vpop.f32.mrb[0].mxu0
        %8635 = vdwg.mxu0
        %8636 = vmatprep.subr.mxu0 0.0
        %8637 = vmatpush1.msra.mxu0 %v8145
        %8638 = vmatprep.subr.mxu0 0.0
        %8639 = vmatpush1.msra.mxu0 %v8146
        %8640 = vmatprep.subr.mxu0 0.0
        %8641 = vmatpush1.msra.mxu0 %v8147
        %8642 = vmatprep.subr.mxu0 0.0
        %8643 = vmatpush1.msra.mxu0 %v8148
        %8644 = vmatprep.subr.mxu0 0.0
        %8645 = vmatpush1.msra.mxu0 %v8149
        %8646 = vmatprep.subr.mxu0 0.0
        %8647 = vmatpush1.msra.mxu0 %v8150
        %8648 = vmatprep.subr.mxu0 0.0
        %8649 = vmatpush1.msra.mxu0 %v8151
        %8650 = vmatprep.subr.mxu0 0.0
        %8651 = vmatpush1.msra.mxu0 %v8152
        %8652 = vmatprep.subr.mxu0 0.0
        %8653 = vmatpush1.msra.mxu0 %v8153
        %8654 = vmatprep.subr.mxu0 0.0
        %8655 = vmatpush1.msra.mxu0 %v8154
        %8656 = vmatprep.subr.mxu0 0.0
        %8657 = vmatpush1.msra.mxu0 %v8155
        %8658 = vmatprep.subr.mxu0 0.0
        %8659 = vmatpush1.msra.mxu0 %v8156
        %8660 = vmatprep.subr.mxu0 0.0
        %8661 = vmatpush1.msra.mxu0 %v8157
        %8662 = vmatprep.subr.mxu0 0.0
        %8663 = vmatpush1.msra.mxu0 %v8158
        %8664 = vmatprep.subr.mxu0 0.0
        %8665 = vmatpush1.msra.mxu0 %v8159
        %8666 = vmatprep.subr.mxu0 0.0
        %8667 = vmatpush1.msra.mxu0 %v8160
        %8668 = vmatprep.subr.mxu0 0.0
        %8669 = vmatpush1.msra.mxu0 %v8161
        %8670 = vmatprep.subr.mxu0 0.0
        %8671 = vmatpush1.msra.mxu0 %v8162
        %8672 = vmatprep.subr.mxu0 0.0
        %8673 = vmatpush1.msra.mxu0 %v8163
        %8674 = vmatprep.subr.mxu0 0.0
        %8675 = vmatpush1.msra.mxu0 %v8164
        %8676 = vmatprep.subr.mxu0 0.0
        %8677 = vmatpush1.msra.mxu0 %v8165
        %8678 = vmatprep.subr.mxu0 0.0
        %8679 = vmatpush1.msra.mxu0 %v8166
        %8680 = vmatprep.subr.mxu0 0.0
        %8681 = vmatpush1.msra.mxu0 %v8167
        %8682 = vmatprep.subr.mxu0 0.0
        %8683 = vmatpush1.msra.mxu0 %v8168
        %8684 = vmatprep.subr.mxu0 0.0
        %8685 = vmatpush1.msra.mxu0 %v8169
        %8686 = vmatprep.subr.mxu0 0.0
        %8687 = vmatpush1.msra.mxu0 %v8170
        %8688 = vmatprep.subr.mxu0 0.0
        %8689 = vmatpush1.msra.mxu0 %v8171
        %8690 = vmatprep.subr.mxu0 0.0
        %8691 = vmatpush1.msra.mxu0 %v8172
        %8692 = vmatprep.subr.mxu0 0.0
        %8693 = vmatpush1.msra.mxu0 %v8173
        %8694 = vmatprep.subr.mxu0 0.0
        %8695 = vmatpush1.msra.mxu0 %v8174
        %8696 = vmatprep.subr.mxu0 0.0
        %8697 = vmatpush1.msra.mxu0 %v8175
        %8698 = vmatprep.subr.mxu0 0.0
        %8699 = vmatpush1.msra.mxu0 %v8176
        %8700 = vmatprep.mubr.f32.mxu0 %v7950
        %8701 = vmatmul.mubr.f32.gmra.mrb[0].mxu0 %v7949
        %v8702 = vpop.f32.mrb[0].mxu0
        %v8703 = vadd.f32 %v8633, %v8702
        %v8704 = vpop.f32.mrb[0].mxu0
        %8705 = vdwg.mxu0
        %8706 = vmatprep.subr.mxu0 0.0
        %8707 = vmatpush1.msra.mxu0 %v8177
        %8708 = vmatprep.subr.mxu0 0.0
        %8709 = vmatpush1.msra.mxu0 %v8178
        %8710 = vmatprep.subr.mxu0 0.0
        %8711 = vmatpush1.msra.mxu0 %v8179
        %8712 = vmatprep.subr.mxu0 0.0
        %8713 = vmatpush1.msra.mxu0 %v8180
        %8714 = vmatprep.subr.mxu0 0.0
        %8715 = vmatpush1.msra.mxu0 %v8181
        %8716 = vmatprep.subr.mxu0 0.0
        %8717 = vmatpush1.msra.mxu0 %v8182
        %8718 = vmatprep.subr.mxu0 0.0
        %8719 = vmatpush1.msra.mxu0 %v8183
        %8720 = vmatprep.subr.mxu0 0.0
        %8721 = vmatpush1.msra.mxu0 %v8184
        %8722 = vmatprep.subr.mxu0 0.0
        %8723 = vmatpush1.msra.mxu0 %v8185
        %8724 = vmatprep.subr.mxu0 0.0
        %8725 = vmatpush1.msra.mxu0 %v8186
        %8726 = vmatprep.subr.mxu0 0.0
        %8727 = vmatpush1.msra.mxu0 %v8187
        %8728 = vmatprep.subr.mxu0 0.0
        %8729 = vmatpush1.msra.mxu0 %v8188
        %8730 = vmatprep.subr.mxu0 0.0
        %8731 = vmatpush1.msra.mxu0 %v8189
        %8732 = vmatprep.subr.mxu0 0.0
        %8733 = vmatpush1.msra.mxu0 %v8190
        %8734 = vmatprep.subr.mxu0 0.0
        %8735 = vmatpush1.msra.mxu0 %v8191
        %8736 = vmatprep.subr.mxu0 0.0
        %8737 = vmatpush1.msra.mxu0 %v8192
        %8738 = vmatprep.subr.mxu0 0.0
        %8739 = vmatpush1.msra.mxu0 %v8193
        %8740 = vmatprep.subr.mxu0 0.0
        %8741 = vmatpush1.msra.mxu0 %v8194
        %8742 = vmatprep.subr.mxu0 0.0
        %8743 = vmatpush1.msra.mxu0 %v8195
        %8744 = vmatprep.subr.mxu0 0.0
        %8745 = vmatpush1.msra.mxu0 %v8196
        %8746 = vmatprep.subr.mxu0 0.0
        %8747 = vmatpush1.msra.mxu0 %v8197
        %8748 = vmatprep.subr.mxu0 0.0
        %8749 = vmatpush1.msra.mxu0 %v8198
        %8750 = vmatprep.subr.mxu0 0.0
        %8751 = vmatpush1.msra.mxu0 %v8199
        %8752 = vmatprep.subr.mxu0 0.0
        %8753 = vmatpush1.msra.mxu0 %v8200
        %8754 = vmatprep.subr.mxu0 0.0
        %8755 = vmatpush1.msra.mxu0 %v8201
        %8756 = vmatprep.subr.mxu0 0.0
        %8757 = vmatpush1.msra.mxu0 %v8202
        %8758 = vmatprep.subr.mxu0 0.0
        %8759 = vmatpush1.msra.mxu0 %v8203
        %8760 = vmatprep.subr.mxu0 0.0
        %8761 = vmatpush1.msra.mxu0 %v8204
        %8762 = vmatprep.subr.mxu0 0.0
        %8763 = vmatpush1.msra.mxu0 %v8205
        %8764 = vmatprep.subr.mxu0 0.0
        %8765 = vmatpush1.msra.mxu0 %v8206
        %8766 = vmatprep.subr.mxu0 0.0
        %8767 = vmatpush1.msra.mxu0 %v8207
        %8768 = vmatprep.subr.mxu0 0.0
        %8769 = vmatpush1.msra.mxu0 %v8208
        %8770 = vmatprep.mubr.f32.mxu0 %v7952
        %8771 = vmatmul.mubr.f32.gmra.mrb[0].mxu0 %v7951
        %v8772 = vpop.f32.mrb[0].mxu0
        %v8773 = vadd.f32 %v8703, %v8772
        %v8774 = vpop.f32.mrb[0].mxu0
        %8775 = vdwg.mxu0
        %v8776 = vmax.f32 %v8773, 0.0
        %v8777 = vld [vmem:[%s11] sm:$0xff]
        %v8778 = vld [vmem:[%s11 + $0x8] sm:$0xff]
        %v8779 = vld [vmem:[%s11 + $0x10] sm:$0xff]
        %v8780 = vld [vmem:[%s11 + $0x18] sm:$0xff]
        %v8781 = vld [vmem:[%s11 + $0x20] sm:$0xff]
        %v8782 = vld [vmem:[%s11 + $0x28] sm:$0xff]
        %v8783 = vld [vmem:[%s11 + $0x30] sm:$0xff]
        %v8784 = vld [vmem:[%s11 + $0x38] sm:$0xff]
        %v8785 = vld [vmem:[%s11 + $0x40] sm:$0xff]
        %v8786 = vld [vmem:[%s11 + $0x48] sm:$0xff]
        %v8787 = vld [vmem:[%s11 + $0x50] sm:$0xff]
        %v8788 = vld [vmem:[%s11 + $0x58] sm:$0xff]
        %v8789 = vld [vmem:[%s11 + $0x60] sm:$0xff]
        %v8790 = vld [vmem:[%s11 + $0x68] sm:$0xff]
        %v8791 = vld [vmem:[%s11 + $0x70] sm:$0xff]
        %v8792 = vld [vmem:[%s11 + $0x78] sm:$0xff]
        %v8793 = vld [vmem:[%s12] sm:$0x1]
        %v8795 = vlaneseq
        %v8796 = vshrl.u32 %v8795, 7
        %v8797 = vsub.s32 0, %v8796
        %v8798 = vrot.slane %v8793, %v8797
        %8800 = vmatprep.subr.mxu0 0.0
        %8801 = vmatpush1.msra.mxu0 %v8777
        %8802 = vmatprep.subr.mxu0 0.0
        %8803 = vmatpush1.msra.mxu0 %v8778
        %8804 = vmatprep.subr.mxu0 0.0
        %8805 = vmatpush1.msra.mxu0 %v8779
        %8806 = vmatprep.subr.mxu0 0.0
        %8807 = vmatpush1.msra.mxu0 %v8780
        %8808 = vmatprep.subr.mxu0 0.0
        %8809 = vmatpush1.msra.mxu0 %v8781
        %8810 = vmatprep.subr.mxu0 0.0
        %8811 = vmatpush1.msra.mxu0 %v8782
        %8812 = vmatprep.subr.mxu0 0.0
        %8813 = vmatpush1.msra.mxu0 %v8783
        %8814 = vmatprep.subr.mxu0 0.0
        %8815 = vmatpush1.msra.mxu0 %v8784
        %8816 = vmatprep.subr.mxu0 0.0
        %8817 = vmatpush1.msra.mxu0 %v8785
        %8818 = vmatprep.subr.mxu0 0.0
        %8819 = vmatpush1.msra.mxu0 %v8786
        %8820 = vmatprep.subr.mxu0 0.0
        %8821 = vmatpush1.msra.mxu0 %v8787
        %8822 = vmatprep.subr.mxu0 0.0
        %8823 = vmatpush1.msra.mxu0 %v8788
        %8824 = vmatprep.subr.mxu0 0.0
        %8825 = vmatpush1.msra.mxu0 %v8789
        %8826 = vmatprep.subr.mxu0 0.0
        %8827 = vmatpush1.msra.mxu0 %v8790
        %8828 = vmatprep.subr.mxu0 0.0
        %8829 = vmatpush1.msra.mxu0 %v8791
        %8830 = vmatprep.subr.mxu0 0.0
        %8831 = vmatpush1.msra.mxu0 %v8792
        %8832 = vmatprep.subr.mxu0 0.0
        %8833 = vmatpush1.msra.mxu0 0.0
        %8834 = vmatprep.subr.mxu0 0.0
        %8835 = vmatpush1.msra.mxu0 0.0
        %8836 = vmatprep.subr.mxu0 0.0
        %8837 = vmatpush1.msra.mxu0 0.0
        %8838 = vmatprep.subr.mxu0 0.0
        %8839 = vmatpush1.msra.mxu0 0.0
        %8840 = vmatprep.subr.mxu0 0.0
        %8841 = vmatpush1.msra.mxu0 0.0
        %8842 = vmatprep.subr.mxu0 0.0
        %8843 = vmatpush1.msra.mxu0 0.0
        %8844 = vmatprep.subr.mxu0 0.0
        %8845 = vmatpush1.msra.mxu0 0.0
        %8846 = vmatprep.subr.mxu0 0.0
        %8847 = vmatpush1.msra.mxu0 0.0
        %8848 = vmatprep.subr.mxu0 0.0
        %8849 = vmatpush1.msra.mxu0 0.0
        %8850 = vmatprep.subr.mxu0 0.0
        %8851 = vmatpush1.msra.mxu0 0.0
        %8852 = vmatprep.subr.mxu0 0.0
        %8853 = vmatpush1.msra.mxu0 0.0
        %8854 = vmatprep.subr.mxu0 0.0
        %8855 = vmatpush1.msra.mxu0 0.0
        %8856 = vmatprep.subr.mxu0 0.0
        %8857 = vmatpush1.msra.mxu0 0.0
        %8858 = vmatprep.subr.mxu0 0.0
        %8859 = vmatpush1.msra.mxu0 0.0
        %8860 = vmatprep.subr.mxu0 0.0
        %8861 = vmatpush1.msra.mxu0 0.0
        %8862 = vmatprep.subr.mxu0 0.0
        %8863 = vmatpush1.msra.mxu0 0.0
        %8864 = vmatprep.mubr.f32.mxu0 0.0
        %8865 = vmatmul.mubr.f32.gmra.mrb[0].mxu0 %v8776
        %v8866 = vpop.f32.mrb[0].mxu0
        %v8867 = vadd.f32 %v8798, %v8866
        %v8868 = vpop.f32.mrb[0].mxu0
        %8869 = vdwg.mxu0
        %8870 = vst [vmem:[%s604] sm:$0xff] %v8867
        %s8871 = sand.u32 %s313, 1
        %s8872 = scalar_lea.sflag [#allocation4], %s8871
        %s8873 = sand.u32 %s313, 1
        %s8874 = smul.addr %s8873, 8
        %s8875 = scalar_lea.vmem [#allocation3], %s8874
        // Predicated region
        $region111: #{cifar10nn_forward.1} parent=105 // pred_check
          %p8876 = pneg %p323
        $region112: #{cifar10nn_forward.1} parent=105 // pred_check_branch
          %8878 = sbr.rel (%p8876) target = $region114
        $region113: #{cifar10nn_forward.1} parent=105 // pred_region
          %s8880 = ssub.s32 128, 128
          %8881 = vsyncadd %s8872, %s8880
          %s8882 = smul.addr %s27, 128
          %s8883 = scalar_lea.hbm %s13, %s8882
          %s8885 = sshll.u32 %s8875, 4
          %s8886 = int_to_ptr.vmem [resolvable:$true] %s8885
          %8888 = dma.vmem_to_hbm [thread:$0]  %s8886, 128, %s8883, %s8872
        $region114: #{cifar10nn_forward.1} parent=105 // pred_fallthru
          _
      $region106: #{cifar10nn_forward.1} parent=5 // pred_fallthru
        _
      %p8889 = scmp.le.s32.totalorder 2, %s22
      // Predicated region
      $region115: #{cifar10nn_forward.1} parent=5 // pred_check
        %p8890 = pneg %p8889
      $region116: #{cifar10nn_forward.1} parent=5 // pred_check_branch
        %8892 = sbr.rel (%p8890) target = $region118
      $region117: #{cifar10nn_forward.1} parent=5 // pred_region
        %s8893 = ssub.s32 %s22, 2
        // Predicated region
        $region119: #{cifar10nn_forward.1} parent=117 // pred_check
          %p8894 = pneg %p329
        $region120: #{cifar10nn_forward.1} parent=117 // pred_check_branch
          %8896 = sbr.rel (%p8894) target = $region122
        $region121: #{cifar10nn_forward.1} parent=117 // pred_region
          %s8897 = sand.u32 %s314, 1
          %s8898 = scalar_lea.sflag [#allocation4], %s8897
          %s8899 = sand.u32 %s314, 1
          %s8900 = smul.addr %s8899, 8
          %s8901 = scalar_lea.vmem [#allocation3], %s8900
          %8902 = dma.done %s8898, 128
        $region122: #{cifar10nn_forward.1} parent=117 // pred_fallthru
          _
      $region118: #{cifar10nn_forward.1} parent=5 // pred_fallthru
        _
    $region6: #{cifar10nn_forward.1} parent=1 // loop_footer
      %s26 = sadd.s32 1, %s22
    $region7: #{cifar10nn_forward.1} parent=1 // loop_footer_branch
      %21 = sbr.rel target = $region3
    $region8: #{cifar10nn_forward.1} parent=1 // loop_exit
      _
    %8903 = vsyncpa [#allocation4], 1
    %s8904 = scalar_lea.sflag [#allocation4], 1
    %8905 = vsyncpa %s8904, 1

</llo_original>
